<compile_context>
chip_gen: v7x
topology: tpu7x:2x2x1
jax: 0.10.0
libtpu: 0.0.40
codegen_flags: <defaults>
</compile_context>

<pallas_src>
import functools

import jax
import jax.numpy as jnp
from jax import lax
from jax.experimental import pallas as pl
from jax.experimental.pallas import tpu as pltpu

# ---- model configuration (small demo shapes) --------------------------------
BATCH      = 2
N_MELS     = 32           # spectrogram height
N_FRAMES   = 32           # spectrogram width
C_STEM     = 64           # stem conv width
C_BOTTLE   = 128          # bottleneck inner width (1x1 + grouped 3x3)
GROUPS     = 4            # ResNeXt cardinality
C_OUT      = 256          # block output width (= relation d_in)
C_INTER    = 128          # relation theta/phi/g width (C_OUT // 2)
FC_HIDDEN  = 128
NB_CLASSES = 10

_VMEM_LIMIT = 32 * 1024 * 1024   # explicit budget: safe on v5e/v6e/v7x


# ------------------------------------------------------------------------------
# 3x3 "same" conv (stride 1), optional groups, via in-kernel tap accumulation
# ------------------------------------------------------------------------------
def _conv3x3_kernel(x_ref, w_ref, b_ref, o_ref, acc_ref, *, w_out, act, use_mxu):
    """One (group, batch, output-row) tile; grid axis 3 iterates the 3 ky taps.

    x_ref  : (1, 1, W+2, Cg)   one padded input row (bf16)
    w_ref  : (1, 3, Cg, Cog)   the 3 kx taps for the current ky tap (bf16)
    b_ref  : (1, 1, Cog)       f32 bias (folded BN)
    o_ref  : (1, 1, W, Cog)    bf16 output row
    acc_ref: (W, Cog)          f32 accumulator scratch
    """
    ky = pl.program_id(3)

    @pl.when(ky == 0)
    def _init():
        acc_ref[...] = jnp.zeros_like(acc_ref)

    row = x_ref[0, 0]                                   # (W+2, Cg) bf16
    for kx in range(3):                                 # in-kernel kx taps
        win = row[kx:kx + w_out, :]                     # (W, Cg)
        tap = w_ref[0, kx]                              # (Cg, Cog)
        if use_mxu:
            acc_ref[...] += jnp.dot(win, tap, preferred_element_type=jnp.float32)
        else:                                           # Cg == 1: rank-1 VPU update
            acc_ref[...] += win.astype(jnp.float32) * tap.astype(jnp.float32)

    @pl.when(ky == 2)
    def _finalize():
        r = acc_ref[...] + b_ref[0].astype(jnp.float32)
        if act == "relu":
            r = jnp.maximum(r, 0.0)
        o_ref[0, 0] = r.astype(o_ref.dtype)


def conv3x3(x, w_grouped, b_grouped, *, groups=1, act="relu"):
    """SAME 3x3 conv, stride 1.

    x         : [B, H, W, Cin]  bf16 NHWC
    w_grouped : [groups*3, 3, Cin//groups, Cout//groups]  bf16
                (group-major; matches PyTorch grouped-conv channel partition:
                 group g covers in-ch [g*Cg,(g+1)*Cg), out-ch [g*Cog,(g+1)*Cog))
    b_grouped : [groups, 1, Cout//groups]  f32
    returns   : [B, H, W, Cout]  bf16
    """
    B, H, W, Cin = x.shape
    G = groups
    Cg = Cin // G
    Cog = w_grouped.shape[-1]

    xp = jnp.pad(x, ((0, 0), (1, 1), (1, 1), (0, 0)))   # 1-px halo only (no im2col)
    if G > 1:
        # group-major input layout: [G*B, H+2, W+2, Cg]  (layout plumbing)
        xp = (xp.reshape(B, H + 2, W + 2, G, Cg)
                .transpose(3, 0, 1, 2, 4)
                .reshape(G * B, H + 2, W + 2, Cg))

    out = pl.pallas_call(
        functools.partial(_conv3x3_kernel, w_out=W, act=act, use_mxu=Cg > 1),
        out_shape=jax.ShapeDtypeStruct((G * B, H, W, Cog), jnp.bfloat16),
        grid=(G, B, H, 3),                               # ky reduction axis last
        in_specs=[
            pl.BlockSpec((1, 1, W + 2, Cg),
                         lambda g, b, h, ky: (g * B + b, h + ky, 0, 0)),
            pl.BlockSpec((1, 3, Cg, Cog),
                         lambda g, b, h, ky: (g * 3 + ky, 0, 0, 0)),
            pl.BlockSpec((1, 1, Cog),
                         lambda g, b, h, ky: (g, 0, 0)),
        ],
        out_specs=pl.BlockSpec((1, 1, W, Cog),
                               lambda g, b, h, ky: (g * B + b, h, 0, 0)),
        scratch_shapes=[pltpu.VMEM((W, Cog), jnp.float32)],
        compiler_params=pltpu.CompilerParams(
            dimension_semantics=("parallel", "parallel", "parallel", "arbitrary"),
            vmem_limit_bytes=_VMEM_LIMIT),
    )(xp, w_grouped, b_grouped)

    if G > 1:
        out = (out.reshape(G, B, H, W, Cog)
                  .transpose(1, 2, 3, 0, 4)
                  .reshape(B, H, W, G * Cog))
    return out


# ------------------------------------------------------------------------------
# 2x2 max pool, stride 2 (lane-dense view: trailing dim = 2*C)
# ------------------------------------------------------------------------------
def _maxpool2x2_kernel(x_ref, o_ref, *, c):
    x = x_ref[...]                                       # (tile, 2, OW, 2*C)
    hm = jnp.maximum(x[:, 0], x[:, 1])                   # pool the H window (VPU)
    o_ref[...] = jnp.maximum(hm[..., :c], hm[..., c:])   # pool the W window (lane halves)


def maxpool2x2(x):
    """x: [B, H, W, C] bf16, H and W even -> [B, H//2, W//2, C] bf16."""
    B, H, W, C = x.shape
    OH, OW = H // 2, W // 2
    rows = B * OH
    xv = x.reshape(rows, 2, OW, 2 * C)                   # contiguous NHWC view
    tile = 8 if rows % 8 == 0 else rows
    out = pl.pallas_call(
        functools.partial(_maxpool2x2_kernel, c=C),
        out_shape=jax.ShapeDtypeStruct((rows, OW, C), jnp.bfloat16),
        grid=(rows // tile,),
        in_specs=[pl.BlockSpec((tile, 2, OW, 2 * C), lambda i: (i, 0, 0, 0))],
        out_specs=pl.BlockSpec((tile, OW, C), lambda i: (i, 0, 0)),
        compiler_params=pltpu.CompilerParams(
            dimension_semantics=("parallel",), vmem_limit_bytes=_VMEM_LIMIT),
    )(xv)
    return out.reshape(B, OH, OW, C)


# ------------------------------------------------------------------------------
# fused matmul + bias (+ residual) + activation  (1x1 convs / shortcut)
# ------------------------------------------------------------------------------
def _mm_kernel(*refs, act, has_res):
    if has_res:
        a_ref, w_ref, b_ref, sc_ref, o_ref = refs
    else:
        a_ref, w_ref, b_ref, o_ref = refs
        sc_ref = None
    acc = jnp.dot(a_ref[...], w_ref[...], preferred_element_type=jnp.float32)
    acc = acc + b_ref[...]
    if sc_ref is not None:
        acc = acc + sc_ref[...].astype(jnp.float32)      # bf16 residual, upcast here
    if act == "relu":
        acc = jnp.maximum(acc, 0.0)
    o_ref[...] = acc.astype(o_ref.dtype)


def matmul_bias_act(a, w, b, shortcut=None, act="none", out_dtype=jnp.bfloat16):
    """act(a @ w + b [+ shortcut]); a/w/shortcut bf16, b f32 (1,N), out bf16."""
    M, K = a.shape
    N = w.shape[1]
    # prefer >=2 parallel row tiles (v7x has 2 TensorCores); tm divides M
    # exactly, so there is no pad / slice round-trip.
    tm = M
    for cand in (256, 512, 128):
        if M > cand and M % cand == 0:
            tm = cand
            break
    args = [a, w, b]
    in_specs = [
        pl.BlockSpec((tm, K), lambda i: (i, 0)),
        pl.BlockSpec((K, N), lambda i: (0, 0)),
        pl.BlockSpec((1, N), lambda i: (0, 0)),
    ]
    if shortcut is not None:
        args.append(shortcut)
        in_specs.append(pl.BlockSpec((tm, N), lambda i: (i, 0)))
    return pl.pallas_call(
        functools.partial(_mm_kernel, act=act, has_res=shortcut is not None),
        out_shape=jax.ShapeDtypeStruct((M, N), out_dtype),
        grid=(M // tm,),
        in_specs=in_specs,
        out_specs=pl.BlockSpec((tm, N), lambda i: (i, 0)),
        compiler_params=pltpu.CompilerParams(
            dimension_semantics=("parallel",), vmem_limit_bytes=_VMEM_LIMIT),
    )(*args)


# ------------------------------------------------------------------------------
# fused relation block (per-batch): theta/phi/g, scaled softmax, W_z, residual
# ------------------------------------------------------------------------------
def _relation_kernel(x_ref, wt_ref, wp_ref, wg_ref, wz_ref, o_ref, *, scale):
    x = x_ref[0]                                                        # (N, C) bf16
    theta = jnp.dot(x, wt_ref[...], preferred_element_type=jnp.float32)
    phi   = jnp.dot(x, wp_ref[...], preferred_element_type=jnp.float32)
    g     = jnp.dot(x, wg_ref[...], preferred_element_type=jnp.float32)
    # QK^T via dot_general (contract last dims) - no in-kernel transpose.
    s = lax.dot_general(theta.astype(jnp.bfloat16), phi.astype(jnp.bfloat16),
                        (((1,), (1,)), ((), ())),
                        preferred_element_type=jnp.float32) * scale      # (N, N)
    s = s - jnp.max(s, axis=-1, keepdims=True)
    p = jnp.exp(s)
    p = p * pl.reciprocal(jnp.sum(p, axis=-1, keepdims=True), approx=True)
    y = jnp.dot(p.astype(jnp.bfloat16), g.astype(jnp.bfloat16),
                preferred_element_type=jnp.float32)                      # (N, Ci)
    z = jnp.dot(y.astype(jnp.bfloat16), wz_ref[...],
                preferred_element_type=jnp.float32)                      # (N, C)
    o_ref[0] = (x.astype(jnp.float32) + z).astype(o_ref.dtype)           # residual


def relation_block(x, wt, wp, wg, wz):
    """x: [B, N, C] bf16 -> [B, N, C] bf16 (non-local relation + residual)."""
    B, N, C = x.shape
    Ci = wt.shape[1]
    return pl.pallas_call(
        functools.partial(_relation_kernel, scale=1.0 / float(Ci) ** 0.5),
        out_shape=jax.ShapeDtypeStruct((B, N, C), jnp.bfloat16),
        grid=(B,),
        in_specs=[
            pl.BlockSpec((1, N, C), lambda i: (i, 0, 0)),
            pl.BlockSpec((C, Ci), lambda i: (0, 0)),
            pl.BlockSpec((C, Ci), lambda i: (0, 0)),
            pl.BlockSpec((C, Ci), lambda i: (0, 0)),
            pl.BlockSpec((Ci, C), lambda i: (0, 0)),
        ],
        out_specs=pl.BlockSpec((1, N, C), lambda i: (i, 0, 0)),
        compiler_params=pltpu.CompilerParams(
            dimension_semantics=("parallel",), vmem_limit_bytes=_VMEM_LIMIT),
    )(x, wt, wp, wg, wz)


# ------------------------------------------------------------------------------
# fused head: adaptive_avg_pool2d((1,1)) + flatten + fc1(ReLU) + fc2
# ------------------------------------------------------------------------------
def _head_kernel(x_ref, w1_ref, b1_ref, w2_ref, b2_ref, o_ref, *, n_spatial):
    x = x_ref[...]                                                       # (B, N, C) bf16
    pooled = jnp.sum(x.astype(jnp.float32), axis=1) * (1.0 / n_spatial)  # true count
    h = jnp.dot(pooled.astype(jnp.bfloat16), w1_ref[...],
                preferred_element_type=jnp.float32) + b1_ref[...]
    h = jnp.maximum(h, 0.0)
    o_ref[...] = jnp.dot(h.astype(jnp.bfloat16), w2_ref[...],
                         preferred_element_type=jnp.float32) + b2_ref[...]


def head(x, w1, b1, w2, b2):
    """x: [B, N, C] bf16 -> logits [B, nb_classes] f32 (single tiny kernel)."""
    B, N, C = x.shape
    Hd = w1.shape[1]
    ncls = w2.shape[1]
    return pl.pallas_call(
        functools.partial(_head_kernel, n_spatial=N),
        out_shape=jax.ShapeDtypeStruct((B, ncls), jnp.float32),          # logits stay f32
        grid=(1,),
        in_specs=[
            pl.BlockSpec((B, N, C), lambda i: (0, 0, 0)),
            pl.BlockSpec((C, Hd), lambda i: (0, 0)),
            pl.BlockSpec((1, Hd), lambda i: (0, 0)),
            pl.BlockSpec((Hd, ncls), lambda i: (0, 0)),
            pl.BlockSpec((1, ncls), lambda i: (0, 0)),
        ],
        out_specs=pl.BlockSpec((B, ncls), lambda i: (0, 0)),
        compiler_params=pltpu.CompilerParams(vmem_limit_bytes=_VMEM_LIMIT),
    )(x, w1, b1, w2, b2)


# ------------------------------------------------------------------------------
# parameters (bf16 weights / pre-reshaped f32 biases, prepared ONCE)
# ------------------------------------------------------------------------------
def init_params(key):
    ks = list(jax.random.split(key, 20))

    def dense(k, kin, kout):
        w = jax.random.normal(k, (kin, kout), jnp.float32) / jnp.sqrt(float(kin))
        return w.astype(jnp.bfloat16)

    def bias(k, n, scale=0.01):
        return jax.random.normal(k, (1, n), jnp.float32) * scale

    def conv_w(k, groups, cg, cog):
        w = jax.random.normal(k, (groups, 3, 3, cg, cog), jnp.float32)
        w = w / jnp.sqrt(9.0 * cg)
        return w.astype(jnp.bfloat16).reshape(groups * 3, 3, cg, cog)

    def conv_b(k, groups, cog, scale=0.01):
        return jax.random.normal(k, (groups, 1, cog), jnp.float32) * scale

    p = {}
    p["stem_w"] = conv_w(ks[0], 1, 1, C_STEM)
    p["stem_b"] = conv_b(ks[1], 1, C_STEM)
    p["c1_w"] = dense(ks[2], C_STEM, C_BOTTLE)
    p["c1_b"] = bias(ks[3], C_BOTTLE)
    p["c2_w"] = conv_w(ks[4], GROUPS, C_BOTTLE // GROUPS, C_BOTTLE // GROUPS)
    p["c2_b"] = conv_b(ks[5], GROUPS, C_BOTTLE // GROUPS)
    p["c3_w"] = dense(ks[6], C_BOTTLE, C_OUT)
    p["c3_b"] = bias(ks[7], C_OUT)
    p["sc_w"] = dense(ks[8], C_STEM, C_OUT)
    p["sc_b"] = bias(ks[9], C_OUT)
    p["r_wt"] = dense(ks[10], C_OUT, C_INTER)
    p["r_wp"] = dense(ks[11], C_OUT, C_INTER)
    p["r_wg"] = dense(ks[12], C_OUT, C_INTER)
    p["r_wz"] = dense(ks[13], C_INTER, C_OUT)
    p["fc1_w"] = dense(ks[14], C_OUT, FC_HIDDEN)
    p["fc1_b"] = bias(ks[15], FC_HIDDEN)
    p["fc2_w"] = dense(ks[16], FC_HIDDEN, NB_CLASSES)
    p["fc2_b"] = bias(ks[17], NB_CLASSES)
    return p


# ------------------------------------------------------------------------------
# forward pass
# ------------------------------------------------------------------------------
def forward(params, spec):
    """spec: [B, 1, n_mels, n_frames] f32 (NCHW feature map, eval mode)."""
    x = jnp.transpose(spec, (0, 2, 3, 1)).astype(jnp.bfloat16)        # NHWC, bf16

    # --- stem: 3x3 conv (folded BN) + ReLU, then 2x2 max pool ----------------
    x = conv3x3(x, params["stem_w"], params["stem_b"], groups=1, act="relu")
    x = maxpool2x2(x)                                                  # [B, 16, 16, 64]

    # --- ResNeXt bottleneck: 1x1 -> grouped 3x3 -> 1x1, projection shortcut,
    #     residual add + ReLU fused into the last matmul epilogue -------------
    B, H, W, C = x.shape
    xf = x.reshape(B * H * W, C)
    y = matmul_bias_act(xf, params["c1_w"], params["c1_b"], act="relu")
    y = conv3x3(y.reshape(B, H, W, C_BOTTLE), params["c2_w"], params["c2_b"],
                groups=GROUPS, act="relu")
    sc = matmul_bias_act(xf, params["sc_w"], params["sc_b"], act="none")
    z = matmul_bias_act(y.reshape(B * H * W, C_BOTTLE), params["c3_w"],
                        params["c3_b"], shortcut=sc, act="relu")

    # --- relation block (theta/phi/g attention + W_z + residual) -------------
    xr = relation_block(z.reshape(B, H * W, C_OUT),
                        params["r_wt"], params["r_wp"], params["r_wg"],
                        params["r_wz"])

    # --- adaptive_avg_pool2d((1,1)) + flatten + fc layers (fused) ------------
    return head(xr, params["fc1_w"], params["fc1_b"],
                params["fc2_w"], params["fc2_b"])


if __name__ == "__main__":
    key = jax.random.PRNGKey(0)
    k_in, k_par = jax.random.split(key)
    spec = jax.random.normal(k_in, (BATCH, 1, N_MELS, N_FRAMES), jnp.float32)
    params = init_params(k_par)

    logits = jax.jit(forward)(params, spec)
    jax.block_until_ready(logits)
    assert logits.shape == (BATCH, NB_CLASSES)
    assert logits.dtype == jnp.float32
    print("KERNEL_OK")
</pallas_src>

<mosaic_0001>
module attributes {stable_mosaic.version = 11 : i64} {
  func.func @_conv3x3_kernel(%arg0: i32, %arg1: i32, %arg2: i32, %arg3: i32, %arg4: memref<1x1x34x1xbf16, #tpu.memory_space<vmem>>, %arg5: memref<1x3x1x64xbf16, #tpu.memory_space<vmem>>, %arg6: memref<1x1x64xf32, #tpu.memory_space<vmem>>, %arg7: memref<1x1x32x64xbf16, #tpu.memory_space<vmem>>, %arg8: memref<32x64xf32, #tpu.memory_space<vmem>>) attributes {dimension_semantics = [#tpu.dimension_semantics<parallel>, #tpu.dimension_semantics<parallel>, #tpu.dimension_semantics<parallel>, #tpu.dimension_semantics<arbitrary>], iteration_bounds = array<i64: 1, 2, 32, 3>, scalar_prefetch = 0 : i64, scratch_operands = 1 : i64, tpu.core_type = #tpu.core_type<tc>, window_params = [{transform_indices = @transform_0, window_bounds = array<i64: 1, 1, 34, 1>}, {transform_indices = @transform_1, window_bounds = array<i64: 1, 3, 1, 64>}, {transform_indices = @transform_2, window_bounds = array<i64: 1, 1, 64>}, {transform_indices = @transform_3, window_bounds = array<i64: 1, 1, 32, 64>}]} {
    %c0_i32 = arith.constant 0 : i32
    %0 = arith.cmpi eq, %arg3, %c0_i32 : i32
    %1 = arith.extui %0 : i1 to i32
    %c0_i32_0 = arith.constant 0 : i32
    %2 = arith.cmpi ne, %1, %c0_i32_0 : i32
    scf.if %2 {
      %cst = arith.constant 0.000000e+00 : f32
      %41 = vector.broadcast %cst : f32 to vector<32x64xf32>
      %c0_27 = arith.constant 0 : index
      %c0_28 = arith.constant 0 : index
      %42 = vector.load %arg8[%c0_27, %c0_28] : memref<32x64xf32, #tpu.memory_space<vmem>>, vector<32x64xf32>
      tpu.vector_store %arg8[%c0_27, %c0_28], %41 {strides = array<i32>} : memref<32x64xf32, #tpu.memory_space<vmem>>, vector<32x64xf32>,
    } else {
    }
    %c0 = arith.constant 0 : index
    %c0_1 = arith.constant 0 : index
    %c0_2 = arith.constant 0 : index
    %c0_3 = arith.constant 0 : index
    %3 = vector.load %arg4[%c0, %c0_1, %c0_2, %c0_3] : memref<1x1x34x1xbf16, #tpu.memory_space<vmem>>, vector<1x1x34x1xbf16>
    %4 = vector.shape_cast %3 : vector<1x1x34x1xbf16> to vector<34x1xbf16>
    %5 = vector.extract_strided_slice %4 {offsets = [0, 0], sizes = [32, 1], strides = [1, 1]} : vector<34x1xbf16> to vector<32x1xbf16>
    %c0_4 = arith.constant 0 : index
    %c0_5 = arith.constant 0 : index
    %c0_6 = arith.constant 0 : index
    %c0_7 = arith.constant 0 : index
    %6 = vector.load %arg5[%c0_4, %c0_5, %c0_6, %c0_7] : memref<1x3x1x64xbf16, #tpu.memory_space<vmem>>, vector<1x1x1x64xbf16>
    %7 = vector.shape_cast %6 : vector<1x1x1x64xbf16> to vector<1x64xbf16>
    %c0_8 = arith.constant 0 : index
    %c0_9 = arith.constant 0 : index
    %8 = vector.load %arg8[%c0_8, %c0_9] : memref<32x64xf32, #tpu.memory_space<vmem>>, vector<32x64xf32>
    %9 = arith.extf %5 : vector<32x1xbf16> to vector<32x1xf32>
    %10 = arith.extf %7 : vector<1x64xbf16> to vector<1x64xf32>
    %11 = vector.broadcast %9 : vector<32x1xf32> to vector<32x64xf32>
    %12 = vector.broadcast %10 : vector<1x64xf32> to vector<32x64xf32>
    %13 = arith.mulf %11, %12 : vector<32x64xf32>
    %14 = arith.addf %8, %13 : vector<32x64xf32>
    %c0_10 = arith.constant 0 : index
    %c0_11 = arith.constant 0 : index
    %15 = vector.load %arg8[%c0_10, %c0_11] : memref<32x64xf32, #tpu.memory_space<vmem>>, vector<32x64xf32>
    tpu.vector_store %arg8[%c0_10, %c0_11], %14 {strides = array<i32>} : memref<32x64xf32, #tpu.memory_space<vmem>>, vector<32x64xf32>,
    %16 = vector.extract_strided_slice %4 {offsets = [1, 0], sizes = [32, 1], strides = [1, 1]} : vector<34x1xbf16> to vector<32x1xbf16>
    %c0_12 = arith.constant 0 : index
    %c1 = arith.constant 1 : index
    %c0_13 = arith.constant 0 : index
    %c0_14 = arith.constant 0 : index
    %17 = vector.load %arg5[%c0_12, %c1, %c0_13, %c0_14] : memref<1x3x1x64xbf16, #tpu.memory_space<vmem>>, vector<1x1x1x64xbf16>
    %18 = vector.shape_cast %17 : vector<1x1x1x64xbf16> to vector<1x64xbf16>
    %c0_15 = arith.constant 0 : index
    %c0_16 = arith.constant 0 : index
    %19 = vector.load %arg8[%c0_15, %c0_16] : memref<32x64xf32, #tpu.memory_space<vmem>>, vector<32x64xf32>
    %20 = arith.extf %16 : vector<32x1xbf16> to vector<32x1xf32>
    %21 = arith.extf %18 : vector<1x64xbf16> to vector<1x64xf32>
    %22 = vector.broadcast %20 : vector<32x1xf32> to vector<32x64xf32>
    %23 = vector.broadcast %21 : vector<1x64xf32> to vector<32x64xf32>
    %24 = arith.mulf %22, %23 : vector<32x64xf32>
    %25 = arith.addf %19, %24 : vector<32x64xf32>
    %c0_17 = arith.constant 0 : index
    %c0_18 = arith.constant 0 : index
    %26 = vector.load %arg8[%c0_17, %c0_18] : memref<32x64xf32, #tpu.memory_space<vmem>>, vector<32x64xf32>
    tpu.vector_store %arg8[%c0_17, %c0_18], %25 {strides = array<i32>} : memref<32x64xf32, #tpu.memory_space<vmem>>, vector<32x64xf32>,
    %27 = vector.extract_strided_slice %4 {offsets = [2, 0], sizes = [32, 1], strides = [1, 1]} : vector<34x1xbf16> to vector<32x1xbf16>
    %c0_19 = arith.constant 0 : index
    %c2 = arith.constant 2 : index
    %c0_20 = arith.constant 0 : index
    %c0_21 = arith.constant 0 : index
    %28 = vector.load %arg5[%c0_19, %c2, %c0_20, %c0_21] : memref<1x3x1x64xbf16, #tpu.memory_space<vmem>>, vector<1x1x1x64xbf16>
    %29 = vector.shape_cast %28 : vector<1x1x1x64xbf16> to vector<1x64xbf16>
    %c0_22 = arith.constant 0 : index
    %c0_23 = arith.constant 0 : index
    %30 = vector.load %arg8[%c0_22, %c0_23] : memref<32x64xf32, #tpu.memory_space<vmem>>, vector<32x64xf32>
    %31 = arith.extf %27 : vector<32x1xbf16> to vector<32x1xf32>
    %32 = arith.extf %29 : vector<1x64xbf16> to vector<1x64xf32>
    %33 = vector.broadcast %31 : vector<32x1xf32> to vector<32x64xf32>
    %34 = vector.broadcast %32 : vector<1x64xf32> to vector<32x64xf32>
    %35 = arith.mulf %33, %34 : vector<32x64xf32>
    %36 = arith.addf %30, %35 : vector<32x64xf32>
    %c0_24 = arith.constant 0 : index
    %c0_25 = arith.constant 0 : index
    %37 = vector.load %arg8[%c0_24, %c0_25] : memref<32x64xf32, #tpu.memory_space<vmem>>, vector<32x64xf32>
    tpu.vector_store %arg8[%c0_24, %c0_25], %36 {strides = array<i32>} : memref<32x64xf32, #tpu.memory_space<vmem>>, vector<32x64xf32>,
    %c2_i32 = arith.constant 2 : i32
    %38 = arith.cmpi eq, %arg3, %c2_i32 : i32
    %39 = arith.extui %38 : i1 to i32
    %c0_i32_26 = arith.constant 0 : i32
    %40 = arith.cmpi ne, %39, %c0_i32_26 : i32
    scf.if %40 {
      %c0_27 = arith.constant 0 : index
      %c0_28 = arith.constant 0 : index
      %41 = vector.load %arg8[%c0_27, %c0_28] : memref<32x64xf32, #tpu.memory_space<vmem>>, vector<32x64xf32>
      %c0_29 = arith.constant 0 : index
      %c0_30 = arith.constant 0 : index
      %c0_31 = arith.constant 0 : index
      %42 = vector.load %arg6[%c0_29, %c0_30, %c0_31] : memref<1x1x64xf32, #tpu.memory_space<vmem>>, vector<1x1x64xf32>
      %43 = vector.shape_cast %42 : vector<1x1x64xf32> to vector<1x64xf32>
      %44 = vector.broadcast %43 : vector<1x64xf32> to vector<32x64xf32>
      %45 = arith.addf %41, %44 : vector<32x64xf32>
      %cst = arith.constant 0.000000e+00 : f32
      %46 = vector.broadcast %cst : f32 to vector<32x64xf32>
      %47 = arith.maximumf %45, %46 : vector<32x64xf32>
      %48 = arith.truncf %47 : vector<32x64xf32> to vector<32x64xbf16>
      %c0_32 = arith.constant 0 : index
      %c0_33 = arith.constant 0 : index
      %c0_34 = arith.constant 0 : index
      %c0_35 = arith.constant 0 : index
      %49 = vector.load %arg7[%c0_32, %c0_33, %c0_34, %c0_35] : memref<1x1x32x64xbf16, #tpu.memory_space<vmem>>, vector<1x1x32x64xbf16>
      %50 = vector.shape_cast %49 : vector<1x1x32x64xbf16> to vector<32x64xbf16>
      %51 = vector.shape_cast %48 : vector<32x64xbf16> to vector<1x1x32x64xbf16>
      tpu.vector_store %arg7[%c0_32, %c0_33, %c0_34, %c0_35], %51 {strides = array<i32>} : memref<1x1x32x64xbf16, #tpu.memory_space<vmem>>, vector<1x1x32x64xbf16>,
    } else {
    }
    return
  }
  func.func @transform_0(%arg0: i32, %arg1: i32, %arg2: i32, %arg3: i32) -> (i32, i32, i32, i32) {
    %c2_i32 = arith.constant 2 : i32
    %0 = arith.muli %arg0, %c2_i32 : i32
    %1 = arith.addi %0, %arg1 : i32
    %2 = arith.addi %arg2, %arg3 : i32
    %c0_i32 = arith.constant 0 : i32
    %c0_i32_0 = arith.constant 0 : i32
    %c0_i32_1 = arith.constant 0 : i32
    return %1, %2, %c0_i32, %c0_i32_0 : i32, i32, i32, i32
  }
  func.func @transform_1(%arg0: i32, %arg1: i32, %arg2: i32, %arg3: i32) -> (i32, i32, i32, i32) {
    %c3_i32 = arith.constant 3 : i32
    %0 = arith.muli %arg0, %c3_i32 : i32
    %1 = arith.addi %0, %arg3 : i32
    %c0_i32 = arith.constant 0 : i32
    %c0_i32_0 = arith.constant 0 : i32
    %c0_i32_1 = arith.constant 0 : i32
    %c0_i32_2 = arith.constant 0 : i32
    return %1, %c0_i32, %c0_i32_0, %c0_i32_1 : i32, i32, i32, i32
  }
  func.func @transform_2(%arg0: i32, %arg1: i32, %arg2: i32, %arg3: i32) -> (i32, i32, i32) {
    %c0_i32 = arith.constant 0 : i32
    %c0_i32_0 = arith.constant 0 : i32
    %c0_i32_1 = arith.constant 0 : i32
    return %arg0, %c0_i32, %c0_i32_0 : i32, i32, i32
  }
  func.func @transform_3(%arg0: i32, %arg1: i32, %arg2: i32, %arg3: i32) -> (i32, i32, i32, i32) {
    %c2_i32 = arith.constant 2 : i32
    %0 = arith.muli %arg0, %c2_i32 : i32
    %1 = arith.addi %0, %arg1 : i32
    %c0_i32 = arith.constant 0 : i32
    %c0_i32_0 = arith.constant 0 : i32
    %c0_i32_1 = arith.constant 0 : i32
    return %1, %arg2, %c0_i32, %c0_i32_0 : i32, i32, i32, i32
  }
}

module attributes {stable_mosaic.version = 11 : i64} {
  func.func @_maxpool2x2_kernel(%arg0: i32, %arg1: memref<8x2x16x128xbf16, #tpu.memory_space<vmem>>, %arg2: memref<8x16x64xbf16, #tpu.memory_space<vmem>>) attributes {dimension_semantics = [#tpu.dimension_semantics<parallel>], iteration_bounds = array<i64: 4>, scalar_prefetch = 0 : i64, scratch_operands = 0 : i64, tpu.core_type = #tpu.core_type<tc>, window_params = [{transform_indices = @transform_0, window_bounds = array<i64: 8, 2, 16, 128>}, {transform_indices = @transform_1, window_bounds = array<i64: 8, 16, 64>}]} {
    %c0 = arith.constant 0 : index
    %c0_0 = arith.constant 0 : index
    %c0_1 = arith.constant 0 : index
    %c0_2 = arith.constant 0 : index
    %0 = vector.load %arg1[%c0, %c0_0, %c0_1, %c0_2] : memref<8x2x16x128xbf16, #tpu.memory_space<vmem>>, vector<8x2x16x128xbf16>
    %1 = vector.extract_strided_slice %0 {offsets = [0, 0, 0, 0], sizes = [8, 1, 16, 128], strides = [1, 1, 1, 1]} : vector<8x2x16x128xbf16> to vector<8x1x16x128xbf16>
    %2 = vector.shape_cast %1 : vector<8x1x16x128xbf16> to vector<8x16x128xbf16>
    %3 = vector.extract_strided_slice %0 {offsets = [0, 1, 0, 0], sizes = [8, 1, 16, 128], strides = [1, 1, 1, 1]} : vector<8x2x16x128xbf16> to vector<8x1x16x128xbf16>
    %4 = vector.shape_cast %3 : vector<8x1x16x128xbf16> to vector<8x16x128xbf16>
    %5 = arith.maximumf %2, %4 : vector<8x16x128xbf16>
    %6 = vector.extract_strided_slice %5 {offsets = [0, 0, 0], sizes = [8, 16, 64], strides = [1, 1, 1]} : vector<8x16x128xbf16> to vector<8x16x64xbf16>
    %7 = vector.extract_strided_slice %5 {offsets = [0, 0, 64], sizes = [8, 16, 64], strides = [1, 1, 1]} : vector<8x16x128xbf16> to vector<8x16x64xbf16>
    %8 = arith.maximumf %6, %7 : vector<8x16x64xbf16>
    %c0_3 = arith.constant 0 : index
    %c0_4 = arith.constant 0 : index
    %c0_5 = arith.constant 0 : index
    %9 = vector.load %arg2[%c0_3, %c0_4, %c0_5] : memref<8x16x64xbf16, #tpu.memory_space<vmem>>, vector<8x16x64xbf16>
    tpu.vector_store %arg2[%c0_3, %c0_4, %c0_5], %8 {strides = array<i32>} : memref<8x16x64xbf16, #tpu.memory_space<vmem>>, vector<8x16x64xbf16>,
    return
  }
  func.func @transform_0(%arg0: i32) -> (i32, i32, i32, i32) {
    %c0_i32 = arith.constant 0 : i32
    %c0_i32_0 = arith.constant 0 : i32
    %c0_i32_1 = arith.constant 0 : i32
    %c0_i32_2 = arith.constant 0 : i32
    return %arg0, %c0_i32, %c0_i32_0, %c0_i32_1 : i32, i32, i32, i32
  }
  func.func @transform_1(%arg0: i32) -> (i32, i32, i32) {
    %c0_i32 = arith.constant 0 : i32
    %c0_i32_0 = arith.constant 0 : i32
    %c0_i32_1 = arith.constant 0 : i32
    return %arg0, %c0_i32, %c0_i32_0 : i32, i32, i32
  }
}

module attributes {stable_mosaic.version = 11 : i64} {
  func.func @_mm_kernel(%arg0: i32, %arg1: memref<256x64xbf16, #tpu.memory_space<vmem>>, %arg2: memref<64x128xbf16, #tpu.memory_space<vmem>>, %arg3: memref<1x128xf32, #tpu.memory_space<vmem>>, %arg4: memref<256x128xbf16, #tpu.memory_space<vmem>>) attributes {dimension_semantics = [#tpu.dimension_semantics<parallel>], iteration_bounds = array<i64: 2>, scalar_prefetch = 0 : i64, scratch_operands = 0 : i64, tpu.core_type = #tpu.core_type<tc>, window_params = [{transform_indices = @transform_0, window_bounds = array<i64: 256, 64>}, {pipeline_mode = #tpu.pipeline_mode<synchronous>, transform_indices = @transform_1, window_bounds = array<i64: 64, 128>}, {pipeline_mode = #tpu.pipeline_mode<synchronous>, transform_indices = @transform_2, window_bounds = array<i64: 1, 128>}, {transform_indices = @transform_3, window_bounds = array<i64: 256, 128>}]} {
    %c0 = arith.constant 0 : index
    %c0_0 = arith.constant 0 : index
    %0 = vector.load %arg1[%c0, %c0_0] : memref<256x64xbf16, #tpu.memory_space<vmem>>, vector<256x64xbf16>
    %c0_1 = arith.constant 0 : index
    %c0_2 = arith.constant 0 : index
    %1 = vector.load %arg2[%c0_1, %c0_2] : memref<64x128xbf16, #tpu.memory_space<vmem>>, vector<64x128xbf16>
    %cst = arith.constant dense<0.000000e+00> : vector<256x128xf32>
    %2 = tpu.matmul %0, %1, %cst {dimension_numbers = #tpu.dot_dimension_numbers<[1], [0], [0], [1], [0, 0, 1, 1], [], []>} : vector<256x64xbf16>, vector<64x128xbf16>, vector<256x128xf32> -> vector<256x128xf32>
    %c0_3 = arith.constant 0 : index
    %c0_4 = arith.constant 0 : index
    %3 = vector.load %arg3[%c0_3, %c0_4] : memref<1x128xf32, #tpu.memory_space<vmem>>, vector<1x128xf32>
    %4 = vector.broadcast %3 : vector<1x128xf32> to vector<256x128xf32>
    %5 = arith.addf %2, %4 : vector<256x128xf32>
    %cst_5 = arith.constant 0.000000e+00 : f32
    %6 = vector.broadcast %cst_5 : f32 to vector<256x128xf32>
    %7 = arith.maximumf %5, %6 : vector<256x128xf32>
    %8 = arith.truncf %7 : vector<256x128xf32> to vector<256x128xbf16>
    %c0_6 = arith.constant 0 : index
    %c0_7 = arith.constant 0 : index
    %9 = vector.load %arg4[%c0_6, %c0_7] : memref<256x128xbf16, #tpu.memory_space<vmem>>, vector<256x128xbf16>
    tpu.vector_store %arg4[%c0_6, %c0_7], %8 {strides = array<i32>} : memref<256x128xbf16, #tpu.memory_space<vmem>>, vector<256x128xbf16>,
    return
  }
  func.func @transform_0(%arg0: i32) -> (i32, i32) {
    %c0_i32 = arith.constant 0 : i32
    %c0_i32_0 = arith.constant 0 : i32
    return %arg0, %c0_i32 : i32, i32
  }
  func.func @transform_1(%arg0: i32) -> (i32, i32) {
    %c0_i32 = arith.constant 0 : i32
    %c0_i32_0 = arith.constant 0 : i32
    %c0_i32_1 = arith.constant 0 : i32
    return %c0_i32, %c0_i32_0 : i32, i32
  }
  func.func @transform_2(%arg0: i32) -> (i32, i32) {
    %c0_i32 = arith.constant 0 : i32
    %c0_i32_0 = arith.constant 0 : i32
    %c0_i32_1 = arith.constant 0 : i32
    return %c0_i32, %c0_i32_0 : i32, i32
  }
  func.func @transform_3(%arg0: i32) -> (i32, i32) {
    %c0_i32 = arith.constant 0 : i32
    %c0_i32_0 = arith.constant 0 : i32
    return %arg0, %c0_i32 : i32, i32
  }
}

module attributes {stable_mosaic.version = 11 : i64} {
  func.func @_conv3x3_kernel(%arg0: i32, %arg1: i32, %arg2: i32, %arg3: i32, %arg4: memref<1x1x18x32xbf16, #tpu.memory_space<vmem>>, %arg5: memref<1x3x32x32xbf16, #tpu.memory_space<vmem>>, %arg6: memref<1x1x32xf32, #tpu.memory_space<vmem>>, %arg7: memref<1x1x16x32xbf16, #tpu.memory_space<vmem>>, %arg8: memref<16x32xf32, #tpu.memory_space<vmem>>) attributes {dimension_semantics = [#tpu.dimension_semantics<parallel>, #tpu.dimension_semantics<parallel>, #tpu.dimension_semantics<parallel>, #tpu.dimension_semantics<arbitrary>], iteration_bounds = array<i64: 4, 2, 16, 3>, scalar_prefetch = 0 : i64, scratch_operands = 1 : i64, tpu.core_type = #tpu.core_type<tc>, window_params = [{transform_indices = @transform_0, window_bounds = array<i64: 1, 1, 18, 32>}, {transform_indices = @transform_1, window_bounds = array<i64: 1, 3, 32, 32>}, {transform_indices = @transform_2, window_bounds = array<i64: 1, 1, 32>}, {transform_indices = @transform_3, window_bounds = array<i64: 1, 1, 16, 32>}]} {
    %c0_i32 = arith.constant 0 : i32
    %0 = arith.cmpi eq, %arg3, %c0_i32 : i32
    %1 = arith.extui %0 : i1 to i32
    %c0_i32_0 = arith.constant 0 : i32
    %2 = arith.cmpi ne, %1, %c0_i32_0 : i32
    scf.if %2 {
      %cst_29 = arith.constant 0.000000e+00 : f32
      %29 = vector.broadcast %cst_29 : f32 to vector<16x32xf32>
      %c0_30 = arith.constant 0 : index
      %c0_31 = arith.constant 0 : index
      %30 = vector.load %arg8[%c0_30, %c0_31] : memref<16x32xf32, #tpu.memory_space<vmem>>, vector<16x32xf32>
      tpu.vector_store %arg8[%c0_30, %c0_31], %29 {strides = array<i32>} : memref<16x32xf32, #tpu.memory_space<vmem>>, vector<16x32xf32>,
    } else {
    }
    %c0 = arith.constant 0 : index
    %c0_1 = arith.constant 0 : index
    %c0_2 = arith.constant 0 : index
    %c0_3 = arith.constant 0 : index
    %3 = vector.load %arg4[%c0, %c0_1, %c0_2, %c0_3] : memref<1x1x18x32xbf16, #tpu.memory_space<vmem>>, vector<1x1x18x32xbf16>
    %4 = vector.shape_cast %3 : vector<1x1x18x32xbf16> to vector<18x32xbf16>
    %5 = vector.extract_strided_slice %4 {offsets = [0, 0], sizes = [16, 32], strides = [1, 1]} : vector<18x32xbf16> to vector<16x32xbf16>
    %c0_4 = arith.constant 0 : index
    %c0_5 = arith.constant 0 : index
    %c0_6 = arith.constant 0 : index
    %c0_7 = arith.constant 0 : index
    %6 = vector.load %arg5[%c0_4, %c0_5, %c0_6, %c0_7] : memref<1x3x32x32xbf16, #tpu.memory_space<vmem>>, vector<1x1x32x32xbf16>
    %7 = vector.shape_cast %6 : vector<1x1x32x32xbf16> to vector<32x32xbf16>
    %c0_8 = arith.constant 0 : index
    %c0_9 = arith.constant 0 : index
    %8 = vector.load %arg8[%c0_8, %c0_9] : memref<16x32xf32, #tpu.memory_space<vmem>>, vector<16x32xf32>
    %cst = arith.constant dense<0.000000e+00> : vector<16x32xf32>
    %9 = tpu.matmul %5, %7, %cst {dimension_numbers = #tpu.dot_dimension_numbers<[1], [0], [0], [1], [0, 0, 1, 1], [], []>} : vector<16x32xbf16>, vector<32x32xbf16>, vector<16x32xf32> -> vector<16x32xf32>
    %10 = arith.addf %8, %9 : vector<16x32xf32>
    %c0_10 = arith.constant 0 : index
    %c0_11 = arith.constant 0 : index
    %11 = vector.load %arg8[%c0_10, %c0_11] : memref<16x32xf32, #tpu.memory_space<vmem>>, vector<16x32xf32>
    tpu.vector_store %arg8[%c0_10, %c0_11], %10 {strides = array<i32>} : memref<16x32xf32, #tpu.memory_space<vmem>>, vector<16x32xf32>,
    %12 = vector.extract_strided_slice %4 {offsets = [1, 0], sizes = [16, 32], strides = [1, 1]} : vector<18x32xbf16> to vector<16x32xbf16>
    %c0_12 = arith.constant 0 : index
    %c1 = arith.constant 1 : index
    %c0_13 = arith.constant 0 : index
    %c0_14 = arith.constant 0 : index
    %13 = vector.load %arg5[%c0_12, %c1, %c0_13, %c0_14] : memref<1x3x32x32xbf16, #tpu.memory_space<vmem>>, vector<1x1x32x32xbf16>
    %14 = vector.shape_cast %13 : vector<1x1x32x32xbf16> to vector<32x32xbf16>
    %c0_15 = arith.constant 0 : index
    %c0_16 = arith.constant 0 : index
    %15 = vector.load %arg8[%c0_15, %c0_16] : memref<16x32xf32, #tpu.memory_space<vmem>>, vector<16x32xf32>
    %cst_17 = arith.constant dense<0.000000e+00> : vector<16x32xf32>
    %16 = tpu.matmul %12, %14, %cst_17 {dimension_numbers = #tpu.dot_dimension_numbers<[1], [0], [0], [1], [0, 0, 1, 1], [], []>} : vector<16x32xbf16>, vector<32x32xbf16>, vector<16x32xf32> -> vector<16x32xf32>
    %17 = arith.addf %15, %16 : vector<16x32xf32>
    %c0_18 = arith.constant 0 : index
    %c0_19 = arith.constant 0 : index
    %18 = vector.load %arg8[%c0_18, %c0_19] : memref<16x32xf32, #tpu.memory_space<vmem>>, vector<16x32xf32>
    tpu.vector_store %arg8[%c0_18, %c0_19], %17 {strides = array<i32>} : memref<16x32xf32, #tpu.memory_space<vmem>>, vector<16x32xf32>,
    %19 = vector.extract_strided_slice %4 {offsets = [2, 0], sizes = [16, 32], strides = [1, 1]} : vector<18x32xbf16> to vector<16x32xbf16>
    %c0_20 = arith.constant 0 : index
    %c2 = arith.constant 2 : index
    %c0_21 = arith.constant 0 : index
    %c0_22 = arith.constant 0 : index
    %20 = vector.load %arg5[%c0_20, %c2, %c0_21, %c0_22] : memref<1x3x32x32xbf16, #tpu.memory_space<vmem>>, vector<1x1x32x32xbf16>
    %21 = vector.shape_cast %20 : vector<1x1x32x32xbf16> to vector<32x32xbf16>
    %c0_23 = arith.constant 0 : index
    %c0_24 = arith.constant 0 : index
    %22 = vector.load %arg8[%c0_23, %c0_24] : memref<16x32xf32, #tpu.memory_space<vmem>>, vector<16x32xf32>
    %cst_25 = arith.constant dense<0.000000e+00> : vector<16x32xf32>
    %23 = tpu.matmul %19, %21, %cst_25 {dimension_numbers = #tpu.dot_dimension_numbers<[1], [0], [0], [1], [0, 0, 1, 1], [], []>} : vector<16x32xbf16>, vector<32x32xbf16>, vector<16x32xf32> -> vector<16x32xf32>
    %24 = arith.addf %22, %23 : vector<16x32xf32>
    %c0_26 = arith.constant 0 : index
    %c0_27 = arith.constant 0 : index
    %25 = vector.load %arg8[%c0_26, %c0_27] : memref<16x32xf32, #tpu.memory_space<vmem>>, vector<16x32xf32>
    tpu.vector_store %arg8[%c0_26, %c0_27], %24 {strides = array<i32>} : memref<16x32xf32, #tpu.memory_space<vmem>>, vector<16x32xf32>,
    %c2_i32 = arith.constant 2 : i32
    %26 = arith.cmpi eq, %arg3, %c2_i32 : i32
    %27 = arith.extui %26 : i1 to i32
    %c0_i32_28 = arith.constant 0 : i32
    %28 = arith.cmpi ne, %27, %c0_i32_28 : i32
    scf.if %28 {
      %c0_29 = arith.constant 0 : index
      %c0_30 = arith.constant 0 : index
      %29 = vector.load %arg8[%c0_29, %c0_30] : memref<16x32xf32, #tpu.memory_space<vmem>>, vector<16x32xf32>
      %c0_31 = arith.constant 0 : index
      %c0_32 = arith.constant 0 : index
      %c0_33 = arith.constant 0 : index
      %30 = vector.load %arg6[%c0_31, %c0_32, %c0_33] : memref<1x1x32xf32, #tpu.memory_space<vmem>>, vector<1x1x32xf32>
      %31 = vector.shape_cast %30 : vector<1x1x32xf32> to vector<1x32xf32>
      %32 = vector.broadcast %31 : vector<1x32xf32> to vector<16x32xf32>
      %33 = arith.addf %29, %32 : vector<16x32xf32>
      %cst_34 = arith.constant 0.000000e+00 : f32
      %34 = vector.broadcast %cst_34 : f32 to vector<16x32xf32>
      %35 = arith.maximumf %33, %34 : vector<16x32xf32>
      %36 = arith.truncf %35 : vector<16x32xf32> to vector<16x32xbf16>
      %c0_35 = arith.constant 0 : index
      %c0_36 = arith.constant 0 : index
      %c0_37 = arith.constant 0 : index
      %c0_38 = arith.constant 0 : index
      %37 = vector.load %arg7[%c0_35, %c0_36, %c0_37, %c0_38] : memref<1x1x16x32xbf16, #tpu.memory_space<vmem>>, vector<1x1x16x32xbf16>
      %38 = vector.shape_cast %37 : vector<1x1x16x32xbf16> to vector<16x32xbf16>
      %39 = vector.shape_cast %36 : vector<16x32xbf16> to vector<1x1x16x32xbf16>
      tpu.vector_store %arg7[%c0_35, %c0_36, %c0_37, %c0_38], %39 {strides = array<i32>} : memref<1x1x16x32xbf16, #tpu.memory_space<vmem>>, vector<1x1x16x32xbf16>,
    } else {
    }
    return
  }
  func.func @transform_0(%arg0: i32, %arg1: i32, %arg2: i32, %arg3: i32) -> (i32, i32, i32, i32) {
    %c2_i32 = arith.constant 2 : i32
    %0 = arith.muli %arg0, %c2_i32 : i32
    %1 = arith.addi %0, %arg1 : i32
    %2 = arith.addi %arg2, %arg3 : i32
    %c0_i32 = arith.constant 0 : i32
    %c0_i32_0 = arith.constant 0 : i32
    %c0_i32_1 = arith.constant 0 : i32
    return %1, %2, %c0_i32, %c0_i32_0 : i32, i32, i32, i32
  }
  func.func @transform_1(%arg0: i32, %arg1: i32, %arg2: i32, %arg3: i32) -> (i32, i32, i32, i32) {
    %c3_i32 = arith.constant 3 : i32
    %0 = arith.muli %arg0, %c3_i32 : i32
    %1 = arith.addi %0, %arg3 : i32
    %c0_i32 = arith.constant 0 : i32
    %c0_i32_0 = arith.constant 0 : i32
    %c0_i32_1 = arith.constant 0 : i32
    %c0_i32_2 = arith.constant 0 : i32
    return %1, %c0_i32, %c0_i32_0, %c0_i32_1 : i32, i32, i32, i32
  }
  func.func @transform_2(%arg0: i32, %arg1: i32, %arg2: i32, %arg3: i32) -> (i32, i32, i32) {
    %c0_i32 = arith.constant 0 : i32
    %c0_i32_0 = arith.constant 0 : i32
    %c0_i32_1 = arith.constant 0 : i32
    return %arg0, %c0_i32, %c0_i32_0 : i32, i32, i32
  }
  func.func @transform_3(%arg0: i32, %arg1: i32, %arg2: i32, %arg3: i32) -> (i32, i32, i32, i32) {
    %c2_i32 = arith.constant 2 : i32
    %0 = arith.muli %arg0, %c2_i32 : i32
    %1 = arith.addi %0, %arg1 : i32
    %c0_i32 = arith.constant 0 : i32
    %c0_i32_0 = arith.constant 0 : i32
    %c0_i32_1 = arith.constant 0 : i32
    return %1, %arg2, %c0_i32, %c0_i32_0 : i32, i32, i32, i32
  }
}

module attributes {stable_mosaic.version = 11 : i64} {
  func.func @_mm_kernel(%arg0: i32, %arg1: memref<256x64xbf16, #tpu.memory_space<vmem>>, %arg2: memref<64x256xbf16, #tpu.memory_space<vmem>>, %arg3: memref<1x256xf32, #tpu.memory_space<vmem>>, %arg4: memref<256x256xbf16, #tpu.memory_space<vmem>>) attributes {dimension_semantics = [#tpu.dimension_semantics<parallel>], iteration_bounds = array<i64: 2>, scalar_prefetch = 0 : i64, scratch_operands = 0 : i64, tpu.core_type = #tpu.core_type<tc>, window_params = [{transform_indices = @transform_0, window_bounds = array<i64: 256, 64>}, {pipeline_mode = #tpu.pipeline_mode<synchronous>, transform_indices = @transform_1, window_bounds = array<i64: 64, 256>}, {pipeline_mode = #tpu.pipeline_mode<synchronous>, transform_indices = @transform_2, window_bounds = array<i64: 1, 256>}, {transform_indices = @transform_3, window_bounds = array<i64: 256, 256>}]} {
    %c0 = arith.constant 0 : index
    %c0_0 = arith.constant 0 : index
    %0 = vector.load %arg1[%c0, %c0_0] : memref<256x64xbf16, #tpu.memory_space<vmem>>, vector<256x64xbf16>
    %c0_1 = arith.constant 0 : index
    %c0_2 = arith.constant 0 : index
    %1 = vector.load %arg2[%c0_1, %c0_2] : memref<64x256xbf16, #tpu.memory_space<vmem>>, vector<64x256xbf16>
    %cst = arith.constant dense<0.000000e+00> : vector<256x256xf32>
    %2 = tpu.matmul %0, %1, %cst {dimension_numbers = #tpu.dot_dimension_numbers<[1], [0], [0], [1], [0, 0, 1, 1], [], []>} : vector<256x64xbf16>, vector<64x256xbf16>, vector<256x256xf32> -> vector<256x256xf32>
    %c0_3 = arith.constant 0 : index
    %c0_4 = arith.constant 0 : index
    %3 = vector.load %arg3[%c0_3, %c0_4] : memref<1x256xf32, #tpu.memory_space<vmem>>, vector<1x256xf32>
    %4 = vector.broadcast %3 : vector<1x256xf32> to vector<256x256xf32>
    %5 = arith.addf %2, %4 : vector<256x256xf32>
    %6 = arith.truncf %5 : vector<256x256xf32> to vector<256x256xbf16>
    %c0_5 = arith.constant 0 : index
    %c0_6 = arith.constant 0 : index
    %7 = vector.load %arg4[%c0_5, %c0_6] : memref<256x256xbf16, #tpu.memory_space<vmem>>, vector<256x256xbf16>
    tpu.vector_store %arg4[%c0_5, %c0_6], %6 {strides = array<i32>} : memref<256x256xbf16, #tpu.memory_space<vmem>>, vector<256x256xbf16>,
    return
  }
  func.func @transform_0(%arg0: i32) -> (i32, i32) {
    %c0_i32 = arith.constant 0 : i32
    %c0_i32_0 = arith.constant 0 : i32
    return %arg0, %c0_i32 : i32, i32
  }
  func.func @transform_1(%arg0: i32) -> (i32, i32) {
    %c0_i32 = arith.constant 0 : i32
    %c0_i32_0 = arith.constant 0 : i32
    %c0_i32_1 = arith.constant 0 : i32
    return %c0_i32, %c0_i32_0 : i32, i32
  }
  func.func @transform_2(%arg0: i32) -> (i32, i32) {
    %c0_i32 = arith.constant 0 : i32
    %c0_i32_0 = arith.constant 0 : i32
    %c0_i32_1 = arith.constant 0 : i32
    return %c0_i32, %c0_i32_0 : i32, i32
  }
  func.func @transform_3(%arg0: i32) -> (i32, i32) {
    %c0_i32 = arith.constant 0 : i32
    %c0_i32_0 = arith.constant 0 : i32
    return %arg0, %c0_i32 : i32, i32
  }
}

module attributes {stable_mosaic.version = 11 : i64} {
  func.func @_mm_kernel(%arg0: i32, %arg1: memref<256x128xbf16, #tpu.memory_space<vmem>>, %arg2: memref<128x256xbf16, #tpu.memory_space<vmem>>, %arg3: memref<1x256xf32, #tpu.memory_space<vmem>>, %arg4: memref<256x256xbf16, #tpu.memory_space<vmem>>, %arg5: memref<256x256xbf16, #tpu.memory_space<vmem>>) attributes {dimension_semantics = [#tpu.dimension_semantics<parallel>], iteration_bounds = array<i64: 2>, scalar_prefetch = 0 : i64, scratch_operands = 0 : i64, tpu.core_type = #tpu.core_type<tc>, window_params = [{transform_indices = @transform_0, window_bounds = array<i64: 256, 128>}, {pipeline_mode = #tpu.pipeline_mode<synchronous>, transform_indices = @transform_1, window_bounds = array<i64: 128, 256>}, {pipeline_mode = #tpu.pipeline_mode<synchronous>, transform_indices = @transform_2, window_bounds = array<i64: 1, 256>}, {transform_indices = @transform_3, window_bounds = array<i64: 256, 256>}, {transform_indices = @transform_4, window_bounds = array<i64: 256, 256>}]} {
    %c0 = arith.constant 0 : index
    %c0_0 = arith.constant 0 : index
    %0 = vector.load %arg1[%c0, %c0_0] : memref<256x128xbf16, #tpu.memory_space<vmem>>, vector<256x128xbf16>
    %c0_1 = arith.constant 0 : index
    %c0_2 = arith.constant 0 : index
    %1 = vector.load %arg2[%c0_1, %c0_2] : memref<128x256xbf16, #tpu.memory_space<vmem>>, vector<128x256xbf16>
    %cst = arith.constant dense<0.000000e+00> : vector<256x256xf32>
    %2 = tpu.matmul %0, %1, %cst {dimension_numbers = #tpu.dot_dimension_numbers<[1], [0], [0], [1], [0, 0, 1, 1], [], []>} : vector<256x128xbf16>, vector<128x256xbf16>, vector<256x256xf32> -> vector<256x256xf32>
    %c0_3 = arith.constant 0 : index
    %c0_4 = arith.constant 0 : index
    %3 = vector.load %arg3[%c0_3, %c0_4] : memref<1x256xf32, #tpu.memory_space<vmem>>, vector<1x256xf32>
    %4 = vector.broadcast %3 : vector<1x256xf32> to vector<256x256xf32>
    %5 = arith.addf %2, %4 : vector<256x256xf32>
    %c0_5 = arith.constant 0 : index
    %c0_6 = arith.constant 0 : index
    %6 = vector.load %arg4[%c0_5, %c0_6] : memref<256x256xbf16, #tpu.memory_space<vmem>>, vector<256x256xbf16>
    %7 = arith.extf %6 : vector<256x256xbf16> to vector<256x256xf32>
    %8 = arith.addf %5, %7 : vector<256x256xf32>
    %cst_7 = arith.constant 0.000000e+00 : f32
    %9 = vector.broadcast %cst_7 : f32 to vector<256x256xf32>
    %10 = arith.maximumf %8, %9 : vector<256x256xf32>
    %11 = arith.truncf %10 : vector<256x256xf32> to vector<256x256xbf16>
    %c0_8 = arith.constant 0 : index
    %c0_9 = arith.constant 0 : index
    %12 = vector.load %arg5[%c0_8, %c0_9] : memref<256x256xbf16, #tpu.memory_space<vmem>>, vector<256x256xbf16>
    tpu.vector_store %arg5[%c0_8, %c0_9], %11 {strides = array<i32>} : memref<256x256xbf16, #tpu.memory_space<vmem>>, vector<256x256xbf16>,
    return
  }
  func.func @transform_0(%arg0: i32) -> (i32, i32) {
    %c0_i32 = arith.constant 0 : i32
    %c0_i32_0 = arith.constant 0 : i32
    return %arg0, %c0_i32 : i32, i32
  }
  func.func @transform_1(%arg0: i32) -> (i32, i32) {
    %c0_i32 = arith.constant 0 : i32
    %c0_i32_0 = arith.constant 0 : i32
    %c0_i32_1 = arith.constant 0 : i32
    return %c0_i32, %c0_i32_0 : i32, i32
  }
  func.func @transform_2(%arg0: i32) -> (i32, i32) {
    %c0_i32 = arith.constant 0 : i32
    %c0_i32_0 = arith.constant 0 : i32
    %c0_i32_1 = arith.constant 0 : i32
    return %c0_i32, %c0_i32_0 : i32, i32
  }
  func.func @transform_3(%arg0: i32) -> (i32, i32) {
    %c0_i32 = arith.constant 0 : i32
    %c0_i32_0 = arith.constant 0 : i32
    return %arg0, %c0_i32 : i32, i32
  }
  func.func @transform_4(%arg0: i32) -> (i32, i32) {
    %c0_i32 = arith.constant 0 : i32
    %c0_i32_0 = arith.constant 0 : i32
    return %arg0, %c0_i32 : i32, i32
  }
}

module attributes {stable_mosaic.version = 11 : i64} {
  func.func @_relation_kernel(%arg0: i32, %arg1: memref<1x256x256xbf16, #tpu.memory_space<vmem>>, %arg2: memref<256x128xbf16, #tpu.memory_space<vmem>>, %arg3: memref<256x128xbf16, #tpu.memory_space<vmem>>, %arg4: memref<256x128xbf16, #tpu.memory_space<vmem>>, %arg5: memref<128x256xbf16, #tpu.memory_space<vmem>>, %arg6: memref<1x256x256xbf16, #tpu.memory_space<vmem>>) attributes {dimension_semantics = [#tpu.dimension_semantics<parallel>], iteration_bounds = array<i64: 2>, scalar_prefetch = 0 : i64, scratch_operands = 0 : i64, tpu.core_type = #tpu.core_type<tc>, window_params = [{transform_indices = @transform_0, window_bounds = array<i64: 1, 256, 256>}, {pipeline_mode = #tpu.pipeline_mode<synchronous>, transform_indices = @transform_1, window_bounds = array<i64: 256, 128>}, {pipeline_mode = #tpu.pipeline_mode<synchronous>, transform_indices = @transform_2, window_bounds = array<i64: 256, 128>}, {pipeline_mode = #tpu.pipeline_mode<synchronous>, transform_indices = @transform_3, window_bounds = array<i64: 256, 128>}, {pipeline_mode = #tpu.pipeline_mode<synchronous>, transform_indices = @transform_4, window_bounds = array<i64: 128, 256>}, {transform_indices = @transform_5, window_bounds = array<i64: 1, 256, 256>}]} {
    %c0 = arith.constant 0 : index
    %c0_0 = arith.constant 0 : index
    %c0_1 = arith.constant 0 : index
    %0 = vector.load %arg1[%c0, %c0_0, %c0_1] : memref<1x256x256xbf16, #tpu.memory_space<vmem>>, vector<1x256x256xbf16>
    %1 = vector.shape_cast %0 : vector<1x256x256xbf16> to vector<256x256xbf16>
    %c0_2 = arith.constant 0 : index
    %c0_3 = arith.constant 0 : index
    %2 = vector.load %arg2[%c0_2, %c0_3] : memref<256x128xbf16, #tpu.memory_space<vmem>>, vector<256x128xbf16>
    %cst = arith.constant dense<0.000000e+00> : vector<256x128xf32>
    %3 = tpu.matmul %1, %2, %cst {dimension_numbers = #tpu.dot_dimension_numbers<[1], [0], [0], [1], [0, 0, 1, 1], [], []>} : vector<256x256xbf16>, vector<256x128xbf16>, vector<256x128xf32> -> vector<256x128xf32>
    %c0_4 = arith.constant 0 : index
    %c0_5 = arith.constant 0 : index
    %4 = vector.load %arg3[%c0_4, %c0_5] : memref<256x128xbf16, #tpu.memory_space<vmem>>, vector<256x128xbf16>
    %cst_6 = arith.constant dense<0.000000e+00> : vector<256x128xf32>
    %5 = tpu.matmul %1, %4, %cst_6 {dimension_numbers = #tpu.dot_dimension_numbers<[1], [0], [0], [1], [0, 0, 1, 1], [], []>} : vector<256x256xbf16>, vector<256x128xbf16>, vector<256x128xf32> -> vector<256x128xf32>
    %c0_7 = arith.constant 0 : index
    %c0_8 = arith.constant 0 : index
    %6 = vector.load %arg4[%c0_7, %c0_8] : memref<256x128xbf16, #tpu.memory_space<vmem>>, vector<256x128xbf16>
    %cst_9 = arith.constant dense<0.000000e+00> : vector<256x128xf32>
    %7 = tpu.matmul %1, %6, %cst_9 {dimension_numbers = #tpu.dot_dimension_numbers<[1], [0], [0], [1], [0, 0, 1, 1], [], []>} : vector<256x256xbf16>, vector<256x128xbf16>, vector<256x128xf32> -> vector<256x128xf32>
    %8 = arith.truncf %3 : vector<256x128xf32> to vector<256x128xbf16>
    %9 = arith.truncf %5 : vector<256x128xf32> to vector<256x128xbf16>
    %cst_10 = arith.constant dense<0.000000e+00> : vector<256x256xf32>
    %10 = tpu.matmul %8, %9, %cst_10 {dimension_numbers = #tpu.dot_dimension_numbers<[1], [1], [0], [0], [0, 0, 1, 0], [], []>} : vector<256x128xbf16>, vector<256x128xbf16>, vector<256x256xf32> -> vector<256x256xf32>
    %cst_11 = arith.constant 0.0883883461 : f32
    %11 = vector.broadcast %cst_11 : f32 to vector<256x256xf32>
    %12 = arith.mulf %10, %11 : vector<256x256xf32>
    %cst_12 = arith.constant dense<0xFF800000> : vector<256xf32>
    %13 = vector.multi_reduction <maximumf>, %12, %cst_12 [1] : vector<256x256xf32> to vector<256xf32>
    %14 = vector.shape_cast %13 : vector<256xf32> to vector<256x1xf32>
    %15 = vector.broadcast %14 : vector<256x1xf32> to vector<256x256xf32>
    %16 = arith.subf %12, %15 : vector<256x256xf32>
    %17 = math.exp %16 : vector<256x256xf32>
    %cst_13 = arith.constant dense<0.000000e+00> : vector<256xf32>
    %18 = vector.multi_reduction <add>, %17, %cst_13 [1] : vector<256x256xf32> to vector<256xf32>
    %19 = vector.shape_cast %18 : vector<256xf32> to vector<256x1xf32>
    %20 = tpu.reciprocal %19 {approx = true} : vector<256x1xf32> -> vector<256x1xf32>
    %21 = vector.broadcast %20 : vector<256x1xf32> to vector<256x256xf32>
    %22 = arith.mulf %17, %21 : vector<256x256xf32>
    %23 = arith.truncf %22 : vector<256x256xf32> to vector<256x256xbf16>
    %24 = arith.truncf %7 : vector<256x128xf32> to vector<256x128xbf16>
    %cst_14 = arith.constant dense<0.000000e+00> : vector<256x128xf32>
    %25 = tpu.matmul %23, %24, %cst_14 {dimension_numbers = #tpu.dot_dimension_numbers<[1], [0], [0], [1], [0, 0, 1, 1], [], []>} : vector<256x256xbf16>, vector<256x128xbf16>, vector<256x128xf32> -> vector<256x128xf32>
    %26 = arith.truncf %25 : vector<256x128xf32> to vector<256x128xbf16>
    %c0_15 = arith.constant 0 : index
    %c0_16 = arith.constant 0 : index
    %27 = vector.load %arg5[%c0_15, %c0_16] : memref<128x256xbf16, #tpu.memory_space<vmem>>, vector<128x256xbf16>
    %cst_17 = arith.constant dense<0.000000e+00> : vector<256x256xf32>
    %28 = tpu.matmul %26, %27, %cst_17 {dimension_numbers = #tpu.dot_dimension_numbers<[1], [0], [0], [1], [0, 0, 1, 1], [], []>} : vector<256x128xbf16>, vector<128x256xbf16>, vector<256x256xf32> -> vector<256x256xf32>
    %29 = arith.extf %1 : vector<256x256xbf16> to vector<256x256xf32>
    %30 = arith.addf %29, %28 : vector<256x256xf32>
    %31 = arith.truncf %30 : vector<256x256xf32> to vector<256x256xbf16>
    %c0_18 = arith.constant 0 : index
    %c0_19 = arith.constant 0 : index
    %c0_20 = arith.constant 0 : index
    %32 = vector.load %arg6[%c0_18, %c0_19, %c0_20] : memref<1x256x256xbf16, #tpu.memory_space<vmem>>, vector<1x256x256xbf16>
    %33 = vector.shape_cast %32 : vector<1x256x256xbf16> to vector<256x256xbf16>
    %34 = vector.shape_cast %31 : vector<256x256xbf16> to vector<1x256x256xbf16>
    tpu.vector_store %arg6[%c0_18, %c0_19, %c0_20], %34 {strides = array<i32>} : memref<1x256x256xbf16, #tpu.memory_space<vmem>>, vector<1x256x256xbf16>,
    return
  }
  func.func @transform_0(%arg0: i32) -> (i32, i32, i32) {
    %c0_i32 = arith.constant 0 : i32
    %c0_i32_0 = arith.constant 0 : i32
    %c0_i32_1 = arith.constant 0 : i32
    return %arg0, %c0_i32, %c0_i32_0 : i32, i32, i32
  }
  func.func @transform_1(%arg0: i32) -> (i32, i32) {
    %c0_i32 = arith.constant 0 : i32
    %c0_i32_0 = arith.constant 0 : i32
    %c0_i32_1 = arith.constant 0 : i32
    return %c0_i32, %c0_i32_0 : i32, i32
  }
  func.func @transform_2(%arg0: i32) -> (i32, i32) {
    %c0_i32 = arith.constant 0 : i32
    %c0_i32_0 = arith.constant 0 : i32
    %c0_i32_1 = arith.constant 0 : i32
    return %c0_i32, %c0_i32_0 : i32, i32
  }
  func.func @transform_3(%arg0: i32) -> (i32, i32) {
    %c0_i32 = arith.constant 0 : i32
    %c0_i32_0 = arith.constant 0 : i32
    %c0_i32_1 = arith.constant 0 : i32
    return %c0_i32, %c0_i32_0 : i32, i32
  }
  func.func @transform_4(%arg0: i32) -> (i32, i32) {
    %c0_i32 = arith.constant 0 : i32
    %c0_i32_0 = arith.constant 0 : i32
    %c0_i32_1 = arith.constant 0 : i32
    return %c0_i32, %c0_i32_0 : i32, i32
  }
  func.func @transform_5(%arg0: i32) -> (i32, i32, i32) {
    %c0_i32 = arith.constant 0 : i32
    %c0_i32_0 = arith.constant 0 : i32
    %c0_i32_1 = arith.constant 0 : i32
    return %arg0, %c0_i32, %c0_i32_0 : i32, i32, i32
  }
}

module attributes {stable_mosaic.version = 11 : i64} {
  func.func @_head_kernel(%arg0: i32, %arg1: memref<2x256x256xbf16, #tpu.memory_space<vmem>>, %arg2: memref<256x128xbf16, #tpu.memory_space<vmem>>, %arg3: memref<1x128xf32, #tpu.memory_space<vmem>>, %arg4: memref<128x10xbf16, #tpu.memory_space<vmem>>, %arg5: memref<1x10xf32, #tpu.memory_space<vmem>>, %arg6: memref<2x10xf32, #tpu.memory_space<vmem>>) attributes {dimension_semantics = [#tpu.dimension_semantics<arbitrary>], iteration_bounds = array<i64: 1>, scalar_prefetch = 0 : i64, scratch_operands = 0 : i64, tpu.core_type = #tpu.core_type<tc>, window_params = [{pipeline_mode = #tpu.pipeline_mode<synchronous>, transform_indices = @transform_0, window_bounds = array<i64: 2, 256, 256>}, {pipeline_mode = #tpu.pipeline_mode<synchronous>, transform_indices = @transform_1, window_bounds = array<i64: 256, 128>}, {pipeline_mode = #tpu.pipeline_mode<synchronous>, transform_indices = @transform_2, window_bounds = array<i64: 1, 128>}, {pipeline_mode = #tpu.pipeline_mode<synchronous>, transform_indices = @transform_3, window_bounds = array<i64: 128, 10>}, {pipeline_mode = #tpu.pipeline_mode<synchronous>, transform_indices = @transform_4, window_bounds = array<i64: 1, 10>}, {pipeline_mode = #tpu.pipeline_mode<synchronous>, transform_indices = @transform_5, window_bounds = array<i64: 2, 10>}]} {
    %c0 = arith.constant 0 : index
    %c0_0 = arith.constant 0 : index
    %c0_1 = arith.constant 0 : index
    %0 = vector.load %arg1[%c0, %c0_0, %c0_1] : memref<2x256x256xbf16, #tpu.memory_space<vmem>>, vector<2x256x256xbf16>
    %1 = arith.extf %0 : vector<2x256x256xbf16> to vector<2x256x256xf32>
    %cst = arith.constant dense<0.000000e+00> : vector<2x256xf32>
    %2 = vector.multi_reduction <add>, %1, %cst [1] : vector<2x256x256xf32> to vector<2x256xf32>
    %cst_2 = arith.constant 3.906250e-03 : f32
    %3 = vector.broadcast %cst_2 : f32 to vector<2x256xf32>
    %4 = arith.mulf %2, %3 : vector<2x256xf32>
    %5 = arith.truncf %4 : vector<2x256xf32> to vector<2x256xbf16>
    %c0_3 = arith.constant 0 : index
    %c0_4 = arith.constant 0 : index
    %6 = vector.load %arg2[%c0_3, %c0_4] : memref<256x128xbf16, #tpu.memory_space<vmem>>, vector<256x128xbf16>
    %cst_5 = arith.constant dense<0.000000e+00> : vector<2x128xf32>
    %7 = tpu.matmul %5, %6, %cst_5 {dimension_numbers = #tpu.dot_dimension_numbers<[1], [0], [0], [1], [0, 0, 1, 1], [], []>} : vector<2x256xbf16>, vector<256x128xbf16>, vector<2x128xf32> -> vector<2x128xf32>
    %c0_6 = arith.constant 0 : index
    %c0_7 = arith.constant 0 : index
    %8 = vector.load %arg3[%c0_6, %c0_7] : memref<1x128xf32, #tpu.memory_space<vmem>>, vector<1x128xf32>
    %9 = vector.broadcast %8 : vector<1x128xf32> to vector<2x128xf32>
    %10 = arith.addf %7, %9 : vector<2x128xf32>
    %cst_8 = arith.constant 0.000000e+00 : f32
    %11 = vector.broadcast %cst_8 : f32 to vector<2x128xf32>
    %12 = arith.maximumf %10, %11 : vector<2x128xf32>
    %13 = arith.truncf %12 : vector<2x128xf32> to vector<2x128xbf16>
    %c0_9 = arith.constant 0 : index
    %c0_10 = arith.constant 0 : index
    %14 = vector.load %arg4[%c0_9, %c0_10] : memref<128x10xbf16, #tpu.memory_space<vmem>>, vector<128x10xbf16>
    %cst_11 = arith.constant dense<0.000000e+00> : vector<2x10xf32>
    %15 = tpu.matmul %13, %14, %cst_11 {dimension_numbers = #tpu.dot_dimension_numbers<[1], [0], [0], [1], [0, 0, 1, 1], [], []>} : vector<2x128xbf16>, vector<128x10xbf16>, vector<2x10xf32> -> vector<2x10xf32>
    %c0_12 = arith.constant 0 : index
    %c0_13 = arith.constant 0 : index
    %16 = vector.load %arg5[%c0_12, %c0_13] : memref<1x10xf32, #tpu.memory_space<vmem>>, vector<1x10xf32>
    %17 = vector.broadcast %16 : vector<1x10xf32> to vector<2x10xf32>
    %18 = arith.addf %15, %17 : vector<2x10xf32>
    %c0_14 = arith.constant 0 : index
    %c0_15 = arith.constant 0 : index
    %19 = vector.load %arg6[%c0_14, %c0_15] : memref<2x10xf32, #tpu.memory_space<vmem>>, vector<2x10xf32>
    tpu.vector_store %arg6[%c0_14, %c0_15], %18 {strides = array<i32>} : memref<2x10xf32, #tpu.memory_space<vmem>>, vector<2x10xf32>,
    return
  }
  func.func @transform_0(%arg0: i32) -> (i32, i32, i32) {
    %c0_i32 = arith.constant 0 : i32
    %c0_i32_0 = arith.constant 0 : i32
    %c0_i32_1 = arith.constant 0 : i32
    %c0_i32_2 = arith.constant 0 : i32
    return %c0_i32, %c0_i32_0, %c0_i32_1 : i32, i32, i32
  }
  func.func @transform_1(%arg0: i32) -> (i32, i32) {
    %c0_i32 = arith.constant 0 : i32
    %c0_i32_0 = arith.constant 0 : i32
    %c0_i32_1 = arith.constant 0 : i32
    return %c0_i32, %c0_i32_0 : i32, i32
  }
  func.func @transform_2(%arg0: i32) -> (i32, i32) {
    %c0_i32 = arith.constant 0 : i32
    %c0_i32_0 = arith.constant 0 : i32
    %c0_i32_1 = arith.constant 0 : i32
    return %c0_i32, %c0_i32_0 : i32, i32
  }
  func.func @transform_3(%arg0: i32) -> (i32, i32) {
    %c0_i32 = arith.constant 0 : i32
    %c0_i32_0 = arith.constant 0 : i32
    %c0_i32_1 = arith.constant 0 : i32
    return %c0_i32, %c0_i32_0 : i32, i32
  }
  func.func @transform_4(%arg0: i32) -> (i32, i32) {
    %c0_i32 = arith.constant 0 : i32
    %c0_i32_0 = arith.constant 0 : i32
    %c0_i32_1 = arith.constant 0 : i32
    return %c0_i32, %c0_i32_0 : i32, i32
  }
  func.func @transform_5(%arg0: i32) -> (i32, i32) {
    %c0_i32 = arith.constant 0 : i32
    %c0_i32_0 = arith.constant 0 : i32
    %c0_i32_1 = arith.constant 0 : i32
    return %c0_i32, %c0_i32_0 : i32, i32
  }
}

</mosaic_0001>

<llo_original>
// kernel: forward.9
$region0: #{forward.9}
  #allocation0 [shape = 'u32[]', space=smem, size = 0x4, offset = 0x4, fixed_abs, tag = 'smem constant byte address 0x4 - core index']
  #allocation1 [shape = 'u32[144,128]{1,0:T(1,128)}', space=vmem, size = 0x12000, scoped, tag = 'internal scratch']
  %s0 = inlined_call_operand.vmem [shape: bf16[32,2,16,128], index: 0, kind: input, shape index: {}]
  %s1 = inlined_call_operand.vmem [shape: bf16[32,16,64], index: 1, kind: output, shape index: {}]
  %s2 = sld [smem:[#allocation0]]
  $region37: #{forward.9} parent=0
    _
  %s4 = ssub.s32 1, %s2
  %s5 = scalar_select 0, %s4, %s2
  loop: start=0, step=1, limit=6
  $region2: #{forward.9} parent=0 // loop_pre_header
    _
  $region3: #{forward.9} parent=0 // loop_header
    %s7 = sphi 0, %s11
    %p8 = scmp.ge.s32.totalorder %s7, 6
    %s17 = sphi 0, %s19
    %s20 = sphi 0, %s17
    %s21 = sphi 0, %s20
    %s37 = sphi 0, %s21
    %s43 = sphi 0, %s45
    %s46 = sphi 0, %s43
    %s47 = sphi 0, %s46
    %s63 = sphi 0, %s47
  $region4: #{forward.9} parent=0 // loop_header_branch
    %10 = sbr.rel (%p8) target = $region8
  $region5: #{forward.9} parent=0 // loop_body
    %s12 = ssub.s32 %s7, 1
    %s13 = ssub.s32 %s7, 2
    %s14 = sadd.s32 %s7, 1
    %s15 = ssub.s32 %s7, %s14
    %p16 = scmp.eq.s32.totalorder %s15, 0
    %s18 = sadd.s32 %s17, 1
    %s19 = scalar_select %p16, %s17, %s18
    %p22 = pneg %p16
    %p23 = scmp.eq.s32.totalorder %s7, 3
    %p24 = por %p22, %p23
    %p25 = scmp.ne.s32.totalorder %s17, %s20
    %p26 = scmp.eq.s32.totalorder %s7, 0
    %p27 = por %p25, %p26
    %p28 = scmp.ne.s32.totalorder %s17, %s20
    %p29 = scmp.eq.s32.totalorder %s12, 3
    %p30 = por %p28, %p29
    %p31 = scmp.ne.s32.totalorder %s20, %s21
    %p32 = scmp.eq.s32.totalorder %s12, 0
    %p33 = por %p31, %p32
    %p34 = scmp.ne.s32.totalorder %s20, %s21
    %p35 = scmp.eq.s32.totalorder %s13, 3
    %p36 = por %p34, %p35
    %p38 = scmp.ne.s32.totalorder %s21, %s37
    %p39 = scmp.eq.s32.totalorder %s13, 0
    %p40 = por %p38, %p39
    %s41 = ssub.s32 %s7, %s14
    %p42 = scmp.eq.s32.totalorder %s41, 0
    %s44 = sadd.s32 %s43, 1
    %s45 = scalar_select %p42, %s43, %s44
    %p48 = pneg %p42
    %p49 = scmp.eq.s32.totalorder %s7, 3
    %p50 = por %p48, %p49
    %p51 = scmp.ne.s32.totalorder %s43, %s46
    %p52 = scmp.eq.s32.totalorder %s7, 0
    %p53 = por %p51, %p52
    %p54 = scmp.ne.s32.totalorder %s43, %s46
    %p55 = scmp.eq.s32.totalorder %s12, 3
    %p56 = por %p54, %p55
    %p57 = scmp.ne.s32.totalorder %s46, %s47
    %p58 = scmp.eq.s32.totalorder %s12, 0
    %p59 = por %p57, %p58
    %p60 = scmp.ne.s32.totalorder %s46, %s47
    %p61 = scmp.eq.s32.totalorder %s13, 3
    %p62 = por %p60, %p61
    %p64 = scmp.ne.s32.totalorder %s47, %s63
    %p65 = scmp.eq.s32.totalorder %s13, 0
    %p66 = por %p64, %p65
    %p67 = scmp.le.s32.totalorder 1, %s7
    %p68 = scmp.lt.s32.totalorder %s7, 5
    %p69 = pnand %p67, %p68
    %p70 = pneg %p69
    // Predicated region
    $region9: #{forward.9} parent=5 // pred_check
      _
    $region10: #{forward.9} parent=5 // pred_check_branch
      %72 = sbr.rel (%p69) target = $region12
    $region11: #{forward.9} parent=5 // pred_region
      %s73 = ssub.s32 %s7, 1
    $region12: #{forward.9} parent=5 // pred_fallthru
      _
    %p74 = scmp.lt.s32.totalorder %s7, 4
    // Predicated region
    $region13: #{forward.9} parent=5 // pred_check
      %p75 = pneg %p74
    $region14: #{forward.9} parent=5 // pred_check_branch
      %77 = sbr.rel (%p75) target = $region16
    $region15: #{forward.9} parent=5 // pred_region
      // Predicated region
      $region17: #{forward.9} parent=15 // pred_check
        %p78 = pneg %p27
      $region18: #{forward.9} parent=15 // pred_check_branch
        %80 = sbr.rel (%p78) target = $region20
      $region19: #{forward.9} parent=15 // pred_region
        %s81 = smul.u32 8, %s7
        %p82 = scmp.lt.s32.totalorder %s81, 31
        %s83 = scalar_select %p82, %s81, 31
        %s84 = smul.addr %s83, 4
        %s85 = smul.addr %s84, 4
        %s86 = scalar_lea.vmem %s0, %s85
        %s87 = smul.u32 8, %s7
      $region20: #{forward.9} parent=15 // pred_fallthru
        _
    $region16: #{forward.9} parent=5 // pred_fallthru
      _
    %p88 = scmp.le.s32.totalorder 1, %s7
    %p89 = scmp.lt.s32.totalorder %s7, 5
    %p90 = pnand %p88, %p89
    %p91 = pneg %p90
    // Predicated region
    $region21: #{forward.9} parent=5 // pred_check
      _
    $region22: #{forward.9} parent=5 // pred_check_branch
      %93 = sbr.rel (%p90) target = $region24
    $region23: #{forward.9} parent=5 // pred_region
      %s94 = ssub.s32 %s7, 1
      %s95 = smul.u32 8, %s12
      %p96 = scmp.lt.s32.totalorder %s95, 31
      %s97 = scalar_select %p96, %s95, 31
      %s98 = smul.addr %s97, 4
      %s99 = smul.addr %s98, 4
      %s100 = scalar_lea.vmem %s0, %s99
      %p101 = pneg %p33
      %p102 = pneg %p30
      %p103 = pneg %p59
      %p104 = pneg %p56
      %s105 = smul.u32 8, %s12
      %p106 = scmp.lt.s32.totalorder %s105, 31
      %s107 = scalar_select %p106, %s105, 31
      %s108 = smul.addr %s107, 2
      %s109 = smul.addr %s108, 4
      %s110 = scalar_lea.vmem %s1, %s109
      %s111 = smul.u32 8, %s12
      %p112 = scmp.lt.s32.totalorder %s111, 31
      %s113 = scalar_select %p112, %s111, 31
      %s114 = smul.addr %s113, 4
      %s115 = smul.addr %s114, 4
      %s116 = scalar_lea.vmem %s0, %s115
      %s117 = smul.u32 8, %s12
      %s118 = smul.u32 8, %s12
      %p119 = scmp.lt.s32.totalorder %s118, 31
      %s120 = scalar_select %p119, %s118, 31
      %s121 = smul.addr %s120, 2
      %s122 = smul.addr %s121, 4
      %s123 = scalar_lea.vmem %s1, %s122
      %s124 = smul.u32 8, %s12
      %v125 = vld [vmem:[%s116] sm:$0xf]
      %v126 = vld [vmem:[%s116 + $0x4] sm:$0xf]
      %v127 = vld [vmem:[%s116 + $0x8] sm:$0xf]
      %v128 = vld [vmem:[%s116 + $0xc] sm:$0xf]
      %v129 = vld [vmem:[%s116 + $0x10] sm:$0xf]
      %v130 = vld [vmem:[%s116 + $0x14] sm:$0xf]
      %v131 = vld [vmem:[%s116 + $0x18] sm:$0xf]
      %v132 = vld [vmem:[%s116 + $0x1c] sm:$0xf]
      %v133 = vld [vmem:[%s116 + $0x20] sm:$0xf]
      %v134 = vld [vmem:[%s116 + $0x24] sm:$0xf]
      %v135 = vld [vmem:[%s116 + $0x28] sm:$0xf]
      %v136 = vld [vmem:[%s116 + $0x2c] sm:$0xf]
      %v137 = vld [vmem:[%s116 + $0x30] sm:$0xf]
      %v138 = vld [vmem:[%s116 + $0x34] sm:$0xf]
      %v139 = vld [vmem:[%s116 + $0x38] sm:$0xf]
      %v140 = vld [vmem:[%s116 + $0x3c] sm:$0xf]
      %v141 = vld [vmem:[%s116 + $0x40] sm:$0xf]
      %v142 = vld [vmem:[%s116 + $0x44] sm:$0xf]
      %v143 = vld [vmem:[%s116 + $0x48] sm:$0xf]
      %v144 = vld [vmem:[%s116 + $0x4c] sm:$0xf]
      %v145 = vld [vmem:[%s116 + $0x50] sm:$0xf]
      %v146 = vld [vmem:[%s116 + $0x54] sm:$0xf]
      %v147 = vld [vmem:[%s116 + $0x58] sm:$0xf]
      %v148 = vld [vmem:[%s116 + $0x5c] sm:$0xf]
      %v149 = vld [vmem:[%s116 + $0x60] sm:$0xf]
      %v150 = vld [vmem:[%s116 + $0x64] sm:$0xf]
      %v151 = vld [vmem:[%s116 + $0x68] sm:$0xf]
      %v152 = vld [vmem:[%s116 + $0x6c] sm:$0xf]
      %v153 = vld [vmem:[%s116 + $0x70] sm:$0xf]
      %v154 = vld [vmem:[%s116 + $0x74] sm:$0xf]
      %v155 = vld [vmem:[%s116 + $0x78] sm:$0xf]
      %v156 = vld [vmem:[%s116 + $0x7c] sm:$0xf]
      %v157 = vmax.bf16 %v125, %v127
      %v158 = vmax.bf16 %v126, %v128
      %v159 = vmax.bf16 %v129, %v131
      %v160 = vmax.bf16 %v130, %v132
      %v161 = vmax.bf16 %v133, %v135
      %v162 = vmax.bf16 %v134, %v136
      %v163 = vmax.bf16 %v137, %v139
      %v164 = vmax.bf16 %v138, %v140
      %v165 = vmax.bf16 %v141, %v143
      %v166 = vmax.bf16 %v142, %v144
      %v167 = vmax.bf16 %v145, %v147
      %v168 = vmax.bf16 %v146, %v148
      %v169 = vmax.bf16 %v149, %v151
      %v170 = vmax.bf16 %v150, %v152
      %v171 = vmax.bf16 %v153, %v155
      %v172 = vmax.bf16 %v154, %v156
      %189 = vrot.lane.b32.xlu0 %v157, 64
      %v190 = vpop.permute.xlu0 %189
      %191 = vrot.lane.b32.xlu0 %v158, 64
      %v192 = vpop.permute.xlu0 %191
      %193 = vrot.lane.b32.xlu0 %v159, 64
      %v194 = vpop.permute.xlu0 %193
      %195 = vrot.lane.b32.xlu0 %v160, 64
      %v196 = vpop.permute.xlu0 %195
      %197 = vrot.lane.b32.xlu0 %v161, 64
      %v198 = vpop.permute.xlu0 %197
      %199 = vrot.lane.b32.xlu0 %v162, 64
      %v200 = vpop.permute.xlu0 %199
      %201 = vrot.lane.b32.xlu0 %v163, 64
      %v202 = vpop.permute.xlu0 %201
      %203 = vrot.lane.b32.xlu0 %v164, 64
      %v204 = vpop.permute.xlu0 %203
      %205 = vrot.lane.b32.xlu0 %v165, 64
      %v206 = vpop.permute.xlu0 %205
      %207 = vrot.lane.b32.xlu0 %v166, 64
      %v208 = vpop.permute.xlu0 %207
      %209 = vrot.lane.b32.xlu0 %v167, 64
      %v210 = vpop.permute.xlu0 %209
      %211 = vrot.lane.b32.xlu0 %v168, 64
      %v212 = vpop.permute.xlu0 %211
      %213 = vrot.lane.b32.xlu0 %v169, 64
      %v214 = vpop.permute.xlu0 %213
      %215 = vrot.lane.b32.xlu0 %v170, 64
      %v216 = vpop.permute.xlu0 %215
      %217 = vrot.lane.b32.xlu0 %v171, 64
      %v218 = vpop.permute.xlu0 %217
      %219 = vrot.lane.b32.xlu0 %v172, 64
      %v220 = vpop.permute.xlu0 %219
      %v237 = vmax.bf16 %v157, %v190
      %v238 = vmax.bf16 %v158, %v192
      %v239 = vmax.bf16 %v159, %v194
      %v240 = vmax.bf16 %v160, %v196
      %v241 = vmax.bf16 %v161, %v198
      %v242 = vmax.bf16 %v162, %v200
      %v243 = vmax.bf16 %v163, %v202
      %v244 = vmax.bf16 %v164, %v204
      %v245 = vmax.bf16 %v165, %v206
      %v246 = vmax.bf16 %v166, %v208
      %v247 = vmax.bf16 %v167, %v210
      %v248 = vmax.bf16 %v168, %v212
      %v249 = vmax.bf16 %v169, %v214
      %v250 = vmax.bf16 %v170, %v216
      %v251 = vmax.bf16 %v171, %v218
      %v252 = vmax.bf16 %v172, %v220
      %vm253 = vcmask 519168
      %254 = vst.msk [vmem:[%s123] sm:$0xf] %vm253, %v237
      %255 = vst.msk [vmem:[%s123 + $0x4] sm:$0xf] %vm253, %v238
      %256 = vst.msk [vmem:[%s123 + $0x8] sm:$0xf] %vm253, %v239
      %257 = vst.msk [vmem:[%s123 + $0xc] sm:$0xf] %vm253, %v240
      %258 = vst.msk [vmem:[%s123 + $0x10] sm:$0xf] %vm253, %v241
      %259 = vst.msk [vmem:[%s123 + $0x14] sm:$0xf] %vm253, %v242
      %260 = vst.msk [vmem:[%s123 + $0x18] sm:$0xf] %vm253, %v243
      %261 = vst.msk [vmem:[%s123 + $0x1c] sm:$0xf] %vm253, %v244
      %262 = vst.msk [vmem:[%s123 + $0x20] sm:$0xf] %vm253, %v245
      %263 = vst.msk [vmem:[%s123 + $0x24] sm:$0xf] %vm253, %v246
      %264 = vst.msk [vmem:[%s123 + $0x28] sm:$0xf] %vm253, %v247
      %265 = vst.msk [vmem:[%s123 + $0x2c] sm:$0xf] %vm253, %v248
      %266 = vst.msk [vmem:[%s123 + $0x30] sm:$0xf] %vm253, %v249
      %267 = vst.msk [vmem:[%s123 + $0x34] sm:$0xf] %vm253, %v250
      %268 = vst.msk [vmem:[%s123 + $0x38] sm:$0xf] %vm253, %v251
      %269 = vst.msk [vmem:[%s123 + $0x3c] sm:$0xf] %vm253, %v252
      %s270 = smul.u32 8, %s12
      %p271 = scmp.lt.s32.totalorder %s270, 31
      %s272 = scalar_select %p271, %s270, 31
      %s273 = smul.addr %s272, 2
      %s274 = smul.addr %s273, 4
      %s275 = scalar_lea.vmem %s1, %s274
      // Predicated region
      $region25: #{forward.9} parent=23 // pred_check
        %p276 = pneg %p56
      $region26: #{forward.9} parent=23 // pred_check_branch
        %278 = sbr.rel (%p276) target = $region28
      $region27: #{forward.9} parent=23 // pred_region
        %s279 = smul.u32 8, %s12
      $region28: #{forward.9} parent=23 // pred_fallthru
        _
    $region24: #{forward.9} parent=5 // pred_fallthru
      _
    %p280 = scmp.le.s32.totalorder 2, %s7
    // Predicated region
    $region29: #{forward.9} parent=5 // pred_check
      %p281 = pneg %p280
    $region30: #{forward.9} parent=5 // pred_check_branch
      %283 = sbr.rel (%p281) target = $region32
    $region31: #{forward.9} parent=5 // pred_region
      %s284 = ssub.s32 %s7, 2
      // Predicated region
      $region33: #{forward.9} parent=31 // pred_check
        %p285 = pneg %p62
      $region34: #{forward.9} parent=31 // pred_check_branch
        %287 = sbr.rel (%p285) target = $region36
      $region35: #{forward.9} parent=31 // pred_region
        %s288 = smul.u32 8, %s13
        %p289 = scmp.lt.s32.totalorder %s288, 31
        %s290 = scalar_select %p289, %s288, 31
        %s291 = smul.addr %s290, 2
        %s292 = smul.addr %s291, 4
        %s293 = scalar_lea.vmem %s1, %s292
      $region36: #{forward.9} parent=31 // pred_fallthru
        _
    $region32: #{forward.9} parent=5 // pred_fallthru
      _
  $region6: #{forward.9} parent=0 // loop_footer
    %s11 = sadd.s32 1, %s7
  $region7: #{forward.9} parent=0 // loop_footer_branch
    %6 = sbr.rel target = $region3
  $region8: #{forward.9} parent=0 // loop_exit
    _

// kernel: forward.8
$region0: #{forward.8}
  #allocation0 [shape = 'u32[]', space=smem, size = 0x4, offset = 0x4, fixed_abs, tag = 'smem constant byte address 0x4 - core index']
  #allocation1 [shape = 'u32[144,128]{1,0:T(1,128)}', space=vmem, size = 0x12000, scoped, tag = 'internal scratch']
  #allocation2 [shape = 'f32[32,64]{1,0:T(8,128)}', space=vmem, size = 0x4000, scoped, tag = 'scratch operand']
  %s0 = inlined_call_operand.vmem [shape: bf16[2,34,34,1], index: 0, kind: input, shape index: {}]
  %s1 = inlined_call_operand.vmem [shape: bf16[3,3,1,64], index: 1, kind: input, shape index: {}]
  %s2 = inlined_call_operand.vmem [shape: f32[1,1,64], index: 2, kind: input, shape index: {}]
  %s3 = inlined_call_operand.vmem [shape: bf16[2,32,32,64], index: 3, kind: output, shape index: {}]
  %s4 = sld [smem:[#allocation0]]
  $region53: #{forward.8} parent=0
    _
  %s6 = ssub.s32 1, %s4
  %s7 = scalar_select 0, %s6, %s4
  loop: start=0, step=1, limit=194
  $region2: #{forward.8} parent=0 // loop_pre_header
    _
  $region3: #{forward.8} parent=0 // loop_header
    %s9 = sphi 0, %s13
    %p10 = scmp.ge.s32.totalorder %s9, 194
    %s16 = sphi 0, %s42
    %s17 = sphi 0, %s38
    %s18 = sphi 0, %s34
    %s19 = sphi 0, %s30
    %s20 = sphi 0, %s16
    %s21 = sphi 0, %s17
    %s22 = sphi 0, %s18
    %s23 = sphi 0, %s19
    %s24 = sphi 0, %s20
    %s25 = sphi 0, %s21
    %s26 = sphi 0, %s22
    %s27 = sphi 0, %s23
    %s53 = sphi 0, %s55
    %s56 = sphi 0, %s53
    %s57 = sphi 0, %s56
    %s73 = sphi 0, %s57
    %s83 = sphi 0, %s85
    %s86 = sphi 0, %s83
    %s87 = sphi 0, %s86
    %s103 = sphi 0, %s87
    %s109 = sphi 0, %s111
    %s112 = sphi 0, %s109
    %s113 = sphi 0, %s112
    %s129 = sphi 0, %s113
    %s141 = sphi 0, %s143
    %s144 = sphi 0, %s141
    %s145 = sphi 0, %s144
    %s161 = sphi 0, %s145
  $region4: #{forward.8} parent=0 // loop_header_branch
    %12 = sbr.rel (%p10) target = $region8
  $region5: #{forward.8} parent=0 // loop_body
    %s14 = ssub.s32 %s9, 1
    %s15 = ssub.s32 %s9, 2
    %s28 = sadd.s32 1, %s19
    %p29 = scmp.ge.s32.totalorder %s28, 3
    %s30 = scalar_select %p29, 0, %s28
    %s31 = sadd.s32 1, %s18
    %s32 = scalar_select %p29, %s31, %s18
    %p33 = scmp.ge.s32.totalorder %s32, 32
    %s34 = scalar_select %p33, 0, %s32
    %s35 = sadd.s32 1, %s17
    %s36 = scalar_select %p33, %s35, %s17
    %p37 = scmp.ge.s32.totalorder %s36, 2
    %s38 = scalar_select %p37, 0, %s36
    %s39 = sadd.s32 1, %s16
    %s40 = scalar_select %p37, %s39, %s16
    %p41 = scmp.ge.s32.totalorder %s40, 1
    %s42 = scalar_select %p41, 0, %s40
    %s43 = smul.u32 %s16, 2
    %s44 = sadd.s32 %s43, %s17
    %s45 = sadd.s32 %s18, %s19
    %s46 = smul.u32 %s42, 2
    %s47 = sadd.s32 %s46, %s38
    %s48 = sadd.s32 %s34, %s30
    %s49 = ssub.s32 %s44, %s47
    %s50 = ssub.s32 %s45, %s48
    %s51 = sor.u32 %s49, %s50
    %p52 = scmp.eq.s32.totalorder %s51, 0
    %s54 = sadd.s32 %s53, 1
    %s55 = scalar_select %p52, %s53, %s54
    %p58 = pneg %p52
    %p59 = scmp.eq.s32.totalorder %s9, 191
    %p60 = por %p58, %p59
    %p61 = scmp.ne.s32.totalorder %s53, %s56
    %p62 = scmp.eq.s32.totalorder %s9, 0
    %p63 = por %p61, %p62
    %p64 = scmp.ne.s32.totalorder %s53, %s56
    %p65 = scmp.eq.s32.totalorder %s14, 191
    %p66 = por %p64, %p65
    %p67 = scmp.ne.s32.totalorder %s56, %s57
    %p68 = scmp.eq.s32.totalorder %s14, 0
    %p69 = por %p67, %p68
    %p70 = scmp.ne.s32.totalorder %s56, %s57
    %p71 = scmp.eq.s32.totalorder %s15, 191
    %p72 = por %p70, %p71
    %p74 = scmp.ne.s32.totalorder %s57, %s73
    %p75 = scmp.eq.s32.totalorder %s15, 0
    %p76 = por %p74, %p75
    %s77 = smul.u32 %s16, 3
    %s78 = sadd.s32 %s77, %s19
    %s79 = smul.u32 %s42, 3
    %s80 = sadd.s32 %s79, %s30
    %s81 = ssub.s32 %s78, %s80
    %p82 = scmp.eq.s32.totalorder %s81, 0
    %s84 = sadd.s32 %s83, 1
    %s85 = scalar_select %p82, %s83, %s84
    %p88 = pneg %p82
    %p89 = scmp.eq.s32.totalorder %s9, 191
    %p90 = por %p88, %p89
    %p91 = scmp.ne.s32.totalorder %s83, %s86
    %p92 = scmp.eq.s32.totalorder %s9, 0
    %p93 = por %p91, %p92
    %p94 = scmp.ne.s32.totalorder %s83, %s86
    %p95 = scmp.eq.s32.totalorder %s14, 191
    %p96 = por %p94, %p95
    %p97 = scmp.ne.s32.totalorder %s86, %s87
    %p98 = scmp.eq.s32.totalorder %s14, 0
    %p99 = por %p97, %p98
    %p100 = scmp.ne.s32.totalorder %s86, %s87
    %p101 = scmp.eq.s32.totalorder %s15, 191
    %p102 = por %p100, %p101
    %p104 = scmp.ne.s32.totalorder %s87, %s103
    %p105 = scmp.eq.s32.totalorder %s15, 0
    %p106 = por %p104, %p105
    %s107 = ssub.s32 %s16, %s42
    %p108 = scmp.eq.s32.totalorder %s107, 0
    %s110 = sadd.s32 %s109, 1
    %s111 = scalar_select %p108, %s109, %s110
    %p114 = pneg %p108
    %p115 = scmp.eq.s32.totalorder %s9, 191
    %p116 = por %p114, %p115
    %p117 = scmp.ne.s32.totalorder %s109, %s112
    %p118 = scmp.eq.s32.totalorder %s9, 0
    %p119 = por %p117, %p118
    %p120 = scmp.ne.s32.totalorder %s109, %s112
    %p121 = scmp.eq.s32.totalorder %s14, 191
    %p122 = por %p120, %p121
    %p123 = scmp.ne.s32.totalorder %s112, %s113
    %p124 = scmp.eq.s32.totalorder %s14, 0
    %p125 = por %p123, %p124
    %p126 = scmp.ne.s32.totalorder %s112, %s113
    %p127 = scmp.eq.s32.totalorder %s15, 191
    %p128 = por %p126, %p127
    %p130 = scmp.ne.s32.totalorder %s113, %s129
    %p131 = scmp.eq.s32.totalorder %s15, 0
    %p132 = por %p130, %p131
    %s133 = smul.u32 %s16, 2
    %s134 = sadd.s32 %s133, %s17
    %s135 = smul.u32 %s42, 2
    %s136 = sadd.s32 %s135, %s38
    %s137 = ssub.s32 %s134, %s136
    %s138 = ssub.s32 %s18, %s34
    %s139 = sor.u32 %s137, %s138
    %p140 = scmp.eq.s32.totalorder %s139, 0
    %s142 = sadd.s32 %s141, 1
    %s143 = scalar_select %p140, %s141, %s142
    %p146 = pneg %p140
    %p147 = scmp.eq.s32.totalorder %s9, 191
    %p148 = por %p146, %p147
    %p149 = scmp.ne.s32.totalorder %s141, %s144
    %p150 = scmp.eq.s32.totalorder %s9, 0
    %p151 = por %p149, %p150
    %p152 = scmp.ne.s32.totalorder %s141, %s144
    %p153 = scmp.eq.s32.totalorder %s14, 191
    %p154 = por %p152, %p153
    %p155 = scmp.ne.s32.totalorder %s144, %s145
    %p156 = scmp.eq.s32.totalorder %s14, 0
    %p157 = por %p155, %p156
    %p158 = scmp.ne.s32.totalorder %s144, %s145
    %p159 = scmp.eq.s32.totalorder %s15, 191
    %p160 = por %p158, %p159
    %p162 = scmp.ne.s32.totalorder %s145, %s161
    %p163 = scmp.eq.s32.totalorder %s15, 0
    %p164 = por %p162, %p163
    %p165 = scmp.le.s32.totalorder 1, %s9
    %p166 = scmp.lt.s32.totalorder %s9, 193
    %p167 = pnand %p165, %p166
    %p168 = pneg %p167
    // Predicated region
    $region9: #{forward.8} parent=5 // pred_check
      _
    $region10: #{forward.8} parent=5 // pred_check_branch
      %170 = sbr.rel (%p167) target = $region12
    $region11: #{forward.8} parent=5 // pred_region
      %s171 = ssub.s32 %s9, 1
      // Predicated region
      $region13: #{forward.8} parent=11 // pred_check
        %p172 = pneg %p125
      $region14: #{forward.8} parent=11 // pred_check_branch
        %174 = sbr.rel (%p172) target = $region16
      $region15: #{forward.8} parent=11 // pred_region
        %p175 = scmp.lt.s32.totalorder %s20, 0
        %s176 = scalar_select %p175, %s20, 0
        %s177 = scalar_lea.vmem %s2, %s176
      $region16: #{forward.8} parent=11 // pred_fallthru
        _
    $region12: #{forward.8} parent=5 // pred_fallthru
      _
    %p178 = scmp.lt.s32.totalorder %s9, 192
    // Predicated region
    $region17: #{forward.8} parent=5 // pred_check
      %p179 = pneg %p178
    $region18: #{forward.8} parent=5 // pred_check_branch
      %181 = sbr.rel (%p179) target = $region20
    $region19: #{forward.8} parent=5 // pred_region
      // Predicated region
      $region21: #{forward.8} parent=19 // pred_check
        %p182 = pneg %p63
      $region22: #{forward.8} parent=19 // pred_check_branch
        %184 = sbr.rel (%p182) target = $region24
      $region23: #{forward.8} parent=19 // pred_region
        %s185 = smul.u32 %s16, 2
        %s186 = sadd.s32 %s185, %s17
        %s187 = sadd.s32 %s18, %s19
        %p188 = scmp.lt.s32.totalorder %s186, 1
        %s189 = scalar_select %p188, %s186, 1
        %p190 = scmp.lt.s32.totalorder %s187, 33
        %s191 = scalar_select %p190, %s187, 33
        %s192 = smul.addr %s191, 5
        %s193 = smul.addr %s189, 170
        %s194 = sadd.s32 %s192, %s193
        %s195 = smul.addr %s194, 4
        %s196 = scalar_lea.vmem %s0, %s195
        %s197 = smul.u32 %s16, 2
        %s198 = sadd.s32 %s197, %s17
        %s199 = sadd.s32 %s18, %s19
      $region24: #{forward.8} parent=19 // pred_fallthru
        _
      // Predicated region
      $region25: #{forward.8} parent=19 // pred_check
        %p200 = pneg %p93
      $region26: #{forward.8} parent=19 // pred_check_branch
        %202 = sbr.rel (%p200) target = $region28
      $region27: #{forward.8} parent=19 // pred_region
        %s203 = smul.u32 %s16, 3
        %s204 = sadd.s32 %s203, %s19
        %p205 = scmp.lt.s32.totalorder %s204, 2
        %s206 = scalar_select %p205, %s204, 2
        %s207 = smul.addr %s206, 3
        %s208 = scalar_lea.vmem %s1, %s207
        %s209 = smul.u32 %s16, 3
        %s210 = sadd.s32 %s209, %s19
      $region28: #{forward.8} parent=19 // pred_fallthru
        _
    $region20: #{forward.8} parent=5 // pred_fallthru
      _
    %p211 = scmp.le.s32.totalorder 1, %s9
    %p212 = scmp.lt.s32.totalorder %s9, 193
    %p213 = pnand %p211, %p212
    %p214 = pneg %p213
    // Predicated region
    $region29: #{forward.8} parent=5 // pred_check
      _
    $region30: #{forward.8} parent=5 // pred_check_branch
      %216 = sbr.rel (%p213) target = $region32
    $region31: #{forward.8} parent=5 // pred_region
      %s217 = ssub.s32 %s9, 1
      %s218 = smul.u32 %s20, 2
      %s219 = sadd.s32 %s218, %s21
      %s220 = sadd.s32 %s22, %s23
      %p221 = scmp.lt.s32.totalorder %s219, 1
      %s222 = scalar_select %p221, %s219, 1
      %p223 = scmp.lt.s32.totalorder %s220, 33
      %s224 = scalar_select %p223, %s220, 33
      %s225 = smul.addr %s224, 5
      %s226 = smul.addr %s222, 170
      %s227 = sadd.s32 %s225, %s226
      %s228 = smul.addr %s227, 4
      %s229 = scalar_lea.vmem %s0, %s228
      %p230 = pneg %p69
      %p231 = pneg %p66
      %s232 = smul.u32 %s20, 3
      %s233 = sadd.s32 %s232, %s23
      %p234 = scmp.lt.s32.totalorder %s233, 2
      %s235 = scalar_select %p234, %s233, 2
      %s236 = smul.addr %s235, 3
      %s237 = scalar_lea.vmem %s1, %s236
      %p238 = pneg %p99
      %p239 = pneg %p96
      %p240 = scmp.lt.s32.totalorder %s20, 0
      %s241 = scalar_select %p240, %s20, 0
      %s242 = scalar_lea.vmem %s2, %s241
      %p243 = pneg %p125
      %p244 = pneg %p122
      %p245 = pneg %p157
      %p246 = pneg %p154
      %s247 = smul.u32 %s20, 2
      %s248 = sadd.s32 %s247, %s21
      %p249 = scmp.lt.s32.totalorder %s248, 1
      %s250 = scalar_select %p249, %s248, 1
      %p251 = scmp.lt.s32.totalorder %s22, 31
      %s252 = scalar_select %p251, %s22, 31
      %s253 = smul.addr %s252, 4
      %s254 = smul.addr %s250, 128
      %s255 = sadd.s32 %s253, %s254
      %s256 = smul.addr %s255, 4
      %s257 = scalar_lea.vmem %s3, %s256
      %s258 = smul.u32 %s20, 2
      %s259 = sadd.s32 %s258, %s21
      %s260 = sadd.s32 %s22, %s23
      %p261 = scmp.lt.s32.totalorder %s259, 1
      %s262 = scalar_select %p261, %s259, 1
      %p263 = scmp.lt.s32.totalorder %s260, 33
      %s264 = scalar_select %p263, %s260, 33
      %s265 = smul.addr %s264, 5
      %s266 = smul.addr %s262, 170
      %s267 = sadd.s32 %s265, %s266
      %s268 = smul.addr %s267, 4
      %s269 = scalar_lea.vmem %s0, %s268
      %s270 = smul.u32 %s20, 2
      %s271 = sadd.s32 %s270, %s21
      %s272 = sadd.s32 %s22, %s23
      %s273 = smul.u32 %s20, 3
      %s274 = sadd.s32 %s273, %s23
      %p275 = scmp.lt.s32.totalorder %s274, 2
      %s276 = scalar_select %p275, %s274, 2
      %s277 = smul.addr %s276, 3
      %s278 = scalar_lea.vmem %s1, %s277
      %s279 = smul.u32 %s20, 3
      %s280 = sadd.s32 %s279, %s23
      %p281 = scmp.lt.s32.totalorder %s20, 0
      %s282 = scalar_select %p281, %s20, 0
      %s283 = scalar_lea.vmem %s2, %s282
      %s284 = smul.u32 %s20, 2
      %s285 = sadd.s32 %s284, %s21
      %p286 = scmp.lt.s32.totalorder %s285, 1
      %s287 = scalar_select %p286, %s285, 1
      %p288 = scmp.lt.s32.totalorder %s22, 31
      %s289 = scalar_select %p288, %s22, 31
      %s290 = smul.addr %s289, 4
      %s291 = smul.addr %s287, 128
      %s292 = sadd.s32 %s290, %s291
      %s293 = smul.addr %s292, 4
      %s294 = scalar_lea.vmem %s3, %s293
      %s295 = smul.u32 %s20, 2
      %s296 = sadd.s32 %s295, %s21
      %p297 = scmp.eq.s32.totalorder %s23, 0
      // Predicated region
      $region33: #{forward.8} parent=31 // pred_check
        %p298 = pneg %p297
      $region34: #{forward.8} parent=31 // pred_check_branch
        %300 = sbr.rel (%p298) target = $region36
      $region35: #{forward.8} parent=31 // pred_region
        %vm301 = vcmask 523264
        %302 = vst.msk [vmem:[#allocation2] sm:$0xff] %vm301, 0.0
        %303 = vst.msk [vmem:[#allocation2 + $0x8] sm:$0xff] %vm301, 0.0
        %304 = vst.msk [vmem:[#allocation2 + $0x10] sm:$0xff] %vm301, 0.0
        %305 = vst.msk [vmem:[#allocation2 + $0x18] sm:$0xff] %vm301, 0.0
      $region36: #{forward.8} parent=31 // pred_fallthru
        _
      %v306 = vld [vmem:[%s269] sm:$0xf]
      %v307 = vld [vmem:[%s269 + $0x4] sm:$0xf]
      %v308 = vld [vmem:[%s269 + $0x8] sm:$0xf]
      %v309 = vld [vmem:[%s269 + $0xc] sm:$0xf]
      %v310 = vld [vmem:[%s269 + $0x10] sm:$0x1]
      %v311 = vld [vmem:[%s278] sm:$0x1]
      %v312 = vld [vmem:[#allocation2] sm:$0xff]
      %v313 = vld [vmem:[#allocation2 + $0x8] sm:$0xff]
      %v314 = vld [vmem:[#allocation2 + $0x10] sm:$0xff]
      %v315 = vld [vmem:[#allocation2 + $0x18] sm:$0xff]
      %v316 = vunpack.c.l.bf16 %v306
      %v317 = vunpack.c.l.bf16 %v307
      %v318 = vunpack.c.l.bf16 %v308
      %v319 = vunpack.c.l.bf16 %v309
      %v320 = vunpack.c.l.bf16 %v311
      %322 = vset.pattern.permute.xlu0 0
      %323 = vperm.xlu0 %322, %v316
      %v324 = vpop.permute.xlu0 %323
      %327 = vset.pattern.permute.xlu0 0
      %328 = vperm.xlu0 %327, %v317
      %v329 = vpop.permute.xlu0 %328
      %332 = vset.pattern.permute.xlu0 0
      %333 = vperm.xlu0 %332, %v318
      %v334 = vpop.permute.xlu0 %333
      %337 = vset.pattern.permute.xlu0 0
      %338 = vperm.xlu0 %337, %v319
      %v339 = vpop.permute.xlu0 %338
      %v341 = vlaneseq
      %v342 = vshrl.u32 %v341, 7
      %v343 = vsub.s32 0, %v342
      %v344 = vrot.slane %v320, %v343
      %v345 = vmul.f32 %v324, %v344
      %v346 = vmul.f32 %v329, %v344
      %v347 = vmul.f32 %v334, %v344
      %v348 = vmul.f32 %v339, %v344
      %v349 = vadd.f32 %v312, %v345
      %v350 = vadd.f32 %v313, %v346
      %v351 = vadd.f32 %v314, %v347
      %v352 = vadd.f32 %v315, %v348
      %vm353 = vcmask 523264
      %354 = vst.msk [vmem:[#allocation2] sm:$0xff] %vm353, %v349
      %355 = vst.msk [vmem:[#allocation2 + $0x8] sm:$0xff] %vm353, %v350
      %356 = vst.msk [vmem:[#allocation2 + $0x10] sm:$0xff] %vm353, %v351
      %357 = vst.msk [vmem:[#allocation2 + $0x18] sm:$0xff] %vm353, %v352
      %s358 = scalar_lea.vmem %s278, 1
      %v359 = vld [vmem:[%s358] sm:$0x1]
      %v360 = vld [vmem:[#allocation2] sm:$0xff]
      %v361 = vld [vmem:[#allocation2 + $0x8] sm:$0xff]
      %v362 = vld [vmem:[#allocation2 + $0x10] sm:$0xff]
      %v363 = vld [vmem:[#allocation2 + $0x18] sm:$0xff]
      %v364 = vunpack.c.l.bf16 %v310
      %v365 = vunpack.c.l.bf16 %v359
      %367 = vset.pattern.permute.xlu0 0
      %368 = vperm.xlu0 %367, %v364
      %v369 = vpop.permute.xlu0 %368
      %v371 = vlaneseq
      %v372 = vshrl.u32 %v371, 7
      %v373 = vsub.s32 0, %v372
      %v374 = vrot.slane %v365, %v373
      %v375 = vmul.f32 %v324, %v374
      %v376 = vmul.f32 %v329, %v374
      %v377 = vmul.f32 %v334, %v374
      %v378 = vmul.f32 %v339, %v374
      %v379 = vmul.f32 %v369, %v374
      %vm385 = vcmask 1046528
      %v386 = vrot.slane %v375, 1
      %v387 = vrot.slane %v376, 1
      %v388 = vsel %vm385, %v386, %v387
      %v389 = vrot.slane %v377, 1
      %v390 = vsel %vm385, %v387, %v389
      %v391 = vrot.slane %v378, 1
      %v392 = vsel %vm385, %v389, %v391
      %v393 = vrot.slane %v379, 1
      %v394 = vsel %vm385, %v391, %v393
      %v399 = vadd.f32 %v360, %v388
      %v400 = vadd.f32 %v361, %v390
      %v401 = vadd.f32 %v362, %v392
      %v402 = vadd.f32 %v363, %v394
      %403 = vst.msk [vmem:[#allocation2] sm:$0xff] %vm353, %v399
      %404 = vst.msk [vmem:[#allocation2 + $0x8] sm:$0xff] %vm353, %v400
      %405 = vst.msk [vmem:[#allocation2 + $0x10] sm:$0xff] %vm353, %v401
      %406 = vst.msk [vmem:[#allocation2 + $0x18] sm:$0xff] %vm353, %v402
      %s407 = scalar_lea.vmem %s278, 2
      %v408 = vld [vmem:[%s407] sm:$0x1]
      %v409 = vld [vmem:[#allocation2] sm:$0xff]
      %v410 = vld [vmem:[#allocation2 + $0x8] sm:$0xff]
      %v411 = vld [vmem:[#allocation2 + $0x10] sm:$0xff]
      %v412 = vld [vmem:[#allocation2 + $0x18] sm:$0xff]
      %v413 = vunpack.c.l.bf16 %v408
      %v414 = vlaneseq
      %v415 = vshrl.u32 %v414, 7
      %v416 = vsub.s32 0, %v415
      %v417 = vrot.slane %v413, %v416
      %v418 = vmul.f32 %v324, %v417
      %v419 = vmul.f32 %v329, %v417
      %v420 = vmul.f32 %v334, %v417
      %v421 = vmul.f32 %v339, %v417
      %v422 = vmul.f32 %v369, %v417
      %vm428 = vcmask 1045504
      %v429 = vrot.slane %v418, 2
      %v430 = vrot.slane %v419, 2
      %v431 = vsel %vm428, %v429, %v430
      %v432 = vrot.slane %v420, 2
      %v433 = vsel %vm428, %v430, %v432
      %v434 = vrot.slane %v421, 2
      %v435 = vsel %vm428, %v432, %v434
      %v436 = vrot.slane %v422, 2
      %v437 = vsel %vm428, %v434, %v436
      %v442 = vadd.f32 %v409, %v431
      %v443 = vadd.f32 %v410, %v433
      %v444 = vadd.f32 %v411, %v435
      %v445 = vadd.f32 %v412, %v437
      %446 = vst.msk [vmem:[#allocation2] sm:$0xff] %vm353, %v442
      %447 = vst.msk [vmem:[#allocation2 + $0x8] sm:$0xff] %vm353, %v443
      %448 = vst.msk [vmem:[#allocation2 + $0x10] sm:$0xff] %vm353, %v444
      %449 = vst.msk [vmem:[#allocation2 + $0x18] sm:$0xff] %vm353, %v445
      %p450 = scmp.eq.s32.totalorder %s23, 2
      // Predicated region
      $region37: #{forward.8} parent=31 // pred_check
        %p451 = pneg %p450
      $region38: #{forward.8} parent=31 // pred_check_branch
        %453 = sbr.rel (%p451) target = $region40
      $region39: #{forward.8} parent=31 // pred_region
        %v454 = vld [vmem:[#allocation2] sm:$0xff]
        %v455 = vld [vmem:[#allocation2 + $0x8] sm:$0xff]
        %v456 = vld [vmem:[#allocation2 + $0x10] sm:$0xff]
        %v457 = vld [vmem:[#allocation2 + $0x18] sm:$0xff]
        %v458 = vld [vmem:[%s283] sm:$0x1]
        %v460 = vlaneseq
        %v461 = vshrl.u32 %v460, 7
        %v462 = vsub.s32 0, %v461
        %v463 = vrot.slane %v458, %v462
        %v465 = vadd.f32 %v454, %v463
        %v466 = vadd.f32 %v455, %v463
        %v467 = vadd.f32 %v456, %v463
        %v468 = vadd.f32 %v457, %v463
        %v469 = vmax.f32 %v465, 0.0
        %v470 = vmax.f32 %v466, 0.0
        %v471 = vmax.f32 %v467, 0.0
        %v472 = vmax.f32 %v468, 0.0
        %v473 = vpack.c.bf16 %v470, %v469
        %v474 = vpack.c.bf16 %v472, %v471
        %v477 = vunpack.c.l.b16 %v473
        %v478 = vunpack.c.h.b16 %v473
        %v479 = vunpack.c.l.b16 %v474
        %v480 = vunpack.c.h.b16 %v474
        %v481 = vpack.c.b16 %v477, %v477
        %v482 = vpack.c.b16 %v478, %v478
        %v483 = vpack.c.b16 %v479, %v479
        %v484 = vpack.c.b16 %v480, %v480
        %vm489 = vcmask 519168
        %490 = vst.msk [vmem:[%s294] sm:$0xf] %vm489, %v481
        %491 = vst.msk [vmem:[%s294 + $0x4] sm:$0xf] %vm489, %v482
        %492 = vst.msk [vmem:[%s294 + $0x8] sm:$0xf] %vm489, %v483
        %493 = vst.msk [vmem:[%s294 + $0xc] sm:$0xf] %vm489, %v484
      $region40: #{forward.8} parent=31 // pred_fallthru
        _
      %s494 = smul.u32 %s20, 2
      %s495 = sadd.s32 %s494, %s21
      %p496 = scmp.lt.s32.totalorder %s495, 1
      %s497 = scalar_select %p496, %s495, 1
      %p498 = scmp.lt.s32.totalorder %s22, 31
      %s499 = scalar_select %p498, %s22, 31
      %s500 = smul.addr %s499, 4
      %s501 = smul.addr %s497, 128
      %s502 = sadd.s32 %s500, %s501
      %s503 = smul.addr %s502, 4
      %s504 = scalar_lea.vmem %s3, %s503
      // Predicated region
      $region41: #{forward.8} parent=31 // pred_check
        %p505 = pneg %p154
      $region42: #{forward.8} parent=31 // pred_check_branch
        %507 = sbr.rel (%p505) target = $region44
      $region43: #{forward.8} parent=31 // pred_region
        %s508 = smul.u32 %s20, 2
        %s509 = sadd.s32 %s508, %s21
      $region44: #{forward.8} parent=31 // pred_fallthru
        _
    $region32: #{forward.8} parent=5 // pred_fallthru
      _
    %p510 = scmp.le.s32.totalorder 2, %s9
    // Predicated region
    $region45: #{forward.8} parent=5 // pred_check
      %p511 = pneg %p510
    $region46: #{forward.8} parent=5 // pred_check_branch
      %513 = sbr.rel (%p511) target = $region48
    $region47: #{forward.8} parent=5 // pred_region
      %s514 = ssub.s32 %s9, 2
      // Predicated region
      $region49: #{forward.8} parent=47 // pred_check
        %p515 = pneg %p160
      $region50: #{forward.8} parent=47 // pred_check_branch
        %517 = sbr.rel (%p515) target = $region52
      $region51: #{forward.8} parent=47 // pred_region
        %s518 = smul.u32 %s24, 2
        %s519 = sadd.s32 %s518, %s25
        %p520 = scmp.lt.s32.totalorder %s519, 1
        %s521 = scalar_select %p520, %s519, 1
        %p522 = scmp.lt.s32.totalorder %s26, 31
        %s523 = scalar_select %p522, %s26, 31
        %s524 = smul.addr %s523, 4
        %s525 = smul.addr %s521, 128
        %s526 = sadd.s32 %s524, %s525
        %s527 = smul.addr %s526, 4
        %s528 = scalar_lea.vmem %s3, %s527
      $region52: #{forward.8} parent=47 // pred_fallthru
        _
    $region48: #{forward.8} parent=5 // pred_fallthru
      _
  $region6: #{forward.8} parent=0 // loop_footer
    %s13 = sadd.s32 1, %s9
  $region7: #{forward.8} parent=0 // loop_footer_branch
    %8 = sbr.rel target = $region3
  $region8: #{forward.8} parent=0 // loop_exit
    _

// kernel: forward.10
$region0: #{forward.10}
  #allocation0 [shape = 'u32[]', space=smem, size = 0x4, offset = 0x4, fixed_abs, tag = 'smem constant byte address 0x4 - core index']
  #allocation1 [shape = 'u32[144,128]{1,0:T(1,128)}', space=vmem, size = 0x12000, scoped, tag = 'internal scratch']
  %s0 = inlined_call_operand.vmem [shape: bf16[512,64], index: 0, kind: input, shape index: {}]
  %s1 = inlined_call_operand.vmem [shape: bf16[64,128], index: 1, kind: input, shape index: {}]
  %s2 = inlined_call_operand.vmem [shape: f32[1,128], index: 2, kind: input, shape index: {}]
  %s3 = inlined_call_operand.vmem [shape: bf16[512,128], index: 3, kind: output, shape index: {}]
  %s4 = sld [smem:[#allocation0]]
  $region45: #{forward.10} parent=0
    _
  %s6 = ssub.s32 1, %s4
  %s7 = scalar_select 0, %s6, %s4
  loop: start=0, step=1, limit=4
  $region2: #{forward.10} parent=0 // loop_pre_header
    _
  $region3: #{forward.10} parent=0 // loop_header
    %s9 = sphi 0, %s13
    %p10 = scmp.ge.s32.totalorder %s9, 4
    %s19 = sphi 0, %s21
    %s22 = sphi 0, %s19
    %s23 = sphi 0, %s22
    %s39 = sphi 0, %s23
    %s43 = sphi 0, %s43
    %s45 = sphi 0, %s43
    %s46 = sphi 0, %s45
    %s60 = sphi 0, %s46
    %s64 = sphi 0, %s64
    %s66 = sphi 0, %s64
    %s67 = sphi 0, %s66
    %s81 = sphi 0, %s67
    %s87 = sphi 0, %s89
    %s90 = sphi 0, %s87
    %s91 = sphi 0, %s90
    %s107 = sphi 0, %s91
  $region4: #{forward.10} parent=0 // loop_header_branch
    %12 = sbr.rel (%p10) target = $region8
  $region5: #{forward.10} parent=0 // loop_body
    %s14 = ssub.s32 %s9, 1
    %s15 = ssub.s32 %s9, 2
    %s16 = sadd.s32 %s9, 1
    %s17 = ssub.s32 %s9, %s16
    %p18 = scmp.eq.s32.totalorder %s17, 0
    %s20 = sadd.s32 %s19, 1
    %s21 = scalar_select %p18, %s19, %s20
    %p24 = pneg %p18
    %p25 = scmp.eq.s32.totalorder %s9, 1
    %p26 = por %p24, %p25
    %p27 = scmp.ne.s32.totalorder %s19, %s22
    %p28 = scmp.eq.s32.totalorder %s9, 0
    %p29 = por %p27, %p28
    %p30 = scmp.ne.s32.totalorder %s19, %s22
    %p31 = scmp.eq.s32.totalorder %s14, 1
    %p32 = por %p30, %p31
    %p33 = scmp.ne.s32.totalorder %s22, %s23
    %p34 = scmp.eq.s32.totalorder %s14, 0
    %p35 = por %p33, %p34
    %p36 = scmp.ne.s32.totalorder %s22, %s23
    %p37 = scmp.eq.s32.totalorder %s15, 1
    %p38 = por %p36, %p37
    %p40 = scmp.ne.s32.totalorder %s23, %s39
    %p41 = scmp.eq.s32.totalorder %s15, 0
    %p42 = por %p40, %p41
    %s44 = sadd.s32 %s43, 1
    %p47 = scmp.eq.s32.totalorder %s9, 1
    %p48 = scmp.ne.s32.totalorder %s43, %s45
    %p49 = scmp.eq.s32.totalorder %s9, 0
    %p50 = por %p48, %p49
    %p51 = scmp.ne.s32.totalorder %s43, %s45
    %p52 = scmp.eq.s32.totalorder %s14, 1
    %p53 = por %p51, %p52
    %p54 = scmp.ne.s32.totalorder %s45, %s46
    %p55 = scmp.eq.s32.totalorder %s14, 0
    %p56 = por %p54, %p55
    %p57 = scmp.ne.s32.totalorder %s45, %s46
    %p58 = scmp.eq.s32.totalorder %s15, 1
    %p59 = por %p57, %p58
    %p61 = scmp.ne.s32.totalorder %s46, %s60
    %p62 = scmp.eq.s32.totalorder %s15, 0
    %p63 = por %p61, %p62
    %s65 = sadd.s32 %s64, 1
    %p68 = scmp.eq.s32.totalorder %s9, 1
    %p69 = scmp.ne.s32.totalorder %s64, %s66
    %p70 = scmp.eq.s32.totalorder %s9, 0
    %p71 = por %p69, %p70
    %p72 = scmp.ne.s32.totalorder %s64, %s66
    %p73 = scmp.eq.s32.totalorder %s14, 1
    %p74 = por %p72, %p73
    %p75 = scmp.ne.s32.totalorder %s66, %s67
    %p76 = scmp.eq.s32.totalorder %s14, 0
    %p77 = por %p75, %p76
    %p78 = scmp.ne.s32.totalorder %s66, %s67
    %p79 = scmp.eq.s32.totalorder %s15, 1
    %p80 = por %p78, %p79
    %p82 = scmp.ne.s32.totalorder %s67, %s81
    %p83 = scmp.eq.s32.totalorder %s15, 0
    %p84 = por %p82, %p83
    %s85 = ssub.s32 %s9, %s16
    %p86 = scmp.eq.s32.totalorder %s85, 0
    %s88 = sadd.s32 %s87, 1
    %s89 = scalar_select %p86, %s87, %s88
    %p92 = pneg %p86
    %p93 = scmp.eq.s32.totalorder %s9, 1
    %p94 = por %p92, %p93
    %p95 = scmp.ne.s32.totalorder %s87, %s90
    %p96 = scmp.eq.s32.totalorder %s9, 0
    %p97 = por %p95, %p96
    %p98 = scmp.ne.s32.totalorder %s87, %s90
    %p99 = scmp.eq.s32.totalorder %s14, 1
    %p100 = por %p98, %p99
    %p101 = scmp.ne.s32.totalorder %s90, %s91
    %p102 = scmp.eq.s32.totalorder %s14, 0
    %p103 = por %p101, %p102
    %p104 = scmp.ne.s32.totalorder %s90, %s91
    %p105 = scmp.eq.s32.totalorder %s15, 1
    %p106 = por %p104, %p105
    %p108 = scmp.ne.s32.totalorder %s91, %s107
    %p109 = scmp.eq.s32.totalorder %s15, 0
    %p110 = por %p108, %p109
    %p111 = scmp.le.s32.totalorder 1, %s9
    %p112 = scmp.lt.s32.totalorder %s9, 3
    %p113 = pnand %p111, %p112
    %p114 = pneg %p113
    // Predicated region
    $region9: #{forward.10} parent=5 // pred_check
      _
    $region10: #{forward.10} parent=5 // pred_check_branch
      %116 = sbr.rel (%p113) target = $region12
    $region11: #{forward.10} parent=5 // pred_region
      %s117 = ssub.s32 %s9, 1
      // Predicated region
      $region13: #{forward.10} parent=11 // pred_check
        %p118 = pneg %p56
      $region14: #{forward.10} parent=11 // pred_check_branch
        %120 = sbr.rel (%p118) target = $region16
      $region15: #{forward.10} parent=11 // pred_region
        _
      $region16: #{forward.10} parent=11 // pred_fallthru
        _
      // Predicated region
      $region17: #{forward.10} parent=11 // pred_check
        %p121 = pneg %p77
      $region18: #{forward.10} parent=11 // pred_check_branch
        %123 = sbr.rel (%p121) target = $region20
      $region19: #{forward.10} parent=11 // pred_region
        _
      $region20: #{forward.10} parent=11 // pred_fallthru
        _
    $region12: #{forward.10} parent=5 // pred_fallthru
      _
    %p124 = scmp.lt.s32.totalorder %s9, 2
    // Predicated region
    $region21: #{forward.10} parent=5 // pred_check
      %p125 = pneg %p124
    $region22: #{forward.10} parent=5 // pred_check_branch
      %127 = sbr.rel (%p125) target = $region24
    $region23: #{forward.10} parent=5 // pred_region
      // Predicated region
      $region25: #{forward.10} parent=23 // pred_check
        %p128 = pneg %p29
      $region26: #{forward.10} parent=23 // pred_check_branch
        %130 = sbr.rel (%p128) target = $region28
      $region27: #{forward.10} parent=23 // pred_region
        %s131 = smul.u32 32, %s9
        %p132 = scmp.lt.s32.totalorder %s131, 63
        %s133 = scalar_select %p132, %s131, 63
        %s134 = smul.addr %s133, 4
        %s135 = scalar_lea.vmem %s0, %s134
        %s136 = smul.u32 32, %s9
      $region28: #{forward.10} parent=23 // pred_fallthru
        _
    $region24: #{forward.10} parent=5 // pred_fallthru
      _
    %p137 = scmp.le.s32.totalorder 1, %s9
    %p138 = scmp.lt.s32.totalorder %s9, 3
    %p139 = pnand %p137, %p138
    %p140 = pneg %p139
    // Predicated region
    $region29: #{forward.10} parent=5 // pred_check
      _
    $region30: #{forward.10} parent=5 // pred_check_branch
      %142 = sbr.rel (%p139) target = $region32
    $region31: #{forward.10} parent=5 // pred_region
      %s143 = ssub.s32 %s9, 1
      %s144 = smul.u32 32, %s14
      %p145 = scmp.lt.s32.totalorder %s144, 63
      %s146 = scalar_select %p145, %s144, 63
      %s147 = smul.addr %s146, 4
      %s148 = scalar_lea.vmem %s0, %s147
      %p149 = pneg %p35
      %p150 = pneg %p32
      %p151 = pneg %p56
      %p152 = pneg %p53
      %p153 = pneg %p77
      %p154 = pneg %p74
      %p155 = pneg %p103
      %p156 = pneg %p100
      %s157 = smul.u32 32, %s14
      %p158 = scmp.lt.s32.totalorder %s157, 63
      %s159 = scalar_select %p158, %s157, 63
      %s160 = smul.addr %s159, 4
      %s161 = scalar_lea.vmem %s3, %s160
      %s162 = smul.u32 32, %s14
      %p163 = scmp.lt.s32.totalorder %s162, 63
      %s164 = scalar_select %p163, %s162, 63
      %s165 = smul.addr %s164, 4
      %s166 = scalar_lea.vmem %s0, %s165
      %s167 = smul.u32 32, %s14
      %s168 = smul.u32 32, %s14
      %p169 = scmp.lt.s32.totalorder %s168, 63
      %s170 = scalar_select %p169, %s168, 63
      %s171 = smul.addr %s170, 4
      %s172 = scalar_lea.vmem %s3, %s171
      %s173 = smul.u32 32, %s14
      %v175 = vld [vmem:[%s166] sm:$0xf]
      %v176 = vld [vmem:[%s166 + $0x4] sm:$0xf]
      %v177 = vld [vmem:[%s166 + $0x8] sm:$0xf]
      %v178 = vld [vmem:[%s166 + $0xc] sm:$0xf]
      %v179 = vld [vmem:[%s166 + $0x10] sm:$0xf]
      %v180 = vld [vmem:[%s166 + $0x14] sm:$0xf]
      %v181 = vld [vmem:[%s166 + $0x18] sm:$0xf]
      %v182 = vld [vmem:[%s166 + $0x1c] sm:$0xf]
      %v183 = vld [vmem:[%s166 + $0x20] sm:$0xf]
      %v184 = vld [vmem:[%s166 + $0x24] sm:$0xf]
      %v185 = vld [vmem:[%s166 + $0x28] sm:$0xf]
      %v186 = vld [vmem:[%s166 + $0x2c] sm:$0xf]
      %v187 = vld [vmem:[%s166 + $0x30] sm:$0xf]
      %v188 = vld [vmem:[%s166 + $0x34] sm:$0xf]
      %v189 = vld [vmem:[%s166 + $0x38] sm:$0xf]
      %v190 = vld [vmem:[%s166 + $0x3c] sm:$0xf]
      %v191 = vld [vmem:[%s166 + $0x40] sm:$0xf]
      %v192 = vld [vmem:[%s166 + $0x44] sm:$0xf]
      %v193 = vld [vmem:[%s166 + $0x48] sm:$0xf]
      %v194 = vld [vmem:[%s166 + $0x4c] sm:$0xf]
      %v195 = vld [vmem:[%s166 + $0x50] sm:$0xf]
      %v196 = vld [vmem:[%s166 + $0x54] sm:$0xf]
      %v197 = vld [vmem:[%s166 + $0x58] sm:$0xf]
      %v198 = vld [vmem:[%s166 + $0x5c] sm:$0xf]
      %v199 = vld [vmem:[%s166 + $0x60] sm:$0xf]
      %v200 = vld [vmem:[%s166 + $0x64] sm:$0xf]
      %v201 = vld [vmem:[%s166 + $0x68] sm:$0xf]
      %v202 = vld [vmem:[%s166 + $0x6c] sm:$0xf]
      %v203 = vld [vmem:[%s166 + $0x70] sm:$0xf]
      %v204 = vld [vmem:[%s166 + $0x74] sm:$0xf]
      %v205 = vld [vmem:[%s166 + $0x78] sm:$0xf]
      %v206 = vld [vmem:[%s166 + $0x7c] sm:$0xf]
      %v207 = vld [vmem:[%s1] sm:$0xf]
      %v208 = vld [vmem:[%s1 + $0x4] sm:$0xf]
      %v209 = vld [vmem:[%s1 + $0x8] sm:$0xf]
      %v210 = vld [vmem:[%s1 + $0xc] sm:$0xf]
      %v211 = vld [vmem:[%s1 + $0x10] sm:$0xf]
      %v212 = vld [vmem:[%s1 + $0x14] sm:$0xf]
      %v213 = vld [vmem:[%s1 + $0x18] sm:$0xf]
      %v214 = vld [vmem:[%s1 + $0x1c] sm:$0xf]
      %v215 = vld [vmem:[%s2] sm:$0x1]
      %v217 = vlaneseq
      %v218 = vshrl.u32 %v217, 7
      %v219 = vsub.s32 0, %v218
      %v220 = vrot.slane %v215, %v219
      %v254 = vunpack.c.l.b16 %v175
      %v255 = vunpack.c.l.b16 %v176
      %v256 = vunpack.c.l.b16 %v177
      %v257 = vunpack.c.l.b16 %v178
      %v258 = vunpack.c.l.b16 %v179
      %v259 = vunpack.c.l.b16 %v180
      %v260 = vunpack.c.l.b16 %v181
      %v261 = vunpack.c.l.b16 %v182
      %v262 = vunpack.c.l.b16 %v183
      %v263 = vunpack.c.l.b16 %v184
      %v264 = vunpack.c.l.b16 %v185
      %v265 = vunpack.c.l.b16 %v186
      %v266 = vunpack.c.l.b16 %v187
      %v267 = vunpack.c.l.b16 %v188
      %v268 = vunpack.c.l.b16 %v189
      %v269 = vunpack.c.l.b16 %v190
      %v270 = vunpack.c.l.b16 %v191
      %v271 = vunpack.c.l.b16 %v192
      %v272 = vunpack.c.l.b16 %v193
      %v273 = vunpack.c.l.b16 %v194
      %v274 = vunpack.c.l.b16 %v195
      %v275 = vunpack.c.l.b16 %v196
      %v276 = vunpack.c.l.b16 %v197
      %v277 = vunpack.c.l.b16 %v198
      %v278 = vunpack.c.l.b16 %v199
      %v279 = vunpack.c.l.b16 %v200
      %v280 = vunpack.c.l.b16 %v201
      %v281 = vunpack.c.l.b16 %v202
      %v282 = vunpack.c.l.b16 %v203
      %v283 = vunpack.c.l.b16 %v204
      %v284 = vunpack.c.l.b16 %v205
      %v285 = vunpack.c.l.b16 %v206
      %v286 = vpack.c.b16 %v255, %v254
      %v287 = vpack.c.b16 %v257, %v256
      %v288 = vpack.c.b16 %v259, %v258
      %v289 = vpack.c.b16 %v261, %v260
      %v290 = vpack.c.b16 %v263, %v262
      %v291 = vpack.c.b16 %v265, %v264
      %v292 = vpack.c.b16 %v267, %v266
      %v293 = vpack.c.b16 %v269, %v268
      %v294 = vpack.c.b16 %v271, %v270
      %v295 = vpack.c.b16 %v273, %v272
      %v296 = vpack.c.b16 %v275, %v274
      %v297 = vpack.c.b16 %v277, %v276
      %v298 = vpack.c.b16 %v279, %v278
      %v299 = vpack.c.b16 %v281, %v280
      %v300 = vpack.c.b16 %v283, %v282
      %v301 = vpack.c.b16 %v285, %v284
      %v310 = vunpack.c.l.b16 %v207
      %v311 = vunpack.c.l.b16 %v208
      %v312 = vunpack.c.l.b16 %v209
      %v313 = vunpack.c.l.b16 %v210
      %v314 = vunpack.c.l.b16 %v211
      %v315 = vunpack.c.l.b16 %v212
      %v316 = vunpack.c.l.b16 %v213
      %v317 = vunpack.c.l.b16 %v214
      %v318 = vpack.c.b16 %v311, %v310
      %v319 = vpack.c.b16 %v313, %v312
      %v320 = vpack.c.b16 %v315, %v314
      %v321 = vpack.c.b16 %v317, %v316
      %vm326 = vcmask 523264
      %v328 = vsel %vm326, %v286, 0
      %v331 = vsel %vm326, %v287, 0
      %v334 = vsel %vm326, %v288, 0
      %v337 = vsel %vm326, %v289, 0
      %v340 = vsel %vm326, %v290, 0
      %v343 = vsel %vm326, %v291, 0
      %v346 = vsel %vm326, %v292, 0
      %v349 = vsel %vm326, %v293, 0
      %v352 = vsel %vm326, %v294, 0
      %v355 = vsel %vm326, %v295, 0
      %v358 = vsel %vm326, %v296, 0
      %v361 = vsel %vm326, %v297, 0
      %v364 = vsel %vm326, %v298, 0
      %v367 = vsel %vm326, %v299, 0
      %v370 = vsel %vm326, %v300, 0
      %v373 = vsel %vm326, %v301, 0
      %375 = vmatprep.subr.bf16.mxu0 0
      %376 = vmatpush1.bf16.msra.mxu0 %v318
      %377 = vmatprep.subr.bf16.mxu0 0
      %378 = vmatpush1.bf16.msra.mxu0 %v319
      %379 = vmatprep.subr.bf16.mxu0 0
      %380 = vmatpush1.bf16.msra.mxu0 %v320
      %381 = vmatprep.subr.bf16.mxu0 0
      %382 = vmatpush1.bf16.msra.mxu0 %v321
      %383 = vmatprep.subr.bf16.mxu0 0
      %384 = vmatpush1.bf16.msra.mxu0 0
      %385 = vmatprep.subr.bf16.mxu0 0
      %386 = vmatpush1.bf16.msra.mxu0 0
      %387 = vmatprep.subr.bf16.mxu0 0
      %388 = vmatpush1.bf16.msra.mxu0 0
      %389 = vmatprep.subr.bf16.mxu0 0
      %390 = vmatpush1.bf16.msra.mxu0 0
      %391 = vmatprep.subr.bf16.mxu0 0
      %392 = vmatpush1.bf16.msra.mxu0 0
      %393 = vmatprep.subr.bf16.mxu0 0
      %394 = vmatpush1.bf16.msra.mxu0 0
      %395 = vmatprep.subr.bf16.mxu0 0
      %396 = vmatpush1.bf16.msra.mxu0 0
      %397 = vmatprep.subr.bf16.mxu0 0
      %398 = vmatpush1.bf16.msra.mxu0 0
      %399 = vmatprep.subr.bf16.mxu0 0
      %400 = vmatpush1.bf16.msra.mxu0 0
      %401 = vmatprep.subr.bf16.mxu0 0
      %402 = vmatpush1.bf16.msra.mxu0 0
      %403 = vmatprep.subr.bf16.mxu0 0
      %404 = vmatpush1.bf16.msra.mxu0 0
      %405 = vmatprep.subr.bf16.mxu0 0
      %406 = vmatpush1.bf16.msra.mxu0 0
      %407 = vmatprep.mubr.bf16.mxu0 0
      %408 = vmatmul.mubr.bf16.gmra.mrb[0].mxu0 %v328
      %v409 = vpop.f32.mrb[0].mxu0
      %v410 = vadd.f32 %v220, %v409
      %v411 = vpop.f32.mrb[0].mxu0
      %v412 = vpop.f32.mrb[0].mxu0
      %v413 = vadd.f32 %v220, %v412
      %v414 = vpop.f32.mrb[0].mxu0
      %415 = vmatprep.mubr.bf16.mxu0 0
      %416 = vmatmul.mubr.bf16.gmra.mrb[0].mxu0 %v331
      %v417 = vpop.f32.mrb[0].mxu0
      %v418 = vadd.f32 %v220, %v417
      %v419 = vpop.f32.mrb[0].mxu0
      %v420 = vpop.f32.mrb[0].mxu0
      %v421 = vadd.f32 %v220, %v420
      %v422 = vpop.f32.mrb[0].mxu0
      %423 = vmatprep.mubr.bf16.mxu0 0
      %424 = vmatmul.mubr.bf16.gmra.mrb[0].mxu0 %v334
      %v425 = vpop.f32.mrb[0].mxu0
      %v426 = vadd.f32 %v220, %v425
      %v427 = vpop.f32.mrb[0].mxu0
      %v428 = vpop.f32.mrb[0].mxu0
      %v429 = vadd.f32 %v220, %v428
      %v430 = vpop.f32.mrb[0].mxu0
      %431 = vmatprep.mubr.bf16.mxu0 0
      %432 = vmatmul.mubr.bf16.gmra.mrb[0].mxu0 %v337
      %v433 = vpop.f32.mrb[0].mxu0
      %v434 = vadd.f32 %v220, %v433
      %v435 = vpop.f32.mrb[0].mxu0
      %v436 = vpop.f32.mrb[0].mxu0
      %v437 = vadd.f32 %v220, %v436
      %v438 = vpop.f32.mrb[0].mxu0
      %439 = vmatprep.mubr.bf16.mxu0 0
      %440 = vmatmul.mubr.bf16.gmra.mrb[0].mxu0 %v340
      %v441 = vpop.f32.mrb[0].mxu0
      %v442 = vadd.f32 %v220, %v441
      %v443 = vpop.f32.mrb[0].mxu0
      %v444 = vpop.f32.mrb[0].mxu0
      %v445 = vadd.f32 %v220, %v444
      %v446 = vpop.f32.mrb[0].mxu0
      %447 = vmatprep.mubr.bf16.mxu0 0
      %448 = vmatmul.mubr.bf16.gmra.mrb[0].mxu0 %v343
      %v449 = vpop.f32.mrb[0].mxu0
      %v450 = vadd.f32 %v220, %v449
      %v451 = vpop.f32.mrb[0].mxu0
      %v452 = vpop.f32.mrb[0].mxu0
      %v453 = vadd.f32 %v220, %v452
      %v454 = vpop.f32.mrb[0].mxu0
      %455 = vmatprep.mubr.bf16.mxu0 0
      %456 = vmatmul.mubr.bf16.gmra.mrb[0].mxu0 %v346
      %v457 = vpop.f32.mrb[0].mxu0
      %v458 = vadd.f32 %v220, %v457
      %v459 = vpop.f32.mrb[0].mxu0
      %v460 = vpop.f32.mrb[0].mxu0
      %v461 = vadd.f32 %v220, %v460
      %v462 = vpop.f32.mrb[0].mxu0
      %463 = vmatprep.mubr.bf16.mxu0 0
      %464 = vmatmul.mubr.bf16.gmra.mrb[0].mxu0 %v349
      %v465 = vpop.f32.mrb[0].mxu0
      %v466 = vadd.f32 %v220, %v465
      %v467 = vpop.f32.mrb[0].mxu0
      %v468 = vpop.f32.mrb[0].mxu0
      %v469 = vadd.f32 %v220, %v468
      %v470 = vpop.f32.mrb[0].mxu0
      %471 = vmatprep.mubr.bf16.mxu0 0
      %472 = vmatmul.mubr.bf16.gmra.mrb[0].mxu0 %v352
      %v473 = vpop.f32.mrb[0].mxu0
      %v474 = vadd.f32 %v220, %v473
      %v475 = vpop.f32.mrb[0].mxu0
      %v476 = vpop.f32.mrb[0].mxu0
      %v477 = vadd.f32 %v220, %v476
      %v478 = vpop.f32.mrb[0].mxu0
      %479 = vmatprep.mubr.bf16.mxu0 0
      %480 = vmatmul.mubr.bf16.gmra.mrb[0].mxu0 %v355
      %v481 = vpop.f32.mrb[0].mxu0
      %v482 = vadd.f32 %v220, %v481
      %v483 = vpop.f32.mrb[0].mxu0
      %v484 = vpop.f32.mrb[0].mxu0
      %v485 = vadd.f32 %v220, %v484
      %v486 = vpop.f32.mrb[0].mxu0
      %487 = vmatprep.mubr.bf16.mxu0 0
      %488 = vmatmul.mubr.bf16.gmra.mrb[0].mxu0 %v358
      %v489 = vpop.f32.mrb[0].mxu0
      %v490 = vadd.f32 %v220, %v489
      %v491 = vpop.f32.mrb[0].mxu0
      %v492 = vpop.f32.mrb[0].mxu0
      %v493 = vadd.f32 %v220, %v492
      %v494 = vpop.f32.mrb[0].mxu0
      %495 = vmatprep.mubr.bf16.mxu0 0
      %496 = vmatmul.mubr.bf16.gmra.mrb[0].mxu0 %v361
      %v497 = vpop.f32.mrb[0].mxu0
      %v498 = vadd.f32 %v220, %v497
      %v499 = vpop.f32.mrb[0].mxu0
      %v500 = vpop.f32.mrb[0].mxu0
      %v501 = vadd.f32 %v220, %v500
      %v502 = vpop.f32.mrb[0].mxu0
      %503 = vmatprep.mubr.bf16.mxu0 0
      %504 = vmatmul.mubr.bf16.gmra.mrb[0].mxu0 %v364
      %v505 = vpop.f32.mrb[0].mxu0
      %v506 = vadd.f32 %v220, %v505
      %v507 = vpop.f32.mrb[0].mxu0
      %v508 = vpop.f32.mrb[0].mxu0
      %v509 = vadd.f32 %v220, %v508
      %v510 = vpop.f32.mrb[0].mxu0
      %511 = vmatprep.mubr.bf16.mxu0 0
      %512 = vmatmul.mubr.bf16.gmra.mrb[0].mxu0 %v367
      %v513 = vpop.f32.mrb[0].mxu0
      %v514 = vadd.f32 %v220, %v513
      %v515 = vpop.f32.mrb[0].mxu0
      %v516 = vpop.f32.mrb[0].mxu0
      %v517 = vadd.f32 %v220, %v516
      %v518 = vpop.f32.mrb[0].mxu0
      %519 = vmatprep.mubr.bf16.mxu0 0
      %520 = vmatmul.mubr.bf16.gmra.mrb[0].mxu0 %v370
      %v521 = vpop.f32.mrb[0].mxu0
      %v522 = vadd.f32 %v220, %v521
      %v523 = vpop.f32.mrb[0].mxu0
      %v524 = vpop.f32.mrb[0].mxu0
      %v525 = vadd.f32 %v220, %v524
      %v526 = vpop.f32.mrb[0].mxu0
      %527 = vmatprep.mubr.bf16.mxu0 0
      %528 = vmatmul.mubr.bf16.gmra.mrb[0].mxu0 %v373
      %v529 = vpop.f32.mrb[0].mxu0
      %v530 = vadd.f32 %v220, %v529
      %v531 = vpop.f32.mrb[0].mxu0
      %v532 = vpop.f32.mrb[0].mxu0
      %v533 = vadd.f32 %v220, %v532
      %v534 = vpop.f32.mrb[0].mxu0
      %535 = vdwg.mxu0
      %v536 = vmax.f32 %v410, 0.0
      %v537 = vmax.f32 %v413, 0.0
      %v538 = vmax.f32 %v418, 0.0
      %v539 = vmax.f32 %v421, 0.0
      %v540 = vmax.f32 %v426, 0.0
      %v541 = vmax.f32 %v429, 0.0
      %v542 = vmax.f32 %v434, 0.0
      %v543 = vmax.f32 %v437, 0.0
      %v544 = vmax.f32 %v442, 0.0
      %v545 = vmax.f32 %v445, 0.0
      %v546 = vmax.f32 %v450, 0.0
      %v547 = vmax.f32 %v453, 0.0
      %v548 = vmax.f32 %v458, 0.0
      %v549 = vmax.f32 %v461, 0.0
      %v550 = vmax.f32 %v466, 0.0
      %v551 = vmax.f32 %v469, 0.0
      %v552 = vmax.f32 %v474, 0.0
      %v553 = vmax.f32 %v477, 0.0
      %v554 = vmax.f32 %v482, 0.0
      %v555 = vmax.f32 %v485, 0.0
      %v556 = vmax.f32 %v490, 0.0
      %v557 = vmax.f32 %v493, 0.0
      %v558 = vmax.f32 %v498, 0.0
      %v559 = vmax.f32 %v501, 0.0
      %v560 = vmax.f32 %v506, 0.0
      %v561 = vmax.f32 %v509, 0.0
      %v562 = vmax.f32 %v514, 0.0
      %v563 = vmax.f32 %v517, 0.0
      %v564 = vmax.f32 %v522, 0.0
      %v565 = vmax.f32 %v525, 0.0
      %v566 = vmax.f32 %v530, 0.0
      %v567 = vmax.f32 %v533, 0.0
      %v568 = vpack.c.bf16 %v537, %v536
      %v569 = vpack.c.bf16 %v539, %v538
      %v570 = vpack.c.bf16 %v541, %v540
      %v571 = vpack.c.bf16 %v543, %v542
      %v572 = vpack.c.bf16 %v545, %v544
      %v573 = vpack.c.bf16 %v547, %v546
      %v574 = vpack.c.bf16 %v549, %v548
      %v575 = vpack.c.bf16 %v551, %v550
      %v576 = vpack.c.bf16 %v553, %v552
      %v577 = vpack.c.bf16 %v555, %v554
      %v578 = vpack.c.bf16 %v557, %v556
      %v579 = vpack.c.bf16 %v559, %v558
      %v580 = vpack.c.bf16 %v561, %v560
      %v581 = vpack.c.bf16 %v563, %v562
      %v582 = vpack.c.bf16 %v565, %v564
      %v583 = vpack.c.bf16 %v567, %v566
      %v600 = vunpack.c.l.b16 %v568
      %v601 = vunpack.c.h.b16 %v568
      %v602 = vunpack.c.l.b16 %v569
      %v603 = vunpack.c.h.b16 %v569
      %v604 = vunpack.c.l.b16 %v570
      %v605 = vunpack.c.h.b16 %v570
      %v606 = vunpack.c.l.b16 %v571
      %v607 = vunpack.c.h.b16 %v571
      %v608 = vunpack.c.l.b16 %v572
      %v609 = vunpack.c.h.b16 %v572
      %v610 = vunpack.c.l.b16 %v573
      %v611 = vunpack.c.h.b16 %v573
      %v612 = vunpack.c.l.b16 %v574
      %v613 = vunpack.c.h.b16 %v574
      %v614 = vunpack.c.l.b16 %v575
      %v615 = vunpack.c.h.b16 %v575
      %v616 = vunpack.c.l.b16 %v576
      %v617 = vunpack.c.h.b16 %v576
      %v618 = vunpack.c.l.b16 %v577
      %v619 = vunpack.c.h.b16 %v577
      %v620 = vunpack.c.l.b16 %v578
      %v621 = vunpack.c.h.b16 %v578
      %v622 = vunpack.c.l.b16 %v579
      %v623 = vunpack.c.h.b16 %v579
      %v624 = vunpack.c.l.b16 %v580
      %v625 = vunpack.c.h.b16 %v580
      %v626 = vunpack.c.l.b16 %v581
      %v627 = vunpack.c.h.b16 %v581
      %v628 = vunpack.c.l.b16 %v582
      %v629 = vunpack.c.h.b16 %v582
      %v630 = vunpack.c.l.b16 %v583
      %v631 = vunpack.c.h.b16 %v583
      %v632 = vpack.c.b16 %v600, %v600
      %v633 = vpack.c.b16 %v601, %v601
      %v634 = vpack.c.b16 %v602, %v602
      %v635 = vpack.c.b16 %v603, %v603
      %v636 = vpack.c.b16 %v604, %v604
      %v637 = vpack.c.b16 %v605, %v605
      %v638 = vpack.c.b16 %v606, %v606
      %v639 = vpack.c.b16 %v607, %v607
      %v640 = vpack.c.b16 %v608, %v608
      %v641 = vpack.c.b16 %v609, %v609
      %v642 = vpack.c.b16 %v610, %v610
      %v643 = vpack.c.b16 %v611, %v611
      %v644 = vpack.c.b16 %v612, %v612
      %v645 = vpack.c.b16 %v613, %v613
      %v646 = vpack.c.b16 %v614, %v614
      %v647 = vpack.c.b16 %v615, %v615
      %v648 = vpack.c.b16 %v616, %v616
      %v649 = vpack.c.b16 %v617, %v617
      %v650 = vpack.c.b16 %v618, %v618
      %v651 = vpack.c.b16 %v619, %v619
      %v652 = vpack.c.b16 %v620, %v620
      %v653 = vpack.c.b16 %v621, %v621
      %v654 = vpack.c.b16 %v622, %v622
      %v655 = vpack.c.b16 %v623, %v623
      %v656 = vpack.c.b16 %v624, %v624
      %v657 = vpack.c.b16 %v625, %v625
      %v658 = vpack.c.b16 %v626, %v626
      %v659 = vpack.c.b16 %v627, %v627
      %v660 = vpack.c.b16 %v628, %v628
      %v661 = vpack.c.b16 %v629, %v629
      %v662 = vpack.c.b16 %v630, %v630
      %v663 = vpack.c.b16 %v631, %v631
      %696 = vst [vmem:[%s172] sm:$0xf] %v632
      %697 = vst [vmem:[%s172 + $0x4] sm:$0xf] %v633
      %698 = vst [vmem:[%s172 + $0x8] sm:$0xf] %v634
      %699 = vst [vmem:[%s172 + $0xc] sm:$0xf] %v635
      %700 = vst [vmem:[%s172 + $0x10] sm:$0xf] %v636
      %701 = vst [vmem:[%s172 + $0x14] sm:$0xf] %v637
      %702 = vst [vmem:[%s172 + $0x18] sm:$0xf] %v638
      %703 = vst [vmem:[%s172 + $0x1c] sm:$0xf] %v639
      %704 = vst [vmem:[%s172 + $0x20] sm:$0xf] %v640
      %705 = vst [vmem:[%s172 + $0x24] sm:$0xf] %v641
      %706 = vst [vmem:[%s172 + $0x28] sm:$0xf] %v642
      %707 = vst [vmem:[%s172 + $0x2c] sm:$0xf] %v643
      %708 = vst [vmem:[%s172 + $0x30] sm:$0xf] %v644
      %709 = vst [vmem:[%s172 + $0x34] sm:$0xf] %v645
      %710 = vst [vmem:[%s172 + $0x38] sm:$0xf] %v646
      %711 = vst [vmem:[%s172 + $0x3c] sm:$0xf] %v647
      %712 = vst [vmem:[%s172 + $0x40] sm:$0xf] %v648
      %713 = vst [vmem:[%s172 + $0x44] sm:$0xf] %v649
      %714 = vst [vmem:[%s172 + $0x48] sm:$0xf] %v650
      %715 = vst [vmem:[%s172 + $0x4c] sm:$0xf] %v651
      %716 = vst [vmem:[%s172 + $0x50] sm:$0xf] %v652
      %717 = vst [vmem:[%s172 + $0x54] sm:$0xf] %v653
      %718 = vst [vmem:[%s172 + $0x58] sm:$0xf] %v654
      %719 = vst [vmem:[%s172 + $0x5c] sm:$0xf] %v655
      %720 = vst [vmem:[%s172 + $0x60] sm:$0xf] %v656
      %721 = vst [vmem:[%s172 + $0x64] sm:$0xf] %v657
      %722 = vst [vmem:[%s172 + $0x68] sm:$0xf] %v658
      %723 = vst [vmem:[%s172 + $0x6c] sm:$0xf] %v659
      %724 = vst [vmem:[%s172 + $0x70] sm:$0xf] %v660
      %725 = vst [vmem:[%s172 + $0x74] sm:$0xf] %v661
      %726 = vst [vmem:[%s172 + $0x78] sm:$0xf] %v662
      %727 = vst [vmem:[%s172 + $0x7c] sm:$0xf] %v663
      %s728 = smul.u32 32, %s14
      %p729 = scmp.lt.s32.totalorder %s728, 63
      %s730 = scalar_select %p729, %s728, 63
      %s731 = smul.addr %s730, 4
      %s732 = scalar_lea.vmem %s3, %s731
      // Predicated region
      $region33: #{forward.10} parent=31 // pred_check
        %p733 = pneg %p100
      $region34: #{forward.10} parent=31 // pred_check_branch
        %735 = sbr.rel (%p733) target = $region36
      $region35: #{forward.10} parent=31 // pred_region
        %s736 = smul.u32 32, %s14
      $region36: #{forward.10} parent=31 // pred_fallthru
        _
    $region32: #{forward.10} parent=5 // pred_fallthru
      _
    %p737 = scmp.le.s32.totalorder 2, %s9
    // Predicated region
    $region37: #{forward.10} parent=5 // pred_check
      %p738 = pneg %p737
    $region38: #{forward.10} parent=5 // pred_check_branch
      %740 = sbr.rel (%p738) target = $region40
    $region39: #{forward.10} parent=5 // pred_region
      %s741 = ssub.s32 %s9, 2
      // Predicated region
      $region41: #{forward.10} parent=39 // pred_check
        %p742 = pneg %p106
      $region42: #{forward.10} parent=39 // pred_check_branch
        %744 = sbr.rel (%p742) target = $region44
      $region43: #{forward.10} parent=39 // pred_region
        %s745 = smul.u32 32, %s15
        %p746 = scmp.lt.s32.totalorder %s745, 63
        %s747 = scalar_select %p746, %s745, 63
        %s748 = smul.addr %s747, 4
        %s749 = scalar_lea.vmem %s3, %s748
      $region44: #{forward.10} parent=39 // pred_fallthru
        _
    $region40: #{forward.10} parent=5 // pred_fallthru
      _
  $region6: #{forward.10} parent=0 // loop_footer
    %s13 = sadd.s32 1, %s9
  $region7: #{forward.10} parent=0 // loop_footer_branch
    %8 = sbr.rel target = $region3
  $region8: #{forward.10} parent=0 // loop_exit
    _

// kernel: forward.11
$region0: #{forward.11}
  #allocation0 [shape = 'u32[]', space=smem, size = 0x4, offset = 0x4, fixed_abs, tag = 'smem constant byte address 0x4 - core index']
  #allocation1 [shape = 'u32[144,128]{1,0:T(1,128)}', space=vmem, size = 0x12000, scoped, tag = 'internal scratch']
  #allocation2 [shape = 'f32[16,32]{1,0:T(8,128)}', space=vmem, size = 0x2000, scoped, tag = 'scratch operand']
  %s0 = inlined_call_operand.vmem [shape: bf16[8,18,18,32], index: 0, kind: input, shape index: {}]
  %s1 = inlined_call_operand.vmem [shape: bf16[12,3,32,32], index: 1, kind: input, shape index: {}]
  %s2 = inlined_call_operand.vmem [shape: f32[4,1,32], index: 2, kind: input, shape index: {}]
  %s3 = inlined_call_operand.vmem [shape: bf16[8,16,16,32], index: 3, kind: output, shape index: {}]
  %s4 = sld [smem:[#allocation0]]
  $region53: #{forward.11} parent=0
    _
  %s6 = ssub.s32 1, %s4
  %s7 = scalar_select 0, %s6, %s4
  loop: start=0, step=1, limit=386
  $region2: #{forward.11} parent=0 // loop_pre_header
    _
  $region3: #{forward.11} parent=0 // loop_header
    %s9 = sphi 0, %s13
    %p10 = scmp.ge.s32.totalorder %s9, 386
    %s16 = sphi 0, %s42
    %s17 = sphi 0, %s38
    %s18 = sphi 0, %s34
    %s19 = sphi 0, %s30
    %s20 = sphi 0, %s16
    %s21 = sphi 0, %s17
    %s22 = sphi 0, %s18
    %s23 = sphi 0, %s19
    %s24 = sphi 0, %s20
    %s25 = sphi 0, %s21
    %s26 = sphi 0, %s22
    %s27 = sphi 0, %s23
    %s53 = sphi 0, %s55
    %s56 = sphi 0, %s53
    %s57 = sphi 0, %s56
    %s73 = sphi 0, %s57
    %s83 = sphi 0, %s85
    %s86 = sphi 0, %s83
    %s87 = sphi 0, %s86
    %s103 = sphi 0, %s87
    %s109 = sphi 0, %s111
    %s112 = sphi 0, %s109
    %s113 = sphi 0, %s112
    %s129 = sphi 0, %s113
    %s141 = sphi 0, %s143
    %s144 = sphi 0, %s141
    %s145 = sphi 0, %s144
    %s161 = sphi 0, %s145
  $region4: #{forward.11} parent=0 // loop_header_branch
    %12 = sbr.rel (%p10) target = $region8
  $region5: #{forward.11} parent=0 // loop_body
    %s14 = ssub.s32 %s9, 1
    %s15 = ssub.s32 %s9, 2
    %s28 = sadd.s32 1, %s19
    %p29 = scmp.ge.s32.totalorder %s28, 3
    %s30 = scalar_select %p29, 0, %s28
    %s31 = sadd.s32 1, %s18
    %s32 = scalar_select %p29, %s31, %s18
    %p33 = scmp.ge.s32.totalorder %s32, 16
    %s34 = scalar_select %p33, 0, %s32
    %s35 = sadd.s32 1, %s17
    %s36 = scalar_select %p33, %s35, %s17
    %p37 = scmp.ge.s32.totalorder %s36, 2
    %s38 = scalar_select %p37, 0, %s36
    %s39 = sadd.s32 1, %s16
    %s40 = scalar_select %p37, %s39, %s16
    %p41 = scmp.ge.s32.totalorder %s40, 4
    %s42 = scalar_select %p41, 0, %s40
    %s43 = smul.u32 %s16, 2
    %s44 = sadd.s32 %s43, %s17
    %s45 = sadd.s32 %s18, %s19
    %s46 = smul.u32 %s42, 2
    %s47 = sadd.s32 %s46, %s38
    %s48 = sadd.s32 %s34, %s30
    %s49 = ssub.s32 %s44, %s47
    %s50 = ssub.s32 %s45, %s48
    %s51 = sor.u32 %s49, %s50
    %p52 = scmp.eq.s32.totalorder %s51, 0
    %s54 = sadd.s32 %s53, 1
    %s55 = scalar_select %p52, %s53, %s54
    %p58 = pneg %p52
    %p59 = scmp.eq.s32.totalorder %s9, 383
    %p60 = por %p58, %p59
    %p61 = scmp.ne.s32.totalorder %s53, %s56
    %p62 = scmp.eq.s32.totalorder %s9, 0
    %p63 = por %p61, %p62
    %p64 = scmp.ne.s32.totalorder %s53, %s56
    %p65 = scmp.eq.s32.totalorder %s14, 383
    %p66 = por %p64, %p65
    %p67 = scmp.ne.s32.totalorder %s56, %s57
    %p68 = scmp.eq.s32.totalorder %s14, 0
    %p69 = por %p67, %p68
    %p70 = scmp.ne.s32.totalorder %s56, %s57
    %p71 = scmp.eq.s32.totalorder %s15, 383
    %p72 = por %p70, %p71
    %p74 = scmp.ne.s32.totalorder %s57, %s73
    %p75 = scmp.eq.s32.totalorder %s15, 0
    %p76 = por %p74, %p75
    %s77 = smul.u32 %s16, 3
    %s78 = sadd.s32 %s77, %s19
    %s79 = smul.u32 %s42, 3
    %s80 = sadd.s32 %s79, %s30
    %s81 = ssub.s32 %s78, %s80
    %p82 = scmp.eq.s32.totalorder %s81, 0
    %s84 = sadd.s32 %s83, 1
    %s85 = scalar_select %p82, %s83, %s84
    %p88 = pneg %p82
    %p89 = scmp.eq.s32.totalorder %s9, 383
    %p90 = por %p88, %p89
    %p91 = scmp.ne.s32.totalorder %s83, %s86
    %p92 = scmp.eq.s32.totalorder %s9, 0
    %p93 = por %p91, %p92
    %p94 = scmp.ne.s32.totalorder %s83, %s86
    %p95 = scmp.eq.s32.totalorder %s14, 383
    %p96 = por %p94, %p95
    %p97 = scmp.ne.s32.totalorder %s86, %s87
    %p98 = scmp.eq.s32.totalorder %s14, 0
    %p99 = por %p97, %p98
    %p100 = scmp.ne.s32.totalorder %s86, %s87
    %p101 = scmp.eq.s32.totalorder %s15, 383
    %p102 = por %p100, %p101
    %p104 = scmp.ne.s32.totalorder %s87, %s103
    %p105 = scmp.eq.s32.totalorder %s15, 0
    %p106 = por %p104, %p105
    %s107 = ssub.s32 %s16, %s42
    %p108 = scmp.eq.s32.totalorder %s107, 0
    %s110 = sadd.s32 %s109, 1
    %s111 = scalar_select %p108, %s109, %s110
    %p114 = pneg %p108
    %p115 = scmp.eq.s32.totalorder %s9, 383
    %p116 = por %p114, %p115
    %p117 = scmp.ne.s32.totalorder %s109, %s112
    %p118 = scmp.eq.s32.totalorder %s9, 0
    %p119 = por %p117, %p118
    %p120 = scmp.ne.s32.totalorder %s109, %s112
    %p121 = scmp.eq.s32.totalorder %s14, 383
    %p122 = por %p120, %p121
    %p123 = scmp.ne.s32.totalorder %s112, %s113
    %p124 = scmp.eq.s32.totalorder %s14, 0
    %p125 = por %p123, %p124
    %p126 = scmp.ne.s32.totalorder %s112, %s113
    %p127 = scmp.eq.s32.totalorder %s15, 383
    %p128 = por %p126, %p127
    %p130 = scmp.ne.s32.totalorder %s113, %s129
    %p131 = scmp.eq.s32.totalorder %s15, 0
    %p132 = por %p130, %p131
    %s133 = smul.u32 %s16, 2
    %s134 = sadd.s32 %s133, %s17
    %s135 = smul.u32 %s42, 2
    %s136 = sadd.s32 %s135, %s38
    %s137 = ssub.s32 %s134, %s136
    %s138 = ssub.s32 %s18, %s34
    %s139 = sor.u32 %s137, %s138
    %p140 = scmp.eq.s32.totalorder %s139, 0
    %s142 = sadd.s32 %s141, 1
    %s143 = scalar_select %p140, %s141, %s142
    %p146 = pneg %p140
    %p147 = scmp.eq.s32.totalorder %s9, 383
    %p148 = por %p146, %p147
    %p149 = scmp.ne.s32.totalorder %s141, %s144
    %p150 = scmp.eq.s32.totalorder %s9, 0
    %p151 = por %p149, %p150
    %p152 = scmp.ne.s32.totalorder %s141, %s144
    %p153 = scmp.eq.s32.totalorder %s14, 383
    %p154 = por %p152, %p153
    %p155 = scmp.ne.s32.totalorder %s144, %s145
    %p156 = scmp.eq.s32.totalorder %s14, 0
    %p157 = por %p155, %p156
    %p158 = scmp.ne.s32.totalorder %s144, %s145
    %p159 = scmp.eq.s32.totalorder %s15, 383
    %p160 = por %p158, %p159
    %p162 = scmp.ne.s32.totalorder %s145, %s161
    %p163 = scmp.eq.s32.totalorder %s15, 0
    %p164 = por %p162, %p163
    %p165 = scmp.le.s32.totalorder 1, %s9
    %p166 = scmp.lt.s32.totalorder %s9, 385
    %p167 = pnand %p165, %p166
    %p168 = pneg %p167
    // Predicated region
    $region9: #{forward.11} parent=5 // pred_check
      _
    $region10: #{forward.11} parent=5 // pred_check_branch
      %170 = sbr.rel (%p167) target = $region12
    $region11: #{forward.11} parent=5 // pred_region
      %s171 = ssub.s32 %s9, 1
    $region12: #{forward.11} parent=5 // pred_fallthru
      _
    %p172 = scmp.lt.s32.totalorder %s9, 384
    // Predicated region
    $region13: #{forward.11} parent=5 // pred_check
      %p173 = pneg %p172
    $region14: #{forward.11} parent=5 // pred_check_branch
      %175 = sbr.rel (%p173) target = $region16
    $region15: #{forward.11} parent=5 // pred_region
      // Predicated region
      $region17: #{forward.11} parent=15 // pred_check
        %p176 = pneg %p63
      $region18: #{forward.11} parent=15 // pred_check_branch
        %178 = sbr.rel (%p176) target = $region20
      $region19: #{forward.11} parent=15 // pred_region
        %s179 = smul.u32 %s16, 2
        %s180 = sadd.s32 %s179, %s17
        %s181 = sadd.s32 %s18, %s19
        %p182 = scmp.lt.s32.totalorder %s180, 7
        %s183 = scalar_select %p182, %s180, 7
        %p184 = scmp.lt.s32.totalorder %s181, 17
        %s185 = scalar_select %p184, %s181, 17
        %s186 = smul.addr %s185, 3
        %s187 = smul.addr %s183, 54
        %s188 = sadd.s32 %s186, %s187
        %s189 = smul.addr %s188, 4
        %s190 = scalar_lea.vmem %s0, %s189
        %s191 = smul.u32 %s16, 2
        %s192 = sadd.s32 %s191, %s17
        %s193 = sadd.s32 %s18, %s19
      $region20: #{forward.11} parent=15 // pred_fallthru
        _
      // Predicated region
      $region21: #{forward.11} parent=15 // pred_check
        %p194 = pneg %p93
      $region22: #{forward.11} parent=15 // pred_check_branch
        %196 = sbr.rel (%p194) target = $region24
      $region23: #{forward.11} parent=15 // pred_region
        %s197 = smul.u32 %s16, 3
        %s198 = sadd.s32 %s197, %s19
        %p199 = scmp.lt.s32.totalorder %s198, 11
        %s200 = scalar_select %p199, %s198, 11
        %s201 = smul.addr %s200, 12
        %s202 = smul.addr %s201, 4
        %s203 = scalar_lea.vmem %s1, %s202
        %s204 = smul.u32 %s16, 3
        %s205 = sadd.s32 %s204, %s19
      $region24: #{forward.11} parent=15 // pred_fallthru
        _
      // Predicated region
      $region25: #{forward.11} parent=15 // pred_check
        %p206 = pneg %p119
      $region26: #{forward.11} parent=15 // pred_check_branch
        %208 = sbr.rel (%p206) target = $region28
      $region27: #{forward.11} parent=15 // pred_region
        %p209 = scmp.lt.s32.totalorder %s16, 3
        %s210 = scalar_select %p209, %s16, 3
        %s211 = scalar_lea.vmem %s2, %s210
      $region28: #{forward.11} parent=15 // pred_fallthru
        _
    $region16: #{forward.11} parent=5 // pred_fallthru
      _
    %p212 = scmp.le.s32.totalorder 1, %s9
    %p213 = scmp.lt.s32.totalorder %s9, 385
    %p214 = pnand %p212, %p213
    %p215 = pneg %p214
    // Predicated region
    $region29: #{forward.11} parent=5 // pred_check
      _
    $region30: #{forward.11} parent=5 // pred_check_branch
      %217 = sbr.rel (%p214) target = $region32
    $region31: #{forward.11} parent=5 // pred_region
      %s218 = ssub.s32 %s9, 1
      %s219 = smul.u32 %s20, 2
      %s220 = sadd.s32 %s219, %s21
      %s221 = sadd.s32 %s22, %s23
      %p222 = scmp.lt.s32.totalorder %s220, 7
      %s223 = scalar_select %p222, %s220, 7
      %p224 = scmp.lt.s32.totalorder %s221, 17
      %s225 = scalar_select %p224, %s221, 17
      %s226 = smul.addr %s225, 3
      %s227 = smul.addr %s223, 54
      %s228 = sadd.s32 %s226, %s227
      %s229 = smul.addr %s228, 4
      %s230 = scalar_lea.vmem %s0, %s229
      %p231 = pneg %p69
      %p232 = pneg %p66
      %s233 = smul.u32 %s20, 3
      %s234 = sadd.s32 %s233, %s23
      %p235 = scmp.lt.s32.totalorder %s234, 11
      %s236 = scalar_select %p235, %s234, 11
      %s237 = smul.addr %s236, 12
      %s238 = smul.addr %s237, 4
      %s239 = scalar_lea.vmem %s1, %s238
      %p240 = pneg %p99
      %p241 = pneg %p96
      %p242 = scmp.lt.s32.totalorder %s20, 3
      %s243 = scalar_select %p242, %s20, 3
      %s244 = scalar_lea.vmem %s2, %s243
      %p245 = pneg %p125
      %p246 = pneg %p122
      %p247 = pneg %p157
      %p248 = pneg %p154
      %s249 = smul.u32 %s20, 2
      %s250 = sadd.s32 %s249, %s21
      %p251 = scmp.lt.s32.totalorder %s250, 7
      %s252 = scalar_select %p251, %s250, 7
      %p253 = scmp.lt.s32.totalorder %s22, 15
      %s254 = scalar_select %p253, %s22, 15
      %s255 = smul.addr %s254, 2
      %s256 = smul.addr %s252, 32
      %s257 = sadd.s32 %s255, %s256
      %s258 = smul.addr %s257, 4
      %s259 = scalar_lea.vmem %s3, %s258
      %s260 = smul.u32 %s20, 2
      %s261 = sadd.s32 %s260, %s21
      %s262 = sadd.s32 %s22, %s23
      %p263 = scmp.lt.s32.totalorder %s261, 7
      %s264 = scalar_select %p263, %s261, 7
      %p265 = scmp.lt.s32.totalorder %s262, 17
      %s266 = scalar_select %p265, %s262, 17
      %s267 = smul.addr %s266, 3
      %s268 = smul.addr %s264, 54
      %s269 = sadd.s32 %s267, %s268
      %s270 = smul.addr %s269, 4
      %s271 = scalar_lea.vmem %s0, %s270
      %s272 = smul.u32 %s20, 2
      %s273 = sadd.s32 %s272, %s21
      %s274 = sadd.s32 %s22, %s23
      %s275 = smul.u32 %s20, 3
      %s276 = sadd.s32 %s275, %s23
      %p277 = scmp.lt.s32.totalorder %s276, 11
      %s278 = scalar_select %p277, %s276, 11
      %s279 = smul.addr %s278, 12
      %s280 = smul.addr %s279, 4
      %s281 = scalar_lea.vmem %s1, %s280
      %s282 = smul.u32 %s20, 3
      %s283 = sadd.s32 %s282, %s23
      %p284 = scmp.lt.s32.totalorder %s20, 3
      %s285 = scalar_select %p284, %s20, 3
      %s286 = scalar_lea.vmem %s2, %s285
      %s287 = smul.u32 %s20, 2
      %s288 = sadd.s32 %s287, %s21
      %p289 = scmp.lt.s32.totalorder %s288, 7
      %s290 = scalar_select %p289, %s288, 7
      %p291 = scmp.lt.s32.totalorder %s22, 15
      %s292 = scalar_select %p291, %s22, 15
      %s293 = smul.addr %s292, 2
      %s294 = smul.addr %s290, 32
      %s295 = sadd.s32 %s293, %s294
      %s296 = smul.addr %s295, 4
      %s297 = scalar_lea.vmem %s3, %s296
      %s298 = smul.u32 %s20, 2
      %s299 = sadd.s32 %s298, %s21
      %p301 = scmp.eq.s32.totalorder %s23, 0
      // Predicated region
      $region33: #{forward.11} parent=31 // pred_check
        %p302 = pneg %p301
      $region34: #{forward.11} parent=31 // pred_check_branch
        %304 = sbr.rel (%p302) target = $region36
      $region35: #{forward.11} parent=31 // pred_region
        %vm305 = vcmask 261120
        %306 = vst.msk [vmem:[#allocation2] sm:$0xff] %vm305, 0.0
        %307 = vst.msk [vmem:[#allocation2 + $0x8] sm:$0xff] %vm305, 0.0
      $region36: #{forward.11} parent=31 // pred_fallthru
        _
      %v308 = vld [vmem:[%s271] sm:$0xf]
      %v309 = vld [vmem:[%s271 + $0x4] sm:$0xf]
      %v310 = vld [vmem:[%s271 + $0x8] sm:$0x1]
      %v311 = vld [vmem:[%s281] sm:$0xf]
      %v312 = vld [vmem:[%s281 + $0x4] sm:$0xf]
      %v313 = vld [vmem:[%s281 + $0x8] sm:$0xf]
      %v314 = vld [vmem:[%s281 + $0xc] sm:$0xf]
      %v315 = vld [vmem:[#allocation2] sm:$0xff]
      %v316 = vld [vmem:[#allocation2 + $0x8] sm:$0xff]
      %v319 = vunpack.c.l.b16 %v308
      %v320 = vunpack.c.l.b16 %v309
      %v321 = vpack.c.b16 %v320, %v319
      %v326 = vunpack.c.l.b16 %v311
      %v327 = vunpack.c.l.b16 %v312
      %v328 = vunpack.c.l.b16 %v313
      %v329 = vunpack.c.l.b16 %v314
      %v330 = vpack.c.b16 %v327, %v326
      %v331 = vpack.c.b16 %v329, %v328
      %vm334 = vcmask 261120
      %v336 = vsel %vm334, %v321, 0
      %338 = vmatprep.subr.bf16.mxu0 0
      %339 = vmatpush1.bf16.msra.mxu0 %v330
      %340 = vmatprep.subr.bf16.mxu0 0
      %341 = vmatpush1.bf16.msra.mxu0 %v331
      %342 = vmatprep.subr.bf16.mxu0 0
      %343 = vmatpush1.bf16.msra.mxu0 0
      %344 = vmatprep.subr.bf16.mxu0 0
      %345 = vmatpush1.bf16.msra.mxu0 0
      %346 = vmatprep.subr.bf16.mxu0 0
      %347 = vmatpush1.bf16.msra.mxu0 0
      %348 = vmatprep.subr.bf16.mxu0 0
      %349 = vmatpush1.bf16.msra.mxu0 0
      %350 = vmatprep.subr.bf16.mxu0 0
      %351 = vmatpush1.bf16.msra.mxu0 0
      %352 = vmatprep.subr.bf16.mxu0 0
      %353 = vmatpush1.bf16.msra.mxu0 0
      %354 = vmatprep.subr.bf16.mxu0 0
      %355 = vmatpush1.bf16.msra.mxu0 0
      %356 = vmatprep.subr.bf16.mxu0 0
      %357 = vmatpush1.bf16.msra.mxu0 0
      %358 = vmatprep.subr.bf16.mxu0 0
      %359 = vmatpush1.bf16.msra.mxu0 0
      %360 = vmatprep.subr.bf16.mxu0 0
      %361 = vmatpush1.bf16.msra.mxu0 0
      %362 = vmatprep.subr.bf16.mxu0 0
      %363 = vmatpush1.bf16.msra.mxu0 0
      %364 = vmatprep.subr.bf16.mxu0 0
      %365 = vmatpush1.bf16.msra.mxu0 0
      %366 = vmatprep.subr.bf16.mxu0 0
      %367 = vmatpush1.bf16.msra.mxu0 0
      %368 = vmatprep.subr.bf16.mxu0 0
      %369 = vmatpush1.bf16.msra.mxu0 0
      %370 = vmatprep.mubr.bf16.mxu0 0
      %371 = vmatmul.mubr.bf16.gmra.mrb[0].mxu0 %v336
      %v372 = vpop.f32.mrb[0].mxu0
      %v373 = vadd.f32 0.0, %v372
      %v374 = vpop.f32.mrb[0].mxu0
      %v375 = vpop.f32.mrb[0].mxu0
      %v376 = vadd.f32 0.0, %v375
      %v377 = vpop.f32.mrb[0].mxu0
      %378 = vdwg.mxu0
      %v379 = vadd.f32 %v315, %v373
      %v380 = vadd.f32 %v316, %v376
      %381 = vst.msk [vmem:[#allocation2] sm:$0xff] %vm334, %v379
      %382 = vst.msk [vmem:[#allocation2 + $0x8] sm:$0xff] %vm334, %v380
      %s383 = scalar_lea.vmem %s281, 16
      %v384 = vld [vmem:[%s383] sm:$0xf]
      %v385 = vld [vmem:[%s383 + $0x4] sm:$0xf]
      %v386 = vld [vmem:[%s383 + $0x8] sm:$0xf]
      %v387 = vld [vmem:[%s383 + $0xc] sm:$0xf]
      %v388 = vld [vmem:[#allocation2] sm:$0xff]
      %v389 = vld [vmem:[#allocation2 + $0x8] sm:$0xff]
      %v391 = vunpack.c.l.b16 %v310
      %v392 = vpack.c.b16 %v391, %v391
      %vm393 = vsmask.f32 7424
      %v394 = vshrl.u32 %v321, 16
      %v396 = vshll.u32 %v321, 16
      %v398 = vrot.slane %v396, 1
      %v399 = vor.u32 %v394, %v398
      %v401 = vshll.u32 %v392, 16
      %v403 = vrot.slane %v401, 1
      %v404 = vsel %vm393, %v399, %v403
      %v409 = vunpack.c.l.b16 %v384
      %v410 = vunpack.c.l.b16 %v385
      %v411 = vunpack.c.l.b16 %v386
      %v412 = vunpack.c.l.b16 %v387
      %v413 = vpack.c.b16 %v410, %v409
      %v414 = vpack.c.b16 %v412, %v411
      %v418 = vsel %vm334, %v404, 0
      %420 = vmatprep.subr.bf16.mxu0 0
      %421 = vmatpush1.bf16.msra.mxu0 %v413
      %422 = vmatprep.subr.bf16.mxu0 0
      %423 = vmatpush1.bf16.msra.mxu0 %v414
      %424 = vmatprep.subr.bf16.mxu0 0
      %425 = vmatpush1.bf16.msra.mxu0 0
      %426 = vmatprep.subr.bf16.mxu0 0
      %427 = vmatpush1.bf16.msra.mxu0 0
      %428 = vmatprep.subr.bf16.mxu0 0
      %429 = vmatpush1.bf16.msra.mxu0 0
      %430 = vmatprep.subr.bf16.mxu0 0
      %431 = vmatpush1.bf16.msra.mxu0 0
      %432 = vmatprep.subr.bf16.mxu0 0
      %433 = vmatpush1.bf16.msra.mxu0 0
      %434 = vmatprep.subr.bf16.mxu0 0
      %435 = vmatpush1.bf16.msra.mxu0 0
      %436 = vmatprep.subr.bf16.mxu0 0
      %437 = vmatpush1.bf16.msra.mxu0 0
      %438 = vmatprep.subr.bf16.mxu0 0
      %439 = vmatpush1.bf16.msra.mxu0 0
      %440 = vmatprep.subr.bf16.mxu0 0
      %441 = vmatpush1.bf16.msra.mxu0 0
      %442 = vmatprep.subr.bf16.mxu0 0
      %443 = vmatpush1.bf16.msra.mxu0 0
      %444 = vmatprep.subr.bf16.mxu0 0
      %445 = vmatpush1.bf16.msra.mxu0 0
      %446 = vmatprep.subr.bf16.mxu0 0
      %447 = vmatpush1.bf16.msra.mxu0 0
      %448 = vmatprep.subr.bf16.mxu0 0
      %449 = vmatpush1.bf16.msra.mxu0 0
      %450 = vmatprep.subr.bf16.mxu0 0
      %451 = vmatpush1.bf16.msra.mxu0 0
      %452 = vmatprep.mubr.bf16.mxu0 0
      %453 = vmatmul.mubr.bf16.gmra.mrb[0].mxu0 %v418
      %v454 = vpop.f32.mrb[0].mxu0
      %v455 = vadd.f32 0.0, %v454
      %v456 = vpop.f32.mrb[0].mxu0
      %v457 = vpop.f32.mrb[0].mxu0
      %v458 = vadd.f32 0.0, %v457
      %v459 = vpop.f32.mrb[0].mxu0
      %460 = vdwg.mxu0
      %v461 = vadd.f32 %v388, %v455
      %v462 = vadd.f32 %v389, %v458
      %463 = vst.msk [vmem:[#allocation2] sm:$0xff] %vm334, %v461
      %464 = vst.msk [vmem:[#allocation2 + $0x8] sm:$0xff] %vm334, %v462
      %s465 = scalar_lea.vmem %s281, 32
      %v466 = vld [vmem:[%s465] sm:$0xf]
      %v467 = vld [vmem:[%s465 + $0x4] sm:$0xf]
      %v468 = vld [vmem:[%s465 + $0x8] sm:$0xf]
      %v469 = vld [vmem:[%s465 + $0xc] sm:$0xf]
      %v470 = vld [vmem:[#allocation2] sm:$0xff]
      %v471 = vld [vmem:[#allocation2 + $0x8] sm:$0xff]
      %vm472 = vcmask 1046528
      %v473 = vrot.slane %v321, 1
      %v474 = vrot.slane %v392, 1
      %v475 = vsel %vm472, %v473, %v474
      %v480 = vunpack.c.l.b16 %v466
      %v481 = vunpack.c.l.b16 %v467
      %v482 = vunpack.c.l.b16 %v468
      %v483 = vunpack.c.l.b16 %v469
      %v484 = vpack.c.b16 %v481, %v480
      %v485 = vpack.c.b16 %v483, %v482
      %v489 = vsel %vm334, %v475, 0
      %491 = vmatprep.subr.bf16.mxu0 0
      %492 = vmatpush1.bf16.msra.mxu0 %v484
      %493 = vmatprep.subr.bf16.mxu0 0
      %494 = vmatpush1.bf16.msra.mxu0 %v485
      %495 = vmatprep.subr.bf16.mxu0 0
      %496 = vmatpush1.bf16.msra.mxu0 0
      %497 = vmatprep.subr.bf16.mxu0 0
      %498 = vmatpush1.bf16.msra.mxu0 0
      %499 = vmatprep.subr.bf16.mxu0 0
      %500 = vmatpush1.bf16.msra.mxu0 0
      %501 = vmatprep.subr.bf16.mxu0 0
      %502 = vmatpush1.bf16.msra.mxu0 0
      %503 = vmatprep.subr.bf16.mxu0 0
      %504 = vmatpush1.bf16.msra.mxu0 0
      %505 = vmatprep.subr.bf16.mxu0 0
      %506 = vmatpush1.bf16.msra.mxu0 0
      %507 = vmatprep.subr.bf16.mxu0 0
      %508 = vmatpush1.bf16.msra.mxu0 0
      %509 = vmatprep.subr.bf16.mxu0 0
      %510 = vmatpush1.bf16.msra.mxu0 0
      %511 = vmatprep.subr.bf16.mxu0 0
      %512 = vmatpush1.bf16.msra.mxu0 0
      %513 = vmatprep.subr.bf16.mxu0 0
      %514 = vmatpush1.bf16.msra.mxu0 0
      %515 = vmatprep.subr.bf16.mxu0 0
      %516 = vmatpush1.bf16.msra.mxu0 0
      %517 = vmatprep.subr.bf16.mxu0 0
      %518 = vmatpush1.bf16.msra.mxu0 0
      %519 = vmatprep.subr.bf16.mxu0 0
      %520 = vmatpush1.bf16.msra.mxu0 0
      %521 = vmatprep.subr.bf16.mxu0 0
      %522 = vmatpush1.bf16.msra.mxu0 0
      %523 = vmatprep.mubr.bf16.mxu0 0
      %524 = vmatmul.mubr.bf16.gmra.mrb[0].mxu0 %v489
      %v525 = vpop.f32.mrb[0].mxu0
      %v526 = vadd.f32 0.0, %v525
      %v527 = vpop.f32.mrb[0].mxu0
      %v528 = vpop.f32.mrb[0].mxu0
      %v529 = vadd.f32 0.0, %v528
      %v530 = vpop.f32.mrb[0].mxu0
      %531 = vdwg.mxu0
      %v532 = vadd.f32 %v470, %v526
      %v533 = vadd.f32 %v471, %v529
      %534 = vst.msk [vmem:[#allocation2] sm:$0xff] %vm334, %v532
      %535 = vst.msk [vmem:[#allocation2 + $0x8] sm:$0xff] %vm334, %v533
      %p536 = scmp.eq.s32.totalorder %s23, 2
      // Predicated region
      $region37: #{forward.11} parent=31 // pred_check
        %p537 = pneg %p536
      $region38: #{forward.11} parent=31 // pred_check_branch
        %539 = sbr.rel (%p537) target = $region40
      $region39: #{forward.11} parent=31 // pred_region
        %v540 = vld [vmem:[#allocation2] sm:$0xff]
        %v541 = vld [vmem:[#allocation2 + $0x8] sm:$0xff]
        %v542 = vld [vmem:[%s286] sm:$0x1]
        %v544 = vlaneseq
        %v545 = vshrl.u32 %v544, 7
        %v546 = vsub.s32 0, %v545
        %v547 = vrot.slane %v542, %v546
        %v549 = vadd.f32 %v540, %v547
        %v550 = vadd.f32 %v541, %v547
        %v551 = vmax.f32 %v549, 0.0
        %v552 = vmax.f32 %v550, 0.0
        %v553 = vpack.c.bf16 %v552, %v551
        %v555 = vunpack.c.l.b16 %v553
        %v556 = vunpack.c.h.b16 %v553
        %v557 = vpack.c.b16 %v555, %v555
        %v558 = vpack.c.b16 %v556, %v556
        %vm561 = vcmask 257024
        %562 = vst.msk [vmem:[%s297] sm:$0xf] %vm561, %v557
        %563 = vst.msk [vmem:[%s297 + $0x4] sm:$0xf] %vm561, %v558
      $region40: #{forward.11} parent=31 // pred_fallthru
        _
      %s564 = smul.u32 %s20, 2
      %s565 = sadd.s32 %s564, %s21
      %p566 = scmp.lt.s32.totalorder %s565, 7
      %s567 = scalar_select %p566, %s565, 7
      %p568 = scmp.lt.s32.totalorder %s22, 15
      %s569 = scalar_select %p568, %s22, 15
      %s570 = smul.addr %s569, 2
      %s571 = smul.addr %s567, 32
      %s572 = sadd.s32 %s570, %s571
      %s573 = smul.addr %s572, 4
      %s574 = scalar_lea.vmem %s3, %s573
      // Predicated region
      $region41: #{forward.11} parent=31 // pred_check
        %p575 = pneg %p154
      $region42: #{forward.11} parent=31 // pred_check_branch
        %577 = sbr.rel (%p575) target = $region44
      $region43: #{forward.11} parent=31 // pred_region
        %s578 = smul.u32 %s20, 2
        %s579 = sadd.s32 %s578, %s21
      $region44: #{forward.11} parent=31 // pred_fallthru
        _
    $region32: #{forward.11} parent=5 // pred_fallthru
      _
    %p580 = scmp.le.s32.totalorder 2, %s9
    // Predicated region
    $region45: #{forward.11} parent=5 // pred_check
      %p581 = pneg %p580
    $region46: #{forward.11} parent=5 // pred_check_branch
      %583 = sbr.rel (%p581) target = $region48
    $region47: #{forward.11} parent=5 // pred_region
      %s584 = ssub.s32 %s9, 2
      // Predicated region
      $region49: #{forward.11} parent=47 // pred_check
        %p585 = pneg %p160
      $region50: #{forward.11} parent=47 // pred_check_branch
        %587 = sbr.rel (%p585) target = $region52
      $region51: #{forward.11} parent=47 // pred_region
        %s588 = smul.u32 %s24, 2
        %s589 = sadd.s32 %s588, %s25
        %p590 = scmp.lt.s32.totalorder %s589, 7
        %s591 = scalar_select %p590, %s589, 7
        %p592 = scmp.lt.s32.totalorder %s26, 15
        %s593 = scalar_select %p592, %s26, 15
        %s594 = smul.addr %s593, 2
        %s595 = smul.addr %s591, 32
        %s596 = sadd.s32 %s594, %s595
        %s597 = smul.addr %s596, 4
        %s598 = scalar_lea.vmem %s3, %s597
      $region52: #{forward.11} parent=47 // pred_fallthru
        _
    $region48: #{forward.11} parent=5 // pred_fallthru
      _
  $region6: #{forward.11} parent=0 // loop_footer
    %s13 = sadd.s32 1, %s9
  $region7: #{forward.11} parent=0 // loop_footer_branch
    %8 = sbr.rel target = $region3
  $region8: #{forward.11} parent=0 // loop_exit
    _

// kernel: forward.12
$region0: #{forward.12}
  #allocation0 [shape = 'u32[]', space=smem, size = 0x4, offset = 0x4, fixed_abs, tag = 'smem constant byte address 0x4 - core index']
  #allocation1 [shape = 'u32[144,128]{1,0:T(1,128)}', space=vmem, size = 0x12000, scoped, tag = 'internal scratch']
  %s0 = inlined_call_operand.vmem [shape: bf16[512,64], index: 0, kind: input, shape index: {}]
  %s1 = inlined_call_operand.vmem [shape: bf16[64,256], index: 1, kind: input, shape index: {}]
  %s2 = inlined_call_operand.vmem [shape: f32[1,256], index: 2, kind: input, shape index: {}]
  %s3 = inlined_call_operand.vmem [shape: bf16[512,256], index: 3, kind: output, shape index: {}]
  %s4 = sld [smem:[#allocation0]]
  $region45: #{forward.12} parent=0
    _
  %s6 = ssub.s32 1, %s4
  %s7 = scalar_select 0, %s6, %s4
  loop: start=0, step=1, limit=4
  $region2: #{forward.12} parent=0 // loop_pre_header
    _
  $region3: #{forward.12} parent=0 // loop_header
    %s9 = sphi 0, %s13
    %p10 = scmp.ge.s32.totalorder %s9, 4
    %s19 = sphi 0, %s21
    %s22 = sphi 0, %s19
    %s23 = sphi 0, %s22
    %s39 = sphi 0, %s23
    %s43 = sphi 0, %s43
    %s45 = sphi 0, %s43
    %s46 = sphi 0, %s45
    %s60 = sphi 0, %s46
    %s64 = sphi 0, %s64
    %s66 = sphi 0, %s64
    %s67 = sphi 0, %s66
    %s81 = sphi 0, %s67
    %s87 = sphi 0, %s89
    %s90 = sphi 0, %s87
    %s91 = sphi 0, %s90
    %s107 = sphi 0, %s91
  $region4: #{forward.12} parent=0 // loop_header_branch
    %12 = sbr.rel (%p10) target = $region8
  $region5: #{forward.12} parent=0 // loop_body
    %s14 = ssub.s32 %s9, 1
    %s15 = ssub.s32 %s9, 2
    %s16 = sadd.s32 %s9, 1
    %s17 = ssub.s32 %s9, %s16
    %p18 = scmp.eq.s32.totalorder %s17, 0
    %s20 = sadd.s32 %s19, 1
    %s21 = scalar_select %p18, %s19, %s20
    %p24 = pneg %p18
    %p25 = scmp.eq.s32.totalorder %s9, 1
    %p26 = por %p24, %p25
    %p27 = scmp.ne.s32.totalorder %s19, %s22
    %p28 = scmp.eq.s32.totalorder %s9, 0
    %p29 = por %p27, %p28
    %p30 = scmp.ne.s32.totalorder %s19, %s22
    %p31 = scmp.eq.s32.totalorder %s14, 1
    %p32 = por %p30, %p31
    %p33 = scmp.ne.s32.totalorder %s22, %s23
    %p34 = scmp.eq.s32.totalorder %s14, 0
    %p35 = por %p33, %p34
    %p36 = scmp.ne.s32.totalorder %s22, %s23
    %p37 = scmp.eq.s32.totalorder %s15, 1
    %p38 = por %p36, %p37
    %p40 = scmp.ne.s32.totalorder %s23, %s39
    %p41 = scmp.eq.s32.totalorder %s15, 0
    %p42 = por %p40, %p41
    %s44 = sadd.s32 %s43, 1
    %p47 = scmp.eq.s32.totalorder %s9, 1
    %p48 = scmp.ne.s32.totalorder %s43, %s45
    %p49 = scmp.eq.s32.totalorder %s9, 0
    %p50 = por %p48, %p49
    %p51 = scmp.ne.s32.totalorder %s43, %s45
    %p52 = scmp.eq.s32.totalorder %s14, 1
    %p53 = por %p51, %p52
    %p54 = scmp.ne.s32.totalorder %s45, %s46
    %p55 = scmp.eq.s32.totalorder %s14, 0
    %p56 = por %p54, %p55
    %p57 = scmp.ne.s32.totalorder %s45, %s46
    %p58 = scmp.eq.s32.totalorder %s15, 1
    %p59 = por %p57, %p58
    %p61 = scmp.ne.s32.totalorder %s46, %s60
    %p62 = scmp.eq.s32.totalorder %s15, 0
    %p63 = por %p61, %p62
    %s65 = sadd.s32 %s64, 1
    %p68 = scmp.eq.s32.totalorder %s9, 1
    %p69 = scmp.ne.s32.totalorder %s64, %s66
    %p70 = scmp.eq.s32.totalorder %s9, 0
    %p71 = por %p69, %p70
    %p72 = scmp.ne.s32.totalorder %s64, %s66
    %p73 = scmp.eq.s32.totalorder %s14, 1
    %p74 = por %p72, %p73
    %p75 = scmp.ne.s32.totalorder %s66, %s67
    %p76 = scmp.eq.s32.totalorder %s14, 0
    %p77 = por %p75, %p76
    %p78 = scmp.ne.s32.totalorder %s66, %s67
    %p79 = scmp.eq.s32.totalorder %s15, 1
    %p80 = por %p78, %p79
    %p82 = scmp.ne.s32.totalorder %s67, %s81
    %p83 = scmp.eq.s32.totalorder %s15, 0
    %p84 = por %p82, %p83
    %s85 = ssub.s32 %s9, %s16
    %p86 = scmp.eq.s32.totalorder %s85, 0
    %s88 = sadd.s32 %s87, 1
    %s89 = scalar_select %p86, %s87, %s88
    %p92 = pneg %p86
    %p93 = scmp.eq.s32.totalorder %s9, 1
    %p94 = por %p92, %p93
    %p95 = scmp.ne.s32.totalorder %s87, %s90
    %p96 = scmp.eq.s32.totalorder %s9, 0
    %p97 = por %p95, %p96
    %p98 = scmp.ne.s32.totalorder %s87, %s90
    %p99 = scmp.eq.s32.totalorder %s14, 1
    %p100 = por %p98, %p99
    %p101 = scmp.ne.s32.totalorder %s90, %s91
    %p102 = scmp.eq.s32.totalorder %s14, 0
    %p103 = por %p101, %p102
    %p104 = scmp.ne.s32.totalorder %s90, %s91
    %p105 = scmp.eq.s32.totalorder %s15, 1
    %p106 = por %p104, %p105
    %p108 = scmp.ne.s32.totalorder %s91, %s107
    %p109 = scmp.eq.s32.totalorder %s15, 0
    %p110 = por %p108, %p109
    %p111 = scmp.le.s32.totalorder 1, %s9
    %p112 = scmp.lt.s32.totalorder %s9, 3
    %p113 = pnand %p111, %p112
    %p114 = pneg %p113
    // Predicated region
    $region9: #{forward.12} parent=5 // pred_check
      _
    $region10: #{forward.12} parent=5 // pred_check_branch
      %116 = sbr.rel (%p113) target = $region12
    $region11: #{forward.12} parent=5 // pred_region
      %s117 = ssub.s32 %s9, 1
      // Predicated region
      $region13: #{forward.12} parent=11 // pred_check
        %p118 = pneg %p56
      $region14: #{forward.12} parent=11 // pred_check_branch
        %120 = sbr.rel (%p118) target = $region16
      $region15: #{forward.12} parent=11 // pred_region
        _
      $region16: #{forward.12} parent=11 // pred_fallthru
        _
      // Predicated region
      $region17: #{forward.12} parent=11 // pred_check
        %p121 = pneg %p77
      $region18: #{forward.12} parent=11 // pred_check_branch
        %123 = sbr.rel (%p121) target = $region20
      $region19: #{forward.12} parent=11 // pred_region
        _
      $region20: #{forward.12} parent=11 // pred_fallthru
        _
    $region12: #{forward.12} parent=5 // pred_fallthru
      _
    %p124 = scmp.lt.s32.totalorder %s9, 2
    // Predicated region
    $region21: #{forward.12} parent=5 // pred_check
      %p125 = pneg %p124
    $region22: #{forward.12} parent=5 // pred_check_branch
      %127 = sbr.rel (%p125) target = $region24
    $region23: #{forward.12} parent=5 // pred_region
      // Predicated region
      $region25: #{forward.12} parent=23 // pred_check
        %p128 = pneg %p29
      $region26: #{forward.12} parent=23 // pred_check_branch
        %130 = sbr.rel (%p128) target = $region28
      $region27: #{forward.12} parent=23 // pred_region
        %s131 = smul.u32 32, %s9
        %p132 = scmp.lt.s32.totalorder %s131, 63
        %s133 = scalar_select %p132, %s131, 63
        %s134 = smul.addr %s133, 4
        %s135 = scalar_lea.vmem %s0, %s134
        %s136 = smul.u32 32, %s9
      $region28: #{forward.12} parent=23 // pred_fallthru
        _
    $region24: #{forward.12} parent=5 // pred_fallthru
      _
    %p137 = scmp.le.s32.totalorder 1, %s9
    %p138 = scmp.lt.s32.totalorder %s9, 3
    %p139 = pnand %p137, %p138
    %p140 = pneg %p139
    // Predicated region
    $region29: #{forward.12} parent=5 // pred_check
      _
    $region30: #{forward.12} parent=5 // pred_check_branch
      %142 = sbr.rel (%p139) target = $region32
    $region31: #{forward.12} parent=5 // pred_region
      %s143 = ssub.s32 %s9, 1
      %s144 = smul.u32 32, %s14
      %p145 = scmp.lt.s32.totalorder %s144, 63
      %s146 = scalar_select %p145, %s144, 63
      %s147 = smul.addr %s146, 4
      %s148 = scalar_lea.vmem %s0, %s147
      %p149 = pneg %p35
      %p150 = pneg %p32
      %p151 = pneg %p56
      %p152 = pneg %p53
      %p153 = pneg %p77
      %p154 = pneg %p74
      %p155 = pneg %p103
      %p156 = pneg %p100
      %s157 = smul.u32 32, %s14
      %p158 = scmp.lt.s32.totalorder %s157, 63
      %s159 = scalar_select %p158, %s157, 63
      %s160 = smul.addr %s159, 2
      %s161 = smul.addr %s160, 4
      %s162 = scalar_lea.vmem %s3, %s161
      %s163 = smul.u32 32, %s14
      %p164 = scmp.lt.s32.totalorder %s163, 63
      %s165 = scalar_select %p164, %s163, 63
      %s166 = smul.addr %s165, 4
      %s167 = scalar_lea.vmem %s0, %s166
      %s168 = smul.u32 32, %s14
      %s169 = smul.u32 32, %s14
      %p170 = scmp.lt.s32.totalorder %s169, 63
      %s171 = scalar_select %p170, %s169, 63
      %s172 = smul.addr %s171, 2
      %s173 = smul.addr %s172, 4
      %s174 = scalar_lea.vmem %s3, %s173
      %s175 = smul.u32 32, %s14
      %v177 = vld [vmem:[%s167] sm:$0xf]
      %v178 = vld [vmem:[%s167 + $0x4] sm:$0xf]
      %v179 = vld [vmem:[%s167 + $0x8] sm:$0xf]
      %v180 = vld [vmem:[%s167 + $0xc] sm:$0xf]
      %v181 = vld [vmem:[%s167 + $0x10] sm:$0xf]
      %v182 = vld [vmem:[%s167 + $0x14] sm:$0xf]
      %v183 = vld [vmem:[%s167 + $0x18] sm:$0xf]
      %v184 = vld [vmem:[%s167 + $0x1c] sm:$0xf]
      %v185 = vld [vmem:[%s167 + $0x20] sm:$0xf]
      %v186 = vld [vmem:[%s167 + $0x24] sm:$0xf]
      %v187 = vld [vmem:[%s167 + $0x28] sm:$0xf]
      %v188 = vld [vmem:[%s167 + $0x2c] sm:$0xf]
      %v189 = vld [vmem:[%s167 + $0x30] sm:$0xf]
      %v190 = vld [vmem:[%s167 + $0x34] sm:$0xf]
      %v191 = vld [vmem:[%s167 + $0x38] sm:$0xf]
      %v192 = vld [vmem:[%s167 + $0x3c] sm:$0xf]
      %v193 = vld [vmem:[%s167 + $0x40] sm:$0xf]
      %v194 = vld [vmem:[%s167 + $0x44] sm:$0xf]
      %v195 = vld [vmem:[%s167 + $0x48] sm:$0xf]
      %v196 = vld [vmem:[%s167 + $0x4c] sm:$0xf]
      %v197 = vld [vmem:[%s167 + $0x50] sm:$0xf]
      %v198 = vld [vmem:[%s167 + $0x54] sm:$0xf]
      %v199 = vld [vmem:[%s167 + $0x58] sm:$0xf]
      %v200 = vld [vmem:[%s167 + $0x5c] sm:$0xf]
      %v201 = vld [vmem:[%s167 + $0x60] sm:$0xf]
      %v202 = vld [vmem:[%s167 + $0x64] sm:$0xf]
      %v203 = vld [vmem:[%s167 + $0x68] sm:$0xf]
      %v204 = vld [vmem:[%s167 + $0x6c] sm:$0xf]
      %v205 = vld [vmem:[%s167 + $0x70] sm:$0xf]
      %v206 = vld [vmem:[%s167 + $0x74] sm:$0xf]
      %v207 = vld [vmem:[%s167 + $0x78] sm:$0xf]
      %v208 = vld [vmem:[%s167 + $0x7c] sm:$0xf]
      %v209 = vld [vmem:[%s1] sm:$0xff]
      %v210 = vld [vmem:[%s1 + $0x8] sm:$0xff]
      %v211 = vld [vmem:[%s1 + $0x10] sm:$0xff]
      %v212 = vld [vmem:[%s1 + $0x18] sm:$0xff]
      %v213 = vld [vmem:[%s1 + $0x20] sm:$0xff]
      %v214 = vld [vmem:[%s1 + $0x28] sm:$0xff]
      %v215 = vld [vmem:[%s1 + $0x30] sm:$0xff]
      %v216 = vld [vmem:[%s1 + $0x38] sm:$0xff]
      %v217 = vld [vmem:[%s2] sm:$0x3]
      %v219 = vlaneseq
      %v220 = vshrl.u32 %v219, 7
      %v221 = vsub.s32 0, %v220
      %v222 = vrot.slane %v217, %v221
      %v223 = vlaneseq
      %v224 = vshrl.u32 %v223, 7
      %v225 = vsub.s32 1, %v224
      %v226 = vrot.slane %v217, %v225
      %v261 = vunpack.c.l.b16 %v177
      %v262 = vunpack.c.l.b16 %v178
      %v263 = vunpack.c.l.b16 %v179
      %v264 = vunpack.c.l.b16 %v180
      %v265 = vunpack.c.l.b16 %v181
      %v266 = vunpack.c.l.b16 %v182
      %v267 = vunpack.c.l.b16 %v183
      %v268 = vunpack.c.l.b16 %v184
      %v269 = vunpack.c.l.b16 %v185
      %v270 = vunpack.c.l.b16 %v186
      %v271 = vunpack.c.l.b16 %v187
      %v272 = vunpack.c.l.b16 %v188
      %v273 = vunpack.c.l.b16 %v189
      %v274 = vunpack.c.l.b16 %v190
      %v275 = vunpack.c.l.b16 %v191
      %v276 = vunpack.c.l.b16 %v192
      %v277 = vunpack.c.l.b16 %v193
      %v278 = vunpack.c.l.b16 %v194
      %v279 = vunpack.c.l.b16 %v195
      %v280 = vunpack.c.l.b16 %v196
      %v281 = vunpack.c.l.b16 %v197
      %v282 = vunpack.c.l.b16 %v198
      %v283 = vunpack.c.l.b16 %v199
      %v284 = vunpack.c.l.b16 %v200
      %v285 = vunpack.c.l.b16 %v201
      %v286 = vunpack.c.l.b16 %v202
      %v287 = vunpack.c.l.b16 %v203
      %v288 = vunpack.c.l.b16 %v204
      %v289 = vunpack.c.l.b16 %v205
      %v290 = vunpack.c.l.b16 %v206
      %v291 = vunpack.c.l.b16 %v207
      %v292 = vunpack.c.l.b16 %v208
      %v293 = vpack.c.b16 %v262, %v261
      %v294 = vpack.c.b16 %v264, %v263
      %v295 = vpack.c.b16 %v266, %v265
      %v296 = vpack.c.b16 %v268, %v267
      %v297 = vpack.c.b16 %v270, %v269
      %v298 = vpack.c.b16 %v272, %v271
      %v299 = vpack.c.b16 %v274, %v273
      %v300 = vpack.c.b16 %v276, %v275
      %v301 = vpack.c.b16 %v278, %v277
      %v302 = vpack.c.b16 %v280, %v279
      %v303 = vpack.c.b16 %v282, %v281
      %v304 = vpack.c.b16 %v284, %v283
      %v305 = vpack.c.b16 %v286, %v285
      %v306 = vpack.c.b16 %v288, %v287
      %v307 = vpack.c.b16 %v290, %v289
      %v308 = vpack.c.b16 %v292, %v291
      %v317 = vunpack.c.l.b16 %v209
      %v318 = vunpack.c.h.b16 %v209
      %v319 = vunpack.c.l.b16 %v210
      %v320 = vunpack.c.h.b16 %v210
      %v321 = vunpack.c.l.b16 %v211
      %v322 = vunpack.c.h.b16 %v211
      %v323 = vunpack.c.l.b16 %v212
      %v324 = vunpack.c.h.b16 %v212
      %v325 = vunpack.c.l.b16 %v213
      %v326 = vunpack.c.h.b16 %v213
      %v327 = vunpack.c.l.b16 %v214
      %v328 = vunpack.c.h.b16 %v214
      %v329 = vunpack.c.l.b16 %v215
      %v330 = vunpack.c.h.b16 %v215
      %v331 = vunpack.c.l.b16 %v216
      %v332 = vunpack.c.h.b16 %v216
      %v333 = vpack.c.b16 %v319, %v317
      %v334 = vpack.c.b16 %v320, %v318
      %v335 = vpack.c.b16 %v323, %v321
      %v336 = vpack.c.b16 %v324, %v322
      %v337 = vpack.c.b16 %v327, %v325
      %v338 = vpack.c.b16 %v328, %v326
      %v339 = vpack.c.b16 %v331, %v329
      %v340 = vpack.c.b16 %v332, %v330
      %vm349 = vcmask 523264
      %v351 = vsel %vm349, %v293, 0
      %v354 = vsel %vm349, %v294, 0
      %v357 = vsel %vm349, %v295, 0
      %v360 = vsel %vm349, %v296, 0
      %v363 = vsel %vm349, %v297, 0
      %v366 = vsel %vm349, %v298, 0
      %v369 = vsel %vm349, %v299, 0
      %v372 = vsel %vm349, %v300, 0
      %v375 = vsel %vm349, %v301, 0
      %v378 = vsel %vm349, %v302, 0
      %v381 = vsel %vm349, %v303, 0
      %v384 = vsel %vm349, %v304, 0
      %v387 = vsel %vm349, %v305, 0
      %v390 = vsel %vm349, %v306, 0
      %v393 = vsel %vm349, %v307, 0
      %v396 = vsel %vm349, %v308, 0
      %398 = vmatprep.subr.bf16.mxu0 %v334
      %399 = vmatpush1.bf16.msra.mxu0 %v333
      %400 = vmatprep.subr.bf16.mxu0 %v336
      %401 = vmatpush1.bf16.msra.mxu0 %v335
      %402 = vmatprep.subr.bf16.mxu0 %v338
      %403 = vmatpush1.bf16.msra.mxu0 %v337
      %404 = vmatprep.subr.bf16.mxu0 %v340
      %405 = vmatpush1.bf16.msra.mxu0 %v339
      %406 = vmatprep.subr.bf16.mxu0 0
      %407 = vmatpush1.bf16.msra.mxu0 0
      %408 = vmatprep.subr.bf16.mxu0 0
      %409 = vmatpush1.bf16.msra.mxu0 0
      %410 = vmatprep.subr.bf16.mxu0 0
      %411 = vmatpush1.bf16.msra.mxu0 0
      %412 = vmatprep.subr.bf16.mxu0 0
      %413 = vmatpush1.bf16.msra.mxu0 0
      %414 = vmatprep.subr.bf16.mxu0 0
      %415 = vmatpush1.bf16.msra.mxu0 0
      %416 = vmatprep.subr.bf16.mxu0 0
      %417 = vmatpush1.bf16.msra.mxu0 0
      %418 = vmatprep.subr.bf16.mxu0 0
      %419 = vmatpush1.bf16.msra.mxu0 0
      %420 = vmatprep.subr.bf16.mxu0 0
      %421 = vmatpush1.bf16.msra.mxu0 0
      %422 = vmatprep.subr.bf16.mxu0 0
      %423 = vmatpush1.bf16.msra.mxu0 0
      %424 = vmatprep.subr.bf16.mxu0 0
      %425 = vmatpush1.bf16.msra.mxu0 0
      %426 = vmatprep.subr.bf16.mxu0 0
      %427 = vmatpush1.bf16.msra.mxu0 0
      %428 = vmatprep.subr.bf16.mxu0 0
      %429 = vmatpush1.bf16.msra.mxu0 0
      %430 = vmatprep.mubr.bf16.mxu0 0
      %431 = vmatmul.mubr.bf16.gmra.mrb[0].mxu0 %v351
      %v432 = vpop.f32.mrb[0].mxu0
      %v433 = vadd.f32 %v222, %v432
      %v434 = vpop.f32.mrb[0].mxu0
      %v435 = vadd.f32 %v226, %v434
      %v436 = vpop.f32.mrb[0].mxu0
      %v437 = vadd.f32 %v222, %v436
      %v438 = vpop.f32.mrb[0].mxu0
      %v439 = vadd.f32 %v226, %v438
      %440 = vmatprep.mubr.bf16.mxu0 0
      %441 = vmatmul.mubr.bf16.gmra.mrb[0].mxu0 %v354
      %v442 = vpop.f32.mrb[0].mxu0
      %v443 = vadd.f32 %v222, %v442
      %v444 = vpop.f32.mrb[0].mxu0
      %v445 = vadd.f32 %v226, %v444
      %v446 = vpop.f32.mrb[0].mxu0
      %v447 = vadd.f32 %v222, %v446
      %v448 = vpop.f32.mrb[0].mxu0
      %v449 = vadd.f32 %v226, %v448
      %450 = vmatprep.mubr.bf16.mxu0 0
      %451 = vmatmul.mubr.bf16.gmra.mrb[0].mxu0 %v357
      %v452 = vpop.f32.mrb[0].mxu0
      %v453 = vadd.f32 %v222, %v452
      %v454 = vpop.f32.mrb[0].mxu0
      %v455 = vadd.f32 %v226, %v454
      %v456 = vpop.f32.mrb[0].mxu0
      %v457 = vadd.f32 %v222, %v456
      %v458 = vpop.f32.mrb[0].mxu0
      %v459 = vadd.f32 %v226, %v458
      %460 = vmatprep.mubr.bf16.mxu0 0
      %461 = vmatmul.mubr.bf16.gmra.mrb[0].mxu0 %v360
      %v462 = vpop.f32.mrb[0].mxu0
      %v463 = vadd.f32 %v222, %v462
      %v464 = vpop.f32.mrb[0].mxu0
      %v465 = vadd.f32 %v226, %v464
      %v466 = vpop.f32.mrb[0].mxu0
      %v467 = vadd.f32 %v222, %v466
      %v468 = vpop.f32.mrb[0].mxu0
      %v469 = vadd.f32 %v226, %v468
      %470 = vmatprep.mubr.bf16.mxu0 0
      %471 = vmatmul.mubr.bf16.gmra.mrb[0].mxu0 %v363
      %v472 = vpop.f32.mrb[0].mxu0
      %v473 = vadd.f32 %v222, %v472
      %v474 = vpop.f32.mrb[0].mxu0
      %v475 = vadd.f32 %v226, %v474
      %v476 = vpop.f32.mrb[0].mxu0
      %v477 = vadd.f32 %v222, %v476
      %v478 = vpop.f32.mrb[0].mxu0
      %v479 = vadd.f32 %v226, %v478
      %480 = vmatprep.mubr.bf16.mxu0 0
      %481 = vmatmul.mubr.bf16.gmra.mrb[0].mxu0 %v366
      %v482 = vpop.f32.mrb[0].mxu0
      %v483 = vadd.f32 %v222, %v482
      %v484 = vpop.f32.mrb[0].mxu0
      %v485 = vadd.f32 %v226, %v484
      %v486 = vpop.f32.mrb[0].mxu0
      %v487 = vadd.f32 %v222, %v486
      %v488 = vpop.f32.mrb[0].mxu0
      %v489 = vadd.f32 %v226, %v488
      %490 = vmatprep.mubr.bf16.mxu0 0
      %491 = vmatmul.mubr.bf16.gmra.mrb[0].mxu0 %v369
      %v492 = vpop.f32.mrb[0].mxu0
      %v493 = vadd.f32 %v222, %v492
      %v494 = vpop.f32.mrb[0].mxu0
      %v495 = vadd.f32 %v226, %v494
      %v496 = vpop.f32.mrb[0].mxu0
      %v497 = vadd.f32 %v222, %v496
      %v498 = vpop.f32.mrb[0].mxu0
      %v499 = vadd.f32 %v226, %v498
      %500 = vmatprep.mubr.bf16.mxu0 0
      %501 = vmatmul.mubr.bf16.gmra.mrb[0].mxu0 %v372
      %v502 = vpop.f32.mrb[0].mxu0
      %v503 = vadd.f32 %v222, %v502
      %v504 = vpop.f32.mrb[0].mxu0
      %v505 = vadd.f32 %v226, %v504
      %v506 = vpop.f32.mrb[0].mxu0
      %v507 = vadd.f32 %v222, %v506
      %v508 = vpop.f32.mrb[0].mxu0
      %v509 = vadd.f32 %v226, %v508
      %510 = vmatprep.mubr.bf16.mxu0 0
      %511 = vmatmul.mubr.bf16.gmra.mrb[0].mxu0 %v375
      %v512 = vpop.f32.mrb[0].mxu0
      %v513 = vadd.f32 %v222, %v512
      %v514 = vpop.f32.mrb[0].mxu0
      %v515 = vadd.f32 %v226, %v514
      %v516 = vpop.f32.mrb[0].mxu0
      %v517 = vadd.f32 %v222, %v516
      %v518 = vpop.f32.mrb[0].mxu0
      %v519 = vadd.f32 %v226, %v518
      %520 = vmatprep.mubr.bf16.mxu0 0
      %521 = vmatmul.mubr.bf16.gmra.mrb[0].mxu0 %v378
      %v522 = vpop.f32.mrb[0].mxu0
      %v523 = vadd.f32 %v222, %v522
      %v524 = vpop.f32.mrb[0].mxu0
      %v525 = vadd.f32 %v226, %v524
      %v526 = vpop.f32.mrb[0].mxu0
      %v527 = vadd.f32 %v222, %v526
      %v528 = vpop.f32.mrb[0].mxu0
      %v529 = vadd.f32 %v226, %v528
      %530 = vmatprep.mubr.bf16.mxu0 0
      %531 = vmatmul.mubr.bf16.gmra.mrb[0].mxu0 %v381
      %v532 = vpop.f32.mrb[0].mxu0
      %v533 = vadd.f32 %v222, %v532
      %v534 = vpop.f32.mrb[0].mxu0
      %v535 = vadd.f32 %v226, %v534
      %v536 = vpop.f32.mrb[0].mxu0
      %v537 = vadd.f32 %v222, %v536
      %v538 = vpop.f32.mrb[0].mxu0
      %v539 = vadd.f32 %v226, %v538
      %540 = vmatprep.mubr.bf16.mxu0 0
      %541 = vmatmul.mubr.bf16.gmra.mrb[0].mxu0 %v384
      %v542 = vpop.f32.mrb[0].mxu0
      %v543 = vadd.f32 %v222, %v542
      %v544 = vpop.f32.mrb[0].mxu0
      %v545 = vadd.f32 %v226, %v544
      %v546 = vpop.f32.mrb[0].mxu0
      %v547 = vadd.f32 %v222, %v546
      %v548 = vpop.f32.mrb[0].mxu0
      %v549 = vadd.f32 %v226, %v548
      %550 = vmatprep.mubr.bf16.mxu0 0
      %551 = vmatmul.mubr.bf16.gmra.mrb[0].mxu0 %v387
      %v552 = vpop.f32.mrb[0].mxu0
      %v553 = vadd.f32 %v222, %v552
      %v554 = vpop.f32.mrb[0].mxu0
      %v555 = vadd.f32 %v226, %v554
      %v556 = vpop.f32.mrb[0].mxu0
      %v557 = vadd.f32 %v222, %v556
      %v558 = vpop.f32.mrb[0].mxu0
      %v559 = vadd.f32 %v226, %v558
      %560 = vmatprep.mubr.bf16.mxu0 0
      %561 = vmatmul.mubr.bf16.gmra.mrb[0].mxu0 %v390
      %v562 = vpop.f32.mrb[0].mxu0
      %v563 = vadd.f32 %v222, %v562
      %v564 = vpop.f32.mrb[0].mxu0
      %v565 = vadd.f32 %v226, %v564
      %v566 = vpop.f32.mrb[0].mxu0
      %v567 = vadd.f32 %v222, %v566
      %v568 = vpop.f32.mrb[0].mxu0
      %v569 = vadd.f32 %v226, %v568
      %570 = vmatprep.mubr.bf16.mxu0 0
      %571 = vmatmul.mubr.bf16.gmra.mrb[0].mxu0 %v393
      %v572 = vpop.f32.mrb[0].mxu0
      %v573 = vadd.f32 %v222, %v572
      %v574 = vpop.f32.mrb[0].mxu0
      %v575 = vadd.f32 %v226, %v574
      %v576 = vpop.f32.mrb[0].mxu0
      %v577 = vadd.f32 %v222, %v576
      %v578 = vpop.f32.mrb[0].mxu0
      %v579 = vadd.f32 %v226, %v578
      %580 = vmatprep.mubr.bf16.mxu0 0
      %581 = vmatmul.mubr.bf16.gmra.mrb[0].mxu0 %v396
      %v582 = vpop.f32.mrb[0].mxu0
      %v583 = vadd.f32 %v222, %v582
      %v584 = vpop.f32.mrb[0].mxu0
      %v585 = vadd.f32 %v226, %v584
      %v586 = vpop.f32.mrb[0].mxu0
      %v587 = vadd.f32 %v222, %v586
      %v588 = vpop.f32.mrb[0].mxu0
      %v589 = vadd.f32 %v226, %v588
      %590 = vdwg.mxu0
      %v591 = vpack.c.bf16 %v437, %v433
      %v592 = vpack.c.bf16 %v439, %v435
      %v593 = vpack.c.bf16 %v447, %v443
      %v594 = vpack.c.bf16 %v449, %v445
      %v595 = vpack.c.bf16 %v457, %v453
      %v596 = vpack.c.bf16 %v459, %v455
      %v597 = vpack.c.bf16 %v467, %v463
      %v598 = vpack.c.bf16 %v469, %v465
      %v599 = vpack.c.bf16 %v477, %v473
      %v600 = vpack.c.bf16 %v479, %v475
      %v601 = vpack.c.bf16 %v487, %v483
      %v602 = vpack.c.bf16 %v489, %v485
      %v603 = vpack.c.bf16 %v497, %v493
      %v604 = vpack.c.bf16 %v499, %v495
      %v605 = vpack.c.bf16 %v507, %v503
      %v606 = vpack.c.bf16 %v509, %v505
      %v607 = vpack.c.bf16 %v517, %v513
      %v608 = vpack.c.bf16 %v519, %v515
      %v609 = vpack.c.bf16 %v527, %v523
      %v610 = vpack.c.bf16 %v529, %v525
      %v611 = vpack.c.bf16 %v537, %v533
      %v612 = vpack.c.bf16 %v539, %v535
      %v613 = vpack.c.bf16 %v547, %v543
      %v614 = vpack.c.bf16 %v549, %v545
      %v615 = vpack.c.bf16 %v557, %v553
      %v616 = vpack.c.bf16 %v559, %v555
      %v617 = vpack.c.bf16 %v567, %v563
      %v618 = vpack.c.bf16 %v569, %v565
      %v619 = vpack.c.bf16 %v577, %v573
      %v620 = vpack.c.bf16 %v579, %v575
      %v621 = vpack.c.bf16 %v587, %v583
      %v622 = vpack.c.bf16 %v589, %v585
      %v655 = vunpack.c.l.b16 %v591
      %v656 = vunpack.c.l.b16 %v592
      %v657 = vunpack.c.h.b16 %v591
      %v658 = vunpack.c.h.b16 %v592
      %v659 = vunpack.c.l.b16 %v593
      %v660 = vunpack.c.l.b16 %v594
      %v661 = vunpack.c.h.b16 %v593
      %v662 = vunpack.c.h.b16 %v594
      %v663 = vunpack.c.l.b16 %v595
      %v664 = vunpack.c.l.b16 %v596
      %v665 = vunpack.c.h.b16 %v595
      %v666 = vunpack.c.h.b16 %v596
      %v667 = vunpack.c.l.b16 %v597
      %v668 = vunpack.c.l.b16 %v598
      %v669 = vunpack.c.h.b16 %v597
      %v670 = vunpack.c.h.b16 %v598
      %v671 = vunpack.c.l.b16 %v599
      %v672 = vunpack.c.l.b16 %v600
      %v673 = vunpack.c.h.b16 %v599
      %v674 = vunpack.c.h.b16 %v600
      %v675 = vunpack.c.l.b16 %v601
      %v676 = vunpack.c.l.b16 %v602
      %v677 = vunpack.c.h.b16 %v601
      %v678 = vunpack.c.h.b16 %v602
      %v679 = vunpack.c.l.b16 %v603
      %v680 = vunpack.c.l.b16 %v604
      %v681 = vunpack.c.h.b16 %v603
      %v682 = vunpack.c.h.b16 %v604
      %v683 = vunpack.c.l.b16 %v605
      %v684 = vunpack.c.l.b16 %v606
      %v685 = vunpack.c.h.b16 %v605
      %v686 = vunpack.c.h.b16 %v606
      %v687 = vunpack.c.l.b16 %v607
      %v688 = vunpack.c.l.b16 %v608
      %v689 = vunpack.c.h.b16 %v607
      %v690 = vunpack.c.h.b16 %v608
      %v691 = vunpack.c.l.b16 %v609
      %v692 = vunpack.c.l.b16 %v610
      %v693 = vunpack.c.h.b16 %v609
      %v694 = vunpack.c.h.b16 %v610
      %v695 = vunpack.c.l.b16 %v611
      %v696 = vunpack.c.l.b16 %v612
      %v697 = vunpack.c.h.b16 %v611
      %v698 = vunpack.c.h.b16 %v612
      %v699 = vunpack.c.l.b16 %v613
      %v700 = vunpack.c.l.b16 %v614
      %v701 = vunpack.c.h.b16 %v613
      %v702 = vunpack.c.h.b16 %v614
      %v703 = vunpack.c.l.b16 %v615
      %v704 = vunpack.c.l.b16 %v616
      %v705 = vunpack.c.h.b16 %v615
      %v706 = vunpack.c.h.b16 %v616
      %v707 = vunpack.c.l.b16 %v617
      %v708 = vunpack.c.l.b16 %v618
      %v709 = vunpack.c.h.b16 %v617
      %v710 = vunpack.c.h.b16 %v618
      %v711 = vunpack.c.l.b16 %v619
      %v712 = vunpack.c.l.b16 %v620
      %v713 = vunpack.c.h.b16 %v619
      %v714 = vunpack.c.h.b16 %v620
      %v715 = vunpack.c.l.b16 %v621
      %v716 = vunpack.c.l.b16 %v622
      %v717 = vunpack.c.h.b16 %v621
      %v718 = vunpack.c.h.b16 %v622
      %v719 = vpack.c.b16 %v656, %v655
      %v720 = vpack.c.b16 %v658, %v657
      %v721 = vpack.c.b16 %v660, %v659
      %v722 = vpack.c.b16 %v662, %v661
      %v723 = vpack.c.b16 %v664, %v663
      %v724 = vpack.c.b16 %v666, %v665
      %v725 = vpack.c.b16 %v668, %v667
      %v726 = vpack.c.b16 %v670, %v669
      %v727 = vpack.c.b16 %v672, %v671
      %v728 = vpack.c.b16 %v674, %v673
      %v729 = vpack.c.b16 %v676, %v675
      %v730 = vpack.c.b16 %v678, %v677
      %v731 = vpack.c.b16 %v680, %v679
      %v732 = vpack.c.b16 %v682, %v681
      %v733 = vpack.c.b16 %v684, %v683
      %v734 = vpack.c.b16 %v686, %v685
      %v735 = vpack.c.b16 %v688, %v687
      %v736 = vpack.c.b16 %v690, %v689
      %v737 = vpack.c.b16 %v692, %v691
      %v738 = vpack.c.b16 %v694, %v693
      %v739 = vpack.c.b16 %v696, %v695
      %v740 = vpack.c.b16 %v698, %v697
      %v741 = vpack.c.b16 %v700, %v699
      %v742 = vpack.c.b16 %v702, %v701
      %v743 = vpack.c.b16 %v704, %v703
      %v744 = vpack.c.b16 %v706, %v705
      %v745 = vpack.c.b16 %v708, %v707
      %v746 = vpack.c.b16 %v710, %v709
      %v747 = vpack.c.b16 %v712, %v711
      %v748 = vpack.c.b16 %v714, %v713
      %v749 = vpack.c.b16 %v716, %v715
      %v750 = vpack.c.b16 %v718, %v717
      %783 = vst [vmem:[%s174] sm:$0xff] %v719
      %784 = vst [vmem:[%s174 + $0x8] sm:$0xff] %v720
      %785 = vst [vmem:[%s174 + $0x10] sm:$0xff] %v721
      %786 = vst [vmem:[%s174 + $0x18] sm:$0xff] %v722
      %787 = vst [vmem:[%s174 + $0x20] sm:$0xff] %v723
      %788 = vst [vmem:[%s174 + $0x28] sm:$0xff] %v724
      %789 = vst [vmem:[%s174 + $0x30] sm:$0xff] %v725
      %790 = vst [vmem:[%s174 + $0x38] sm:$0xff] %v726
      %791 = vst [vmem:[%s174 + $0x40] sm:$0xff] %v727
      %792 = vst [vmem:[%s174 + $0x48] sm:$0xff] %v728
      %793 = vst [vmem:[%s174 + $0x50] sm:$0xff] %v729
      %794 = vst [vmem:[%s174 + $0x58] sm:$0xff] %v730
      %795 = vst [vmem:[%s174 + $0x60] sm:$0xff] %v731
      %796 = vst [vmem:[%s174 + $0x68] sm:$0xff] %v732
      %797 = vst [vmem:[%s174 + $0x70] sm:$0xff] %v733
      %798 = vst [vmem:[%s174 + $0x78] sm:$0xff] %v734
      %799 = vst [vmem:[%s174 + $0x80] sm:$0xff] %v735
      %800 = vst [vmem:[%s174 + $0x88] sm:$0xff] %v736
      %801 = vst [vmem:[%s174 + $0x90] sm:$0xff] %v737
      %802 = vst [vmem:[%s174 + $0x98] sm:$0xff] %v738
      %803 = vst [vmem:[%s174 + $0xa0] sm:$0xff] %v739
      %804 = vst [vmem:[%s174 + $0xa8] sm:$0xff] %v740
      %805 = vst [vmem:[%s174 + $0xb0] sm:$0xff] %v741
      %806 = vst [vmem:[%s174 + $0xb8] sm:$0xff] %v742
      %807 = vst [vmem:[%s174 + $0xc0] sm:$0xff] %v743
      %808 = vst [vmem:[%s174 + $0xc8] sm:$0xff] %v744
      %809 = vst [vmem:[%s174 + $0xd0] sm:$0xff] %v745
      %810 = vst [vmem:[%s174 + $0xd8] sm:$0xff] %v746
      %811 = vst [vmem:[%s174 + $0xe0] sm:$0xff] %v747
      %812 = vst [vmem:[%s174 + $0xe8] sm:$0xff] %v748
      %813 = vst [vmem:[%s174 + $0xf0] sm:$0xff] %v749
      %814 = vst [vmem:[%s174 + $0xf8] sm:$0xff] %v750
      %s815 = smul.u32 32, %s14
      %p816 = scmp.lt.s32.totalorder %s815, 63
      %s817 = scalar_select %p816, %s815, 63
      %s818 = smul.addr %s817, 2
      %s819 = smul.addr %s818, 4
      %s820 = scalar_lea.vmem %s3, %s819
      // Predicated region
      $region33: #{forward.12} parent=31 // pred_check
        %p821 = pneg %p100
      $region34: #{forward.12} parent=31 // pred_check_branch
        %823 = sbr.rel (%p821) target = $region36
      $region35: #{forward.12} parent=31 // pred_region
        %s824 = smul.u32 32, %s14
      $region36: #{forward.12} parent=31 // pred_fallthru
        _
    $region32: #{forward.12} parent=5 // pred_fallthru
      _
    %p825 = scmp.le.s32.totalorder 2, %s9
    // Predicated region
    $region37: #{forward.12} parent=5 // pred_check
      %p826 = pneg %p825
    $region38: #{forward.12} parent=5 // pred_check_branch
      %828 = sbr.rel (%p826) target = $region40
    $region39: #{forward.12} parent=5 // pred_region
      %s829 = ssub.s32 %s9, 2
      // Predicated region
      $region41: #{forward.12} parent=39 // pred_check
        %p830 = pneg %p106
      $region42: #{forward.12} parent=39 // pred_check_branch
        %832 = sbr.rel (%p830) target = $region44
      $region43: #{forward.12} parent=39 // pred_region
        %s833 = smul.u32 32, %s15
        %p834 = scmp.lt.s32.totalorder %s833, 63
        %s835 = scalar_select %p834, %s833, 63
        %s836 = smul.addr %s835, 2
        %s837 = smul.addr %s836, 4
        %s838 = scalar_lea.vmem %s3, %s837
      $region44: #{forward.12} parent=39 // pred_fallthru
        _
    $region40: #{forward.12} parent=5 // pred_fallthru
      _
  $region6: #{forward.12} parent=0 // loop_footer
    %s13 = sadd.s32 1, %s9
  $region7: #{forward.12} parent=0 // loop_footer_branch
    %8 = sbr.rel target = $region3
  $region8: #{forward.12} parent=0 // loop_exit
    _

// kernel: forward.13
$region0: #{forward.13}
  #allocation0 [shape = 'u32[]', space=smem, size = 0x4, offset = 0x4, fixed_abs, tag = 'smem constant byte address 0x4 - core index']
  #allocation1 [shape = 'u32[144,128]{1,0:T(1,128)}', space=vmem, size = 0x12000, scoped, tag = 'internal scratch']
  %s0 = inlined_call_operand.vmem [shape: bf16[512,128], index: 0, kind: input, shape index: {}]
  %s1 = inlined_call_operand.vmem [shape: bf16[128,256], index: 1, kind: input, shape index: {}]
  %s2 = inlined_call_operand.vmem [shape: f32[1,256], index: 2, kind: input, shape index: {}]
  %s3 = inlined_call_operand.vmem [shape: bf16[512,256], index: 3, kind: input, shape index: {}]
  %s4 = inlined_call_operand.vmem [shape: bf16[512,256], index: 4, kind: output, shape index: {}]
  %s5 = sld [smem:[#allocation0]]
  $region49: #{forward.13} parent=0
    _
  %s7 = ssub.s32 1, %s5
  %s8 = scalar_select 0, %s7, %s5
  loop: start=0, step=1, limit=4
  $region2: #{forward.13} parent=0 // loop_pre_header
    _
  $region3: #{forward.13} parent=0 // loop_header
    %s10 = sphi 0, %s14
    %p11 = scmp.ge.s32.totalorder %s10, 4
    %s20 = sphi 0, %s22
    %s23 = sphi 0, %s20
    %s24 = sphi 0, %s23
    %s40 = sphi 0, %s24
    %s44 = sphi 0, %s44
    %s46 = sphi 0, %s44
    %s47 = sphi 0, %s46
    %s61 = sphi 0, %s47
    %s65 = sphi 0, %s65
    %s67 = sphi 0, %s65
    %s68 = sphi 0, %s67
    %s82 = sphi 0, %s68
    %s88 = sphi 0, %s90
    %s91 = sphi 0, %s88
    %s92 = sphi 0, %s91
    %s108 = sphi 0, %s92
    %s114 = sphi 0, %s116
    %s117 = sphi 0, %s114
    %s118 = sphi 0, %s117
    %s134 = sphi 0, %s118
  $region4: #{forward.13} parent=0 // loop_header_branch
    %13 = sbr.rel (%p11) target = $region8
  $region5: #{forward.13} parent=0 // loop_body
    %s15 = ssub.s32 %s10, 1
    %s16 = ssub.s32 %s10, 2
    %s17 = sadd.s32 %s10, 1
    %s18 = ssub.s32 %s10, %s17
    %p19 = scmp.eq.s32.totalorder %s18, 0
    %s21 = sadd.s32 %s20, 1
    %s22 = scalar_select %p19, %s20, %s21
    %p25 = pneg %p19
    %p26 = scmp.eq.s32.totalorder %s10, 1
    %p27 = por %p25, %p26
    %p28 = scmp.ne.s32.totalorder %s20, %s23
    %p29 = scmp.eq.s32.totalorder %s10, 0
    %p30 = por %p28, %p29
    %p31 = scmp.ne.s32.totalorder %s20, %s23
    %p32 = scmp.eq.s32.totalorder %s15, 1
    %p33 = por %p31, %p32
    %p34 = scmp.ne.s32.totalorder %s23, %s24
    %p35 = scmp.eq.s32.totalorder %s15, 0
    %p36 = por %p34, %p35
    %p37 = scmp.ne.s32.totalorder %s23, %s24
    %p38 = scmp.eq.s32.totalorder %s16, 1
    %p39 = por %p37, %p38
    %p41 = scmp.ne.s32.totalorder %s24, %s40
    %p42 = scmp.eq.s32.totalorder %s16, 0
    %p43 = por %p41, %p42
    %s45 = sadd.s32 %s44, 1
    %p48 = scmp.eq.s32.totalorder %s10, 1
    %p49 = scmp.ne.s32.totalorder %s44, %s46
    %p50 = scmp.eq.s32.totalorder %s10, 0
    %p51 = por %p49, %p50
    %p52 = scmp.ne.s32.totalorder %s44, %s46
    %p53 = scmp.eq.s32.totalorder %s15, 1
    %p54 = por %p52, %p53
    %p55 = scmp.ne.s32.totalorder %s46, %s47
    %p56 = scmp.eq.s32.totalorder %s15, 0
    %p57 = por %p55, %p56
    %p58 = scmp.ne.s32.totalorder %s46, %s47
    %p59 = scmp.eq.s32.totalorder %s16, 1
    %p60 = por %p58, %p59
    %p62 = scmp.ne.s32.totalorder %s47, %s61
    %p63 = scmp.eq.s32.totalorder %s16, 0
    %p64 = por %p62, %p63
    %s66 = sadd.s32 %s65, 1
    %p69 = scmp.eq.s32.totalorder %s10, 1
    %p70 = scmp.ne.s32.totalorder %s65, %s67
    %p71 = scmp.eq.s32.totalorder %s10, 0
    %p72 = por %p70, %p71
    %p73 = scmp.ne.s32.totalorder %s65, %s67
    %p74 = scmp.eq.s32.totalorder %s15, 1
    %p75 = por %p73, %p74
    %p76 = scmp.ne.s32.totalorder %s67, %s68
    %p77 = scmp.eq.s32.totalorder %s15, 0
    %p78 = por %p76, %p77
    %p79 = scmp.ne.s32.totalorder %s67, %s68
    %p80 = scmp.eq.s32.totalorder %s16, 1
    %p81 = por %p79, %p80
    %p83 = scmp.ne.s32.totalorder %s68, %s82
    %p84 = scmp.eq.s32.totalorder %s16, 0
    %p85 = por %p83, %p84
    %s86 = ssub.s32 %s10, %s17
    %p87 = scmp.eq.s32.totalorder %s86, 0
    %s89 = sadd.s32 %s88, 1
    %s90 = scalar_select %p87, %s88, %s89
    %p93 = pneg %p87
    %p94 = scmp.eq.s32.totalorder %s10, 1
    %p95 = por %p93, %p94
    %p96 = scmp.ne.s32.totalorder %s88, %s91
    %p97 = scmp.eq.s32.totalorder %s10, 0
    %p98 = por %p96, %p97
    %p99 = scmp.ne.s32.totalorder %s88, %s91
    %p100 = scmp.eq.s32.totalorder %s15, 1
    %p101 = por %p99, %p100
    %p102 = scmp.ne.s32.totalorder %s91, %s92
    %p103 = scmp.eq.s32.totalorder %s15, 0
    %p104 = por %p102, %p103
    %p105 = scmp.ne.s32.totalorder %s91, %s92
    %p106 = scmp.eq.s32.totalorder %s16, 1
    %p107 = por %p105, %p106
    %p109 = scmp.ne.s32.totalorder %s92, %s108
    %p110 = scmp.eq.s32.totalorder %s16, 0
    %p111 = por %p109, %p110
    %s112 = ssub.s32 %s10, %s17
    %p113 = scmp.eq.s32.totalorder %s112, 0
    %s115 = sadd.s32 %s114, 1
    %s116 = scalar_select %p113, %s114, %s115
    %p119 = pneg %p113
    %p120 = scmp.eq.s32.totalorder %s10, 1
    %p121 = por %p119, %p120
    %p122 = scmp.ne.s32.totalorder %s114, %s117
    %p123 = scmp.eq.s32.totalorder %s10, 0
    %p124 = por %p122, %p123
    %p125 = scmp.ne.s32.totalorder %s114, %s117
    %p126 = scmp.eq.s32.totalorder %s15, 1
    %p127 = por %p125, %p126
    %p128 = scmp.ne.s32.totalorder %s117, %s118
    %p129 = scmp.eq.s32.totalorder %s15, 0
    %p130 = por %p128, %p129
    %p131 = scmp.ne.s32.totalorder %s117, %s118
    %p132 = scmp.eq.s32.totalorder %s16, 1
    %p133 = por %p131, %p132
    %p135 = scmp.ne.s32.totalorder %s118, %s134
    %p136 = scmp.eq.s32.totalorder %s16, 0
    %p137 = por %p135, %p136
    %p138 = scmp.le.s32.totalorder 1, %s10
    %p139 = scmp.lt.s32.totalorder %s10, 3
    %p140 = pnand %p138, %p139
    %p141 = pneg %p140
    // Predicated region
    $region9: #{forward.13} parent=5 // pred_check
      _
    $region10: #{forward.13} parent=5 // pred_check_branch
      %143 = sbr.rel (%p140) target = $region12
    $region11: #{forward.13} parent=5 // pred_region
      %s144 = ssub.s32 %s10, 1
      // Predicated region
      $region13: #{forward.13} parent=11 // pred_check
        %p145 = pneg %p57
      $region14: #{forward.13} parent=11 // pred_check_branch
        %147 = sbr.rel (%p145) target = $region16
      $region15: #{forward.13} parent=11 // pred_region
        _
      $region16: #{forward.13} parent=11 // pred_fallthru
        _
      // Predicated region
      $region17: #{forward.13} parent=11 // pred_check
        %p148 = pneg %p78
      $region18: #{forward.13} parent=11 // pred_check_branch
        %150 = sbr.rel (%p148) target = $region20
      $region19: #{forward.13} parent=11 // pred_region
        _
      $region20: #{forward.13} parent=11 // pred_fallthru
        _
    $region12: #{forward.13} parent=5 // pred_fallthru
      _
    %p151 = scmp.lt.s32.totalorder %s10, 2
    // Predicated region
    $region21: #{forward.13} parent=5 // pred_check
      %p152 = pneg %p151
    $region22: #{forward.13} parent=5 // pred_check_branch
      %154 = sbr.rel (%p152) target = $region24
    $region23: #{forward.13} parent=5 // pred_region
      // Predicated region
      $region25: #{forward.13} parent=23 // pred_check
        %p155 = pneg %p30
      $region26: #{forward.13} parent=23 // pred_check_branch
        %157 = sbr.rel (%p155) target = $region28
      $region27: #{forward.13} parent=23 // pred_region
        %s158 = smul.u32 32, %s10
        %p159 = scmp.lt.s32.totalorder %s158, 63
        %s160 = scalar_select %p159, %s158, 63
        %s161 = smul.addr %s160, 4
        %s162 = scalar_lea.vmem %s0, %s161
        %s163 = smul.u32 32, %s10
      $region28: #{forward.13} parent=23 // pred_fallthru
        _
      // Predicated region
      $region29: #{forward.13} parent=23 // pred_check
        %p164 = pneg %p98
      $region30: #{forward.13} parent=23 // pred_check_branch
        %166 = sbr.rel (%p164) target = $region32
      $region31: #{forward.13} parent=23 // pred_region
        %s167 = smul.u32 32, %s10
        %p168 = scmp.lt.s32.totalorder %s167, 63
        %s169 = scalar_select %p168, %s167, 63
        %s170 = smul.addr %s169, 2
        %s171 = smul.addr %s170, 4
        %s172 = scalar_lea.vmem %s3, %s171
        %s173 = smul.u32 32, %s10
      $region32: #{forward.13} parent=23 // pred_fallthru
        _
    $region24: #{forward.13} parent=5 // pred_fallthru
      _
    %p174 = scmp.le.s32.totalorder 1, %s10
    %p175 = scmp.lt.s32.totalorder %s10, 3
    %p176 = pnand %p174, %p175
    %p177 = pneg %p176
    // Predicated region
    $region33: #{forward.13} parent=5 // pred_check
      _
    $region34: #{forward.13} parent=5 // pred_check_branch
      %179 = sbr.rel (%p176) target = $region36
    $region35: #{forward.13} parent=5 // pred_region
      %s180 = ssub.s32 %s10, 1
      %s181 = smul.u32 32, %s15
      %p182 = scmp.lt.s32.totalorder %s181, 63
      %s183 = scalar_select %p182, %s181, 63
      %s184 = smul.addr %s183, 4
      %s185 = scalar_lea.vmem %s0, %s184
      %p186 = pneg %p36
      %p187 = pneg %p33
      %p188 = pneg %p57
      %p189 = pneg %p54
      %p190 = pneg %p78
      %p191 = pneg %p75
      %s192 = smul.u32 32, %s15
      %p193 = scmp.lt.s32.totalorder %s192, 63
      %s194 = scalar_select %p193, %s192, 63
      %s195 = smul.addr %s194, 2
      %s196 = smul.addr %s195, 4
      %s197 = scalar_lea.vmem %s3, %s196
      %p198 = pneg %p104
      %p199 = pneg %p101
      %p200 = pneg %p130
      %p201 = pneg %p127
      %s202 = smul.u32 32, %s15
      %p203 = scmp.lt.s32.totalorder %s202, 63
      %s204 = scalar_select %p203, %s202, 63
      %s205 = smul.addr %s204, 2
      %s206 = smul.addr %s205, 4
      %s207 = scalar_lea.vmem %s4, %s206
      %s208 = smul.u32 32, %s15
      %p209 = scmp.lt.s32.totalorder %s208, 63
      %s210 = scalar_select %p209, %s208, 63
      %s211 = smul.addr %s210, 4
      %s212 = scalar_lea.vmem %s0, %s211
      %s213 = smul.u32 32, %s15
      %s214 = smul.u32 32, %s15
      %p215 = scmp.lt.s32.totalorder %s214, 63
      %s216 = scalar_select %p215, %s214, 63
      %s217 = smul.addr %s216, 2
      %s218 = smul.addr %s217, 4
      %s219 = scalar_lea.vmem %s3, %s218
      %s220 = smul.u32 32, %s15
      %s221 = smul.u32 32, %s15
      %p222 = scmp.lt.s32.totalorder %s221, 63
      %s223 = scalar_select %p222, %s221, 63
      %s224 = smul.addr %s223, 2
      %s225 = smul.addr %s224, 4
      %s226 = scalar_lea.vmem %s4, %s225
      %s227 = smul.u32 32, %s15
      %v229 = vld [vmem:[%s212] sm:$0xf]
      %v230 = vld [vmem:[%s212 + $0x4] sm:$0xf]
      %v231 = vld [vmem:[%s212 + $0x8] sm:$0xf]
      %v232 = vld [vmem:[%s212 + $0xc] sm:$0xf]
      %v233 = vld [vmem:[%s212 + $0x10] sm:$0xf]
      %v234 = vld [vmem:[%s212 + $0x14] sm:$0xf]
      %v235 = vld [vmem:[%s212 + $0x18] sm:$0xf]
      %v236 = vld [vmem:[%s212 + $0x1c] sm:$0xf]
      %v237 = vld [vmem:[%s212 + $0x20] sm:$0xf]
      %v238 = vld [vmem:[%s212 + $0x24] sm:$0xf]
      %v239 = vld [vmem:[%s212 + $0x28] sm:$0xf]
      %v240 = vld [vmem:[%s212 + $0x2c] sm:$0xf]
      %v241 = vld [vmem:[%s212 + $0x30] sm:$0xf]
      %v242 = vld [vmem:[%s212 + $0x34] sm:$0xf]
      %v243 = vld [vmem:[%s212 + $0x38] sm:$0xf]
      %v244 = vld [vmem:[%s212 + $0x3c] sm:$0xf]
      %v245 = vld [vmem:[%s212 + $0x40] sm:$0xf]
      %v246 = vld [vmem:[%s212 + $0x44] sm:$0xf]
      %v247 = vld [vmem:[%s212 + $0x48] sm:$0xf]
      %v248 = vld [vmem:[%s212 + $0x4c] sm:$0xf]
      %v249 = vld [vmem:[%s212 + $0x50] sm:$0xf]
      %v250 = vld [vmem:[%s212 + $0x54] sm:$0xf]
      %v251 = vld [vmem:[%s212 + $0x58] sm:$0xf]
      %v252 = vld [vmem:[%s212 + $0x5c] sm:$0xf]
      %v253 = vld [vmem:[%s212 + $0x60] sm:$0xf]
      %v254 = vld [vmem:[%s212 + $0x64] sm:$0xf]
      %v255 = vld [vmem:[%s212 + $0x68] sm:$0xf]
      %v256 = vld [vmem:[%s212 + $0x6c] sm:$0xf]
      %v257 = vld [vmem:[%s212 + $0x70] sm:$0xf]
      %v258 = vld [vmem:[%s212 + $0x74] sm:$0xf]
      %v259 = vld [vmem:[%s212 + $0x78] sm:$0xf]
      %v260 = vld [vmem:[%s212 + $0x7c] sm:$0xf]
      %v261 = vld [vmem:[%s1] sm:$0xff]
      %v262 = vld [vmem:[%s1 + $0x8] sm:$0xff]
      %v263 = vld [vmem:[%s1 + $0x10] sm:$0xff]
      %v264 = vld [vmem:[%s1 + $0x18] sm:$0xff]
      %v265 = vld [vmem:[%s1 + $0x20] sm:$0xff]
      %v266 = vld [vmem:[%s1 + $0x28] sm:$0xff]
      %v267 = vld [vmem:[%s1 + $0x30] sm:$0xff]
      %v268 = vld [vmem:[%s1 + $0x38] sm:$0xff]
      %v269 = vld [vmem:[%s1 + $0x40] sm:$0xff]
      %v270 = vld [vmem:[%s1 + $0x48] sm:$0xff]
      %v271 = vld [vmem:[%s1 + $0x50] sm:$0xff]
      %v272 = vld [vmem:[%s1 + $0x58] sm:$0xff]
      %v273 = vld [vmem:[%s1 + $0x60] sm:$0xff]
      %v274 = vld [vmem:[%s1 + $0x68] sm:$0xff]
      %v275 = vld [vmem:[%s1 + $0x70] sm:$0xff]
      %v276 = vld [vmem:[%s1 + $0x78] sm:$0xff]
      %v277 = vld [vmem:[%s2] sm:$0x3]
      %v279 = vlaneseq
      %v280 = vshrl.u32 %v279, 7
      %v281 = vsub.s32 0, %v280
      %v282 = vrot.slane %v277, %v281
      %v283 = vlaneseq
      %v284 = vshrl.u32 %v283, 7
      %v285 = vsub.s32 1, %v284
      %v286 = vrot.slane %v277, %v285
      %v321 = vunpack.c.l.b16 %v229
      %v322 = vunpack.c.l.b16 %v230
      %v323 = vunpack.c.l.b16 %v231
      %v324 = vunpack.c.l.b16 %v232
      %v325 = vunpack.c.l.b16 %v233
      %v326 = vunpack.c.l.b16 %v234
      %v327 = vunpack.c.l.b16 %v235
      %v328 = vunpack.c.l.b16 %v236
      %v329 = vunpack.c.l.b16 %v237
      %v330 = vunpack.c.l.b16 %v238
      %v331 = vunpack.c.l.b16 %v239
      %v332 = vunpack.c.l.b16 %v240
      %v333 = vunpack.c.l.b16 %v241
      %v334 = vunpack.c.l.b16 %v242
      %v335 = vunpack.c.l.b16 %v243
      %v336 = vunpack.c.l.b16 %v244
      %v337 = vunpack.c.l.b16 %v245
      %v338 = vunpack.c.l.b16 %v246
      %v339 = vunpack.c.l.b16 %v247
      %v340 = vunpack.c.l.b16 %v248
      %v341 = vunpack.c.l.b16 %v249
      %v342 = vunpack.c.l.b16 %v250
      %v343 = vunpack.c.l.b16 %v251
      %v344 = vunpack.c.l.b16 %v252
      %v345 = vunpack.c.l.b16 %v253
      %v346 = vunpack.c.l.b16 %v254
      %v347 = vunpack.c.l.b16 %v255
      %v348 = vunpack.c.l.b16 %v256
      %v349 = vunpack.c.l.b16 %v257
      %v350 = vunpack.c.l.b16 %v258
      %v351 = vunpack.c.l.b16 %v259
      %v352 = vunpack.c.l.b16 %v260
      %v353 = vpack.c.b16 %v322, %v321
      %v354 = vpack.c.b16 %v324, %v323
      %v355 = vpack.c.b16 %v326, %v325
      %v356 = vpack.c.b16 %v328, %v327
      %v357 = vpack.c.b16 %v330, %v329
      %v358 = vpack.c.b16 %v332, %v331
      %v359 = vpack.c.b16 %v334, %v333
      %v360 = vpack.c.b16 %v336, %v335
      %v361 = vpack.c.b16 %v338, %v337
      %v362 = vpack.c.b16 %v340, %v339
      %v363 = vpack.c.b16 %v342, %v341
      %v364 = vpack.c.b16 %v344, %v343
      %v365 = vpack.c.b16 %v346, %v345
      %v366 = vpack.c.b16 %v348, %v347
      %v367 = vpack.c.b16 %v350, %v349
      %v368 = vpack.c.b16 %v352, %v351
      %v401 = vunpack.c.l.b16 %v261
      %v402 = vunpack.c.h.b16 %v261
      %v403 = vunpack.c.l.b16 %v262
      %v404 = vunpack.c.h.b16 %v262
      %v405 = vunpack.c.l.b16 %v263
      %v406 = vunpack.c.h.b16 %v263
      %v407 = vunpack.c.l.b16 %v264
      %v408 = vunpack.c.h.b16 %v264
      %v409 = vunpack.c.l.b16 %v265
      %v410 = vunpack.c.h.b16 %v265
      %v411 = vunpack.c.l.b16 %v266
      %v412 = vunpack.c.h.b16 %v266
      %v413 = vunpack.c.l.b16 %v267
      %v414 = vunpack.c.h.b16 %v267
      %v415 = vunpack.c.l.b16 %v268
      %v416 = vunpack.c.h.b16 %v268
      %v417 = vunpack.c.l.b16 %v269
      %v418 = vunpack.c.h.b16 %v269
      %v419 = vunpack.c.l.b16 %v270
      %v420 = vunpack.c.h.b16 %v270
      %v421 = vunpack.c.l.b16 %v271
      %v422 = vunpack.c.h.b16 %v271
      %v423 = vunpack.c.l.b16 %v272
      %v424 = vunpack.c.h.b16 %v272
      %v425 = vunpack.c.l.b16 %v273
      %v426 = vunpack.c.h.b16 %v273
      %v427 = vunpack.c.l.b16 %v274
      %v428 = vunpack.c.h.b16 %v274
      %v429 = vunpack.c.l.b16 %v275
      %v430 = vunpack.c.h.b16 %v275
      %v431 = vunpack.c.l.b16 %v276
      %v432 = vunpack.c.h.b16 %v276
      %v433 = vpack.c.b16 %v403, %v401
      %v434 = vpack.c.b16 %v404, %v402
      %v435 = vpack.c.b16 %v407, %v405
      %v436 = vpack.c.b16 %v408, %v406
      %v437 = vpack.c.b16 %v411, %v409
      %v438 = vpack.c.b16 %v412, %v410
      %v439 = vpack.c.b16 %v415, %v413
      %v440 = vpack.c.b16 %v416, %v414
      %v441 = vpack.c.b16 %v419, %v417
      %v442 = vpack.c.b16 %v420, %v418
      %v443 = vpack.c.b16 %v423, %v421
      %v444 = vpack.c.b16 %v424, %v422
      %v445 = vpack.c.b16 %v427, %v425
      %v446 = vpack.c.b16 %v428, %v426
      %v447 = vpack.c.b16 %v431, %v429
      %v448 = vpack.c.b16 %v432, %v430
      %465 = vmatprep.subr.bf16.mxu0 %v434
      %466 = vmatpush1.bf16.msra.mxu0 %v433
      %467 = vmatprep.subr.bf16.mxu0 %v436
      %468 = vmatpush1.bf16.msra.mxu0 %v435
      %469 = vmatprep.subr.bf16.mxu0 %v438
      %470 = vmatpush1.bf16.msra.mxu0 %v437
      %471 = vmatprep.subr.bf16.mxu0 %v440
      %472 = vmatpush1.bf16.msra.mxu0 %v439
      %473 = vmatprep.subr.bf16.mxu0 %v442
      %474 = vmatpush1.bf16.msra.mxu0 %v441
      %475 = vmatprep.subr.bf16.mxu0 %v444
      %476 = vmatpush1.bf16.msra.mxu0 %v443
      %477 = vmatprep.subr.bf16.mxu0 %v446
      %478 = vmatpush1.bf16.msra.mxu0 %v445
      %479 = vmatprep.subr.bf16.mxu0 %v448
      %480 = vmatpush1.bf16.msra.mxu0 %v447
      %481 = vmatprep.subr.bf16.mxu0 0
      %482 = vmatpush1.bf16.msra.mxu0 0
      %483 = vmatprep.subr.bf16.mxu0 0
      %484 = vmatpush1.bf16.msra.mxu0 0
      %485 = vmatprep.subr.bf16.mxu0 0
      %486 = vmatpush1.bf16.msra.mxu0 0
      %487 = vmatprep.subr.bf16.mxu0 0
      %488 = vmatpush1.bf16.msra.mxu0 0
      %489 = vmatprep.subr.bf16.mxu0 0
      %490 = vmatpush1.bf16.msra.mxu0 0
      %491 = vmatprep.subr.bf16.mxu0 0
      %492 = vmatpush1.bf16.msra.mxu0 0
      %493 = vmatprep.subr.bf16.mxu0 0
      %494 = vmatpush1.bf16.msra.mxu0 0
      %495 = vmatprep.subr.bf16.mxu0 0
      %496 = vmatpush1.bf16.msra.mxu0 0
      %497 = vmatprep.mubr.bf16.mxu0 0
      %498 = vmatmul.mubr.bf16.gmra.mrb[0].mxu0 %v353
      %v499 = vpop.f32.mrb[0].mxu0
      %v500 = vadd.f32 %v282, %v499
      %v501 = vpop.f32.mrb[0].mxu0
      %v502 = vadd.f32 %v286, %v501
      %v503 = vpop.f32.mrb[0].mxu0
      %v504 = vadd.f32 %v282, %v503
      %v505 = vpop.f32.mrb[0].mxu0
      %v506 = vadd.f32 %v286, %v505
      %507 = vmatprep.mubr.bf16.mxu0 0
      %508 = vmatmul.mubr.bf16.gmra.mrb[0].mxu0 %v354
      %v509 = vpop.f32.mrb[0].mxu0
      %v510 = vadd.f32 %v282, %v509
      %v511 = vpop.f32.mrb[0].mxu0
      %v512 = vadd.f32 %v286, %v511
      %v513 = vpop.f32.mrb[0].mxu0
      %v514 = vadd.f32 %v282, %v513
      %v515 = vpop.f32.mrb[0].mxu0
      %v516 = vadd.f32 %v286, %v515
      %517 = vmatprep.mubr.bf16.mxu0 0
      %518 = vmatmul.mubr.bf16.gmra.mrb[0].mxu0 %v355
      %v519 = vpop.f32.mrb[0].mxu0
      %v520 = vadd.f32 %v282, %v519
      %v521 = vpop.f32.mrb[0].mxu0
      %v522 = vadd.f32 %v286, %v521
      %v523 = vpop.f32.mrb[0].mxu0
      %v524 = vadd.f32 %v282, %v523
      %v525 = vpop.f32.mrb[0].mxu0
      %v526 = vadd.f32 %v286, %v525
      %527 = vmatprep.mubr.bf16.mxu0 0
      %528 = vmatmul.mubr.bf16.gmra.mrb[0].mxu0 %v356
      %v529 = vpop.f32.mrb[0].mxu0
      %v530 = vadd.f32 %v282, %v529
      %v531 = vpop.f32.mrb[0].mxu0
      %v532 = vadd.f32 %v286, %v531
      %v533 = vpop.f32.mrb[0].mxu0
      %v534 = vadd.f32 %v282, %v533
      %v535 = vpop.f32.mrb[0].mxu0
      %v536 = vadd.f32 %v286, %v535
      %537 = vmatprep.mubr.bf16.mxu0 0
      %538 = vmatmul.mubr.bf16.gmra.mrb[0].mxu0 %v357
      %v539 = vpop.f32.mrb[0].mxu0
      %v540 = vadd.f32 %v282, %v539
      %v541 = vpop.f32.mrb[0].mxu0
      %v542 = vadd.f32 %v286, %v541
      %v543 = vpop.f32.mrb[0].mxu0
      %v544 = vadd.f32 %v282, %v543
      %v545 = vpop.f32.mrb[0].mxu0
      %v546 = vadd.f32 %v286, %v545
      %547 = vmatprep.mubr.bf16.mxu0 0
      %548 = vmatmul.mubr.bf16.gmra.mrb[0].mxu0 %v358
      %v549 = vpop.f32.mrb[0].mxu0
      %v550 = vadd.f32 %v282, %v549
      %v551 = vpop.f32.mrb[0].mxu0
      %v552 = vadd.f32 %v286, %v551
      %v553 = vpop.f32.mrb[0].mxu0
      %v554 = vadd.f32 %v282, %v553
      %v555 = vpop.f32.mrb[0].mxu0
      %v556 = vadd.f32 %v286, %v555
      %557 = vmatprep.mubr.bf16.mxu0 0
      %558 = vmatmul.mubr.bf16.gmra.mrb[0].mxu0 %v359
      %v559 = vpop.f32.mrb[0].mxu0
      %v560 = vadd.f32 %v282, %v559
      %v561 = vpop.f32.mrb[0].mxu0
      %v562 = vadd.f32 %v286, %v561
      %v563 = vpop.f32.mrb[0].mxu0
      %v564 = vadd.f32 %v282, %v563
      %v565 = vpop.f32.mrb[0].mxu0
      %v566 = vadd.f32 %v286, %v565
      %567 = vmatprep.mubr.bf16.mxu0 0
      %568 = vmatmul.mubr.bf16.gmra.mrb[0].mxu0 %v360
      %v569 = vpop.f32.mrb[0].mxu0
      %v570 = vadd.f32 %v282, %v569
      %v571 = vpop.f32.mrb[0].mxu0
      %v572 = vadd.f32 %v286, %v571
      %v573 = vpop.f32.mrb[0].mxu0
      %v574 = vadd.f32 %v282, %v573
      %v575 = vpop.f32.mrb[0].mxu0
      %v576 = vadd.f32 %v286, %v575
      %577 = vmatprep.mubr.bf16.mxu0 0
      %578 = vmatmul.mubr.bf16.gmra.mrb[0].mxu0 %v361
      %v579 = vpop.f32.mrb[0].mxu0
      %v580 = vadd.f32 %v282, %v579
      %v581 = vpop.f32.mrb[0].mxu0
      %v582 = vadd.f32 %v286, %v581
      %v583 = vpop.f32.mrb[0].mxu0
      %v584 = vadd.f32 %v282, %v583
      %v585 = vpop.f32.mrb[0].mxu0
      %v586 = vadd.f32 %v286, %v585
      %587 = vmatprep.mubr.bf16.mxu0 0
      %588 = vmatmul.mubr.bf16.gmra.mrb[0].mxu0 %v362
      %v589 = vpop.f32.mrb[0].mxu0
      %v590 = vadd.f32 %v282, %v589
      %v591 = vpop.f32.mrb[0].mxu0
      %v592 = vadd.f32 %v286, %v591
      %v593 = vpop.f32.mrb[0].mxu0
      %v594 = vadd.f32 %v282, %v593
      %v595 = vpop.f32.mrb[0].mxu0
      %v596 = vadd.f32 %v286, %v595
      %597 = vmatprep.mubr.bf16.mxu0 0
      %598 = vmatmul.mubr.bf16.gmra.mrb[0].mxu0 %v363
      %v599 = vpop.f32.mrb[0].mxu0
      %v600 = vadd.f32 %v282, %v599
      %v601 = vpop.f32.mrb[0].mxu0
      %v602 = vadd.f32 %v286, %v601
      %v603 = vpop.f32.mrb[0].mxu0
      %v604 = vadd.f32 %v282, %v603
      %v605 = vpop.f32.mrb[0].mxu0
      %v606 = vadd.f32 %v286, %v605
      %607 = vmatprep.mubr.bf16.mxu0 0
      %608 = vmatmul.mubr.bf16.gmra.mrb[0].mxu0 %v364
      %v609 = vpop.f32.mrb[0].mxu0
      %v610 = vadd.f32 %v282, %v609
      %v611 = vpop.f32.mrb[0].mxu0
      %v612 = vadd.f32 %v286, %v611
      %v613 = vpop.f32.mrb[0].mxu0
      %v614 = vadd.f32 %v282, %v613
      %v615 = vpop.f32.mrb[0].mxu0
      %v616 = vadd.f32 %v286, %v615
      %617 = vmatprep.mubr.bf16.mxu0 0
      %618 = vmatmul.mubr.bf16.gmra.mrb[0].mxu0 %v365
      %v619 = vpop.f32.mrb[0].mxu0
      %v620 = vadd.f32 %v282, %v619
      %v621 = vpop.f32.mrb[0].mxu0
      %v622 = vadd.f32 %v286, %v621
      %v623 = vpop.f32.mrb[0].mxu0
      %v624 = vadd.f32 %v282, %v623
      %v625 = vpop.f32.mrb[0].mxu0
      %v626 = vadd.f32 %v286, %v625
      %627 = vmatprep.mubr.bf16.mxu0 0
      %628 = vmatmul.mubr.bf16.gmra.mrb[0].mxu0 %v366
      %v629 = vpop.f32.mrb[0].mxu0
      %v630 = vadd.f32 %v282, %v629
      %v631 = vpop.f32.mrb[0].mxu0
      %v632 = vadd.f32 %v286, %v631
      %v633 = vpop.f32.mrb[0].mxu0
      %v634 = vadd.f32 %v282, %v633
      %v635 = vpop.f32.mrb[0].mxu0
      %v636 = vadd.f32 %v286, %v635
      %637 = vmatprep.mubr.bf16.mxu0 0
      %638 = vmatmul.mubr.bf16.gmra.mrb[0].mxu0 %v367
      %v639 = vpop.f32.mrb[0].mxu0
      %v640 = vadd.f32 %v282, %v639
      %v641 = vpop.f32.mrb[0].mxu0
      %v642 = vadd.f32 %v286, %v641
      %v643 = vpop.f32.mrb[0].mxu0
      %v644 = vadd.f32 %v282, %v643
      %v645 = vpop.f32.mrb[0].mxu0
      %v646 = vadd.f32 %v286, %v645
      %647 = vmatprep.mubr.bf16.mxu0 0
      %648 = vmatmul.mubr.bf16.gmra.mrb[0].mxu0 %v368
      %v649 = vpop.f32.mrb[0].mxu0
      %v650 = vadd.f32 %v282, %v649
      %v651 = vpop.f32.mrb[0].mxu0
      %v652 = vadd.f32 %v286, %v651
      %v653 = vpop.f32.mrb[0].mxu0
      %v654 = vadd.f32 %v282, %v653
      %v655 = vpop.f32.mrb[0].mxu0
      %v656 = vadd.f32 %v286, %v655
      %657 = vdwg.mxu0
      %v658 = vld [vmem:[%s219] sm:$0xff]
      %v659 = vld [vmem:[%s219 + $0x8] sm:$0xff]
      %v660 = vld [vmem:[%s219 + $0x10] sm:$0xff]
      %v661 = vld [vmem:[%s219 + $0x18] sm:$0xff]
      %v662 = vld [vmem:[%s219 + $0x20] sm:$0xff]
      %v663 = vld [vmem:[%s219 + $0x28] sm:$0xff]
      %v664 = vld [vmem:[%s219 + $0x30] sm:$0xff]
      %v665 = vld [vmem:[%s219 + $0x38] sm:$0xff]
      %v666 = vld [vmem:[%s219 + $0x40] sm:$0xff]
      %v667 = vld [vmem:[%s219 + $0x48] sm:$0xff]
      %v668 = vld [vmem:[%s219 + $0x50] sm:$0xff]
      %v669 = vld [vmem:[%s219 + $0x58] sm:$0xff]
      %v670 = vld [vmem:[%s219 + $0x60] sm:$0xff]
      %v671 = vld [vmem:[%s219 + $0x68] sm:$0xff]
      %v672 = vld [vmem:[%s219 + $0x70] sm:$0xff]
      %v673 = vld [vmem:[%s219 + $0x78] sm:$0xff]
      %v674 = vld [vmem:[%s219 + $0x80] sm:$0xff]
      %v675 = vld [vmem:[%s219 + $0x88] sm:$0xff]
      %v676 = vld [vmem:[%s219 + $0x90] sm:$0xff]
      %v677 = vld [vmem:[%s219 + $0x98] sm:$0xff]
      %v678 = vld [vmem:[%s219 + $0xa0] sm:$0xff]
      %v679 = vld [vmem:[%s219 + $0xa8] sm:$0xff]
      %v680 = vld [vmem:[%s219 + $0xb0] sm:$0xff]
      %v681 = vld [vmem:[%s219 + $0xb8] sm:$0xff]
      %v682 = vld [vmem:[%s219 + $0xc0] sm:$0xff]
      %v683 = vld [vmem:[%s219 + $0xc8] sm:$0xff]
      %v684 = vld [vmem:[%s219 + $0xd0] sm:$0xff]
      %v685 = vld [vmem:[%s219 + $0xd8] sm:$0xff]
      %v686 = vld [vmem:[%s219 + $0xe0] sm:$0xff]
      %v687 = vld [vmem:[%s219 + $0xe8] sm:$0xff]
      %v688 = vld [vmem:[%s219 + $0xf0] sm:$0xff]
      %v689 = vld [vmem:[%s219 + $0xf8] sm:$0xff]
      %v690 = vunpack.c.l.bf16 %v658
      %v691 = vunpack.c.h.bf16 %v658
      %v692 = vunpack.c.l.bf16 %v659
      %v693 = vunpack.c.h.bf16 %v659
      %v694 = vunpack.c.l.bf16 %v660
      %v695 = vunpack.c.h.bf16 %v660
      %v696 = vunpack.c.l.bf16 %v661
      %v697 = vunpack.c.h.bf16 %v661
      %v698 = vunpack.c.l.bf16 %v662
      %v699 = vunpack.c.h.bf16 %v662
      %v700 = vunpack.c.l.bf16 %v663
      %v701 = vunpack.c.h.bf16 %v663
      %v702 = vunpack.c.l.bf16 %v664
      %v703 = vunpack.c.h.bf16 %v664
      %v704 = vunpack.c.l.bf16 %v665
      %v705 = vunpack.c.h.bf16 %v665
      %v706 = vunpack.c.l.bf16 %v666
      %v707 = vunpack.c.h.bf16 %v666
      %v708 = vunpack.c.l.bf16 %v667
      %v709 = vunpack.c.h.bf16 %v667
      %v710 = vunpack.c.l.bf16 %v668
      %v711 = vunpack.c.h.bf16 %v668
      %v712 = vunpack.c.l.bf16 %v669
      %v713 = vunpack.c.h.bf16 %v669
      %v714 = vunpack.c.l.bf16 %v670
      %v715 = vunpack.c.h.bf16 %v670
      %v716 = vunpack.c.l.bf16 %v671
      %v717 = vunpack.c.h.bf16 %v671
      %v718 = vunpack.c.l.bf16 %v672
      %v719 = vunpack.c.h.bf16 %v672
      %v720 = vunpack.c.l.bf16 %v673
      %v721 = vunpack.c.h.bf16 %v673
      %v722 = vunpack.c.l.bf16 %v674
      %v723 = vunpack.c.h.bf16 %v674
      %v724 = vunpack.c.l.bf16 %v675
      %v725 = vunpack.c.h.bf16 %v675
      %v726 = vunpack.c.l.bf16 %v676
      %v727 = vunpack.c.h.bf16 %v676
      %v728 = vunpack.c.l.bf16 %v677
      %v729 = vunpack.c.h.bf16 %v677
      %v730 = vunpack.c.l.bf16 %v678
      %v731 = vunpack.c.h.bf16 %v678
      %v732 = vunpack.c.l.bf16 %v679
      %v733 = vunpack.c.h.bf16 %v679
      %v734 = vunpack.c.l.bf16 %v680
      %v735 = vunpack.c.h.bf16 %v680
      %v736 = vunpack.c.l.bf16 %v681
      %v737 = vunpack.c.h.bf16 %v681
      %v738 = vunpack.c.l.bf16 %v682
      %v739 = vunpack.c.h.bf16 %v682
      %v740 = vunpack.c.l.bf16 %v683
      %v741 = vunpack.c.h.bf16 %v683
      %v742 = vunpack.c.l.bf16 %v684
      %v743 = vunpack.c.h.bf16 %v684
      %v744 = vunpack.c.l.bf16 %v685
      %v745 = vunpack.c.h.bf16 %v685
      %v746 = vunpack.c.l.bf16 %v686
      %v747 = vunpack.c.h.bf16 %v686
      %v748 = vunpack.c.l.bf16 %v687
      %v749 = vunpack.c.h.bf16 %v687
      %v750 = vunpack.c.l.bf16 %v688
      %v751 = vunpack.c.h.bf16 %v688
      %v752 = vunpack.c.l.bf16 %v689
      %v753 = vunpack.c.h.bf16 %v689
      %v754 = vadd.f32 %v500, %v690
      %v755 = vadd.f32 %v502, %v691
      %v756 = vadd.f32 %v504, %v692
      %v757 = vadd.f32 %v506, %v693
      %v758 = vadd.f32 %v510, %v694
      %v759 = vadd.f32 %v512, %v695
      %v760 = vadd.f32 %v514, %v696
      %v761 = vadd.f32 %v516, %v697
      %v762 = vadd.f32 %v520, %v698
      %v763 = vadd.f32 %v522, %v699
      %v764 = vadd.f32 %v524, %v700
      %v765 = vadd.f32 %v526, %v701
      %v766 = vadd.f32 %v530, %v702
      %v767 = vadd.f32 %v532, %v703
      %v768 = vadd.f32 %v534, %v704
      %v769 = vadd.f32 %v536, %v705
      %v770 = vadd.f32 %v540, %v706
      %v771 = vadd.f32 %v542, %v707
      %v772 = vadd.f32 %v544, %v708
      %v773 = vadd.f32 %v546, %v709
      %v774 = vadd.f32 %v550, %v710
      %v775 = vadd.f32 %v552, %v711
      %v776 = vadd.f32 %v554, %v712
      %v777 = vadd.f32 %v556, %v713
      %v778 = vadd.f32 %v560, %v714
      %v779 = vadd.f32 %v562, %v715
      %v780 = vadd.f32 %v564, %v716
      %v781 = vadd.f32 %v566, %v717
      %v782 = vadd.f32 %v570, %v718
      %v783 = vadd.f32 %v572, %v719
      %v784 = vadd.f32 %v574, %v720
      %v785 = vadd.f32 %v576, %v721
      %v786 = vadd.f32 %v580, %v722
      %v787 = vadd.f32 %v582, %v723
      %v788 = vadd.f32 %v584, %v724
      %v789 = vadd.f32 %v586, %v725
      %v790 = vadd.f32 %v590, %v726
      %v791 = vadd.f32 %v592, %v727
      %v792 = vadd.f32 %v594, %v728
      %v793 = vadd.f32 %v596, %v729
      %v794 = vadd.f32 %v600, %v730
      %v795 = vadd.f32 %v602, %v731
      %v796 = vadd.f32 %v604, %v732
      %v797 = vadd.f32 %v606, %v733
      %v798 = vadd.f32 %v610, %v734
      %v799 = vadd.f32 %v612, %v735
      %v800 = vadd.f32 %v614, %v736
      %v801 = vadd.f32 %v616, %v737
      %v802 = vadd.f32 %v620, %v738
      %v803 = vadd.f32 %v622, %v739
      %v804 = vadd.f32 %v624, %v740
      %v805 = vadd.f32 %v626, %v741
      %v806 = vadd.f32 %v630, %v742
      %v807 = vadd.f32 %v632, %v743
      %v808 = vadd.f32 %v634, %v744
      %v809 = vadd.f32 %v636, %v745
      %v810 = vadd.f32 %v640, %v746
      %v811 = vadd.f32 %v642, %v747
      %v812 = vadd.f32 %v644, %v748
      %v813 = vadd.f32 %v646, %v749
      %v814 = vadd.f32 %v650, %v750
      %v815 = vadd.f32 %v652, %v751
      %v816 = vadd.f32 %v654, %v752
      %v817 = vadd.f32 %v656, %v753
      %v818 = vmax.f32 %v754, 0.0
      %v819 = vmax.f32 %v755, 0.0
      %v820 = vmax.f32 %v756, 0.0
      %v821 = vmax.f32 %v757, 0.0
      %v822 = vmax.f32 %v758, 0.0
      %v823 = vmax.f32 %v759, 0.0
      %v824 = vmax.f32 %v760, 0.0
      %v825 = vmax.f32 %v761, 0.0
      %v826 = vmax.f32 %v762, 0.0
      %v827 = vmax.f32 %v763, 0.0
      %v828 = vmax.f32 %v764, 0.0
      %v829 = vmax.f32 %v765, 0.0
      %v830 = vmax.f32 %v766, 0.0
      %v831 = vmax.f32 %v767, 0.0
      %v832 = vmax.f32 %v768, 0.0
      %v833 = vmax.f32 %v769, 0.0
      %v834 = vmax.f32 %v770, 0.0
      %v835 = vmax.f32 %v771, 0.0
      %v836 = vmax.f32 %v772, 0.0
      %v837 = vmax.f32 %v773, 0.0
      %v838 = vmax.f32 %v774, 0.0
      %v839 = vmax.f32 %v775, 0.0
      %v840 = vmax.f32 %v776, 0.0
      %v841 = vmax.f32 %v777, 0.0
      %v842 = vmax.f32 %v778, 0.0
      %v843 = vmax.f32 %v779, 0.0
      %v844 = vmax.f32 %v780, 0.0
      %v845 = vmax.f32 %v781, 0.0
      %v846 = vmax.f32 %v782, 0.0
      %v847 = vmax.f32 %v783, 0.0
      %v848 = vmax.f32 %v784, 0.0
      %v849 = vmax.f32 %v785, 0.0
      %v850 = vmax.f32 %v786, 0.0
      %v851 = vmax.f32 %v787, 0.0
      %v852 = vmax.f32 %v788, 0.0
      %v853 = vmax.f32 %v789, 0.0
      %v854 = vmax.f32 %v790, 0.0
      %v855 = vmax.f32 %v791, 0.0
      %v856 = vmax.f32 %v792, 0.0
      %v857 = vmax.f32 %v793, 0.0
      %v858 = vmax.f32 %v794, 0.0
      %v859 = vmax.f32 %v795, 0.0
      %v860 = vmax.f32 %v796, 0.0
      %v861 = vmax.f32 %v797, 0.0
      %v862 = vmax.f32 %v798, 0.0
      %v863 = vmax.f32 %v799, 0.0
      %v864 = vmax.f32 %v800, 0.0
      %v865 = vmax.f32 %v801, 0.0
      %v866 = vmax.f32 %v802, 0.0
      %v867 = vmax.f32 %v803, 0.0
      %v868 = vmax.f32 %v804, 0.0
      %v869 = vmax.f32 %v805, 0.0
      %v870 = vmax.f32 %v806, 0.0
      %v871 = vmax.f32 %v807, 0.0
      %v872 = vmax.f32 %v808, 0.0
      %v873 = vmax.f32 %v809, 0.0
      %v874 = vmax.f32 %v810, 0.0
      %v875 = vmax.f32 %v811, 0.0
      %v876 = vmax.f32 %v812, 0.0
      %v877 = vmax.f32 %v813, 0.0
      %v878 = vmax.f32 %v814, 0.0
      %v879 = vmax.f32 %v815, 0.0
      %v880 = vmax.f32 %v816, 0.0
      %v881 = vmax.f32 %v817, 0.0
      %v882 = vpack.c.bf16 %v820, %v818
      %v883 = vpack.c.bf16 %v821, %v819
      %v884 = vpack.c.bf16 %v824, %v822
      %v885 = vpack.c.bf16 %v825, %v823
      %v886 = vpack.c.bf16 %v828, %v826
      %v887 = vpack.c.bf16 %v829, %v827
      %v888 = vpack.c.bf16 %v832, %v830
      %v889 = vpack.c.bf16 %v833, %v831
      %v890 = vpack.c.bf16 %v836, %v834
      %v891 = vpack.c.bf16 %v837, %v835
      %v892 = vpack.c.bf16 %v840, %v838
      %v893 = vpack.c.bf16 %v841, %v839
      %v894 = vpack.c.bf16 %v844, %v842
      %v895 = vpack.c.bf16 %v845, %v843
      %v896 = vpack.c.bf16 %v848, %v846
      %v897 = vpack.c.bf16 %v849, %v847
      %v898 = vpack.c.bf16 %v852, %v850
      %v899 = vpack.c.bf16 %v853, %v851
      %v900 = vpack.c.bf16 %v856, %v854
      %v901 = vpack.c.bf16 %v857, %v855
      %v902 = vpack.c.bf16 %v860, %v858
      %v903 = vpack.c.bf16 %v861, %v859
      %v904 = vpack.c.bf16 %v864, %v862
      %v905 = vpack.c.bf16 %v865, %v863
      %v906 = vpack.c.bf16 %v868, %v866
      %v907 = vpack.c.bf16 %v869, %v867
      %v908 = vpack.c.bf16 %v872, %v870
      %v909 = vpack.c.bf16 %v873, %v871
      %v910 = vpack.c.bf16 %v876, %v874
      %v911 = vpack.c.bf16 %v877, %v875
      %v912 = vpack.c.bf16 %v880, %v878
      %v913 = vpack.c.bf16 %v881, %v879
      %v946 = vunpack.c.l.b16 %v882
      %v947 = vunpack.c.l.b16 %v883
      %v948 = vunpack.c.h.b16 %v882
      %v949 = vunpack.c.h.b16 %v883
      %v950 = vunpack.c.l.b16 %v884
      %v951 = vunpack.c.l.b16 %v885
      %v952 = vunpack.c.h.b16 %v884
      %v953 = vunpack.c.h.b16 %v885
      %v954 = vunpack.c.l.b16 %v886
      %v955 = vunpack.c.l.b16 %v887
      %v956 = vunpack.c.h.b16 %v886
      %v957 = vunpack.c.h.b16 %v887
      %v958 = vunpack.c.l.b16 %v888
      %v959 = vunpack.c.l.b16 %v889
      %v960 = vunpack.c.h.b16 %v888
      %v961 = vunpack.c.h.b16 %v889
      %v962 = vunpack.c.l.b16 %v890
      %v963 = vunpack.c.l.b16 %v891
      %v964 = vunpack.c.h.b16 %v890
      %v965 = vunpack.c.h.b16 %v891
      %v966 = vunpack.c.l.b16 %v892
      %v967 = vunpack.c.l.b16 %v893
      %v968 = vunpack.c.h.b16 %v892
      %v969 = vunpack.c.h.b16 %v893
      %v970 = vunpack.c.l.b16 %v894
      %v971 = vunpack.c.l.b16 %v895
      %v972 = vunpack.c.h.b16 %v894
      %v973 = vunpack.c.h.b16 %v895
      %v974 = vunpack.c.l.b16 %v896
      %v975 = vunpack.c.l.b16 %v897
      %v976 = vunpack.c.h.b16 %v896
      %v977 = vunpack.c.h.b16 %v897
      %v978 = vunpack.c.l.b16 %v898
      %v979 = vunpack.c.l.b16 %v899
      %v980 = vunpack.c.h.b16 %v898
      %v981 = vunpack.c.h.b16 %v899
      %v982 = vunpack.c.l.b16 %v900
      %v983 = vunpack.c.l.b16 %v901
      %v984 = vunpack.c.h.b16 %v900
      %v985 = vunpack.c.h.b16 %v901
      %v986 = vunpack.c.l.b16 %v902
      %v987 = vunpack.c.l.b16 %v903
      %v988 = vunpack.c.h.b16 %v902
      %v989 = vunpack.c.h.b16 %v903
      %v990 = vunpack.c.l.b16 %v904
      %v991 = vunpack.c.l.b16 %v905
      %v992 = vunpack.c.h.b16 %v904
      %v993 = vunpack.c.h.b16 %v905
      %v994 = vunpack.c.l.b16 %v906
      %v995 = vunpack.c.l.b16 %v907
      %v996 = vunpack.c.h.b16 %v906
      %v997 = vunpack.c.h.b16 %v907
      %v998 = vunpack.c.l.b16 %v908
      %v999 = vunpack.c.l.b16 %v909
      %v1000 = vunpack.c.h.b16 %v908
      %v1001 = vunpack.c.h.b16 %v909
      %v1002 = vunpack.c.l.b16 %v910
      %v1003 = vunpack.c.l.b16 %v911
      %v1004 = vunpack.c.h.b16 %v910
      %v1005 = vunpack.c.h.b16 %v911
      %v1006 = vunpack.c.l.b16 %v912
      %v1007 = vunpack.c.l.b16 %v913
      %v1008 = vunpack.c.h.b16 %v912
      %v1009 = vunpack.c.h.b16 %v913
      %v1010 = vpack.c.b16 %v947, %v946
      %v1011 = vpack.c.b16 %v949, %v948
      %v1012 = vpack.c.b16 %v951, %v950
      %v1013 = vpack.c.b16 %v953, %v952
      %v1014 = vpack.c.b16 %v955, %v954
      %v1015 = vpack.c.b16 %v957, %v956
      %v1016 = vpack.c.b16 %v959, %v958
      %v1017 = vpack.c.b16 %v961, %v960
      %v1018 = vpack.c.b16 %v963, %v962
      %v1019 = vpack.c.b16 %v965, %v964
      %v1020 = vpack.c.b16 %v967, %v966
      %v1021 = vpack.c.b16 %v969, %v968
      %v1022 = vpack.c.b16 %v971, %v970
      %v1023 = vpack.c.b16 %v973, %v972
      %v1024 = vpack.c.b16 %v975, %v974
      %v1025 = vpack.c.b16 %v977, %v976
      %v1026 = vpack.c.b16 %v979, %v978
      %v1027 = vpack.c.b16 %v981, %v980
      %v1028 = vpack.c.b16 %v983, %v982
      %v1029 = vpack.c.b16 %v985, %v984
      %v1030 = vpack.c.b16 %v987, %v986
      %v1031 = vpack.c.b16 %v989, %v988
      %v1032 = vpack.c.b16 %v991, %v990
      %v1033 = vpack.c.b16 %v993, %v992
      %v1034 = vpack.c.b16 %v995, %v994
      %v1035 = vpack.c.b16 %v997, %v996
      %v1036 = vpack.c.b16 %v999, %v998
      %v1037 = vpack.c.b16 %v1001, %v1000
      %v1038 = vpack.c.b16 %v1003, %v1002
      %v1039 = vpack.c.b16 %v1005, %v1004
      %v1040 = vpack.c.b16 %v1007, %v1006
      %v1041 = vpack.c.b16 %v1009, %v1008
      %1074 = vst [vmem:[%s226] sm:$0xff] %v1010
      %1075 = vst [vmem:[%s226 + $0x8] sm:$0xff] %v1011
      %1076 = vst [vmem:[%s226 + $0x10] sm:$0xff] %v1012
      %1077 = vst [vmem:[%s226 + $0x18] sm:$0xff] %v1013
      %1078 = vst [vmem:[%s226 + $0x20] sm:$0xff] %v1014
      %1079 = vst [vmem:[%s226 + $0x28] sm:$0xff] %v1015
      %1080 = vst [vmem:[%s226 + $0x30] sm:$0xff] %v1016
      %1081 = vst [vmem:[%s226 + $0x38] sm:$0xff] %v1017
      %1082 = vst [vmem:[%s226 + $0x40] sm:$0xff] %v1018
      %1083 = vst [vmem:[%s226 + $0x48] sm:$0xff] %v1019
      %1084 = vst [vmem:[%s226 + $0x50] sm:$0xff] %v1020
      %1085 = vst [vmem:[%s226 + $0x58] sm:$0xff] %v1021
      %1086 = vst [vmem:[%s226 + $0x60] sm:$0xff] %v1022
      %1087 = vst [vmem:[%s226 + $0x68] sm:$0xff] %v1023
      %1088 = vst [vmem:[%s226 + $0x70] sm:$0xff] %v1024
      %1089 = vst [vmem:[%s226 + $0x78] sm:$0xff] %v1025
      %1090 = vst [vmem:[%s226 + $0x80] sm:$0xff] %v1026
      %1091 = vst [vmem:[%s226 + $0x88] sm:$0xff] %v1027
      %1092 = vst [vmem:[%s226 + $0x90] sm:$0xff] %v1028
      %1093 = vst [vmem:[%s226 + $0x98] sm:$0xff] %v1029
      %1094 = vst [vmem:[%s226 + $0xa0] sm:$0xff] %v1030
      %1095 = vst [vmem:[%s226 + $0xa8] sm:$0xff] %v1031
      %1096 = vst [vmem:[%s226 + $0xb0] sm:$0xff] %v1032
      %1097 = vst [vmem:[%s226 + $0xb8] sm:$0xff] %v1033
      %1098 = vst [vmem:[%s226 + $0xc0] sm:$0xff] %v1034
      %1099 = vst [vmem:[%s226 + $0xc8] sm:$0xff] %v1035
      %1100 = vst [vmem:[%s226 + $0xd0] sm:$0xff] %v1036
      %1101 = vst [vmem:[%s226 + $0xd8] sm:$0xff] %v1037
      %1102 = vst [vmem:[%s226 + $0xe0] sm:$0xff] %v1038
      %1103 = vst [vmem:[%s226 + $0xe8] sm:$0xff] %v1039
      %1104 = vst [vmem:[%s226 + $0xf0] sm:$0xff] %v1040
      %1105 = vst [vmem:[%s226 + $0xf8] sm:$0xff] %v1041
      %s1106 = smul.u32 32, %s15
      %p1107 = scmp.lt.s32.totalorder %s1106, 63
      %s1108 = scalar_select %p1107, %s1106, 63
      %s1109 = smul.addr %s1108, 2
      %s1110 = smul.addr %s1109, 4
      %s1111 = scalar_lea.vmem %s4, %s1110
      // Predicated region
      $region37: #{forward.13} parent=35 // pred_check
        %p1112 = pneg %p127
      $region38: #{forward.13} parent=35 // pred_check_branch
        %1114 = sbr.rel (%p1112) target = $region40
      $region39: #{forward.13} parent=35 // pred_region
        %s1115 = smul.u32 32, %s15
      $region40: #{forward.13} parent=35 // pred_fallthru
        _
    $region36: #{forward.13} parent=5 // pred_fallthru
      _
    %p1116 = scmp.le.s32.totalorder 2, %s10
    // Predicated region
    $region41: #{forward.13} parent=5 // pred_check
      %p1117 = pneg %p1116
    $region42: #{forward.13} parent=5 // pred_check_branch
      %1119 = sbr.rel (%p1117) target = $region44
    $region43: #{forward.13} parent=5 // pred_region
      %s1120 = ssub.s32 %s10, 2
      // Predicated region
      $region45: #{forward.13} parent=43 // pred_check
        %p1121 = pneg %p133
      $region46: #{forward.13} parent=43 // pred_check_branch
        %1123 = sbr.rel (%p1121) target = $region48
      $region47: #{forward.13} parent=43 // pred_region
        %s1124 = smul.u32 32, %s16
        %p1125 = scmp.lt.s32.totalorder %s1124, 63
        %s1126 = scalar_select %p1125, %s1124, 63
        %s1127 = smul.addr %s1126, 2
        %s1128 = smul.addr %s1127, 4
        %s1129 = scalar_lea.vmem %s4, %s1128
      $region48: #{forward.13} parent=43 // pred_fallthru
        _
    $region44: #{forward.13} parent=5 // pred_fallthru
      _
  $region6: #{forward.13} parent=0 // loop_footer
    %s14 = sadd.s32 1, %s10
  $region7: #{forward.13} parent=0 // loop_footer_branch
    %9 = sbr.rel target = $region3
  $region8: #{forward.13} parent=0 // loop_exit
    _

// kernel: forward.15
$region0: #{forward.15}
  #allocation0 [shape = 'u32[]', space=smem, size = 0x4, offset = 0x4, fixed_abs, tag = 'smem constant byte address 0x4 - core index']
  #allocation1 [shape = 'u32[144,128]{1,0:T(1,128)}', space=vmem, size = 0x12000, scoped, tag = 'internal scratch']
  %s0 = inlined_call_operand.vmem [shape: bf16[2,256,256], index: 0, kind: input, shape index: {}]
  %s1 = inlined_call_operand.vmem [shape: bf16[256,128], index: 1, kind: input, shape index: {}]
  %s2 = inlined_call_operand.vmem [shape: f32[1,128], index: 2, kind: input, shape index: {}]
  %s3 = inlined_call_operand.vmem [shape: bf16[128,10], index: 3, kind: input, shape index: {}]
  %s4 = inlined_call_operand.vmem [shape: f32[1,10], index: 4, kind: input, shape index: {}]
  %s5 = inlined_call_operand.hbm [shape: f32[2,10], index: 5, kind: output, shape index: {}]
  %s6 = sld [smem:[#allocation0]]
  $region30: #{forward.15} parent=0
    _
  %s8 = ssub.s32 1, %s6
  %s9 = scalar_select 0, %s8, %s6
  $region1: #{forward.15} parent=0
    #allocation2 [shape = 'u8[1024]{0}', space=vmem, size = 0x400, scoped, tag = 'output window, operand 0, single buffered']
    #allocation3 [shape = 's32[1]{0}', space=sflag, size = 0x4, scoped, tag = 'scoped memory for forward.15']
    %10 = vsyncpa [#allocation3], 0
    // Predicated region
    $region2: #{forward.15} parent=1 // pred_check
      _
    $region3: #{forward.15} parent=1 // pred_check_branch
      %12 = sbr.rel (0) target = $region5
    $region4: #{forward.15} parent=1 // pred_region
      _
    $region5: #{forward.15} parent=1 // pred_fallthru
      _
    // Predicated region
    $region6: #{forward.15} parent=1 // pred_check
      _
    $region7: #{forward.15} parent=1 // pred_check_branch
      %14 = sbr.rel (0) target = $region9
    $region8: #{forward.15} parent=1 // pred_region
      _
    $region9: #{forward.15} parent=1 // pred_fallthru
      _
    // Predicated region
    $region10: #{forward.15} parent=1 // pred_check
      _
    $region11: #{forward.15} parent=1 // pred_check_branch
      %16 = sbr.rel (0) target = $region13
    $region12: #{forward.15} parent=1 // pred_region
      _
    $region13: #{forward.15} parent=1 // pred_fallthru
      _
    // Predicated region
    $region14: #{forward.15} parent=1 // pred_check
      _
    $region15: #{forward.15} parent=1 // pred_check_branch
      %18 = sbr.rel (0) target = $region17
    $region16: #{forward.15} parent=1 // pred_region
      _
    $region17: #{forward.15} parent=1 // pred_fallthru
      _
    // Predicated region
    $region18: #{forward.15} parent=1 // pred_check
      _
    $region19: #{forward.15} parent=1 // pred_check_branch
      %20 = sbr.rel (0) target = $region21
    $region20: #{forward.15} parent=1 // pred_region
      _
    $region21: #{forward.15} parent=1 // pred_fallthru
      _
    %v22 = vld [vmem:[%s0] sm:$0xff]
    %v23 = vld [vmem:[%s0 + $0x8] sm:$0xff]
    %v24 = vld [vmem:[%s0 + $0x10] sm:$0xff]
    %v25 = vld [vmem:[%s0 + $0x18] sm:$0xff]
    %v26 = vld [vmem:[%s0 + $0x20] sm:$0xff]
    %v27 = vld [vmem:[%s0 + $0x28] sm:$0xff]
    %v28 = vld [vmem:[%s0 + $0x30] sm:$0xff]
    %v29 = vld [vmem:[%s0 + $0x38] sm:$0xff]
    %v30 = vld [vmem:[%s0 + $0x40] sm:$0xff]
    %v31 = vld [vmem:[%s0 + $0x48] sm:$0xff]
    %v32 = vld [vmem:[%s0 + $0x50] sm:$0xff]
    %v33 = vld [vmem:[%s0 + $0x58] sm:$0xff]
    %v34 = vld [vmem:[%s0 + $0x60] sm:$0xff]
    %v35 = vld [vmem:[%s0 + $0x68] sm:$0xff]
    %v36 = vld [vmem:[%s0 + $0x70] sm:$0xff]
    %v37 = vld [vmem:[%s0 + $0x78] sm:$0xff]
    %v38 = vld [vmem:[%s0 + $0x80] sm:$0xff]
    %v39 = vld [vmem:[%s0 + $0x88] sm:$0xff]
    %v40 = vld [vmem:[%s0 + $0x90] sm:$0xff]
    %v41 = vld [vmem:[%s0 + $0x98] sm:$0xff]
    %v42 = vld [vmem:[%s0 + $0xa0] sm:$0xff]
    %v43 = vld [vmem:[%s0 + $0xa8] sm:$0xff]
    %v44 = vld [vmem:[%s0 + $0xb0] sm:$0xff]
    %v45 = vld [vmem:[%s0 + $0xb8] sm:$0xff]
    %v46 = vld [vmem:[%s0 + $0xc0] sm:$0xff]
    %v47 = vld [vmem:[%s0 + $0xc8] sm:$0xff]
    %v48 = vld [vmem:[%s0 + $0xd0] sm:$0xff]
    %v49 = vld [vmem:[%s0 + $0xd8] sm:$0xff]
    %v50 = vld [vmem:[%s0 + $0xe0] sm:$0xff]
    %v51 = vld [vmem:[%s0 + $0xe8] sm:$0xff]
    %v52 = vld [vmem:[%s0 + $0xf0] sm:$0xff]
    %v53 = vld [vmem:[%s0 + $0xf8] sm:$0xff]
    %v54 = vld [vmem:[%s0 + $0x100] sm:$0xff]
    %v55 = vld [vmem:[%s0 + $0x108] sm:$0xff]
    %v56 = vld [vmem:[%s0 + $0x110] sm:$0xff]
    %v57 = vld [vmem:[%s0 + $0x118] sm:$0xff]
    %v58 = vld [vmem:[%s0 + $0x120] sm:$0xff]
    %v59 = vld [vmem:[%s0 + $0x128] sm:$0xff]
    %v60 = vld [vmem:[%s0 + $0x130] sm:$0xff]
    %v61 = vld [vmem:[%s0 + $0x138] sm:$0xff]
    %v62 = vld [vmem:[%s0 + $0x140] sm:$0xff]
    %v63 = vld [vmem:[%s0 + $0x148] sm:$0xff]
    %v64 = vld [vmem:[%s0 + $0x150] sm:$0xff]
    %v65 = vld [vmem:[%s0 + $0x158] sm:$0xff]
    %v66 = vld [vmem:[%s0 + $0x160] sm:$0xff]
    %v67 = vld [vmem:[%s0 + $0x168] sm:$0xff]
    %v68 = vld [vmem:[%s0 + $0x170] sm:$0xff]
    %v69 = vld [vmem:[%s0 + $0x178] sm:$0xff]
    %v70 = vld [vmem:[%s0 + $0x180] sm:$0xff]
    %v71 = vld [vmem:[%s0 + $0x188] sm:$0xff]
    %v72 = vld [vmem:[%s0 + $0x190] sm:$0xff]
    %v73 = vld [vmem:[%s0 + $0x198] sm:$0xff]
    %v74 = vld [vmem:[%s0 + $0x1a0] sm:$0xff]
    %v75 = vld [vmem:[%s0 + $0x1a8] sm:$0xff]
    %v76 = vld [vmem:[%s0 + $0x1b0] sm:$0xff]
    %v77 = vld [vmem:[%s0 + $0x1b8] sm:$0xff]
    %v78 = vld [vmem:[%s0 + $0x1c0] sm:$0xff]
    %v79 = vld [vmem:[%s0 + $0x1c8] sm:$0xff]
    %v80 = vld [vmem:[%s0 + $0x1d0] sm:$0xff]
    %v81 = vld [vmem:[%s0 + $0x1d8] sm:$0xff]
    %v82 = vld [vmem:[%s0 + $0x1e0] sm:$0xff]
    %v83 = vld [vmem:[%s0 + $0x1e8] sm:$0xff]
    %v84 = vld [vmem:[%s0 + $0x1f0] sm:$0xff]
    %v85 = vld [vmem:[%s0 + $0x1f8] sm:$0xff]
    %v86 = vunpack.c.l.bf16 %v22
    %v87 = vunpack.c.h.bf16 %v22
    %v88 = vunpack.c.l.bf16 %v23
    %v89 = vunpack.c.h.bf16 %v23
    %v90 = vunpack.c.l.bf16 %v24
    %v91 = vunpack.c.h.bf16 %v24
    %v92 = vunpack.c.l.bf16 %v25
    %v93 = vunpack.c.h.bf16 %v25
    %v94 = vunpack.c.l.bf16 %v26
    %v95 = vunpack.c.h.bf16 %v26
    %v96 = vunpack.c.l.bf16 %v27
    %v97 = vunpack.c.h.bf16 %v27
    %v98 = vunpack.c.l.bf16 %v28
    %v99 = vunpack.c.h.bf16 %v28
    %v100 = vunpack.c.l.bf16 %v29
    %v101 = vunpack.c.h.bf16 %v29
    %v102 = vunpack.c.l.bf16 %v30
    %v103 = vunpack.c.h.bf16 %v30
    %v104 = vunpack.c.l.bf16 %v31
    %v105 = vunpack.c.h.bf16 %v31
    %v106 = vunpack.c.l.bf16 %v32
    %v107 = vunpack.c.h.bf16 %v32
    %v108 = vunpack.c.l.bf16 %v33
    %v109 = vunpack.c.h.bf16 %v33
    %v110 = vunpack.c.l.bf16 %v34
    %v111 = vunpack.c.h.bf16 %v34
    %v112 = vunpack.c.l.bf16 %v35
    %v113 = vunpack.c.h.bf16 %v35
    %v114 = vunpack.c.l.bf16 %v36
    %v115 = vunpack.c.h.bf16 %v36
    %v116 = vunpack.c.l.bf16 %v37
    %v117 = vunpack.c.h.bf16 %v37
    %v118 = vunpack.c.l.bf16 %v38
    %v119 = vunpack.c.h.bf16 %v38
    %v120 = vunpack.c.l.bf16 %v39
    %v121 = vunpack.c.h.bf16 %v39
    %v122 = vunpack.c.l.bf16 %v40
    %v123 = vunpack.c.h.bf16 %v40
    %v124 = vunpack.c.l.bf16 %v41
    %v125 = vunpack.c.h.bf16 %v41
    %v126 = vunpack.c.l.bf16 %v42
    %v127 = vunpack.c.h.bf16 %v42
    %v128 = vunpack.c.l.bf16 %v43
    %v129 = vunpack.c.h.bf16 %v43
    %v130 = vunpack.c.l.bf16 %v44
    %v131 = vunpack.c.h.bf16 %v44
    %v132 = vunpack.c.l.bf16 %v45
    %v133 = vunpack.c.h.bf16 %v45
    %v134 = vunpack.c.l.bf16 %v46
    %v135 = vunpack.c.h.bf16 %v46
    %v136 = vunpack.c.l.bf16 %v47
    %v137 = vunpack.c.h.bf16 %v47
    %v138 = vunpack.c.l.bf16 %v48
    %v139 = vunpack.c.h.bf16 %v48
    %v140 = vunpack.c.l.bf16 %v49
    %v141 = vunpack.c.h.bf16 %v49
    %v142 = vunpack.c.l.bf16 %v50
    %v143 = vunpack.c.h.bf16 %v50
    %v144 = vunpack.c.l.bf16 %v51
    %v145 = vunpack.c.h.bf16 %v51
    %v146 = vunpack.c.l.bf16 %v52
    %v147 = vunpack.c.h.bf16 %v52
    %v148 = vunpack.c.l.bf16 %v53
    %v149 = vunpack.c.h.bf16 %v53
    %v150 = vunpack.c.l.bf16 %v54
    %v151 = vunpack.c.h.bf16 %v54
    %v152 = vunpack.c.l.bf16 %v55
    %v153 = vunpack.c.h.bf16 %v55
    %v154 = vunpack.c.l.bf16 %v56
    %v155 = vunpack.c.h.bf16 %v56
    %v156 = vunpack.c.l.bf16 %v57
    %v157 = vunpack.c.h.bf16 %v57
    %v158 = vunpack.c.l.bf16 %v58
    %v159 = vunpack.c.h.bf16 %v58
    %v160 = vunpack.c.l.bf16 %v59
    %v161 = vunpack.c.h.bf16 %v59
    %v162 = vunpack.c.l.bf16 %v60
    %v163 = vunpack.c.h.bf16 %v60
    %v164 = vunpack.c.l.bf16 %v61
    %v165 = vunpack.c.h.bf16 %v61
    %v166 = vunpack.c.l.bf16 %v62
    %v167 = vunpack.c.h.bf16 %v62
    %v168 = vunpack.c.l.bf16 %v63
    %v169 = vunpack.c.h.bf16 %v63
    %v170 = vunpack.c.l.bf16 %v64
    %v171 = vunpack.c.h.bf16 %v64
    %v172 = vunpack.c.l.bf16 %v65
    %v173 = vunpack.c.h.bf16 %v65
    %v174 = vunpack.c.l.bf16 %v66
    %v175 = vunpack.c.h.bf16 %v66
    %v176 = vunpack.c.l.bf16 %v67
    %v177 = vunpack.c.h.bf16 %v67
    %v178 = vunpack.c.l.bf16 %v68
    %v179 = vunpack.c.h.bf16 %v68
    %v180 = vunpack.c.l.bf16 %v69
    %v181 = vunpack.c.h.bf16 %v69
    %v182 = vunpack.c.l.bf16 %v70
    %v183 = vunpack.c.h.bf16 %v70
    %v184 = vunpack.c.l.bf16 %v71
    %v185 = vunpack.c.h.bf16 %v71
    %v186 = vunpack.c.l.bf16 %v72
    %v187 = vunpack.c.h.bf16 %v72
    %v188 = vunpack.c.l.bf16 %v73
    %v189 = vunpack.c.h.bf16 %v73
    %v190 = vunpack.c.l.bf16 %v74
    %v191 = vunpack.c.h.bf16 %v74
    %v192 = vunpack.c.l.bf16 %v75
    %v193 = vunpack.c.h.bf16 %v75
    %v194 = vunpack.c.l.bf16 %v76
    %v195 = vunpack.c.h.bf16 %v76
    %v196 = vunpack.c.l.bf16 %v77
    %v197 = vunpack.c.h.bf16 %v77
    %v198 = vunpack.c.l.bf16 %v78
    %v199 = vunpack.c.h.bf16 %v78
    %v200 = vunpack.c.l.bf16 %v79
    %v201 = vunpack.c.h.bf16 %v79
    %v202 = vunpack.c.l.bf16 %v80
    %v203 = vunpack.c.h.bf16 %v80
    %v204 = vunpack.c.l.bf16 %v81
    %v205 = vunpack.c.h.bf16 %v81
    %v206 = vunpack.c.l.bf16 %v82
    %v207 = vunpack.c.h.bf16 %v82
    %v208 = vunpack.c.l.bf16 %v83
    %v209 = vunpack.c.h.bf16 %v83
    %v210 = vunpack.c.l.bf16 %v84
    %v211 = vunpack.c.h.bf16 %v84
    %v212 = vunpack.c.l.bf16 %v85
    %v213 = vunpack.c.h.bf16 %v85
    %v214 = vadd.f32 %v86, %v88
    %v215 = vadd.f32 %v214, %v90
    %v216 = vadd.f32 %v215, %v92
    %v217 = vadd.f32 %v216, %v94
    %v218 = vadd.f32 %v217, %v96
    %v219 = vadd.f32 %v218, %v98
    %v220 = vadd.f32 %v219, %v100
    %v221 = vadd.f32 %v220, %v102
    %v222 = vadd.f32 %v221, %v104
    %v223 = vadd.f32 %v222, %v106
    %v224 = vadd.f32 %v223, %v108
    %v225 = vadd.f32 %v224, %v110
    %v226 = vadd.f32 %v225, %v112
    %v227 = vadd.f32 %v226, %v114
    %v228 = vadd.f32 %v227, %v116
    %v229 = vadd.f32 %v228, %v118
    %v230 = vadd.f32 %v229, %v120
    %v231 = vadd.f32 %v230, %v122
    %v232 = vadd.f32 %v231, %v124
    %v233 = vadd.f32 %v232, %v126
    %v234 = vadd.f32 %v233, %v128
    %v235 = vadd.f32 %v234, %v130
    %v236 = vadd.f32 %v235, %v132
    %v237 = vadd.f32 %v236, %v134
    %v238 = vadd.f32 %v237, %v136
    %v239 = vadd.f32 %v238, %v138
    %v240 = vadd.f32 %v239, %v140
    %v241 = vadd.f32 %v240, %v142
    %v242 = vadd.f32 %v241, %v144
    %v243 = vadd.f32 %v242, %v146
    %v244 = vadd.f32 %v243, %v148
    %v245 = vrot.slane %v244, 4
    %v246 = vadd.f32 %v244, %v245
    %v247 = vrot.slane %v246, 2
    %v248 = vadd.f32 %v246, %v247
    %v249 = vrot.slane %v248, 1
    %v250 = vadd.f32 %v248, %v249
    %v251 = vadd.f32 %v87, %v89
    %v252 = vadd.f32 %v251, %v91
    %v253 = vadd.f32 %v252, %v93
    %v254 = vadd.f32 %v253, %v95
    %v255 = vadd.f32 %v254, %v97
    %v256 = vadd.f32 %v255, %v99
    %v257 = vadd.f32 %v256, %v101
    %v258 = vadd.f32 %v257, %v103
    %v259 = vadd.f32 %v258, %v105
    %v260 = vadd.f32 %v259, %v107
    %v261 = vadd.f32 %v260, %v109
    %v262 = vadd.f32 %v261, %v111
    %v263 = vadd.f32 %v262, %v113
    %v264 = vadd.f32 %v263, %v115
    %v265 = vadd.f32 %v264, %v117
    %v266 = vadd.f32 %v265, %v119
    %v267 = vadd.f32 %v266, %v121
    %v268 = vadd.f32 %v267, %v123
    %v269 = vadd.f32 %v268, %v125
    %v270 = vadd.f32 %v269, %v127
    %v271 = vadd.f32 %v270, %v129
    %v272 = vadd.f32 %v271, %v131
    %v273 = vadd.f32 %v272, %v133
    %v274 = vadd.f32 %v273, %v135
    %v275 = vadd.f32 %v274, %v137
    %v276 = vadd.f32 %v275, %v139
    %v277 = vadd.f32 %v276, %v141
    %v278 = vadd.f32 %v277, %v143
    %v279 = vadd.f32 %v278, %v145
    %v280 = vadd.f32 %v279, %v147
    %v281 = vadd.f32 %v280, %v149
    %v282 = vrot.slane %v281, 4
    %v283 = vadd.f32 %v281, %v282
    %v284 = vrot.slane %v283, 2
    %v285 = vadd.f32 %v283, %v284
    %v286 = vrot.slane %v285, 1
    %v287 = vadd.f32 %v285, %v286
    %v288 = vadd.f32 %v150, %v152
    %v289 = vadd.f32 %v288, %v154
    %v290 = vadd.f32 %v289, %v156
    %v291 = vadd.f32 %v290, %v158
    %v292 = vadd.f32 %v291, %v160
    %v293 = vadd.f32 %v292, %v162
    %v294 = vadd.f32 %v293, %v164
    %v295 = vadd.f32 %v294, %v166
    %v296 = vadd.f32 %v295, %v168
    %v297 = vadd.f32 %v296, %v170
    %v298 = vadd.f32 %v297, %v172
    %v299 = vadd.f32 %v298, %v174
    %v300 = vadd.f32 %v299, %v176
    %v301 = vadd.f32 %v300, %v178
    %v302 = vadd.f32 %v301, %v180
    %v303 = vadd.f32 %v302, %v182
    %v304 = vadd.f32 %v303, %v184
    %v305 = vadd.f32 %v304, %v186
    %v306 = vadd.f32 %v305, %v188
    %v307 = vadd.f32 %v306, %v190
    %v308 = vadd.f32 %v307, %v192
    %v309 = vadd.f32 %v308, %v194
    %v310 = vadd.f32 %v309, %v196
    %v311 = vadd.f32 %v310, %v198
    %v312 = vadd.f32 %v311, %v200
    %v313 = vadd.f32 %v312, %v202
    %v314 = vadd.f32 %v313, %v204
    %v315 = vadd.f32 %v314, %v206
    %v316 = vadd.f32 %v315, %v208
    %v317 = vadd.f32 %v316, %v210
    %v318 = vadd.f32 %v317, %v212
    %v319 = vrot.slane %v318, 4
    %v320 = vadd.f32 %v318, %v319
    %v321 = vrot.slane %v320, 2
    %v322 = vadd.f32 %v320, %v321
    %v323 = vrot.slane %v322, 1
    %v324 = vadd.f32 %v322, %v323
    %v325 = vadd.f32 %v151, %v153
    %v326 = vadd.f32 %v325, %v155
    %v327 = vadd.f32 %v326, %v157
    %v328 = vadd.f32 %v327, %v159
    %v329 = vadd.f32 %v328, %v161
    %v330 = vadd.f32 %v329, %v163
    %v331 = vadd.f32 %v330, %v165
    %v332 = vadd.f32 %v331, %v167
    %v333 = vadd.f32 %v332, %v169
    %v334 = vadd.f32 %v333, %v171
    %v335 = vadd.f32 %v334, %v173
    %v336 = vadd.f32 %v335, %v175
    %v337 = vadd.f32 %v336, %v177
    %v338 = vadd.f32 %v337, %v179
    %v339 = vadd.f32 %v338, %v181
    %v340 = vadd.f32 %v339, %v183
    %v341 = vadd.f32 %v340, %v185
    %v342 = vadd.f32 %v341, %v187
    %v343 = vadd.f32 %v342, %v189
    %v344 = vadd.f32 %v343, %v191
    %v345 = vadd.f32 %v344, %v193
    %v346 = vadd.f32 %v345, %v195
    %v347 = vadd.f32 %v346, %v197
    %v348 = vadd.f32 %v347, %v199
    %v349 = vadd.f32 %v348, %v201
    %v350 = vadd.f32 %v349, %v203
    %v351 = vadd.f32 %v350, %v205
    %v352 = vadd.f32 %v351, %v207
    %v353 = vadd.f32 %v352, %v209
    %v354 = vadd.f32 %v353, %v211
    %v355 = vadd.f32 %v354, %v213
    %v356 = vrot.slane %v355, 4
    %v357 = vadd.f32 %v355, %v356
    %v358 = vrot.slane %v357, 2
    %v359 = vadd.f32 %v357, %v358
    %v360 = vrot.slane %v359, 1
    %v361 = vadd.f32 %v359, %v360
    %v362 = vmul.f32 %v250, 0.00390625
    %v363 = vmul.f32 %v287, 0.00390625
    %v364 = vmul.f32 %v324, 0.00390625
    %v365 = vmul.f32 %v361, 0.00390625
    %v366 = vpack.c.bf16 %v362, %v362
    %v367 = vpack.c.bf16 %v363, %v363
    %v368 = vpack.c.bf16 %v364, %v364
    %v369 = vpack.c.bf16 %v365, %v365
    %v370 = vld [vmem:[%s1] sm:$0xf]
    %v371 = vld [vmem:[%s1 + $0x4] sm:$0xf]
    %v372 = vld [vmem:[%s1 + $0x8] sm:$0xf]
    %v373 = vld [vmem:[%s1 + $0xc] sm:$0xf]
    %v374 = vld [vmem:[%s1 + $0x10] sm:$0xf]
    %v375 = vld [vmem:[%s1 + $0x14] sm:$0xf]
    %v376 = vld [vmem:[%s1 + $0x18] sm:$0xf]
    %v377 = vld [vmem:[%s1 + $0x1c] sm:$0xf]
    %v378 = vld [vmem:[%s1 + $0x20] sm:$0xf]
    %v379 = vld [vmem:[%s1 + $0x24] sm:$0xf]
    %v380 = vld [vmem:[%s1 + $0x28] sm:$0xf]
    %v381 = vld [vmem:[%s1 + $0x2c] sm:$0xf]
    %v382 = vld [vmem:[%s1 + $0x30] sm:$0xf]
    %v383 = vld [vmem:[%s1 + $0x34] sm:$0xf]
    %v384 = vld [vmem:[%s1 + $0x38] sm:$0xf]
    %v385 = vld [vmem:[%s1 + $0x3c] sm:$0xf]
    %v386 = vld [vmem:[%s1 + $0x40] sm:$0xf]
    %v387 = vld [vmem:[%s1 + $0x44] sm:$0xf]
    %v388 = vld [vmem:[%s1 + $0x48] sm:$0xf]
    %v389 = vld [vmem:[%s1 + $0x4c] sm:$0xf]
    %v390 = vld [vmem:[%s1 + $0x50] sm:$0xf]
    %v391 = vld [vmem:[%s1 + $0x54] sm:$0xf]
    %v392 = vld [vmem:[%s1 + $0x58] sm:$0xf]
    %v393 = vld [vmem:[%s1 + $0x5c] sm:$0xf]
    %v394 = vld [vmem:[%s1 + $0x60] sm:$0xf]
    %v395 = vld [vmem:[%s1 + $0x64] sm:$0xf]
    %v396 = vld [vmem:[%s1 + $0x68] sm:$0xf]
    %v397 = vld [vmem:[%s1 + $0x6c] sm:$0xf]
    %v398 = vld [vmem:[%s1 + $0x70] sm:$0xf]
    %v399 = vld [vmem:[%s1 + $0x74] sm:$0xf]
    %v400 = vld [vmem:[%s1 + $0x78] sm:$0xf]
    %v401 = vld [vmem:[%s1 + $0x7c] sm:$0xf]
    %v402 = vld [vmem:[%s2] sm:$0x1]
    %v404 = vlaneseq
    %v405 = vshrl.u32 %v404, 7
    %v406 = vsub.s32 0, %v405
    %v407 = vrot.slane %v402, %v406
    %v413 = vunpack.c.l.b16 %v366
    %v414 = vunpack.c.l.b16 %v367
    %v415 = vunpack.c.l.b16 %v368
    %v416 = vunpack.c.l.b16 %v369
    %vm417 = vcmask 1041409
    %v418 = vsel %vm417, %v415, %v413
    %v419 = vsel %vm417, %v416, %v414
    %v420 = vpack.c.b16 %v418, %v418
    %v421 = vpack.c.b16 %v419, %v419
    %v456 = vunpack.c.l.b16 %v370
    %v457 = vunpack.c.l.b16 %v371
    %v458 = vunpack.c.l.b16 %v372
    %v459 = vunpack.c.l.b16 %v373
    %v460 = vunpack.c.l.b16 %v374
    %v461 = vunpack.c.l.b16 %v375
    %v462 = vunpack.c.l.b16 %v376
    %v463 = vunpack.c.l.b16 %v377
    %v464 = vunpack.c.l.b16 %v378
    %v465 = vunpack.c.l.b16 %v379
    %v466 = vunpack.c.l.b16 %v380
    %v467 = vunpack.c.l.b16 %v381
    %v468 = vunpack.c.l.b16 %v382
    %v469 = vunpack.c.l.b16 %v383
    %v470 = vunpack.c.l.b16 %v384
    %v471 = vunpack.c.l.b16 %v385
    %v472 = vunpack.c.l.b16 %v386
    %v473 = vunpack.c.l.b16 %v387
    %v474 = vunpack.c.l.b16 %v388
    %v475 = vunpack.c.l.b16 %v389
    %v476 = vunpack.c.l.b16 %v390
    %v477 = vunpack.c.l.b16 %v391
    %v478 = vunpack.c.l.b16 %v392
    %v479 = vunpack.c.l.b16 %v393
    %v480 = vunpack.c.l.b16 %v394
    %v481 = vunpack.c.l.b16 %v395
    %v482 = vunpack.c.l.b16 %v396
    %v483 = vunpack.c.l.b16 %v397
    %v484 = vunpack.c.l.b16 %v398
    %v485 = vunpack.c.l.b16 %v399
    %v486 = vunpack.c.l.b16 %v400
    %v487 = vunpack.c.l.b16 %v401
    %v488 = vpack.c.b16 %v457, %v456
    %v489 = vpack.c.b16 %v459, %v458
    %v490 = vpack.c.b16 %v461, %v460
    %v491 = vpack.c.b16 %v463, %v462
    %v492 = vpack.c.b16 %v465, %v464
    %v493 = vpack.c.b16 %v467, %v466
    %v494 = vpack.c.b16 %v469, %v468
    %v495 = vpack.c.b16 %v471, %v470
    %v496 = vpack.c.b16 %v473, %v472
    %v497 = vpack.c.b16 %v475, %v474
    %v498 = vpack.c.b16 %v477, %v476
    %v499 = vpack.c.b16 %v479, %v478
    %v500 = vpack.c.b16 %v481, %v480
    %v501 = vpack.c.b16 %v483, %v482
    %v502 = vpack.c.b16 %v485, %v484
    %v503 = vpack.c.b16 %v487, %v486
    %520 = vmatprep.subr.bf16.mxu0 0
    %521 = vmatpush1.bf16.msra.mxu0 %v488
    %522 = vmatprep.subr.bf16.mxu0 0
    %523 = vmatpush1.bf16.msra.mxu0 %v489
    %524 = vmatprep.subr.bf16.mxu0 0
    %525 = vmatpush1.bf16.msra.mxu0 %v490
    %526 = vmatprep.subr.bf16.mxu0 0
    %527 = vmatpush1.bf16.msra.mxu0 %v491
    %528 = vmatprep.subr.bf16.mxu0 0
    %529 = vmatpush1.bf16.msra.mxu0 %v492
    %530 = vmatprep.subr.bf16.mxu0 0
    %531 = vmatpush1.bf16.msra.mxu0 %v493
    %532 = vmatprep.subr.bf16.mxu0 0
    %533 = vmatpush1.bf16.msra.mxu0 %v494
    %534 = vmatprep.subr.bf16.mxu0 0
    %535 = vmatpush1.bf16.msra.mxu0 %v495
    %536 = vmatprep.subr.bf16.mxu0 0
    %537 = vmatpush1.bf16.msra.mxu0 %v496
    %538 = vmatprep.subr.bf16.mxu0 0
    %539 = vmatpush1.bf16.msra.mxu0 %v497
    %540 = vmatprep.subr.bf16.mxu0 0
    %541 = vmatpush1.bf16.msra.mxu0 %v498
    %542 = vmatprep.subr.bf16.mxu0 0
    %543 = vmatpush1.bf16.msra.mxu0 %v499
    %544 = vmatprep.subr.bf16.mxu0 0
    %545 = vmatpush1.bf16.msra.mxu0 %v500
    %546 = vmatprep.subr.bf16.mxu0 0
    %547 = vmatpush1.bf16.msra.mxu0 %v501
    %548 = vmatprep.subr.bf16.mxu0 0
    %549 = vmatpush1.bf16.msra.mxu0 %v502
    %550 = vmatprep.subr.bf16.mxu0 0
    %551 = vmatpush1.bf16.msra.mxu0 %v503
    %552 = vmatprep.mubr.bf16.mxu0 %v421
    %553 = vmatmul.mubr.bf16.gmra.mrb[0].mxu0 %v420
    %v554 = vpop.f32.mrb[0].mxu0
    %v555 = vadd.f32 %v407, %v554
    %v556 = vpop.f32.mrb[0].mxu0
    %v557 = vpop.f32.mrb[0].mxu0
    %v558 = vpop.f32.mrb[0].mxu0
    %559 = vdwg.mxu0
    %v560 = vmax.f32 %v555, 0.0
    %v561 = vpack.c.bf16 %v560, %v560
    %v562 = vld [vmem:[%s3] sm:$0xf]
    %v563 = vld [vmem:[%s3 + $0x4] sm:$0xf]
    %v564 = vld [vmem:[%s3 + $0x8] sm:$0xf]
    %v565 = vld [vmem:[%s3 + $0xc] sm:$0xf]
    %v566 = vld [vmem:[%s3 + $0x10] sm:$0xf]
    %v567 = vld [vmem:[%s3 + $0x14] sm:$0xf]
    %v568 = vld [vmem:[%s3 + $0x18] sm:$0xf]
    %v569 = vld [vmem:[%s3 + $0x1c] sm:$0xf]
    %v570 = vld [vmem:[%s3 + $0x20] sm:$0xf]
    %v571 = vld [vmem:[%s3 + $0x24] sm:$0xf]
    %v572 = vld [vmem:[%s3 + $0x28] sm:$0xf]
    %v573 = vld [vmem:[%s3 + $0x2c] sm:$0xf]
    %v574 = vld [vmem:[%s3 + $0x30] sm:$0xf]
    %v575 = vld [vmem:[%s3 + $0x34] sm:$0xf]
    %v576 = vld [vmem:[%s3 + $0x38] sm:$0xf]
    %v577 = vld [vmem:[%s3 + $0x3c] sm:$0xf]
    %v578 = vld [vmem:[%s4] sm:$0x1]
    %v580 = vlaneseq
    %v581 = vshrl.u32 %v580, 7
    %v582 = vsub.s32 0, %v581
    %v583 = vrot.slane %v578, %v582
    %v601 = vunpack.c.l.b16 %v562
    %v602 = vunpack.c.l.b16 %v563
    %v603 = vunpack.c.l.b16 %v564
    %v604 = vunpack.c.l.b16 %v565
    %v605 = vunpack.c.l.b16 %v566
    %v606 = vunpack.c.l.b16 %v567
    %v607 = vunpack.c.l.b16 %v568
    %v608 = vunpack.c.l.b16 %v569
    %v609 = vunpack.c.l.b16 %v570
    %v610 = vunpack.c.l.b16 %v571
    %v611 = vunpack.c.l.b16 %v572
    %v612 = vunpack.c.l.b16 %v573
    %v613 = vunpack.c.l.b16 %v574
    %v614 = vunpack.c.l.b16 %v575
    %v615 = vunpack.c.l.b16 %v576
    %v616 = vunpack.c.l.b16 %v577
    %v617 = vpack.c.b16 %v602, %v601
    %v618 = vpack.c.b16 %v604, %v603
    %v619 = vpack.c.b16 %v606, %v605
    %v620 = vpack.c.b16 %v608, %v607
    %v621 = vpack.c.b16 %v610, %v609
    %v622 = vpack.c.b16 %v612, %v611
    %v623 = vpack.c.b16 %v614, %v613
    %v624 = vpack.c.b16 %v616, %v615
    %633 = vmatprep.subr.bf16.mxu0 0
    %634 = vmatpush1.bf16.msra.mxu0 %v617
    %635 = vmatprep.subr.bf16.mxu0 0
    %636 = vmatpush1.bf16.msra.mxu0 %v618
    %637 = vmatprep.subr.bf16.mxu0 0
    %638 = vmatpush1.bf16.msra.mxu0 %v619
    %639 = vmatprep.subr.bf16.mxu0 0
    %640 = vmatpush1.bf16.msra.mxu0 %v620
    %641 = vmatprep.subr.bf16.mxu0 0
    %642 = vmatpush1.bf16.msra.mxu0 %v621
    %643 = vmatprep.subr.bf16.mxu0 0
    %644 = vmatpush1.bf16.msra.mxu0 %v622
    %645 = vmatprep.subr.bf16.mxu0 0
    %646 = vmatpush1.bf16.msra.mxu0 %v623
    %647 = vmatprep.subr.bf16.mxu0 0
    %648 = vmatpush1.bf16.msra.mxu0 %v624
    %649 = vmatprep.subr.bf16.mxu0 0
    %650 = vmatpush1.bf16.msra.mxu0 0
    %651 = vmatprep.subr.bf16.mxu0 0
    %652 = vmatpush1.bf16.msra.mxu0 0
    %653 = vmatprep.subr.bf16.mxu0 0
    %654 = vmatpush1.bf16.msra.mxu0 0
    %655 = vmatprep.subr.bf16.mxu0 0
    %656 = vmatpush1.bf16.msra.mxu0 0
    %657 = vmatprep.subr.bf16.mxu0 0
    %658 = vmatpush1.bf16.msra.mxu0 0
    %659 = vmatprep.subr.bf16.mxu0 0
    %660 = vmatpush1.bf16.msra.mxu0 0
    %661 = vmatprep.subr.bf16.mxu0 0
    %662 = vmatpush1.bf16.msra.mxu0 0
    %663 = vmatprep.subr.bf16.mxu0 0
    %664 = vmatpush1.bf16.msra.mxu0 0
    %665 = vmatprep.mubr.bf16.mxu0 0
    %666 = vmatmul.mubr.bf16.gmra.mrb[0].mxu0 %v561
    %v667 = vpop.f32.mrb[0].mxu0
    %v668 = vadd.f32 %v583, %v667
    %v669 = vpop.f32.mrb[0].mxu0
    %v670 = vpop.f32.mrb[0].mxu0
    %v671 = vpop.f32.mrb[0].mxu0
    %672 = vdwg.mxu0
    %vm673 = vcmask 74752
    %674 = vst.msk [vmem:[#allocation2] sm:$0x3] %vm673, %v668
    // Predicated region
    $region22: #{forward.15} parent=1 // pred_check
      _
    $region23: #{forward.15} parent=1 // pred_check_branch
      %676 = sbr.rel (0) target = $region25
    $region24: #{forward.15} parent=1 // pred_region
      %s678 = ssub.s32 32, 32
      %679 = vsyncadd [#allocation3], %s678
      %s681 = sshll.u32 [#allocation2], 4
      %s682 = int_to_ptr.vmem [resolvable:$true] %s681
      %684 = dma.vmem_to_hbm [thread:$0]  %s682, 32, %s5, [#allocation3]
    $region25: #{forward.15} parent=1 // pred_fallthru
      _
    // Predicated region
    $region26: #{forward.15} parent=1 // pred_check
      _
    $region27: #{forward.15} parent=1 // pred_check_branch
      %686 = sbr.rel (0) target = $region29
    $region28: #{forward.15} parent=1 // pred_region
      %687 = dma.done [#allocation3], 32
    $region29: #{forward.15} parent=1 // pred_fallthru
      _
    %688 = vsyncpa [#allocation3], 1

// kernel: forward.14
$region0: #{forward.14}
  #allocation0 [shape = 'u32[]', space=smem, size = 0x4, offset = 0x4, fixed_abs, tag = 'smem constant byte address 0x4 - core index']
  #allocation1 [shape = 'u32[144,128]{1,0:T(1,128)}', space=vmem, size = 0x12000, scoped, tag = 'internal scratch']
  %s0 = inlined_call_operand.vmem [shape: bf16[2,256,256], index: 0, kind: input, shape index: {}]
  %s1 = inlined_call_operand.vmem [shape: bf16[256,128], index: 1, kind: input, shape index: {}]
  %s2 = inlined_call_operand.vmem [shape: bf16[256,128], index: 2, kind: input, shape index: {}]
  %s3 = inlined_call_operand.vmem [shape: bf16[256,128], index: 3, kind: input, shape index: {}]
  %s4 = inlined_call_operand.vmem [shape: bf16[128,256], index: 4, kind: input, shape index: {}]
  %s5 = inlined_call_operand.vmem [shape: bf16[2,256,256], index: 5, kind: output, shape index: {}]
  %s6 = sld [smem:[#allocation0]]
  $region53: #{forward.14} parent=0
    _
  %s8 = ssub.s32 1, %s6
  %s9 = scalar_select 0, %s8, %s6
  loop: start=0, step=1, limit=4
  $region2: #{forward.14} parent=0 // loop_pre_header
    _
  $region3: #{forward.14} parent=0 // loop_header
    %s11 = sphi 0, %s15
    %p12 = scmp.ge.s32.totalorder %s11, 4
    %s21 = sphi 0, %s23
    %s24 = sphi 0, %s21
    %s25 = sphi 0, %s24
    %s41 = sphi 0, %s25
    %s45 = sphi 0, %s45
    %s47 = sphi 0, %s45
    %s48 = sphi 0, %s47
    %s62 = sphi 0, %s48
    %s66 = sphi 0, %s66
    %s68 = sphi 0, %s66
    %s69 = sphi 0, %s68
    %s83 = sphi 0, %s69
    %s87 = sphi 0, %s87
    %s89 = sphi 0, %s87
    %s90 = sphi 0, %s89
    %s104 = sphi 0, %s90
    %s108 = sphi 0, %s108
    %s110 = sphi 0, %s108
    %s111 = sphi 0, %s110
    %s125 = sphi 0, %s111
    %s131 = sphi 0, %s133
    %s134 = sphi 0, %s131
    %s135 = sphi 0, %s134
    %s151 = sphi 0, %s135
  $region4: #{forward.14} parent=0 // loop_header_branch
    %14 = sbr.rel (%p12) target = $region8
  $region5: #{forward.14} parent=0 // loop_body
    %s16 = ssub.s32 %s11, 1
    %s17 = ssub.s32 %s11, 2
    %s18 = sadd.s32 %s11, 1
    %s19 = ssub.s32 %s11, %s18
    %p20 = scmp.eq.s32.totalorder %s19, 0
    %s22 = sadd.s32 %s21, 1
    %s23 = scalar_select %p20, %s21, %s22
    %p26 = pneg %p20
    %p27 = scmp.eq.s32.totalorder %s11, 1
    %p28 = por %p26, %p27
    %p29 = scmp.ne.s32.totalorder %s21, %s24
    %p30 = scmp.eq.s32.totalorder %s11, 0
    %p31 = por %p29, %p30
    %p32 = scmp.ne.s32.totalorder %s21, %s24
    %p33 = scmp.eq.s32.totalorder %s16, 1
    %p34 = por %p32, %p33
    %p35 = scmp.ne.s32.totalorder %s24, %s25
    %p36 = scmp.eq.s32.totalorder %s16, 0
    %p37 = por %p35, %p36
    %p38 = scmp.ne.s32.totalorder %s24, %s25
    %p39 = scmp.eq.s32.totalorder %s17, 1
    %p40 = por %p38, %p39
    %p42 = scmp.ne.s32.totalorder %s25, %s41
    %p43 = scmp.eq.s32.totalorder %s17, 0
    %p44 = por %p42, %p43
    %s46 = sadd.s32 %s45, 1
    %p49 = scmp.eq.s32.totalorder %s11, 1
    %p50 = scmp.ne.s32.totalorder %s45, %s47
    %p51 = scmp.eq.s32.totalorder %s11, 0
    %p52 = por %p50, %p51
    %p53 = scmp.ne.s32.totalorder %s45, %s47
    %p54 = scmp.eq.s32.totalorder %s16, 1
    %p55 = por %p53, %p54
    %p56 = scmp.ne.s32.totalorder %s47, %s48
    %p57 = scmp.eq.s32.totalorder %s16, 0
    %p58 = por %p56, %p57
    %p59 = scmp.ne.s32.totalorder %s47, %s48
    %p60 = scmp.eq.s32.totalorder %s17, 1
    %p61 = por %p59, %p60
    %p63 = scmp.ne.s32.totalorder %s48, %s62
    %p64 = scmp.eq.s32.totalorder %s17, 0
    %p65 = por %p63, %p64
    %s67 = sadd.s32 %s66, 1
    %p70 = scmp.eq.s32.totalorder %s11, 1
    %p71 = scmp.ne.s32.totalorder %s66, %s68
    %p72 = scmp.eq.s32.totalorder %s11, 0
    %p73 = por %p71, %p72
    %p74 = scmp.ne.s32.totalorder %s66, %s68
    %p75 = scmp.eq.s32.totalorder %s16, 1
    %p76 = por %p74, %p75
    %p77 = scmp.ne.s32.totalorder %s68, %s69
    %p78 = scmp.eq.s32.totalorder %s16, 0
    %p79 = por %p77, %p78
    %p80 = scmp.ne.s32.totalorder %s68, %s69
    %p81 = scmp.eq.s32.totalorder %s17, 1
    %p82 = por %p80, %p81
    %p84 = scmp.ne.s32.totalorder %s69, %s83
    %p85 = scmp.eq.s32.totalorder %s17, 0
    %p86 = por %p84, %p85
    %s88 = sadd.s32 %s87, 1
    %p91 = scmp.eq.s32.totalorder %s11, 1
    %p92 = scmp.ne.s32.totalorder %s87, %s89
    %p93 = scmp.eq.s32.totalorder %s11, 0
    %p94 = por %p92, %p93
    %p95 = scmp.ne.s32.totalorder %s87, %s89
    %p96 = scmp.eq.s32.totalorder %s16, 1
    %p97 = por %p95, %p96
    %p98 = scmp.ne.s32.totalorder %s89, %s90
    %p99 = scmp.eq.s32.totalorder %s16, 0
    %p100 = por %p98, %p99
    %p101 = scmp.ne.s32.totalorder %s89, %s90
    %p102 = scmp.eq.s32.totalorder %s17, 1
    %p103 = por %p101, %p102
    %p105 = scmp.ne.s32.totalorder %s90, %s104
    %p106 = scmp.eq.s32.totalorder %s17, 0
    %p107 = por %p105, %p106
    %s109 = sadd.s32 %s108, 1
    %p112 = scmp.eq.s32.totalorder %s11, 1
    %p113 = scmp.ne.s32.totalorder %s108, %s110
    %p114 = scmp.eq.s32.totalorder %s11, 0
    %p115 = por %p113, %p114
    %p116 = scmp.ne.s32.totalorder %s108, %s110
    %p117 = scmp.eq.s32.totalorder %s16, 1
    %p118 = por %p116, %p117
    %p119 = scmp.ne.s32.totalorder %s110, %s111
    %p120 = scmp.eq.s32.totalorder %s16, 0
    %p121 = por %p119, %p120
    %p122 = scmp.ne.s32.totalorder %s110, %s111
    %p123 = scmp.eq.s32.totalorder %s17, 1
    %p124 = por %p122, %p123
    %p126 = scmp.ne.s32.totalorder %s111, %s125
    %p127 = scmp.eq.s32.totalorder %s17, 0
    %p128 = por %p126, %p127
    %s129 = ssub.s32 %s11, %s18
    %p130 = scmp.eq.s32.totalorder %s129, 0
    %s132 = sadd.s32 %s131, 1
    %s133 = scalar_select %p130, %s131, %s132
    %p136 = pneg %p130
    %p137 = scmp.eq.s32.totalorder %s11, 1
    %p138 = por %p136, %p137
    %p139 = scmp.ne.s32.totalorder %s131, %s134
    %p140 = scmp.eq.s32.totalorder %s11, 0
    %p141 = por %p139, %p140
    %p142 = scmp.ne.s32.totalorder %s131, %s134
    %p143 = scmp.eq.s32.totalorder %s16, 1
    %p144 = por %p142, %p143
    %p145 = scmp.ne.s32.totalorder %s134, %s135
    %p146 = scmp.eq.s32.totalorder %s16, 0
    %p147 = por %p145, %p146
    %p148 = scmp.ne.s32.totalorder %s134, %s135
    %p149 = scmp.eq.s32.totalorder %s17, 1
    %p150 = por %p148, %p149
    %p152 = scmp.ne.s32.totalorder %s135, %s151
    %p153 = scmp.eq.s32.totalorder %s17, 0
    %p154 = por %p152, %p153
    %p155 = scmp.le.s32.totalorder 1, %s11
    %p156 = scmp.lt.s32.totalorder %s11, 3
    %p157 = pnand %p155, %p156
    %p158 = pneg %p157
    // Predicated region
    $region9: #{forward.14} parent=5 // pred_check
      _
    $region10: #{forward.14} parent=5 // pred_check_branch
      %160 = sbr.rel (%p157) target = $region12
    $region11: #{forward.14} parent=5 // pred_region
      %s161 = ssub.s32 %s11, 1
      // Predicated region
      $region13: #{forward.14} parent=11 // pred_check
        %p162 = pneg %p58
      $region14: #{forward.14} parent=11 // pred_check_branch
        %164 = sbr.rel (%p162) target = $region16
      $region15: #{forward.14} parent=11 // pred_region
        _
      $region16: #{forward.14} parent=11 // pred_fallthru
        _
      // Predicated region
      $region17: #{forward.14} parent=11 // pred_check
        %p165 = pneg %p79
      $region18: #{forward.14} parent=11 // pred_check_branch
        %167 = sbr.rel (%p165) target = $region20
      $region19: #{forward.14} parent=11 // pred_region
        _
      $region20: #{forward.14} parent=11 // pred_fallthru
        _
      // Predicated region
      $region21: #{forward.14} parent=11 // pred_check
        %p168 = pneg %p100
      $region22: #{forward.14} parent=11 // pred_check_branch
        %170 = sbr.rel (%p168) target = $region24
      $region23: #{forward.14} parent=11 // pred_region
        _
      $region24: #{forward.14} parent=11 // pred_fallthru
        _
      // Predicated region
      $region25: #{forward.14} parent=11 // pred_check
        %p171 = pneg %p121
      $region26: #{forward.14} parent=11 // pred_check_branch
        %173 = sbr.rel (%p171) target = $region28
      $region27: #{forward.14} parent=11 // pred_region
        _
      $region28: #{forward.14} parent=11 // pred_fallthru
        _
    $region12: #{forward.14} parent=5 // pred_fallthru
      _
    %p174 = scmp.lt.s32.totalorder %s11, 2
    // Predicated region
    $region29: #{forward.14} parent=5 // pred_check
      %p175 = pneg %p174
    $region30: #{forward.14} parent=5 // pred_check_branch
      %177 = sbr.rel (%p175) target = $region32
    $region31: #{forward.14} parent=5 // pred_region
      // Predicated region
      $region33: #{forward.14} parent=31 // pred_check
        %p178 = pneg %p31
      $region34: #{forward.14} parent=31 // pred_check_branch
        %180 = sbr.rel (%p178) target = $region36
      $region35: #{forward.14} parent=31 // pred_region
        %p181 = scmp.lt.s32.totalorder %s11, 1
        %s182 = scalar_select %p181, %s11, 1
        %s183 = smul.addr %s182, 64
        %s184 = smul.addr %s183, 4
        %s185 = scalar_lea.vmem %s0, %s184
      $region36: #{forward.14} parent=31 // pred_fallthru
        _
    $region32: #{forward.14} parent=5 // pred_fallthru
      _
    %p186 = scmp.le.s32.totalorder 1, %s11
    %p187 = scmp.lt.s32.totalorder %s11, 3
    %p188 = pnand %p186, %p187
    %p189 = pneg %p188
    // Predicated region
    $region37: #{forward.14} parent=5 // pred_check
      _
    $region38: #{forward.14} parent=5 // pred_check_branch
      %191 = sbr.rel (%p188) target = $region40
    $region39: #{forward.14} parent=5 // pred_region
      %s192 = ssub.s32 %s11, 1
      %p193 = scmp.lt.s32.totalorder %s16, 1
      %s194 = scalar_select %p193, %s16, 1
      %s195 = smul.addr %s194, 64
      %s196 = smul.addr %s195, 4
      %s197 = scalar_lea.vmem %s0, %s196
      %p198 = pneg %p37
      %p199 = pneg %p34
      %p200 = pneg %p58
      %p201 = pneg %p55
      %p202 = pneg %p79
      %p203 = pneg %p76
      %p204 = pneg %p100
      %p205 = pneg %p97
      %p206 = pneg %p121
      %p207 = pneg %p118
      %p208 = pneg %p147
      %p209 = pneg %p144
      %p210 = scmp.lt.s32.totalorder %s16, 1
      %s211 = scalar_select %p210, %s16, 1
      %s212 = smul.addr %s211, 64
      %s213 = smul.addr %s212, 4
      %s214 = scalar_lea.vmem %s5, %s213
      %p215 = scmp.lt.s32.totalorder %s16, 1
      %s216 = scalar_select %p215, %s16, 1
      %s217 = smul.addr %s216, 64
      %s218 = smul.addr %s217, 4
      %s219 = scalar_lea.vmem %s0, %s218
      %p220 = scmp.lt.s32.totalorder %s16, 1
      %s221 = scalar_select %p220, %s16, 1
      %s222 = smul.addr %s221, 64
      %s223 = smul.addr %s222, 4
      %s224 = scalar_lea.vmem %s5, %s223
      %v226 = vld [vmem:[%s219] sm:$0xff]
      %v227 = vld [vmem:[%s219 + $0x8] sm:$0xff]
      %v228 = vld [vmem:[%s219 + $0x10] sm:$0xff]
      %v229 = vld [vmem:[%s219 + $0x18] sm:$0xff]
      %v230 = vld [vmem:[%s219 + $0x20] sm:$0xff]
      %v231 = vld [vmem:[%s219 + $0x28] sm:$0xff]
      %v232 = vld [vmem:[%s219 + $0x30] sm:$0xff]
      %v233 = vld [vmem:[%s219 + $0x38] sm:$0xff]
      %v234 = vld [vmem:[%s219 + $0x40] sm:$0xff]
      %v235 = vld [vmem:[%s219 + $0x48] sm:$0xff]
      %v236 = vld [vmem:[%s219 + $0x50] sm:$0xff]
      %v237 = vld [vmem:[%s219 + $0x58] sm:$0xff]
      %v238 = vld [vmem:[%s219 + $0x60] sm:$0xff]
      %v239 = vld [vmem:[%s219 + $0x68] sm:$0xff]
      %v240 = vld [vmem:[%s219 + $0x70] sm:$0xff]
      %v241 = vld [vmem:[%s219 + $0x78] sm:$0xff]
      %v242 = vld [vmem:[%s219 + $0x80] sm:$0xff]
      %v243 = vld [vmem:[%s219 + $0x88] sm:$0xff]
      %v244 = vld [vmem:[%s219 + $0x90] sm:$0xff]
      %v245 = vld [vmem:[%s219 + $0x98] sm:$0xff]
      %v246 = vld [vmem:[%s219 + $0xa0] sm:$0xff]
      %v247 = vld [vmem:[%s219 + $0xa8] sm:$0xff]
      %v248 = vld [vmem:[%s219 + $0xb0] sm:$0xff]
      %v249 = vld [vmem:[%s219 + $0xb8] sm:$0xff]
      %v250 = vld [vmem:[%s219 + $0xc0] sm:$0xff]
      %v251 = vld [vmem:[%s219 + $0xc8] sm:$0xff]
      %v252 = vld [vmem:[%s219 + $0xd0] sm:$0xff]
      %v253 = vld [vmem:[%s219 + $0xd8] sm:$0xff]
      %v254 = vld [vmem:[%s219 + $0xe0] sm:$0xff]
      %v255 = vld [vmem:[%s219 + $0xe8] sm:$0xff]
      %v256 = vld [vmem:[%s219 + $0xf0] sm:$0xff]
      %v257 = vld [vmem:[%s219 + $0xf8] sm:$0xff]
      %v258 = vld [vmem:[%s1] sm:$0xf]
      %v259 = vld [vmem:[%s1 + $0x4] sm:$0xf]
      %v260 = vld [vmem:[%s1 + $0x8] sm:$0xf]
      %v261 = vld [vmem:[%s1 + $0xc] sm:$0xf]
      %v262 = vld [vmem:[%s1 + $0x10] sm:$0xf]
      %v263 = vld [vmem:[%s1 + $0x14] sm:$0xf]
      %v264 = vld [vmem:[%s1 + $0x18] sm:$0xf]
      %v265 = vld [vmem:[%s1 + $0x1c] sm:$0xf]
      %v266 = vld [vmem:[%s1 + $0x20] sm:$0xf]
      %v267 = vld [vmem:[%s1 + $0x24] sm:$0xf]
      %v268 = vld [vmem:[%s1 + $0x28] sm:$0xf]
      %v269 = vld [vmem:[%s1 + $0x2c] sm:$0xf]
      %v270 = vld [vmem:[%s1 + $0x30] sm:$0xf]
      %v271 = vld [vmem:[%s1 + $0x34] sm:$0xf]
      %v272 = vld [vmem:[%s1 + $0x38] sm:$0xf]
      %v273 = vld [vmem:[%s1 + $0x3c] sm:$0xf]
      %v274 = vld [vmem:[%s1 + $0x40] sm:$0xf]
      %v275 = vld [vmem:[%s1 + $0x44] sm:$0xf]
      %v276 = vld [vmem:[%s1 + $0x48] sm:$0xf]
      %v277 = vld [vmem:[%s1 + $0x4c] sm:$0xf]
      %v278 = vld [vmem:[%s1 + $0x50] sm:$0xf]
      %v279 = vld [vmem:[%s1 + $0x54] sm:$0xf]
      %v280 = vld [vmem:[%s1 + $0x58] sm:$0xf]
      %v281 = vld [vmem:[%s1 + $0x5c] sm:$0xf]
      %v282 = vld [vmem:[%s1 + $0x60] sm:$0xf]
      %v283 = vld [vmem:[%s1 + $0x64] sm:$0xf]
      %v284 = vld [vmem:[%s1 + $0x68] sm:$0xf]
      %v285 = vld [vmem:[%s1 + $0x6c] sm:$0xf]
      %v286 = vld [vmem:[%s1 + $0x70] sm:$0xf]
      %v287 = vld [vmem:[%s1 + $0x74] sm:$0xf]
      %v288 = vld [vmem:[%s1 + $0x78] sm:$0xf]
      %v289 = vld [vmem:[%s1 + $0x7c] sm:$0xf]
      %v322 = vunpack.c.l.b16 %v226
      %v323 = vunpack.c.h.b16 %v226
      %v324 = vunpack.c.l.b16 %v227
      %v325 = vunpack.c.h.b16 %v227
      %v326 = vunpack.c.l.b16 %v228
      %v327 = vunpack.c.h.b16 %v228
      %v328 = vunpack.c.l.b16 %v229
      %v329 = vunpack.c.h.b16 %v229
      %v330 = vunpack.c.l.b16 %v230
      %v331 = vunpack.c.h.b16 %v230
      %v332 = vunpack.c.l.b16 %v231
      %v333 = vunpack.c.h.b16 %v231
      %v334 = vunpack.c.l.b16 %v232
      %v335 = vunpack.c.h.b16 %v232
      %v336 = vunpack.c.l.b16 %v233
      %v337 = vunpack.c.h.b16 %v233
      %v338 = vunpack.c.l.b16 %v234
      %v339 = vunpack.c.h.b16 %v234
      %v340 = vunpack.c.l.b16 %v235
      %v341 = vunpack.c.h.b16 %v235
      %v342 = vunpack.c.l.b16 %v236
      %v343 = vunpack.c.h.b16 %v236
      %v344 = vunpack.c.l.b16 %v237
      %v345 = vunpack.c.h.b16 %v237
      %v346 = vunpack.c.l.b16 %v238
      %v347 = vunpack.c.h.b16 %v238
      %v348 = vunpack.c.l.b16 %v239
      %v349 = vunpack.c.h.b16 %v239
      %v350 = vunpack.c.l.b16 %v240
      %v351 = vunpack.c.h.b16 %v240
      %v352 = vunpack.c.l.b16 %v241
      %v353 = vunpack.c.h.b16 %v241
      %v354 = vunpack.c.l.b16 %v242
      %v355 = vunpack.c.h.b16 %v242
      %v356 = vunpack.c.l.b16 %v243
      %v357 = vunpack.c.h.b16 %v243
      %v358 = vunpack.c.l.b16 %v244
      %v359 = vunpack.c.h.b16 %v244
      %v360 = vunpack.c.l.b16 %v245
      %v361 = vunpack.c.h.b16 %v245
      %v362 = vunpack.c.l.b16 %v246
      %v363 = vunpack.c.h.b16 %v246
      %v364 = vunpack.c.l.b16 %v247
      %v365 = vunpack.c.h.b16 %v247
      %v366 = vunpack.c.l.b16 %v248
      %v367 = vunpack.c.h.b16 %v248
      %v368 = vunpack.c.l.b16 %v249
      %v369 = vunpack.c.h.b16 %v249
      %v370 = vunpack.c.l.b16 %v250
      %v371 = vunpack.c.h.b16 %v250
      %v372 = vunpack.c.l.b16 %v251
      %v373 = vunpack.c.h.b16 %v251
      %v374 = vunpack.c.l.b16 %v252
      %v375 = vunpack.c.h.b16 %v252
      %v376 = vunpack.c.l.b16 %v253
      %v377 = vunpack.c.h.b16 %v253
      %v378 = vunpack.c.l.b16 %v254
      %v379 = vunpack.c.h.b16 %v254
      %v380 = vunpack.c.l.b16 %v255
      %v381 = vunpack.c.h.b16 %v255
      %v382 = vunpack.c.l.b16 %v256
      %v383 = vunpack.c.h.b16 %v256
      %v384 = vunpack.c.l.b16 %v257
      %v385 = vunpack.c.h.b16 %v257
      %v386 = vpack.c.b16 %v324, %v322
      %v387 = vpack.c.b16 %v325, %v323
      %v388 = vpack.c.b16 %v328, %v326
      %v389 = vpack.c.b16 %v329, %v327
      %v390 = vpack.c.b16 %v332, %v330
      %v391 = vpack.c.b16 %v333, %v331
      %v392 = vpack.c.b16 %v336, %v334
      %v393 = vpack.c.b16 %v337, %v335
      %v394 = vpack.c.b16 %v340, %v338
      %v395 = vpack.c.b16 %v341, %v339
      %v396 = vpack.c.b16 %v344, %v342
      %v397 = vpack.c.b16 %v345, %v343
      %v398 = vpack.c.b16 %v348, %v346
      %v399 = vpack.c.b16 %v349, %v347
      %v400 = vpack.c.b16 %v352, %v350
      %v401 = vpack.c.b16 %v353, %v351
      %v402 = vpack.c.b16 %v356, %v354
      %v403 = vpack.c.b16 %v357, %v355
      %v404 = vpack.c.b16 %v360, %v358
      %v405 = vpack.c.b16 %v361, %v359
      %v406 = vpack.c.b16 %v364, %v362
      %v407 = vpack.c.b16 %v365, %v363
      %v408 = vpack.c.b16 %v368, %v366
      %v409 = vpack.c.b16 %v369, %v367
      %v410 = vpack.c.b16 %v372, %v370
      %v411 = vpack.c.b16 %v373, %v371
      %v412 = vpack.c.b16 %v376, %v374
      %v413 = vpack.c.b16 %v377, %v375
      %v414 = vpack.c.b16 %v380, %v378
      %v415 = vpack.c.b16 %v381, %v379
      %v416 = vpack.c.b16 %v384, %v382
      %v417 = vpack.c.b16 %v385, %v383
      %v482 = vunpack.c.l.b16 %v258
      %v483 = vunpack.c.l.b16 %v259
      %v484 = vunpack.c.l.b16 %v260
      %v485 = vunpack.c.l.b16 %v261
      %v486 = vunpack.c.l.b16 %v262
      %v487 = vunpack.c.l.b16 %v263
      %v488 = vunpack.c.l.b16 %v264
      %v489 = vunpack.c.l.b16 %v265
      %v490 = vunpack.c.l.b16 %v266
      %v491 = vunpack.c.l.b16 %v267
      %v492 = vunpack.c.l.b16 %v268
      %v493 = vunpack.c.l.b16 %v269
      %v494 = vunpack.c.l.b16 %v270
      %v495 = vunpack.c.l.b16 %v271
      %v496 = vunpack.c.l.b16 %v272
      %v497 = vunpack.c.l.b16 %v273
      %v498 = vunpack.c.l.b16 %v274
      %v499 = vunpack.c.l.b16 %v275
      %v500 = vunpack.c.l.b16 %v276
      %v501 = vunpack.c.l.b16 %v277
      %v502 = vunpack.c.l.b16 %v278
      %v503 = vunpack.c.l.b16 %v279
      %v504 = vunpack.c.l.b16 %v280
      %v505 = vunpack.c.l.b16 %v281
      %v506 = vunpack.c.l.b16 %v282
      %v507 = vunpack.c.l.b16 %v283
      %v508 = vunpack.c.l.b16 %v284
      %v509 = vunpack.c.l.b16 %v285
      %v510 = vunpack.c.l.b16 %v286
      %v511 = vunpack.c.l.b16 %v287
      %v512 = vunpack.c.l.b16 %v288
      %v513 = vunpack.c.l.b16 %v289
      %v514 = vpack.c.b16 %v483, %v482
      %v515 = vpack.c.b16 %v485, %v484
      %v516 = vpack.c.b16 %v487, %v486
      %v517 = vpack.c.b16 %v489, %v488
      %v518 = vpack.c.b16 %v491, %v490
      %v519 = vpack.c.b16 %v493, %v492
      %v520 = vpack.c.b16 %v495, %v494
      %v521 = vpack.c.b16 %v497, %v496
      %v522 = vpack.c.b16 %v499, %v498
      %v523 = vpack.c.b16 %v501, %v500
      %v524 = vpack.c.b16 %v503, %v502
      %v525 = vpack.c.b16 %v505, %v504
      %v526 = vpack.c.b16 %v507, %v506
      %v527 = vpack.c.b16 %v509, %v508
      %v528 = vpack.c.b16 %v511, %v510
      %v529 = vpack.c.b16 %v513, %v512
      %546 = vmatprep.subr.bf16.mxu0 0
      %547 = vmatpush1.bf16.msra.mxu0 %v514
      %548 = vmatprep.subr.bf16.mxu0 0
      %549 = vmatpush1.bf16.msra.mxu0 %v515
      %550 = vmatprep.subr.bf16.mxu0 0
      %551 = vmatpush1.bf16.msra.mxu0 %v516
      %552 = vmatprep.subr.bf16.mxu0 0
      %553 = vmatpush1.bf16.msra.mxu0 %v517
      %554 = vmatprep.subr.bf16.mxu0 0
      %555 = vmatpush1.bf16.msra.mxu0 %v518
      %556 = vmatprep.subr.bf16.mxu0 0
      %557 = vmatpush1.bf16.msra.mxu0 %v519
      %558 = vmatprep.subr.bf16.mxu0 0
      %559 = vmatpush1.bf16.msra.mxu0 %v520
      %560 = vmatprep.subr.bf16.mxu0 0
      %561 = vmatpush1.bf16.msra.mxu0 %v521
      %562 = vmatprep.subr.bf16.mxu0 0
      %563 = vmatpush1.bf16.msra.mxu0 %v522
      %564 = vmatprep.subr.bf16.mxu0 0
      %565 = vmatpush1.bf16.msra.mxu0 %v523
      %566 = vmatprep.subr.bf16.mxu0 0
      %567 = vmatpush1.bf16.msra.mxu0 %v524
      %568 = vmatprep.subr.bf16.mxu0 0
      %569 = vmatpush1.bf16.msra.mxu0 %v525
      %570 = vmatprep.subr.bf16.mxu0 0
      %571 = vmatpush1.bf16.msra.mxu0 %v526
      %572 = vmatprep.subr.bf16.mxu0 0
      %573 = vmatpush1.bf16.msra.mxu0 %v527
      %574 = vmatprep.subr.bf16.mxu0 0
      %575 = vmatpush1.bf16.msra.mxu0 %v528
      %576 = vmatprep.subr.bf16.mxu0 0
      %577 = vmatpush1.bf16.msra.mxu0 %v529
      %578 = vmatprep.mubr.bf16.mxu0 %v387
      %579 = vmatmul.mubr.bf16.gmra.mrb[0].mxu0 %v386
      %v580 = vpop.f32.mrb[0].mxu0
      %v581 = vadd.f32 0.0, %v580
      %v582 = vpop.f32.mrb[0].mxu0
      %v583 = vpop.f32.mrb[0].mxu0
      %v584 = vadd.f32 0.0, %v583
      %v585 = vpop.f32.mrb[0].mxu0
      %586 = vmatprep.mubr.bf16.mxu0 %v389
      %587 = vmatmul.mubr.bf16.gmra.mrb[0].mxu0 %v388
      %v588 = vpop.f32.mrb[0].mxu0
      %v589 = vadd.f32 0.0, %v588
      %v590 = vpop.f32.mrb[0].mxu0
      %v591 = vpop.f32.mrb[0].mxu0
      %v592 = vadd.f32 0.0, %v591
      %v593 = vpop.f32.mrb[0].mxu0
      %594 = vmatprep.mubr.bf16.mxu0 %v391
      %595 = vmatmul.mubr.bf16.gmra.mrb[0].mxu0 %v390
      %v596 = vpop.f32.mrb[0].mxu0
      %v597 = vadd.f32 0.0, %v596
      %v598 = vpop.f32.mrb[0].mxu0
      %v599 = vpop.f32.mrb[0].mxu0
      %v600 = vadd.f32 0.0, %v599
      %v601 = vpop.f32.mrb[0].mxu0
      %602 = vmatprep.mubr.bf16.mxu0 %v393
      %603 = vmatmul.mubr.bf16.gmra.mrb[0].mxu0 %v392
      %v604 = vpop.f32.mrb[0].mxu0
      %v605 = vadd.f32 0.0, %v604
      %v606 = vpop.f32.mrb[0].mxu0
      %v607 = vpop.f32.mrb[0].mxu0
      %v608 = vadd.f32 0.0, %v607
      %v609 = vpop.f32.mrb[0].mxu0
      %610 = vmatprep.mubr.bf16.mxu0 %v395
      %611 = vmatmul.mubr.bf16.gmra.mrb[0].mxu0 %v394
      %v612 = vpop.f32.mrb[0].mxu0
      %v613 = vadd.f32 0.0, %v612
      %v614 = vpop.f32.mrb[0].mxu0
      %v615 = vpop.f32.mrb[0].mxu0
      %v616 = vadd.f32 0.0, %v615
      %v617 = vpop.f32.mrb[0].mxu0
      %618 = vmatprep.mubr.bf16.mxu0 %v397
      %619 = vmatmul.mubr.bf16.gmra.mrb[0].mxu0 %v396
      %v620 = vpop.f32.mrb[0].mxu0
      %v621 = vadd.f32 0.0, %v620
      %v622 = vpop.f32.mrb[0].mxu0
      %v623 = vpop.f32.mrb[0].mxu0
      %v624 = vadd.f32 0.0, %v623
      %v625 = vpop.f32.mrb[0].mxu0
      %626 = vmatprep.mubr.bf16.mxu0 %v399
      %627 = vmatmul.mubr.bf16.gmra.mrb[0].mxu0 %v398
      %v628 = vpop.f32.mrb[0].mxu0
      %v629 = vadd.f32 0.0, %v628
      %v630 = vpop.f32.mrb[0].mxu0
      %v631 = vpop.f32.mrb[0].mxu0
      %v632 = vadd.f32 0.0, %v631
      %v633 = vpop.f32.mrb[0].mxu0
      %634 = vmatprep.mubr.bf16.mxu0 %v401
      %635 = vmatmul.mubr.bf16.gmra.mrb[0].mxu0 %v400
      %v636 = vpop.f32.mrb[0].mxu0
      %v637 = vadd.f32 0.0, %v636
      %v638 = vpop.f32.mrb[0].mxu0
      %v639 = vpop.f32.mrb[0].mxu0
      %v640 = vadd.f32 0.0, %v639
      %v641 = vpop.f32.mrb[0].mxu0
      %642 = vmatprep.mubr.bf16.mxu0 %v403
      %643 = vmatmul.mubr.bf16.gmra.mrb[0].mxu0 %v402
      %v644 = vpop.f32.mrb[0].mxu0
      %v645 = vadd.f32 0.0, %v644
      %v646 = vpop.f32.mrb[0].mxu0
      %v647 = vpop.f32.mrb[0].mxu0
      %v648 = vadd.f32 0.0, %v647
      %v649 = vpop.f32.mrb[0].mxu0
      %650 = vmatprep.mubr.bf16.mxu0 %v405
      %651 = vmatmul.mubr.bf16.gmra.mrb[0].mxu0 %v404
      %v652 = vpop.f32.mrb[0].mxu0
      %v653 = vadd.f32 0.0, %v652
      %v654 = vpop.f32.mrb[0].mxu0
      %v655 = vpop.f32.mrb[0].mxu0
      %v656 = vadd.f32 0.0, %v655
      %v657 = vpop.f32.mrb[0].mxu0
      %658 = vmatprep.mubr.bf16.mxu0 %v407
      %659 = vmatmul.mubr.bf16.gmra.mrb[0].mxu0 %v406
      %v660 = vpop.f32.mrb[0].mxu0
      %v661 = vadd.f32 0.0, %v660
      %v662 = vpop.f32.mrb[0].mxu0
      %v663 = vpop.f32.mrb[0].mxu0
      %v664 = vadd.f32 0.0, %v663
      %v665 = vpop.f32.mrb[0].mxu0
      %666 = vmatprep.mubr.bf16.mxu0 %v409
      %667 = vmatmul.mubr.bf16.gmra.mrb[0].mxu0 %v408
      %v668 = vpop.f32.mrb[0].mxu0
      %v669 = vadd.f32 0.0, %v668
      %v670 = vpop.f32.mrb[0].mxu0
      %v671 = vpop.f32.mrb[0].mxu0
      %v672 = vadd.f32 0.0, %v671
      %v673 = vpop.f32.mrb[0].mxu0
      %674 = vmatprep.mubr.bf16.mxu0 %v411
      %675 = vmatmul.mubr.bf16.gmra.mrb[0].mxu0 %v410
      %v676 = vpop.f32.mrb[0].mxu0
      %v677 = vadd.f32 0.0, %v676
      %v678 = vpop.f32.mrb[0].mxu0
      %v679 = vpop.f32.mrb[0].mxu0
      %v680 = vadd.f32 0.0, %v679
      %v681 = vpop.f32.mrb[0].mxu0
      %682 = vmatprep.mubr.bf16.mxu0 %v413
      %683 = vmatmul.mubr.bf16.gmra.mrb[0].mxu0 %v412
      %v684 = vpop.f32.mrb[0].mxu0
      %v685 = vadd.f32 0.0, %v684
      %v686 = vpop.f32.mrb[0].mxu0
      %v687 = vpop.f32.mrb[0].mxu0
      %v688 = vadd.f32 0.0, %v687
      %v689 = vpop.f32.mrb[0].mxu0
      %690 = vmatprep.mubr.bf16.mxu0 %v415
      %691 = vmatmul.mubr.bf16.gmra.mrb[0].mxu0 %v414
      %v692 = vpop.f32.mrb[0].mxu0
      %v693 = vadd.f32 0.0, %v692
      %v694 = vpop.f32.mrb[0].mxu0
      %v695 = vpop.f32.mrb[0].mxu0
      %v696 = vadd.f32 0.0, %v695
      %v697 = vpop.f32.mrb[0].mxu0
      %698 = vmatprep.mubr.bf16.mxu0 %v417
      %699 = vmatmul.mubr.bf16.gmra.mrb[0].mxu0 %v416
      %v700 = vpop.f32.mrb[0].mxu0
      %v701 = vadd.f32 0.0, %v700
      %v702 = vpop.f32.mrb[0].mxu0
      %v703 = vpop.f32.mrb[0].mxu0
      %v704 = vadd.f32 0.0, %v703
      %v705 = vpop.f32.mrb[0].mxu0
      %706 = vdwg.mxu0
      %v707 = vld [vmem:[%s2] sm:$0xf]
      %v708 = vld [vmem:[%s2 + $0x4] sm:$0xf]
      %v709 = vld [vmem:[%s2 + $0x8] sm:$0xf]
      %v710 = vld [vmem:[%s2 + $0xc] sm:$0xf]
      %v711 = vld [vmem:[%s2 + $0x10] sm:$0xf]
      %v712 = vld [vmem:[%s2 + $0x14] sm:$0xf]
      %v713 = vld [vmem:[%s2 + $0x18] sm:$0xf]
      %v714 = vld [vmem:[%s2 + $0x1c] sm:$0xf]
      %v715 = vld [vmem:[%s2 + $0x20] sm:$0xf]
      %v716 = vld [vmem:[%s2 + $0x24] sm:$0xf]
      %v717 = vld [vmem:[%s2 + $0x28] sm:$0xf]
      %v718 = vld [vmem:[%s2 + $0x2c] sm:$0xf]
      %v719 = vld [vmem:[%s2 + $0x30] sm:$0xf]
      %v720 = vld [vmem:[%s2 + $0x34] sm:$0xf]
      %v721 = vld [vmem:[%s2 + $0x38] sm:$0xf]
      %v722 = vld [vmem:[%s2 + $0x3c] sm:$0xf]
      %v723 = vld [vmem:[%s2 + $0x40] sm:$0xf]
      %v724 = vld [vmem:[%s2 + $0x44] sm:$0xf]
      %v725 = vld [vmem:[%s2 + $0x48] sm:$0xf]
      %v726 = vld [vmem:[%s2 + $0x4c] sm:$0xf]
      %v727 = vld [vmem:[%s2 + $0x50] sm:$0xf]
      %v728 = vld [vmem:[%s2 + $0x54] sm:$0xf]
      %v729 = vld [vmem:[%s2 + $0x58] sm:$0xf]
      %v730 = vld [vmem:[%s2 + $0x5c] sm:$0xf]
      %v731 = vld [vmem:[%s2 + $0x60] sm:$0xf]
      %v732 = vld [vmem:[%s2 + $0x64] sm:$0xf]
      %v733 = vld [vmem:[%s2 + $0x68] sm:$0xf]
      %v734 = vld [vmem:[%s2 + $0x6c] sm:$0xf]
      %v735 = vld [vmem:[%s2 + $0x70] sm:$0xf]
      %v736 = vld [vmem:[%s2 + $0x74] sm:$0xf]
      %v737 = vld [vmem:[%s2 + $0x78] sm:$0xf]
      %v738 = vld [vmem:[%s2 + $0x7c] sm:$0xf]
      %v771 = vunpack.c.l.b16 %v707
      %v772 = vunpack.c.l.b16 %v708
      %v773 = vunpack.c.l.b16 %v709
      %v774 = vunpack.c.l.b16 %v710
      %v775 = vunpack.c.l.b16 %v711
      %v776 = vunpack.c.l.b16 %v712
      %v777 = vunpack.c.l.b16 %v713
      %v778 = vunpack.c.l.b16 %v714
      %v779 = vunpack.c.l.b16 %v715
      %v780 = vunpack.c.l.b16 %v716
      %v781 = vunpack.c.l.b16 %v717
      %v782 = vunpack.c.l.b16 %v718
      %v783 = vunpack.c.l.b16 %v719
      %v784 = vunpack.c.l.b16 %v720
      %v785 = vunpack.c.l.b16 %v721
      %v786 = vunpack.c.l.b16 %v722
      %v787 = vunpack.c.l.b16 %v723
      %v788 = vunpack.c.l.b16 %v724
      %v789 = vunpack.c.l.b16 %v725
      %v790 = vunpack.c.l.b16 %v726
      %v791 = vunpack.c.l.b16 %v727
      %v792 = vunpack.c.l.b16 %v728
      %v793 = vunpack.c.l.b16 %v729
      %v794 = vunpack.c.l.b16 %v730
      %v795 = vunpack.c.l.b16 %v731
      %v796 = vunpack.c.l.b16 %v732
      %v797 = vunpack.c.l.b16 %v733
      %v798 = vunpack.c.l.b16 %v734
      %v799 = vunpack.c.l.b16 %v735
      %v800 = vunpack.c.l.b16 %v736
      %v801 = vunpack.c.l.b16 %v737
      %v802 = vunpack.c.l.b16 %v738
      %v803 = vpack.c.b16 %v772, %v771
      %v804 = vpack.c.b16 %v774, %v773
      %v805 = vpack.c.b16 %v776, %v775
      %v806 = vpack.c.b16 %v778, %v777
      %v807 = vpack.c.b16 %v780, %v779
      %v808 = vpack.c.b16 %v782, %v781
      %v809 = vpack.c.b16 %v784, %v783
      %v810 = vpack.c.b16 %v786, %v785
      %v811 = vpack.c.b16 %v788, %v787
      %v812 = vpack.c.b16 %v790, %v789
      %v813 = vpack.c.b16 %v792, %v791
      %v814 = vpack.c.b16 %v794, %v793
      %v815 = vpack.c.b16 %v796, %v795
      %v816 = vpack.c.b16 %v798, %v797
      %v817 = vpack.c.b16 %v800, %v799
      %v818 = vpack.c.b16 %v802, %v801
      %835 = vmatprep.subr.bf16.mxu0 0
      %836 = vmatpush1.bf16.msra.mxu0 %v803
      %837 = vmatprep.subr.bf16.mxu0 0
      %838 = vmatpush1.bf16.msra.mxu0 %v804
      %839 = vmatprep.subr.bf16.mxu0 0
      %840 = vmatpush1.bf16.msra.mxu0 %v805
      %841 = vmatprep.subr.bf16.mxu0 0
      %842 = vmatpush1.bf16.msra.mxu0 %v806
      %843 = vmatprep.subr.bf16.mxu0 0
      %844 = vmatpush1.bf16.msra.mxu0 %v807
      %845 = vmatprep.subr.bf16.mxu0 0
      %846 = vmatpush1.bf16.msra.mxu0 %v808
      %847 = vmatprep.subr.bf16.mxu0 0
      %848 = vmatpush1.bf16.msra.mxu0 %v809
      %849 = vmatprep.subr.bf16.mxu0 0
      %850 = vmatpush1.bf16.msra.mxu0 %v810
      %851 = vmatprep.subr.bf16.mxu0 0
      %852 = vmatpush1.bf16.msra.mxu0 %v811
      %853 = vmatprep.subr.bf16.mxu0 0
      %854 = vmatpush1.bf16.msra.mxu0 %v812
      %855 = vmatprep.subr.bf16.mxu0 0
      %856 = vmatpush1.bf16.msra.mxu0 %v813
      %857 = vmatprep.subr.bf16.mxu0 0
      %858 = vmatpush1.bf16.msra.mxu0 %v814
      %859 = vmatprep.subr.bf16.mxu0 0
      %860 = vmatpush1.bf16.msra.mxu0 %v815
      %861 = vmatprep.subr.bf16.mxu0 0
      %862 = vmatpush1.bf16.msra.mxu0 %v816
      %863 = vmatprep.subr.bf16.mxu0 0
      %864 = vmatpush1.bf16.msra.mxu0 %v817
      %865 = vmatprep.subr.bf16.mxu0 0
      %866 = vmatpush1.bf16.msra.mxu0 %v818
      %867 = vmatprep.mubr.bf16.mxu0 %v387
      %868 = vmatmul.mubr.bf16.gmra.mrb[0].mxu0 %v386
      %v869 = vpop.f32.mrb[0].mxu0
      %v870 = vadd.f32 0.0, %v869
      %v871 = vpop.f32.mrb[0].mxu0
      %v872 = vpop.f32.mrb[0].mxu0
      %v873 = vadd.f32 0.0, %v872
      %v874 = vpop.f32.mrb[0].mxu0
      %875 = vmatprep.mubr.bf16.mxu0 %v389
      %876 = vmatmul.mubr.bf16.gmra.mrb[0].mxu0 %v388
      %v877 = vpop.f32.mrb[0].mxu0
      %v878 = vadd.f32 0.0, %v877
      %v879 = vpop.f32.mrb[0].mxu0
      %v880 = vpop.f32.mrb[0].mxu0
      %v881 = vadd.f32 0.0, %v880
      %v882 = vpop.f32.mrb[0].mxu0
      %883 = vmatprep.mubr.bf16.mxu0 %v391
      %884 = vmatmul.mubr.bf16.gmra.mrb[0].mxu0 %v390
      %v885 = vpop.f32.mrb[0].mxu0
      %v886 = vadd.f32 0.0, %v885
      %v887 = vpop.f32.mrb[0].mxu0
      %v888 = vpop.f32.mrb[0].mxu0
      %v889 = vadd.f32 0.0, %v888
      %v890 = vpop.f32.mrb[0].mxu0
      %891 = vmatprep.mubr.bf16.mxu0 %v393
      %892 = vmatmul.mubr.bf16.gmra.mrb[0].mxu0 %v392
      %v893 = vpop.f32.mrb[0].mxu0
      %v894 = vadd.f32 0.0, %v893
      %v895 = vpop.f32.mrb[0].mxu0
      %v896 = vpop.f32.mrb[0].mxu0
      %v897 = vadd.f32 0.0, %v896
      %v898 = vpop.f32.mrb[0].mxu0
      %899 = vmatprep.mubr.bf16.mxu0 %v395
      %900 = vmatmul.mubr.bf16.gmra.mrb[0].mxu0 %v394
      %v901 = vpop.f32.mrb[0].mxu0
      %v902 = vadd.f32 0.0, %v901
      %v903 = vpop.f32.mrb[0].mxu0
      %v904 = vpop.f32.mrb[0].mxu0
      %v905 = vadd.f32 0.0, %v904
      %v906 = vpop.f32.mrb[0].mxu0
      %907 = vmatprep.mubr.bf16.mxu0 %v397
      %908 = vmatmul.mubr.bf16.gmra.mrb[0].mxu0 %v396
      %v909 = vpop.f32.mrb[0].mxu0
      %v910 = vadd.f32 0.0, %v909
      %v911 = vpop.f32.mrb[0].mxu0
      %v912 = vpop.f32.mrb[0].mxu0
      %v913 = vadd.f32 0.0, %v912
      %v914 = vpop.f32.mrb[0].mxu0
      %915 = vmatprep.mubr.bf16.mxu0 %v399
      %916 = vmatmul.mubr.bf16.gmra.mrb[0].mxu0 %v398
      %v917 = vpop.f32.mrb[0].mxu0
      %v918 = vadd.f32 0.0, %v917
      %v919 = vpop.f32.mrb[0].mxu0
      %v920 = vpop.f32.mrb[0].mxu0
      %v921 = vadd.f32 0.0, %v920
      %v922 = vpop.f32.mrb[0].mxu0
      %923 = vmatprep.mubr.bf16.mxu0 %v401
      %924 = vmatmul.mubr.bf16.gmra.mrb[0].mxu0 %v400
      %v925 = vpop.f32.mrb[0].mxu0
      %v926 = vadd.f32 0.0, %v925
      %v927 = vpop.f32.mrb[0].mxu0
      %v928 = vpop.f32.mrb[0].mxu0
      %v929 = vadd.f32 0.0, %v928
      %v930 = vpop.f32.mrb[0].mxu0
      %931 = vmatprep.mubr.bf16.mxu0 %v403
      %932 = vmatmul.mubr.bf16.gmra.mrb[0].mxu0 %v402
      %v933 = vpop.f32.mrb[0].mxu0
      %v934 = vadd.f32 0.0, %v933
      %v935 = vpop.f32.mrb[0].mxu0
      %v936 = vpop.f32.mrb[0].mxu0
      %v937 = vadd.f32 0.0, %v936
      %v938 = vpop.f32.mrb[0].mxu0
      %939 = vmatprep.mubr.bf16.mxu0 %v405
      %940 = vmatmul.mubr.bf16.gmra.mrb[0].mxu0 %v404
      %v941 = vpop.f32.mrb[0].mxu0
      %v942 = vadd.f32 0.0, %v941
      %v943 = vpop.f32.mrb[0].mxu0
      %v944 = vpop.f32.mrb[0].mxu0
      %v945 = vadd.f32 0.0, %v944
      %v946 = vpop.f32.mrb[0].mxu0
      %947 = vmatprep.mubr.bf16.mxu0 %v407
      %948 = vmatmul.mubr.bf16.gmra.mrb[0].mxu0 %v406
      %v949 = vpop.f32.mrb[0].mxu0
      %v950 = vadd.f32 0.0, %v949
      %v951 = vpop.f32.mrb[0].mxu0
      %v952 = vpop.f32.mrb[0].mxu0
      %v953 = vadd.f32 0.0, %v952
      %v954 = vpop.f32.mrb[0].mxu0
      %955 = vmatprep.mubr.bf16.mxu0 %v409
      %956 = vmatmul.mubr.bf16.gmra.mrb[0].mxu0 %v408
      %v957 = vpop.f32.mrb[0].mxu0
      %v958 = vadd.f32 0.0, %v957
      %v959 = vpop.f32.mrb[0].mxu0
      %v960 = vpop.f32.mrb[0].mxu0
      %v961 = vadd.f32 0.0, %v960
      %v962 = vpop.f32.mrb[0].mxu0
      %963 = vmatprep.mubr.bf16.mxu0 %v411
      %964 = vmatmul.mubr.bf16.gmra.mrb[0].mxu0 %v410
      %v965 = vpop.f32.mrb[0].mxu0
      %v966 = vadd.f32 0.0, %v965
      %v967 = vpop.f32.mrb[0].mxu0
      %v968 = vpop.f32.mrb[0].mxu0
      %v969 = vadd.f32 0.0, %v968
      %v970 = vpop.f32.mrb[0].mxu0
      %971 = vmatprep.mubr.bf16.mxu0 %v413
      %972 = vmatmul.mubr.bf16.gmra.mrb[0].mxu0 %v412
      %v973 = vpop.f32.mrb[0].mxu0
      %v974 = vadd.f32 0.0, %v973
      %v975 = vpop.f32.mrb[0].mxu0
      %v976 = vpop.f32.mrb[0].mxu0
      %v977 = vadd.f32 0.0, %v976
      %v978 = vpop.f32.mrb[0].mxu0
      %979 = vmatprep.mubr.bf16.mxu0 %v415
      %980 = vmatmul.mubr.bf16.gmra.mrb[0].mxu0 %v414
      %v981 = vpop.f32.mrb[0].mxu0
      %v982 = vadd.f32 0.0, %v981
      %v983 = vpop.f32.mrb[0].mxu0
      %v984 = vpop.f32.mrb[0].mxu0
      %v985 = vadd.f32 0.0, %v984
      %v986 = vpop.f32.mrb[0].mxu0
      %987 = vmatprep.mubr.bf16.mxu0 %v417
      %988 = vmatmul.mubr.bf16.gmra.mrb[0].mxu0 %v416
      %v989 = vpop.f32.mrb[0].mxu0
      %v990 = vadd.f32 0.0, %v989
      %v991 = vpop.f32.mrb[0].mxu0
      %v992 = vpop.f32.mrb[0].mxu0
      %v993 = vadd.f32 0.0, %v992
      %v994 = vpop.f32.mrb[0].mxu0
      %995 = vdwg.mxu0
      %v996 = vld [vmem:[%s3] sm:$0xf]
      %v997 = vld [vmem:[%s3 + $0x4] sm:$0xf]
      %v998 = vld [vmem:[%s3 + $0x8] sm:$0xf]
      %v999 = vld [vmem:[%s3 + $0xc] sm:$0xf]
      %v1000 = vld [vmem:[%s3 + $0x10] sm:$0xf]
      %v1001 = vld [vmem:[%s3 + $0x14] sm:$0xf]
      %v1002 = vld [vmem:[%s3 + $0x18] sm:$0xf]
      %v1003 = vld [vmem:[%s3 + $0x1c] sm:$0xf]
      %v1004 = vld [vmem:[%s3 + $0x20] sm:$0xf]
      %v1005 = vld [vmem:[%s3 + $0x24] sm:$0xf]
      %v1006 = vld [vmem:[%s3 + $0x28] sm:$0xf]
      %v1007 = vld [vmem:[%s3 + $0x2c] sm:$0xf]
      %v1008 = vld [vmem:[%s3 + $0x30] sm:$0xf]
      %v1009 = vld [vmem:[%s3 + $0x34] sm:$0xf]
      %v1010 = vld [vmem:[%s3 + $0x38] sm:$0xf]
      %v1011 = vld [vmem:[%s3 + $0x3c] sm:$0xf]
      %v1012 = vld [vmem:[%s3 + $0x40] sm:$0xf]
      %v1013 = vld [vmem:[%s3 + $0x44] sm:$0xf]
      %v1014 = vld [vmem:[%s3 + $0x48] sm:$0xf]
      %v1015 = vld [vmem:[%s3 + $0x4c] sm:$0xf]
      %v1016 = vld [vmem:[%s3 + $0x50] sm:$0xf]
      %v1017 = vld [vmem:[%s3 + $0x54] sm:$0xf]
      %v1018 = vld [vmem:[%s3 + $0x58] sm:$0xf]
      %v1019 = vld [vmem:[%s3 + $0x5c] sm:$0xf]
      %v1020 = vld [vmem:[%s3 + $0x60] sm:$0xf]
      %v1021 = vld [vmem:[%s3 + $0x64] sm:$0xf]
      %v1022 = vld [vmem:[%s3 + $0x68] sm:$0xf]
      %v1023 = vld [vmem:[%s3 + $0x6c] sm:$0xf]
      %v1024 = vld [vmem:[%s3 + $0x70] sm:$0xf]
      %v1025 = vld [vmem:[%s3 + $0x74] sm:$0xf]
      %v1026 = vld [vmem:[%s3 + $0x78] sm:$0xf]
      %v1027 = vld [vmem:[%s3 + $0x7c] sm:$0xf]
      %v1060 = vunpack.c.l.b16 %v996
      %v1061 = vunpack.c.l.b16 %v997
      %v1062 = vunpack.c.l.b16 %v998
      %v1063 = vunpack.c.l.b16 %v999
      %v1064 = vunpack.c.l.b16 %v1000
      %v1065 = vunpack.c.l.b16 %v1001
      %v1066 = vunpack.c.l.b16 %v1002
      %v1067 = vunpack.c.l.b16 %v1003
      %v1068 = vunpack.c.l.b16 %v1004
      %v1069 = vunpack.c.l.b16 %v1005
      %v1070 = vunpack.c.l.b16 %v1006
      %v1071 = vunpack.c.l.b16 %v1007
      %v1072 = vunpack.c.l.b16 %v1008
      %v1073 = vunpack.c.l.b16 %v1009
      %v1074 = vunpack.c.l.b16 %v1010
      %v1075 = vunpack.c.l.b16 %v1011
      %v1076 = vunpack.c.l.b16 %v1012
      %v1077 = vunpack.c.l.b16 %v1013
      %v1078 = vunpack.c.l.b16 %v1014
      %v1079 = vunpack.c.l.b16 %v1015
      %v1080 = vunpack.c.l.b16 %v1016
      %v1081 = vunpack.c.l.b16 %v1017
      %v1082 = vunpack.c.l.b16 %v1018
      %v1083 = vunpack.c.l.b16 %v1019
      %v1084 = vunpack.c.l.b16 %v1020
      %v1085 = vunpack.c.l.b16 %v1021
      %v1086 = vunpack.c.l.b16 %v1022
      %v1087 = vunpack.c.l.b16 %v1023
      %v1088 = vunpack.c.l.b16 %v1024
      %v1089 = vunpack.c.l.b16 %v1025
      %v1090 = vunpack.c.l.b16 %v1026
      %v1091 = vunpack.c.l.b16 %v1027
      %v1092 = vpack.c.b16 %v1061, %v1060
      %v1093 = vpack.c.b16 %v1063, %v1062
      %v1094 = vpack.c.b16 %v1065, %v1064
      %v1095 = vpack.c.b16 %v1067, %v1066
      %v1096 = vpack.c.b16 %v1069, %v1068
      %v1097 = vpack.c.b16 %v1071, %v1070
      %v1098 = vpack.c.b16 %v1073, %v1072
      %v1099 = vpack.c.b16 %v1075, %v1074
      %v1100 = vpack.c.b16 %v1077, %v1076
      %v1101 = vpack.c.b16 %v1079, %v1078
      %v1102 = vpack.c.b16 %v1081, %v1080
      %v1103 = vpack.c.b16 %v1083, %v1082
      %v1104 = vpack.c.b16 %v1085, %v1084
      %v1105 = vpack.c.b16 %v1087, %v1086
      %v1106 = vpack.c.b16 %v1089, %v1088
      %v1107 = vpack.c.b16 %v1091, %v1090
      %1124 = vmatprep.subr.bf16.mxu0 0
      %1125 = vmatpush1.bf16.msra.mxu0 %v1092
      %1126 = vmatprep.subr.bf16.mxu0 0
      %1127 = vmatpush1.bf16.msra.mxu0 %v1093
      %1128 = vmatprep.subr.bf16.mxu0 0
      %1129 = vmatpush1.bf16.msra.mxu0 %v1094
      %1130 = vmatprep.subr.bf16.mxu0 0
      %1131 = vmatpush1.bf16.msra.mxu0 %v1095
      %1132 = vmatprep.subr.bf16.mxu0 0
      %1133 = vmatpush1.bf16.msra.mxu0 %v1096
      %1134 = vmatprep.subr.bf16.mxu0 0
      %1135 = vmatpush1.bf16.msra.mxu0 %v1097
      %1136 = vmatprep.subr.bf16.mxu0 0
      %1137 = vmatpush1.bf16.msra.mxu0 %v1098
      %1138 = vmatprep.subr.bf16.mxu0 0
      %1139 = vmatpush1.bf16.msra.mxu0 %v1099
      %1140 = vmatprep.subr.bf16.mxu0 0
      %1141 = vmatpush1.bf16.msra.mxu0 %v1100
      %1142 = vmatprep.subr.bf16.mxu0 0
      %1143 = vmatpush1.bf16.msra.mxu0 %v1101
      %1144 = vmatprep.subr.bf16.mxu0 0
      %1145 = vmatpush1.bf16.msra.mxu0 %v1102
      %1146 = vmatprep.subr.bf16.mxu0 0
      %1147 = vmatpush1.bf16.msra.mxu0 %v1103
      %1148 = vmatprep.subr.bf16.mxu0 0
      %1149 = vmatpush1.bf16.msra.mxu0 %v1104
      %1150 = vmatprep.subr.bf16.mxu0 0
      %1151 = vmatpush1.bf16.msra.mxu0 %v1105
      %1152 = vmatprep.subr.bf16.mxu0 0
      %1153 = vmatpush1.bf16.msra.mxu0 %v1106
      %1154 = vmatprep.subr.bf16.mxu0 0
      %1155 = vmatpush1.bf16.msra.mxu0 %v1107
      %1156 = vmatprep.mubr.bf16.mxu0 %v387
      %1157 = vmatmul.mubr.bf16.gmra.mrb[0].mxu0 %v386
      %v1158 = vpop.f32.mrb[0].mxu0
      %v1159 = vadd.f32 0.0, %v1158
      %v1160 = vpop.f32.mrb[0].mxu0
      %v1161 = vpop.f32.mrb[0].mxu0
      %v1162 = vadd.f32 0.0, %v1161
      %v1163 = vpop.f32.mrb[0].mxu0
      %1164 = vmatprep.mubr.bf16.mxu0 %v389
      %1165 = vmatmul.mubr.bf16.gmra.mrb[0].mxu0 %v388
      %v1166 = vpop.f32.mrb[0].mxu0
      %v1167 = vadd.f32 0.0, %v1166
      %v1168 = vpop.f32.mrb[0].mxu0
      %v1169 = vpop.f32.mrb[0].mxu0
      %v1170 = vadd.f32 0.0, %v1169
      %v1171 = vpop.f32.mrb[0].mxu0
      %1172 = vmatprep.mubr.bf16.mxu0 %v391
      %1173 = vmatmul.mubr.bf16.gmra.mrb[0].mxu0 %v390
      %v1174 = vpop.f32.mrb[0].mxu0
      %v1175 = vadd.f32 0.0, %v1174
      %v1176 = vpop.f32.mrb[0].mxu0
      %v1177 = vpop.f32.mrb[0].mxu0
      %v1178 = vadd.f32 0.0, %v1177
      %v1179 = vpop.f32.mrb[0].mxu0
      %1180 = vmatprep.mubr.bf16.mxu0 %v393
      %1181 = vmatmul.mubr.bf16.gmra.mrb[0].mxu0 %v392
      %v1182 = vpop.f32.mrb[0].mxu0
      %v1183 = vadd.f32 0.0, %v1182
      %v1184 = vpop.f32.mrb[0].mxu0
      %v1185 = vpop.f32.mrb[0].mxu0
      %v1186 = vadd.f32 0.0, %v1185
      %v1187 = vpop.f32.mrb[0].mxu0
      %1188 = vmatprep.mubr.bf16.mxu0 %v395
      %1189 = vmatmul.mubr.bf16.gmra.mrb[0].mxu0 %v394
      %v1190 = vpop.f32.mrb[0].mxu0
      %v1191 = vadd.f32 0.0, %v1190
      %v1192 = vpop.f32.mrb[0].mxu0
      %v1193 = vpop.f32.mrb[0].mxu0
      %v1194 = vadd.f32 0.0, %v1193
      %v1195 = vpop.f32.mrb[0].mxu0
      %1196 = vmatprep.mubr.bf16.mxu0 %v397
      %1197 = vmatmul.mubr.bf16.gmra.mrb[0].mxu0 %v396
      %v1198 = vpop.f32.mrb[0].mxu0
      %v1199 = vadd.f32 0.0, %v1198
      %v1200 = vpop.f32.mrb[0].mxu0
      %v1201 = vpop.f32.mrb[0].mxu0
      %v1202 = vadd.f32 0.0, %v1201
      %v1203 = vpop.f32.mrb[0].mxu0
      %1204 = vmatprep.mubr.bf16.mxu0 %v399
      %1205 = vmatmul.mubr.bf16.gmra.mrb[0].mxu0 %v398
      %v1206 = vpop.f32.mrb[0].mxu0
      %v1207 = vadd.f32 0.0, %v1206
      %v1208 = vpop.f32.mrb[0].mxu0
      %v1209 = vpop.f32.mrb[0].mxu0
      %v1210 = vadd.f32 0.0, %v1209
      %v1211 = vpop.f32.mrb[0].mxu0
      %1212 = vmatprep.mubr.bf16.mxu0 %v401
      %1213 = vmatmul.mubr.bf16.gmra.mrb[0].mxu0 %v400
      %v1214 = vpop.f32.mrb[0].mxu0
      %v1215 = vadd.f32 0.0, %v1214
      %v1216 = vpop.f32.mrb[0].mxu0
      %v1217 = vpop.f32.mrb[0].mxu0
      %v1218 = vadd.f32 0.0, %v1217
      %v1219 = vpop.f32.mrb[0].mxu0
      %1220 = vmatprep.mubr.bf16.mxu0 %v403
      %1221 = vmatmul.mubr.bf16.gmra.mrb[0].mxu0 %v402
      %v1222 = vpop.f32.mrb[0].mxu0
      %v1223 = vadd.f32 0.0, %v1222
      %v1224 = vpop.f32.mrb[0].mxu0
      %v1225 = vpop.f32.mrb[0].mxu0
      %v1226 = vadd.f32 0.0, %v1225
      %v1227 = vpop.f32.mrb[0].mxu0
      %1228 = vmatprep.mubr.bf16.mxu0 %v405
      %1229 = vmatmul.mubr.bf16.gmra.mrb[0].mxu0 %v404
      %v1230 = vpop.f32.mrb[0].mxu0
      %v1231 = vadd.f32 0.0, %v1230
      %v1232 = vpop.f32.mrb[0].mxu0
      %v1233 = vpop.f32.mrb[0].mxu0
      %v1234 = vadd.f32 0.0, %v1233
      %v1235 = vpop.f32.mrb[0].mxu0
      %1236 = vmatprep.mubr.bf16.mxu0 %v407
      %1237 = vmatmul.mubr.bf16.gmra.mrb[0].mxu0 %v406
      %v1238 = vpop.f32.mrb[0].mxu0
      %v1239 = vadd.f32 0.0, %v1238
      %v1240 = vpop.f32.mrb[0].mxu0
      %v1241 = vpop.f32.mrb[0].mxu0
      %v1242 = vadd.f32 0.0, %v1241
      %v1243 = vpop.f32.mrb[0].mxu0
      %1244 = vmatprep.mubr.bf16.mxu0 %v409
      %1245 = vmatmul.mubr.bf16.gmra.mrb[0].mxu0 %v408
      %v1246 = vpop.f32.mrb[0].mxu0
      %v1247 = vadd.f32 0.0, %v1246
      %v1248 = vpop.f32.mrb[0].mxu0
      %v1249 = vpop.f32.mrb[0].mxu0
      %v1250 = vadd.f32 0.0, %v1249
      %v1251 = vpop.f32.mrb[0].mxu0
      %1252 = vmatprep.mubr.bf16.mxu0 %v411
      %1253 = vmatmul.mubr.bf16.gmra.mrb[0].mxu0 %v410
      %v1254 = vpop.f32.mrb[0].mxu0
      %v1255 = vadd.f32 0.0, %v1254
      %v1256 = vpop.f32.mrb[0].mxu0
      %v1257 = vpop.f32.mrb[0].mxu0
      %v1258 = vadd.f32 0.0, %v1257
      %v1259 = vpop.f32.mrb[0].mxu0
      %1260 = vmatprep.mubr.bf16.mxu0 %v413
      %1261 = vmatmul.mubr.bf16.gmra.mrb[0].mxu0 %v412
      %v1262 = vpop.f32.mrb[0].mxu0
      %v1263 = vadd.f32 0.0, %v1262
      %v1264 = vpop.f32.mrb[0].mxu0
      %v1265 = vpop.f32.mrb[0].mxu0
      %v1266 = vadd.f32 0.0, %v1265
      %v1267 = vpop.f32.mrb[0].mxu0
      %1268 = vmatprep.mubr.bf16.mxu0 %v415
      %1269 = vmatmul.mubr.bf16.gmra.mrb[0].mxu0 %v414
      %v1270 = vpop.f32.mrb[0].mxu0
      %v1271 = vadd.f32 0.0, %v1270
      %v1272 = vpop.f32.mrb[0].mxu0
      %v1273 = vpop.f32.mrb[0].mxu0
      %v1274 = vadd.f32 0.0, %v1273
      %v1275 = vpop.f32.mrb[0].mxu0
      %1276 = vmatprep.mubr.bf16.mxu0 %v417
      %1277 = vmatmul.mubr.bf16.gmra.mrb[0].mxu0 %v416
      %v1278 = vpop.f32.mrb[0].mxu0
      %v1279 = vadd.f32 0.0, %v1278
      %v1280 = vpop.f32.mrb[0].mxu0
      %v1281 = vpop.f32.mrb[0].mxu0
      %v1282 = vadd.f32 0.0, %v1281
      %v1283 = vpop.f32.mrb[0].mxu0
      %1284 = vdwg.mxu0
      %v1285 = vpack.c.bf16 %v584, %v581
      %v1286 = vpack.c.bf16 %v592, %v589
      %v1287 = vpack.c.bf16 %v600, %v597
      %v1288 = vpack.c.bf16 %v608, %v605
      %v1289 = vpack.c.bf16 %v616, %v613
      %v1290 = vpack.c.bf16 %v624, %v621
      %v1291 = vpack.c.bf16 %v632, %v629
      %v1292 = vpack.c.bf16 %v640, %v637
      %v1293 = vpack.c.bf16 %v648, %v645
      %v1294 = vpack.c.bf16 %v656, %v653
      %v1295 = vpack.c.bf16 %v664, %v661
      %v1296 = vpack.c.bf16 %v672, %v669
      %v1297 = vpack.c.bf16 %v680, %v677
      %v1298 = vpack.c.bf16 %v688, %v685
      %v1299 = vpack.c.bf16 %v696, %v693
      %v1300 = vpack.c.bf16 %v704, %v701
      %v1301 = vpack.c.bf16 %v873, %v870
      %v1302 = vpack.c.bf16 %v881, %v878
      %v1303 = vpack.c.bf16 %v889, %v886
      %v1304 = vpack.c.bf16 %v897, %v894
      %v1305 = vpack.c.bf16 %v905, %v902
      %v1306 = vpack.c.bf16 %v913, %v910
      %v1307 = vpack.c.bf16 %v921, %v918
      %v1308 = vpack.c.bf16 %v929, %v926
      %v1309 = vpack.c.bf16 %v937, %v934
      %v1310 = vpack.c.bf16 %v945, %v942
      %v1311 = vpack.c.bf16 %v953, %v950
      %v1312 = vpack.c.bf16 %v961, %v958
      %v1313 = vpack.c.bf16 %v969, %v966
      %v1314 = vpack.c.bf16 %v977, %v974
      %v1315 = vpack.c.bf16 %v985, %v982
      %v1316 = vpack.c.bf16 %v993, %v990
      %1317 = vmatprep.subr.bf16.mxu0 0
      %1318 = vmatpush1.bf16.xpose.msra.mxu0 %v1301
      %1319 = vmatprep.subr.bf16.mxu0 0
      %1320 = vmatpush1.bf16.xpose.msra.mxu0 %v1302
      %1321 = vmatprep.subr.bf16.mxu0 0
      %1322 = vmatpush1.bf16.xpose.msra.mxu0 %v1303
      %1323 = vmatprep.subr.bf16.mxu0 0
      %1324 = vmatpush1.bf16.xpose.msra.mxu0 %v1304
      %1325 = vmatprep.subr.bf16.mxu0 0
      %1326 = vmatpush1.bf16.xpose.msra.mxu0 %v1305
      %1327 = vmatprep.subr.bf16.mxu0 0
      %1328 = vmatpush1.bf16.xpose.msra.mxu0 %v1306
      %1329 = vmatprep.subr.bf16.mxu0 0
      %1330 = vmatpush1.bf16.xpose.msra.mxu0 %v1307
      %1331 = vmatprep.subr.bf16.mxu0 0
      %1332 = vmatpush1.bf16.xpose.msra.mxu0 %v1308
      %1333 = vmatprep.subr.bf16.mxu0 0
      %1334 = vmatpush1.bf16.xpose.msra.mxu0 %v1309
      %1335 = vmatprep.subr.bf16.mxu0 0
      %1336 = vmatpush1.bf16.xpose.msra.mxu0 %v1310
      %1337 = vmatprep.subr.bf16.mxu0 0
      %1338 = vmatpush1.bf16.xpose.msra.mxu0 %v1311
      %1339 = vmatprep.subr.bf16.mxu0 0
      %1340 = vmatpush1.bf16.xpose.msra.mxu0 %v1312
      %1341 = vmatprep.subr.bf16.mxu0 0
      %1342 = vmatpush1.bf16.xpose.msra.mxu0 %v1313
      %1343 = vmatprep.subr.bf16.mxu0 0
      %1344 = vmatpush1.bf16.xpose.msra.mxu0 %v1314
      %1345 = vmatprep.subr.bf16.mxu0 0
      %1346 = vmatpush1.bf16.xpose.msra.mxu0 %v1315
      %1347 = vmatprep.subr.bf16.mxu0 0
      %1348 = vmatpush1.bf16.xpose.msra.mxu0 %v1316
      %1349 = vmatprep.mubr.bf16.mxu0 0
      %1350 = vmatmul.mubr.bf16.gmra.mrb[0].mxu0 %v1285
      %v1351 = vpop.f32.mrb[0].mxu0
      %v1352 = vadd.f32 0.0, %v1351
      %v1353 = vpop.f32.mrb[0].mxu0
      %v1354 = vadd.f32 0.0, %v1353
      %v1355 = vpop.f32.mrb[0].mxu0
      %v1356 = vadd.f32 0.0, %v1355
      %v1357 = vpop.f32.mrb[0].mxu0
      %v1358 = vadd.f32 0.0, %v1357
      %1359 = vmatprep.mubr.bf16.mxu0 0
      %1360 = vmatmul.mubr.bf16.gmra.mrb[0].mxu0 %v1286
      %v1361 = vpop.f32.mrb[0].mxu0
      %v1362 = vadd.f32 0.0, %v1361
      %v1363 = vpop.f32.mrb[0].mxu0
      %v1364 = vadd.f32 0.0, %v1363
      %v1365 = vpop.f32.mrb[0].mxu0
      %v1366 = vadd.f32 0.0, %v1365
      %v1367 = vpop.f32.mrb[0].mxu0
      %v1368 = vadd.f32 0.0, %v1367
      %1369 = vmatprep.mubr.bf16.mxu0 0
      %1370 = vmatmul.mubr.bf16.gmra.mrb[0].mxu0 %v1287
      %v1371 = vpop.f32.mrb[0].mxu0
      %v1372 = vadd.f32 0.0, %v1371
      %v1373 = vpop.f32.mrb[0].mxu0
      %v1374 = vadd.f32 0.0, %v1373
      %v1375 = vpop.f32.mrb[0].mxu0
      %v1376 = vadd.f32 0.0, %v1375
      %v1377 = vpop.f32.mrb[0].mxu0
      %v1378 = vadd.f32 0.0, %v1377
      %1379 = vmatprep.mubr.bf16.mxu0 0
      %1380 = vmatmul.mubr.bf16.gmra.mrb[0].mxu0 %v1288
      %v1381 = vpop.f32.mrb[0].mxu0
      %v1382 = vadd.f32 0.0, %v1381
      %v1383 = vpop.f32.mrb[0].mxu0
      %v1384 = vadd.f32 0.0, %v1383
      %v1385 = vpop.f32.mrb[0].mxu0
      %v1386 = vadd.f32 0.0, %v1385
      %v1387 = vpop.f32.mrb[0].mxu0
      %v1388 = vadd.f32 0.0, %v1387
      %1389 = vmatprep.mubr.bf16.mxu0 0
      %1390 = vmatmul.mubr.bf16.gmra.mrb[0].mxu0 %v1289
      %v1391 = vpop.f32.mrb[0].mxu0
      %v1392 = vadd.f32 0.0, %v1391
      %v1393 = vpop.f32.mrb[0].mxu0
      %v1394 = vadd.f32 0.0, %v1393
      %v1395 = vpop.f32.mrb[0].mxu0
      %v1396 = vadd.f32 0.0, %v1395
      %v1397 = vpop.f32.mrb[0].mxu0
      %v1398 = vadd.f32 0.0, %v1397
      %1399 = vmatprep.mubr.bf16.mxu0 0
      %1400 = vmatmul.mubr.bf16.gmra.mrb[0].mxu0 %v1290
      %v1401 = vpop.f32.mrb[0].mxu0
      %v1402 = vadd.f32 0.0, %v1401
      %v1403 = vpop.f32.mrb[0].mxu0
      %v1404 = vadd.f32 0.0, %v1403
      %v1405 = vpop.f32.mrb[0].mxu0
      %v1406 = vadd.f32 0.0, %v1405
      %v1407 = vpop.f32.mrb[0].mxu0
      %v1408 = vadd.f32 0.0, %v1407
      %1409 = vmatprep.mubr.bf16.mxu0 0
      %1410 = vmatmul.mubr.bf16.gmra.mrb[0].mxu0 %v1291
      %v1411 = vpop.f32.mrb[0].mxu0
      %v1412 = vadd.f32 0.0, %v1411
      %v1413 = vpop.f32.mrb[0].mxu0
      %v1414 = vadd.f32 0.0, %v1413
      %v1415 = vpop.f32.mrb[0].mxu0
      %v1416 = vadd.f32 0.0, %v1415
      %v1417 = vpop.f32.mrb[0].mxu0
      %v1418 = vadd.f32 0.0, %v1417
      %1419 = vmatprep.mubr.bf16.mxu0 0
      %1420 = vmatmul.mubr.bf16.gmra.mrb[0].mxu0 %v1292
      %v1421 = vpop.f32.mrb[0].mxu0
      %v1422 = vadd.f32 0.0, %v1421
      %v1423 = vpop.f32.mrb[0].mxu0
      %v1424 = vadd.f32 0.0, %v1423
      %v1425 = vpop.f32.mrb[0].mxu0
      %v1426 = vadd.f32 0.0, %v1425
      %v1427 = vpop.f32.mrb[0].mxu0
      %v1428 = vadd.f32 0.0, %v1427
      %1429 = vmatprep.mubr.bf16.mxu0 0
      %1430 = vmatmul.mubr.bf16.gmra.mrb[0].mxu0 %v1293
      %v1431 = vpop.f32.mrb[0].mxu0
      %v1432 = vadd.f32 0.0, %v1431
      %v1433 = vpop.f32.mrb[0].mxu0
      %v1434 = vadd.f32 0.0, %v1433
      %v1435 = vpop.f32.mrb[0].mxu0
      %v1436 = vadd.f32 0.0, %v1435
      %v1437 = vpop.f32.mrb[0].mxu0
      %v1438 = vadd.f32 0.0, %v1437
      %1439 = vmatprep.mubr.bf16.mxu0 0
      %1440 = vmatmul.mubr.bf16.gmra.mrb[0].mxu0 %v1294
      %v1441 = vpop.f32.mrb[0].mxu0
      %v1442 = vadd.f32 0.0, %v1441
      %v1443 = vpop.f32.mrb[0].mxu0
      %v1444 = vadd.f32 0.0, %v1443
      %v1445 = vpop.f32.mrb[0].mxu0
      %v1446 = vadd.f32 0.0, %v1445
      %v1447 = vpop.f32.mrb[0].mxu0
      %v1448 = vadd.f32 0.0, %v1447
      %1449 = vmatprep.mubr.bf16.mxu0 0
      %1450 = vmatmul.mubr.bf16.gmra.mrb[0].mxu0 %v1295
      %v1451 = vpop.f32.mrb[0].mxu0
      %v1452 = vadd.f32 0.0, %v1451
      %v1453 = vpop.f32.mrb[0].mxu0
      %v1454 = vadd.f32 0.0, %v1453
      %v1455 = vpop.f32.mrb[0].mxu0
      %v1456 = vadd.f32 0.0, %v1455
      %v1457 = vpop.f32.mrb[0].mxu0
      %v1458 = vadd.f32 0.0, %v1457
      %1459 = vmatprep.mubr.bf16.mxu0 0
      %1460 = vmatmul.mubr.bf16.gmra.mrb[0].mxu0 %v1296
      %v1461 = vpop.f32.mrb[0].mxu0
      %v1462 = vadd.f32 0.0, %v1461
      %v1463 = vpop.f32.mrb[0].mxu0
      %v1464 = vadd.f32 0.0, %v1463
      %v1465 = vpop.f32.mrb[0].mxu0
      %v1466 = vadd.f32 0.0, %v1465
      %v1467 = vpop.f32.mrb[0].mxu0
      %v1468 = vadd.f32 0.0, %v1467
      %1469 = vmatprep.mubr.bf16.mxu0 0
      %1470 = vmatmul.mubr.bf16.gmra.mrb[0].mxu0 %v1297
      %v1471 = vpop.f32.mrb[0].mxu0
      %v1472 = vadd.f32 0.0, %v1471
      %v1473 = vpop.f32.mrb[0].mxu0
      %v1474 = vadd.f32 0.0, %v1473
      %v1475 = vpop.f32.mrb[0].mxu0
      %v1476 = vadd.f32 0.0, %v1475
      %v1477 = vpop.f32.mrb[0].mxu0
      %v1478 = vadd.f32 0.0, %v1477
      %1479 = vmatprep.mubr.bf16.mxu0 0
      %1480 = vmatmul.mubr.bf16.gmra.mrb[0].mxu0 %v1298
      %v1481 = vpop.f32.mrb[0].mxu0
      %v1482 = vadd.f32 0.0, %v1481
      %v1483 = vpop.f32.mrb[0].mxu0
      %v1484 = vadd.f32 0.0, %v1483
      %v1485 = vpop.f32.mrb[0].mxu0
      %v1486 = vadd.f32 0.0, %v1485
      %v1487 = vpop.f32.mrb[0].mxu0
      %v1488 = vadd.f32 0.0, %v1487
      %1489 = vmatprep.mubr.bf16.mxu0 0
      %1490 = vmatmul.mubr.bf16.gmra.mrb[0].mxu0 %v1299
      %v1491 = vpop.f32.mrb[0].mxu0
      %v1492 = vadd.f32 0.0, %v1491
      %v1493 = vpop.f32.mrb[0].mxu0
      %v1494 = vadd.f32 0.0, %v1493
      %v1495 = vpop.f32.mrb[0].mxu0
      %v1496 = vadd.f32 0.0, %v1495
      %v1497 = vpop.f32.mrb[0].mxu0
      %v1498 = vadd.f32 0.0, %v1497
      %1499 = vmatprep.mubr.bf16.mxu0 0
      %1500 = vmatmul.mubr.bf16.gmra.mrb[0].mxu0 %v1300
      %v1501 = vpop.f32.mrb[0].mxu0
      %v1502 = vadd.f32 0.0, %v1501
      %v1503 = vpop.f32.mrb[0].mxu0
      %v1504 = vadd.f32 0.0, %v1503
      %v1505 = vpop.f32.mrb[0].mxu0
      %v1506 = vadd.f32 0.0, %v1505
      %v1507 = vpop.f32.mrb[0].mxu0
      %v1508 = vadd.f32 0.0, %v1507
      %1509 = vdwg.mxu0
      %v1510 = vmul.f32 %v1352, 0.088388346
      %v1511 = vmul.f32 %v1354, 0.088388346
      %v1512 = vmul.f32 %v1356, 0.088388346
      %v1513 = vmul.f32 %v1358, 0.088388346
      %v1514 = vmul.f32 %v1362, 0.088388346
      %v1515 = vmul.f32 %v1364, 0.088388346
      %v1516 = vmul.f32 %v1366, 0.088388346
      %v1517 = vmul.f32 %v1368, 0.088388346
      %v1518 = vmul.f32 %v1372, 0.088388346
      %v1519 = vmul.f32 %v1374, 0.088388346
      %v1520 = vmul.f32 %v1376, 0.088388346
      %v1521 = vmul.f32 %v1378, 0.088388346
      %v1522 = vmul.f32 %v1382, 0.088388346
      %v1523 = vmul.f32 %v1384, 0.088388346
      %v1524 = vmul.f32 %v1386, 0.088388346
      %v1525 = vmul.f32 %v1388, 0.088388346
      %v1526 = vmul.f32 %v1392, 0.088388346
      %v1527 = vmul.f32 %v1394, 0.088388346
      %v1528 = vmul.f32 %v1396, 0.088388346
      %v1529 = vmul.f32 %v1398, 0.088388346
      %v1530 = vmul.f32 %v1402, 0.088388346
      %v1531 = vmul.f32 %v1404, 0.088388346
      %v1532 = vmul.f32 %v1406, 0.088388346
      %v1533 = vmul.f32 %v1408, 0.088388346
      %v1534 = vmul.f32 %v1412, 0.088388346
      %v1535 = vmul.f32 %v1414, 0.088388346
      %v1536 = vmul.f32 %v1416, 0.088388346
      %v1537 = vmul.f32 %v1418, 0.088388346
      %v1538 = vmul.f32 %v1422, 0.088388346
      %v1539 = vmul.f32 %v1424, 0.088388346
      %v1540 = vmul.f32 %v1426, 0.088388346
      %v1541 = vmul.f32 %v1428, 0.088388346
      %v1542 = vmul.f32 %v1432, 0.088388346
      %v1543 = vmul.f32 %v1434, 0.088388346
      %v1544 = vmul.f32 %v1436, 0.088388346
      %v1545 = vmul.f32 %v1438, 0.088388346
      %v1546 = vmul.f32 %v1442, 0.088388346
      %v1547 = vmul.f32 %v1444, 0.088388346
      %v1548 = vmul.f32 %v1446, 0.088388346
      %v1549 = vmul.f32 %v1448, 0.088388346
      %v1550 = vmul.f32 %v1452, 0.088388346
      %v1551 = vmul.f32 %v1454, 0.088388346
      %v1552 = vmul.f32 %v1456, 0.088388346
      %v1553 = vmul.f32 %v1458, 0.088388346
      %v1554 = vmul.f32 %v1462, 0.088388346
      %v1555 = vmul.f32 %v1464, 0.088388346
      %v1556 = vmul.f32 %v1466, 0.088388346
      %v1557 = vmul.f32 %v1468, 0.088388346
      %v1558 = vmul.f32 %v1472, 0.088388346
      %v1559 = vmul.f32 %v1474, 0.088388346
      %v1560 = vmul.f32 %v1476, 0.088388346
      %v1561 = vmul.f32 %v1478, 0.088388346
      %v1562 = vmul.f32 %v1482, 0.088388346
      %v1563 = vmul.f32 %v1484, 0.088388346
      %v1564 = vmul.f32 %v1486, 0.088388346
      %v1565 = vmul.f32 %v1488, 0.088388346
      %v1566 = vmul.f32 %v1492, 0.088388346
      %v1567 = vmul.f32 %v1494, 0.088388346
      %v1568 = vmul.f32 %v1496, 0.088388346
      %v1569 = vmul.f32 %v1498, 0.088388346
      %v1570 = vmul.f32 %v1502, 0.088388346
      %v1571 = vmul.f32 %v1504, 0.088388346
      %v1572 = vmul.f32 %v1506, 0.088388346
      %v1573 = vmul.f32 %v1508, 0.088388346
      %v1574 = vmax.f32 %v1510, %v1511
      %1575 = vmax.xlane.f32.xlu0 %v1574
      %v1576 = vpop.xlane.xlu0 %1575
      %v1577 = vmax.f32 %v1512, %v1513
      %1578 = vmax.xlane.f32.xlu0 %v1577
      %v1579 = vpop.xlane.xlu0 %1578
      %v1580 = vmax.f32 %v1514, %v1515
      %1581 = vmax.xlane.f32.xlu0 %v1580
      %v1582 = vpop.xlane.xlu0 %1581
      %v1583 = vmax.f32 %v1516, %v1517
      %1584 = vmax.xlane.f32.xlu0 %v1583
      %v1585 = vpop.xlane.xlu0 %1584
      %v1586 = vmax.f32 %v1518, %v1519
      %1587 = vmax.xlane.f32.xlu0 %v1586
      %v1588 = vpop.xlane.xlu0 %1587
      %v1589 = vmax.f32 %v1520, %v1521
      %1590 = vmax.xlane.f32.xlu0 %v1589
      %v1591 = vpop.xlane.xlu0 %1590
      %v1592 = vmax.f32 %v1522, %v1523
      %1593 = vmax.xlane.f32.xlu0 %v1592
      %v1594 = vpop.xlane.xlu0 %1593
      %v1595 = vmax.f32 %v1524, %v1525
      %1596 = vmax.xlane.f32.xlu0 %v1595
      %v1597 = vpop.xlane.xlu0 %1596
      %v1598 = vmax.f32 %v1526, %v1527
      %1599 = vmax.xlane.f32.xlu0 %v1598
      %v1600 = vpop.xlane.xlu0 %1599
      %v1601 = vmax.f32 %v1528, %v1529
      %1602 = vmax.xlane.f32.xlu0 %v1601
      %v1603 = vpop.xlane.xlu0 %1602
      %v1604 = vmax.f32 %v1530, %v1531
      %1605 = vmax.xlane.f32.xlu0 %v1604
      %v1606 = vpop.xlane.xlu0 %1605
      %v1607 = vmax.f32 %v1532, %v1533
      %1608 = vmax.xlane.f32.xlu0 %v1607
      %v1609 = vpop.xlane.xlu0 %1608
      %v1610 = vmax.f32 %v1534, %v1535
      %1611 = vmax.xlane.f32.xlu0 %v1610
      %v1612 = vpop.xlane.xlu0 %1611
      %v1613 = vmax.f32 %v1536, %v1537
      %1614 = vmax.xlane.f32.xlu0 %v1613
      %v1615 = vpop.xlane.xlu0 %1614
      %v1616 = vmax.f32 %v1538, %v1539
      %1617 = vmax.xlane.f32.xlu0 %v1616
      %v1618 = vpop.xlane.xlu0 %1617
      %v1619 = vmax.f32 %v1540, %v1541
      %1620 = vmax.xlane.f32.xlu0 %v1619
      %v1621 = vpop.xlane.xlu0 %1620
      %v1622 = vmax.f32 %v1542, %v1543
      %1623 = vmax.xlane.f32.xlu0 %v1622
      %v1624 = vpop.xlane.xlu0 %1623
      %v1625 = vmax.f32 %v1544, %v1545
      %1626 = vmax.xlane.f32.xlu0 %v1625
      %v1627 = vpop.xlane.xlu0 %1626
      %v1628 = vmax.f32 %v1546, %v1547
      %1629 = vmax.xlane.f32.xlu0 %v1628
      %v1630 = vpop.xlane.xlu0 %1629
      %v1631 = vmax.f32 %v1548, %v1549
      %1632 = vmax.xlane.f32.xlu0 %v1631
      %v1633 = vpop.xlane.xlu0 %1632
      %v1634 = vmax.f32 %v1550, %v1551
      %1635 = vmax.xlane.f32.xlu0 %v1634
      %v1636 = vpop.xlane.xlu0 %1635
      %v1637 = vmax.f32 %v1552, %v1553
      %1638 = vmax.xlane.f32.xlu0 %v1637
      %v1639 = vpop.xlane.xlu0 %1638
      %v1640 = vmax.f32 %v1554, %v1555
      %1641 = vmax.xlane.f32.xlu0 %v1640
      %v1642 = vpop.xlane.xlu0 %1641
      %v1643 = vmax.f32 %v1556, %v1557
      %1644 = vmax.xlane.f32.xlu0 %v1643
      %v1645 = vpop.xlane.xlu0 %1644
      %v1646 = vmax.f32 %v1558, %v1559
      %1647 = vmax.xlane.f32.xlu0 %v1646
      %v1648 = vpop.xlane.xlu0 %1647
      %v1649 = vmax.f32 %v1560, %v1561
      %1650 = vmax.xlane.f32.xlu0 %v1649
      %v1651 = vpop.xlane.xlu0 %1650
      %v1652 = vmax.f32 %v1562, %v1563
      %1653 = vmax.xlane.f32.xlu0 %v1652
      %v1654 = vpop.xlane.xlu0 %1653
      %v1655 = vmax.f32 %v1564, %v1565
      %1656 = vmax.xlane.f32.xlu0 %v1655
      %v1657 = vpop.xlane.xlu0 %1656
      %v1658 = vmax.f32 %v1566, %v1567
      %1659 = vmax.xlane.f32.xlu0 %v1658
      %v1660 = vpop.xlane.xlu0 %1659
      %v1661 = vmax.f32 %v1568, %v1569
      %1662 = vmax.xlane.f32.xlu0 %v1661
      %v1663 = vpop.xlane.xlu0 %1662
      %v1664 = vmax.f32 %v1570, %v1571
      %1665 = vmax.xlane.f32.xlu0 %v1664
      %v1666 = vpop.xlane.xlu0 %1665
      %v1667 = vmax.f32 %v1572, %v1573
      %1668 = vmax.xlane.f32.xlu0 %v1667
      %v1669 = vpop.xlane.xlu0 %1668
      %v1670 = vsub.f32 %v1510, %v1576
      %v1671 = vsub.f32 %v1511, %v1576
      %v1672 = vsub.f32 %v1512, %v1579
      %v1673 = vsub.f32 %v1513, %v1579
      %v1674 = vsub.f32 %v1514, %v1582
      %v1675 = vsub.f32 %v1515, %v1582
      %v1676 = vsub.f32 %v1516, %v1585
      %v1677 = vsub.f32 %v1517, %v1585
      %v1678 = vsub.f32 %v1518, %v1588
      %v1679 = vsub.f32 %v1519, %v1588
      %v1680 = vsub.f32 %v1520, %v1591
      %v1681 = vsub.f32 %v1521, %v1591
      %v1682 = vsub.f32 %v1522, %v1594
      %v1683 = vsub.f32 %v1523, %v1594
      %v1684 = vsub.f32 %v1524, %v1597
      %v1685 = vsub.f32 %v1525, %v1597
      %v1686 = vsub.f32 %v1526, %v1600
      %v1687 = vsub.f32 %v1527, %v1600
      %v1688 = vsub.f32 %v1528, %v1603
      %v1689 = vsub.f32 %v1529, %v1603
      %v1690 = vsub.f32 %v1530, %v1606
      %v1691 = vsub.f32 %v1531, %v1606
      %v1692 = vsub.f32 %v1532, %v1609
      %v1693 = vsub.f32 %v1533, %v1609
      %v1694 = vsub.f32 %v1534, %v1612
      %v1695 = vsub.f32 %v1535, %v1612
      %v1696 = vsub.f32 %v1536, %v1615
      %v1697 = vsub.f32 %v1537, %v1615
      %v1698 = vsub.f32 %v1538, %v1618
      %v1699 = vsub.f32 %v1539, %v1618
      %v1700 = vsub.f32 %v1540, %v1621
      %v1701 = vsub.f32 %v1541, %v1621
      %v1702 = vsub.f32 %v1542, %v1624
      %v1703 = vsub.f32 %v1543, %v1624
      %v1704 = vsub.f32 %v1544, %v1627
      %v1705 = vsub.f32 %v1545, %v1627
      %v1706 = vsub.f32 %v1546, %v1630
      %v1707 = vsub.f32 %v1547, %v1630
      %v1708 = vsub.f32 %v1548, %v1633
      %v1709 = vsub.f32 %v1549, %v1633
      %v1710 = vsub.f32 %v1550, %v1636
      %v1711 = vsub.f32 %v1551, %v1636
      %v1712 = vsub.f32 %v1552, %v1639
      %v1713 = vsub.f32 %v1553, %v1639
      %v1714 = vsub.f32 %v1554, %v1642
      %v1715 = vsub.f32 %v1555, %v1642
      %v1716 = vsub.f32 %v1556, %v1645
      %v1717 = vsub.f32 %v1557, %v1645
      %v1718 = vsub.f32 %v1558, %v1648
      %v1719 = vsub.f32 %v1559, %v1648
      %v1720 = vsub.f32 %v1560, %v1651
      %v1721 = vsub.f32 %v1561, %v1651
      %v1722 = vsub.f32 %v1562, %v1654
      %v1723 = vsub.f32 %v1563, %v1654
      %v1724 = vsub.f32 %v1564, %v1657
      %v1725 = vsub.f32 %v1565, %v1657
      %v1726 = vsub.f32 %v1566, %v1660
      %v1727 = vsub.f32 %v1567, %v1660
      %v1728 = vsub.f32 %v1568, %v1663
      %v1729 = vsub.f32 %v1569, %v1663
      %v1730 = vsub.f32 %v1570, %v1666
      %v1731 = vsub.f32 %v1571, %v1666
      %v1732 = vsub.f32 %v1572, %v1669
      %v1733 = vsub.f32 %v1573, %v1669
      %v1734 = vmul.f32 %v1670, 1.442695
      %v1735 = vpow.pop %v1734
      %v1736 = vmul.f32 %v1671, 1.442695
      %v1737 = vpow.pop %v1736
      %v1738 = vmul.f32 %v1672, 1.442695
      %v1739 = vpow.pop %v1738
      %v1740 = vmul.f32 %v1673, 1.442695
      %v1741 = vpow.pop %v1740
      %v1742 = vmul.f32 %v1674, 1.442695
      %v1743 = vpow.pop %v1742
      %v1744 = vmul.f32 %v1675, 1.442695
      %v1745 = vpow.pop %v1744
      %v1746 = vmul.f32 %v1676, 1.442695
      %v1747 = vpow.pop %v1746
      %v1748 = vmul.f32 %v1677, 1.442695
      %v1749 = vpow.pop %v1748
      %v1750 = vmul.f32 %v1678, 1.442695
      %v1751 = vpow.pop %v1750
      %v1752 = vmul.f32 %v1679, 1.442695
      %v1753 = vpow.pop %v1752
      %v1754 = vmul.f32 %v1680, 1.442695
      %v1755 = vpow.pop %v1754
      %v1756 = vmul.f32 %v1681, 1.442695
      %v1757 = vpow.pop %v1756
      %v1758 = vmul.f32 %v1682, 1.442695
      %v1759 = vpow.pop %v1758
      %v1760 = vmul.f32 %v1683, 1.442695
      %v1761 = vpow.pop %v1760
      %v1762 = vmul.f32 %v1684, 1.442695
      %v1763 = vpow.pop %v1762
      %v1764 = vmul.f32 %v1685, 1.442695
      %v1765 = vpow.pop %v1764
      %v1766 = vmul.f32 %v1686, 1.442695
      %v1767 = vpow.pop %v1766
      %v1768 = vmul.f32 %v1687, 1.442695
      %v1769 = vpow.pop %v1768
      %v1770 = vmul.f32 %v1688, 1.442695
      %v1771 = vpow.pop %v1770
      %v1772 = vmul.f32 %v1689, 1.442695
      %v1773 = vpow.pop %v1772
      %v1774 = vmul.f32 %v1690, 1.442695
      %v1775 = vpow.pop %v1774
      %v1776 = vmul.f32 %v1691, 1.442695
      %v1777 = vpow.pop %v1776
      %v1778 = vmul.f32 %v1692, 1.442695
      %v1779 = vpow.pop %v1778
      %v1780 = vmul.f32 %v1693, 1.442695
      %v1781 = vpow.pop %v1780
      %v1782 = vmul.f32 %v1694, 1.442695
      %v1783 = vpow.pop %v1782
      %v1784 = vmul.f32 %v1695, 1.442695
      %v1785 = vpow.pop %v1784
      %v1786 = vmul.f32 %v1696, 1.442695
      %v1787 = vpow.pop %v1786
      %v1788 = vmul.f32 %v1697, 1.442695
      %v1789 = vpow.pop %v1788
      %v1790 = vmul.f32 %v1698, 1.442695
      %v1791 = vpow.pop %v1790
      %v1792 = vmul.f32 %v1699, 1.442695
      %v1793 = vpow.pop %v1792
      %v1794 = vmul.f32 %v1700, 1.442695
      %v1795 = vpow.pop %v1794
      %v1796 = vmul.f32 %v1701, 1.442695
      %v1797 = vpow.pop %v1796
      %v1798 = vmul.f32 %v1702, 1.442695
      %v1799 = vpow.pop %v1798
      %v1800 = vmul.f32 %v1703, 1.442695
      %v1801 = vpow.pop %v1800
      %v1802 = vmul.f32 %v1704, 1.442695
      %v1803 = vpow.pop %v1802
      %v1804 = vmul.f32 %v1705, 1.442695
      %v1805 = vpow.pop %v1804
      %v1806 = vmul.f32 %v1706, 1.442695
      %v1807 = vpow.pop %v1806
      %v1808 = vmul.f32 %v1707, 1.442695
      %v1809 = vpow.pop %v1808
      %v1810 = vmul.f32 %v1708, 1.442695
      %v1811 = vpow.pop %v1810
      %v1812 = vmul.f32 %v1709, 1.442695
      %v1813 = vpow.pop %v1812
      %v1814 = vmul.f32 %v1710, 1.442695
      %v1815 = vpow.pop %v1814
      %v1816 = vmul.f32 %v1711, 1.442695
      %v1817 = vpow.pop %v1816
      %v1818 = vmul.f32 %v1712, 1.442695
      %v1819 = vpow.pop %v1818
      %v1820 = vmul.f32 %v1713, 1.442695
      %v1821 = vpow.pop %v1820
      %v1822 = vmul.f32 %v1714, 1.442695
      %v1823 = vpow.pop %v1822
      %v1824 = vmul.f32 %v1715, 1.442695
      %v1825 = vpow.pop %v1824
      %v1826 = vmul.f32 %v1716, 1.442695
      %v1827 = vpow.pop %v1826
      %v1828 = vmul.f32 %v1717, 1.442695
      %v1829 = vpow.pop %v1828
      %v1830 = vmul.f32 %v1718, 1.442695
      %v1831 = vpow.pop %v1830
      %v1832 = vmul.f32 %v1719, 1.442695
      %v1833 = vpow.pop %v1832
      %v1834 = vmul.f32 %v1720, 1.442695
      %v1835 = vpow.pop %v1834
      %v1836 = vmul.f32 %v1721, 1.442695
      %v1837 = vpow.pop %v1836
      %v1838 = vmul.f32 %v1722, 1.442695
      %v1839 = vpow.pop %v1838
      %v1840 = vmul.f32 %v1723, 1.442695
      %v1841 = vpow.pop %v1840
      %v1842 = vmul.f32 %v1724, 1.442695
      %v1843 = vpow.pop %v1842
      %v1844 = vmul.f32 %v1725, 1.442695
      %v1845 = vpow.pop %v1844
      %v1846 = vmul.f32 %v1726, 1.442695
      %v1847 = vpow.pop %v1846
      %v1848 = vmul.f32 %v1727, 1.442695
      %v1849 = vpow.pop %v1848
      %v1850 = vmul.f32 %v1728, 1.442695
      %v1851 = vpow.pop %v1850
      %v1852 = vmul.f32 %v1729, 1.442695
      %v1853 = vpow.pop %v1852
      %v1854 = vmul.f32 %v1730, 1.442695
      %v1855 = vpow.pop %v1854
      %v1856 = vmul.f32 %v1731, 1.442695
      %v1857 = vpow.pop %v1856
      %v1858 = vmul.f32 %v1732, 1.442695
      %v1859 = vpow.pop %v1858
      %v1860 = vmul.f32 %v1733, 1.442695
      %v1861 = vpow.pop %v1860
      %v1862 = vadd.f32 %v1735, %v1737
      %1863 = vadd.xlane.f32.xlu0 %v1862
      %v1864 = vpop.xlane.xlu0 %1863
      %v1865 = vadd.f32 %v1739, %v1741
      %1866 = vadd.xlane.f32.xlu0 %v1865
      %v1867 = vpop.xlane.xlu0 %1866
      %v1868 = vadd.f32 %v1743, %v1745
      %1869 = vadd.xlane.f32.xlu0 %v1868
      %v1870 = vpop.xlane.xlu0 %1869
      %v1871 = vadd.f32 %v1747, %v1749
      %1872 = vadd.xlane.f32.xlu0 %v1871
      %v1873 = vpop.xlane.xlu0 %1872
      %v1874 = vadd.f32 %v1751, %v1753
      %1875 = vadd.xlane.f32.xlu0 %v1874
      %v1876 = vpop.xlane.xlu0 %1875
      %v1877 = vadd.f32 %v1755, %v1757
      %1878 = vadd.xlane.f32.xlu0 %v1877
      %v1879 = vpop.xlane.xlu0 %1878
      %v1880 = vadd.f32 %v1759, %v1761
      %1881 = vadd.xlane.f32.xlu0 %v1880
      %v1882 = vpop.xlane.xlu0 %1881
      %v1883 = vadd.f32 %v1763, %v1765
      %1884 = vadd.xlane.f32.xlu0 %v1883
      %v1885 = vpop.xlane.xlu0 %1884
      %v1886 = vadd.f32 %v1767, %v1769
      %1887 = vadd.xlane.f32.xlu0 %v1886
      %v1888 = vpop.xlane.xlu0 %1887
      %v1889 = vadd.f32 %v1771, %v1773
      %1890 = vadd.xlane.f32.xlu0 %v1889
      %v1891 = vpop.xlane.xlu0 %1890
      %v1892 = vadd.f32 %v1775, %v1777
      %1893 = vadd.xlane.f32.xlu0 %v1892
      %v1894 = vpop.xlane.xlu0 %1893
      %v1895 = vadd.f32 %v1779, %v1781
      %1896 = vadd.xlane.f32.xlu0 %v1895
      %v1897 = vpop.xlane.xlu0 %1896
      %v1898 = vadd.f32 %v1783, %v1785
      %1899 = vadd.xlane.f32.xlu0 %v1898
      %v1900 = vpop.xlane.xlu0 %1899
      %v1901 = vadd.f32 %v1787, %v1789
      %1902 = vadd.xlane.f32.xlu0 %v1901
      %v1903 = vpop.xlane.xlu0 %1902
      %v1904 = vadd.f32 %v1791, %v1793
      %1905 = vadd.xlane.f32.xlu0 %v1904
      %v1906 = vpop.xlane.xlu0 %1905
      %v1907 = vadd.f32 %v1795, %v1797
      %1908 = vadd.xlane.f32.xlu0 %v1907
      %v1909 = vpop.xlane.xlu0 %1908
      %v1910 = vadd.f32 %v1799, %v1801
      %1911 = vadd.xlane.f32.xlu0 %v1910
      %v1912 = vpop.xlane.xlu0 %1911
      %v1913 = vadd.f32 %v1803, %v1805
      %1914 = vadd.xlane.f32.xlu0 %v1913
      %v1915 = vpop.xlane.xlu0 %1914
      %v1916 = vadd.f32 %v1807, %v1809
      %1917 = vadd.xlane.f32.xlu0 %v1916
      %v1918 = vpop.xlane.xlu0 %1917
      %v1919 = vadd.f32 %v1811, %v1813
      %1920 = vadd.xlane.f32.xlu0 %v1919
      %v1921 = vpop.xlane.xlu0 %1920
      %v1922 = vadd.f32 %v1815, %v1817
      %1923 = vadd.xlane.f32.xlu0 %v1922
      %v1924 = vpop.xlane.xlu0 %1923
      %v1925 = vadd.f32 %v1819, %v1821
      %1926 = vadd.xlane.f32.xlu0 %v1925
      %v1927 = vpop.xlane.xlu0 %1926
      %v1928 = vadd.f32 %v1823, %v1825
      %1929 = vadd.xlane.f32.xlu0 %v1928
      %v1930 = vpop.xlane.xlu0 %1929
      %v1931 = vadd.f32 %v1827, %v1829
      %1932 = vadd.xlane.f32.xlu0 %v1931
      %v1933 = vpop.xlane.xlu0 %1932
      %v1934 = vadd.f32 %v1831, %v1833
      %1935 = vadd.xlane.f32.xlu0 %v1934
      %v1936 = vpop.xlane.xlu0 %1935
      %v1937 = vadd.f32 %v1835, %v1837
      %1938 = vadd.xlane.f32.xlu0 %v1937
      %v1939 = vpop.xlane.xlu0 %1938
      %v1940 = vadd.f32 %v1839, %v1841
      %1941 = vadd.xlane.f32.xlu0 %v1940
      %v1942 = vpop.xlane.xlu0 %1941
      %v1943 = vadd.f32 %v1843, %v1845
      %1944 = vadd.xlane.f32.xlu0 %v1943
      %v1945 = vpop.xlane.xlu0 %1944
      %v1946 = vadd.f32 %v1847, %v1849
      %1947 = vadd.xlane.f32.xlu0 %v1946
      %v1948 = vpop.xlane.xlu0 %1947
      %v1949 = vadd.f32 %v1851, %v1853
      %1950 = vadd.xlane.f32.xlu0 %v1949
      %v1951 = vpop.xlane.xlu0 %1950
      %v1952 = vadd.f32 %v1855, %v1857
      %1953 = vadd.xlane.f32.xlu0 %v1952
      %v1954 = vpop.xlane.xlu0 %1953
      %v1955 = vadd.f32 %v1859, %v1861
      %1956 = vadd.xlane.f32.xlu0 %v1955
      %v1957 = vpop.xlane.xlu0 %1956
      %v1958 = vrcp.pop %v1864
      %v1959 = vrcp.pop %v1867
      %v1960 = vrcp.pop %v1870
      %v1961 = vrcp.pop %v1873
      %v1962 = vrcp.pop %v1876
      %v1963 = vrcp.pop %v1879
      %v1964 = vrcp.pop %v1882
      %v1965 = vrcp.pop %v1885
      %v1966 = vrcp.pop %v1888
      %v1967 = vrcp.pop %v1891
      %v1968 = vrcp.pop %v1894
      %v1969 = vrcp.pop %v1897
      %v1970 = vrcp.pop %v1900
      %v1971 = vrcp.pop %v1903
      %v1972 = vrcp.pop %v1906
      %v1973 = vrcp.pop %v1909
      %v1974 = vrcp.pop %v1912
      %v1975 = vrcp.pop %v1915
      %v1976 = vrcp.pop %v1918
      %v1977 = vrcp.pop %v1921
      %v1978 = vrcp.pop %v1924
      %v1979 = vrcp.pop %v1927
      %v1980 = vrcp.pop %v1930
      %v1981 = vrcp.pop %v1933
      %v1982 = vrcp.pop %v1936
      %v1983 = vrcp.pop %v1939
      %v1984 = vrcp.pop %v1942
      %v1985 = vrcp.pop %v1945
      %v1986 = vrcp.pop %v1948
      %v1987 = vrcp.pop %v1951
      %v1988 = vrcp.pop %v1954
      %v1989 = vrcp.pop %v1957
      %v1990 = vmul.f32 %v1735, %v1958
      %v1991 = vmul.f32 %v1737, %v1958
      %v1992 = vmul.f32 %v1739, %v1959
      %v1993 = vmul.f32 %v1741, %v1959
      %v1994 = vmul.f32 %v1743, %v1960
      %v1995 = vmul.f32 %v1745, %v1960
      %v1996 = vmul.f32 %v1747, %v1961
      %v1997 = vmul.f32 %v1749, %v1961
      %v1998 = vmul.f32 %v1751, %v1962
      %v1999 = vmul.f32 %v1753, %v1962
      %v2000 = vmul.f32 %v1755, %v1963
      %v2001 = vmul.f32 %v1757, %v1963
      %v2002 = vmul.f32 %v1759, %v1964
      %v2003 = vmul.f32 %v1761, %v1964
      %v2004 = vmul.f32 %v1763, %v1965
      %v2005 = vmul.f32 %v1765, %v1965
      %v2006 = vmul.f32 %v1767, %v1966
      %v2007 = vmul.f32 %v1769, %v1966
      %v2008 = vmul.f32 %v1771, %v1967
      %v2009 = vmul.f32 %v1773, %v1967
      %v2010 = vmul.f32 %v1775, %v1968
      %v2011 = vmul.f32 %v1777, %v1968
      %v2012 = vmul.f32 %v1779, %v1969
      %v2013 = vmul.f32 %v1781, %v1969
      %v2014 = vmul.f32 %v1783, %v1970
      %v2015 = vmul.f32 %v1785, %v1970
      %v2016 = vmul.f32 %v1787, %v1971
      %v2017 = vmul.f32 %v1789, %v1971
      %v2018 = vmul.f32 %v1791, %v1972
      %v2019 = vmul.f32 %v1793, %v1972
      %v2020 = vmul.f32 %v1795, %v1973
      %v2021 = vmul.f32 %v1797, %v1973
      %v2022 = vmul.f32 %v1799, %v1974
      %v2023 = vmul.f32 %v1801, %v1974
      %v2024 = vmul.f32 %v1803, %v1975
      %v2025 = vmul.f32 %v1805, %v1975
      %v2026 = vmul.f32 %v1807, %v1976
      %v2027 = vmul.f32 %v1809, %v1976
      %v2028 = vmul.f32 %v1811, %v1977
      %v2029 = vmul.f32 %v1813, %v1977
      %v2030 = vmul.f32 %v1815, %v1978
      %v2031 = vmul.f32 %v1817, %v1978
      %v2032 = vmul.f32 %v1819, %v1979
      %v2033 = vmul.f32 %v1821, %v1979
      %v2034 = vmul.f32 %v1823, %v1980
      %v2035 = vmul.f32 %v1825, %v1980
      %v2036 = vmul.f32 %v1827, %v1981
      %v2037 = vmul.f32 %v1829, %v1981
      %v2038 = vmul.f32 %v1831, %v1982
      %v2039 = vmul.f32 %v1833, %v1982
      %v2040 = vmul.f32 %v1835, %v1983
      %v2041 = vmul.f32 %v1837, %v1983
      %v2042 = vmul.f32 %v1839, %v1984
      %v2043 = vmul.f32 %v1841, %v1984
      %v2044 = vmul.f32 %v1843, %v1985
      %v2045 = vmul.f32 %v1845, %v1985
      %v2046 = vmul.f32 %v1847, %v1986
      %v2047 = vmul.f32 %v1849, %v1986
      %v2048 = vmul.f32 %v1851, %v1987
      %v2049 = vmul.f32 %v1853, %v1987
      %v2050 = vmul.f32 %v1855, %v1988
      %v2051 = vmul.f32 %v1857, %v1988
      %v2052 = vmul.f32 %v1859, %v1989
      %v2053 = vmul.f32 %v1861, %v1989
      %v2054 = vpack.c.bf16 %v1992, %v1990
      %v2055 = vpack.c.bf16 %v1993, %v1991
      %v2056 = vpack.c.bf16 %v1996, %v1994
      %v2057 = vpack.c.bf16 %v1997, %v1995
      %v2058 = vpack.c.bf16 %v2000, %v1998
      %v2059 = vpack.c.bf16 %v2001, %v1999
      %v2060 = vpack.c.bf16 %v2004, %v2002
      %v2061 = vpack.c.bf16 %v2005, %v2003
      %v2062 = vpack.c.bf16 %v2008, %v2006
      %v2063 = vpack.c.bf16 %v2009, %v2007
      %v2064 = vpack.c.bf16 %v2012, %v2010
      %v2065 = vpack.c.bf16 %v2013, %v2011
      %v2066 = vpack.c.bf16 %v2016, %v2014
      %v2067 = vpack.c.bf16 %v2017, %v2015
      %v2068 = vpack.c.bf16 %v2020, %v2018
      %v2069 = vpack.c.bf16 %v2021, %v2019
      %v2070 = vpack.c.bf16 %v2024, %v2022
      %v2071 = vpack.c.bf16 %v2025, %v2023
      %v2072 = vpack.c.bf16 %v2028, %v2026
      %v2073 = vpack.c.bf16 %v2029, %v2027
      %v2074 = vpack.c.bf16 %v2032, %v2030
      %v2075 = vpack.c.bf16 %v2033, %v2031
      %v2076 = vpack.c.bf16 %v2036, %v2034
      %v2077 = vpack.c.bf16 %v2037, %v2035
      %v2078 = vpack.c.bf16 %v2040, %v2038
      %v2079 = vpack.c.bf16 %v2041, %v2039
      %v2080 = vpack.c.bf16 %v2044, %v2042
      %v2081 = vpack.c.bf16 %v2045, %v2043
      %v2082 = vpack.c.bf16 %v2048, %v2046
      %v2083 = vpack.c.bf16 %v2049, %v2047
      %v2084 = vpack.c.bf16 %v2052, %v2050
      %v2085 = vpack.c.bf16 %v2053, %v2051
      %v2086 = vpack.c.bf16 %v1162, %v1159
      %v2087 = vpack.c.bf16 %v1170, %v1167
      %v2088 = vpack.c.bf16 %v1178, %v1175
      %v2089 = vpack.c.bf16 %v1186, %v1183
      %v2090 = vpack.c.bf16 %v1194, %v1191
      %v2091 = vpack.c.bf16 %v1202, %v1199
      %v2092 = vpack.c.bf16 %v1210, %v1207
      %v2093 = vpack.c.bf16 %v1218, %v1215
      %v2094 = vpack.c.bf16 %v1226, %v1223
      %v2095 = vpack.c.bf16 %v1234, %v1231
      %v2096 = vpack.c.bf16 %v1242, %v1239
      %v2097 = vpack.c.bf16 %v1250, %v1247
      %v2098 = vpack.c.bf16 %v1258, %v1255
      %v2099 = vpack.c.bf16 %v1266, %v1263
      %v2100 = vpack.c.bf16 %v1274, %v1271
      %v2101 = vpack.c.bf16 %v1282, %v1279
      %2102 = vmatprep.subr.bf16.mxu0 0
      %2103 = vmatpush1.bf16.msra.mxu0 %v2086
      %2104 = vmatprep.subr.bf16.mxu0 0
      %2105 = vmatpush1.bf16.msra.mxu0 %v2087
      %2106 = vmatprep.subr.bf16.mxu0 0
      %2107 = vmatpush1.bf16.msra.mxu0 %v2088
      %2108 = vmatprep.subr.bf16.mxu0 0
      %2109 = vmatpush1.bf16.msra.mxu0 %v2089
      %2110 = vmatprep.subr.bf16.mxu0 0
      %2111 = vmatpush1.bf16.msra.mxu0 %v2090
      %2112 = vmatprep.subr.bf16.mxu0 0
      %2113 = vmatpush1.bf16.msra.mxu0 %v2091
      %2114 = vmatprep.subr.bf16.mxu0 0
      %2115 = vmatpush1.bf16.msra.mxu0 %v2092
      %2116 = vmatprep.subr.bf16.mxu0 0
      %2117 = vmatpush1.bf16.msra.mxu0 %v2093
      %2118 = vmatprep.subr.bf16.mxu0 0
      %2119 = vmatpush1.bf16.msra.mxu0 %v2094
      %2120 = vmatprep.subr.bf16.mxu0 0
      %2121 = vmatpush1.bf16.msra.mxu0 %v2095
      %2122 = vmatprep.subr.bf16.mxu0 0
      %2123 = vmatpush1.bf16.msra.mxu0 %v2096
      %2124 = vmatprep.subr.bf16.mxu0 0
      %2125 = vmatpush1.bf16.msra.mxu0 %v2097
      %2126 = vmatprep.subr.bf16.mxu0 0
      %2127 = vmatpush1.bf16.msra.mxu0 %v2098
      %2128 = vmatprep.subr.bf16.mxu0 0
      %2129 = vmatpush1.bf16.msra.mxu0 %v2099
      %2130 = vmatprep.subr.bf16.mxu0 0
      %2131 = vmatpush1.bf16.msra.mxu0 %v2100
      %2132 = vmatprep.subr.bf16.mxu0 0
      %2133 = vmatpush1.bf16.msra.mxu0 %v2101
      %2134 = vmatprep.mubr.bf16.mxu0 %v2055
      %2135 = vmatmul.mubr.bf16.gmra.mrb[0].mxu0 %v2054
      %v2136 = vpop.f32.mrb[0].mxu0
      %v2137 = vadd.f32 0.0, %v2136
      %v2138 = vpop.f32.mrb[0].mxu0
      %v2139 = vpop.f32.mrb[0].mxu0
      %v2140 = vadd.f32 0.0, %v2139
      %v2141 = vpop.f32.mrb[0].mxu0
      %2142 = vmatprep.mubr.bf16.mxu0 %v2057
      %2143 = vmatmul.mubr.bf16.gmra.mrb[0].mxu0 %v2056
      %v2144 = vpop.f32.mrb[0].mxu0
      %v2145 = vadd.f32 0.0, %v2144
      %v2146 = vpop.f32.mrb[0].mxu0
      %v2147 = vpop.f32.mrb[0].mxu0
      %v2148 = vadd.f32 0.0, %v2147
      %v2149 = vpop.f32.mrb[0].mxu0
      %2150 = vmatprep.mubr.bf16.mxu0 %v2059
      %2151 = vmatmul.mubr.bf16.gmra.mrb[0].mxu0 %v2058
      %v2152 = vpop.f32.mrb[0].mxu0
      %v2153 = vadd.f32 0.0, %v2152
      %v2154 = vpop.f32.mrb[0].mxu0
      %v2155 = vpop.f32.mrb[0].mxu0
      %v2156 = vadd.f32 0.0, %v2155
      %v2157 = vpop.f32.mrb[0].mxu0
      %2158 = vmatprep.mubr.bf16.mxu0 %v2061
      %2159 = vmatmul.mubr.bf16.gmra.mrb[0].mxu0 %v2060
      %v2160 = vpop.f32.mrb[0].mxu0
      %v2161 = vadd.f32 0.0, %v2160
      %v2162 = vpop.f32.mrb[0].mxu0
      %v2163 = vpop.f32.mrb[0].mxu0
      %v2164 = vadd.f32 0.0, %v2163
      %v2165 = vpop.f32.mrb[0].mxu0
      %2166 = vmatprep.mubr.bf16.mxu0 %v2063
      %2167 = vmatmul.mubr.bf16.gmra.mrb[0].mxu0 %v2062
      %v2168 = vpop.f32.mrb[0].mxu0
      %v2169 = vadd.f32 0.0, %v2168
      %v2170 = vpop.f32.mrb[0].mxu0
      %v2171 = vpop.f32.mrb[0].mxu0
      %v2172 = vadd.f32 0.0, %v2171
      %v2173 = vpop.f32.mrb[0].mxu0
      %2174 = vmatprep.mubr.bf16.mxu0 %v2065
      %2175 = vmatmul.mubr.bf16.gmra.mrb[0].mxu0 %v2064
      %v2176 = vpop.f32.mrb[0].mxu0
      %v2177 = vadd.f32 0.0, %v2176
      %v2178 = vpop.f32.mrb[0].mxu0
      %v2179 = vpop.f32.mrb[0].mxu0
      %v2180 = vadd.f32 0.0, %v2179
      %v2181 = vpop.f32.mrb[0].mxu0
      %2182 = vmatprep.mubr.bf16.mxu0 %v2067
      %2183 = vmatmul.mubr.bf16.gmra.mrb[0].mxu0 %v2066
      %v2184 = vpop.f32.mrb[0].mxu0
      %v2185 = vadd.f32 0.0, %v2184
      %v2186 = vpop.f32.mrb[0].mxu0
      %v2187 = vpop.f32.mrb[0].mxu0
      %v2188 = vadd.f32 0.0, %v2187
      %v2189 = vpop.f32.mrb[0].mxu0
      %2190 = vmatprep.mubr.bf16.mxu0 %v2069
      %2191 = vmatmul.mubr.bf16.gmra.mrb[0].mxu0 %v2068
      %v2192 = vpop.f32.mrb[0].mxu0
      %v2193 = vadd.f32 0.0, %v2192
      %v2194 = vpop.f32.mrb[0].mxu0
      %v2195 = vpop.f32.mrb[0].mxu0
      %v2196 = vadd.f32 0.0, %v2195
      %v2197 = vpop.f32.mrb[0].mxu0
      %2198 = vmatprep.mubr.bf16.mxu0 %v2071
      %2199 = vmatmul.mubr.bf16.gmra.mrb[0].mxu0 %v2070
      %v2200 = vpop.f32.mrb[0].mxu0
      %v2201 = vadd.f32 0.0, %v2200
      %v2202 = vpop.f32.mrb[0].mxu0
      %v2203 = vpop.f32.mrb[0].mxu0
      %v2204 = vadd.f32 0.0, %v2203
      %v2205 = vpop.f32.mrb[0].mxu0
      %2206 = vmatprep.mubr.bf16.mxu0 %v2073
      %2207 = vmatmul.mubr.bf16.gmra.mrb[0].mxu0 %v2072
      %v2208 = vpop.f32.mrb[0].mxu0
      %v2209 = vadd.f32 0.0, %v2208
      %v2210 = vpop.f32.mrb[0].mxu0
      %v2211 = vpop.f32.mrb[0].mxu0
      %v2212 = vadd.f32 0.0, %v2211
      %v2213 = vpop.f32.mrb[0].mxu0
      %2214 = vmatprep.mubr.bf16.mxu0 %v2075
      %2215 = vmatmul.mubr.bf16.gmra.mrb[0].mxu0 %v2074
      %v2216 = vpop.f32.mrb[0].mxu0
      %v2217 = vadd.f32 0.0, %v2216
      %v2218 = vpop.f32.mrb[0].mxu0
      %v2219 = vpop.f32.mrb[0].mxu0
      %v2220 = vadd.f32 0.0, %v2219
      %v2221 = vpop.f32.mrb[0].mxu0
      %2222 = vmatprep.mubr.bf16.mxu0 %v2077
      %2223 = vmatmul.mubr.bf16.gmra.mrb[0].mxu0 %v2076
      %v2224 = vpop.f32.mrb[0].mxu0
      %v2225 = vadd.f32 0.0, %v2224
      %v2226 = vpop.f32.mrb[0].mxu0
      %v2227 = vpop.f32.mrb[0].mxu0
      %v2228 = vadd.f32 0.0, %v2227
      %v2229 = vpop.f32.mrb[0].mxu0
      %2230 = vmatprep.mubr.bf16.mxu0 %v2079
      %2231 = vmatmul.mubr.bf16.gmra.mrb[0].mxu0 %v2078
      %v2232 = vpop.f32.mrb[0].mxu0
      %v2233 = vadd.f32 0.0, %v2232
      %v2234 = vpop.f32.mrb[0].mxu0
      %v2235 = vpop.f32.mrb[0].mxu0
      %v2236 = vadd.f32 0.0, %v2235
      %v2237 = vpop.f32.mrb[0].mxu0
      %2238 = vmatprep.mubr.bf16.mxu0 %v2081
      %2239 = vmatmul.mubr.bf16.gmra.mrb[0].mxu0 %v2080
      %v2240 = vpop.f32.mrb[0].mxu0
      %v2241 = vadd.f32 0.0, %v2240
      %v2242 = vpop.f32.mrb[0].mxu0
      %v2243 = vpop.f32.mrb[0].mxu0
      %v2244 = vadd.f32 0.0, %v2243
      %v2245 = vpop.f32.mrb[0].mxu0
      %2246 = vmatprep.mubr.bf16.mxu0 %v2083
      %2247 = vmatmul.mubr.bf16.gmra.mrb[0].mxu0 %v2082
      %v2248 = vpop.f32.mrb[0].mxu0
      %v2249 = vadd.f32 0.0, %v2248
      %v2250 = vpop.f32.mrb[0].mxu0
      %v2251 = vpop.f32.mrb[0].mxu0
      %v2252 = vadd.f32 0.0, %v2251
      %v2253 = vpop.f32.mrb[0].mxu0
      %2254 = vmatprep.mubr.bf16.mxu0 %v2085
      %2255 = vmatmul.mubr.bf16.gmra.mrb[0].mxu0 %v2084
      %v2256 = vpop.f32.mrb[0].mxu0
      %v2257 = vadd.f32 0.0, %v2256
      %v2258 = vpop.f32.mrb[0].mxu0
      %v2259 = vpop.f32.mrb[0].mxu0
      %v2260 = vadd.f32 0.0, %v2259
      %v2261 = vpop.f32.mrb[0].mxu0
      %2262 = vdwg.mxu0
      %v2263 = vpack.c.bf16 %v2140, %v2137
      %v2264 = vpack.c.bf16 %v2148, %v2145
      %v2265 = vpack.c.bf16 %v2156, %v2153
      %v2266 = vpack.c.bf16 %v2164, %v2161
      %v2267 = vpack.c.bf16 %v2172, %v2169
      %v2268 = vpack.c.bf16 %v2180, %v2177
      %v2269 = vpack.c.bf16 %v2188, %v2185
      %v2270 = vpack.c.bf16 %v2196, %v2193
      %v2271 = vpack.c.bf16 %v2204, %v2201
      %v2272 = vpack.c.bf16 %v2212, %v2209
      %v2273 = vpack.c.bf16 %v2220, %v2217
      %v2274 = vpack.c.bf16 %v2228, %v2225
      %v2275 = vpack.c.bf16 %v2236, %v2233
      %v2276 = vpack.c.bf16 %v2244, %v2241
      %v2277 = vpack.c.bf16 %v2252, %v2249
      %v2278 = vpack.c.bf16 %v2260, %v2257
      %v2279 = vld [vmem:[%s4] sm:$0xff]
      %v2280 = vld [vmem:[%s4 + $0x8] sm:$0xff]
      %v2281 = vld [vmem:[%s4 + $0x10] sm:$0xff]
      %v2282 = vld [vmem:[%s4 + $0x18] sm:$0xff]
      %v2283 = vld [vmem:[%s4 + $0x20] sm:$0xff]
      %v2284 = vld [vmem:[%s4 + $0x28] sm:$0xff]
      %v2285 = vld [vmem:[%s4 + $0x30] sm:$0xff]
      %v2286 = vld [vmem:[%s4 + $0x38] sm:$0xff]
      %v2287 = vld [vmem:[%s4 + $0x40] sm:$0xff]
      %v2288 = vld [vmem:[%s4 + $0x48] sm:$0xff]
      %v2289 = vld [vmem:[%s4 + $0x50] sm:$0xff]
      %v2290 = vld [vmem:[%s4 + $0x58] sm:$0xff]
      %v2291 = vld [vmem:[%s4 + $0x60] sm:$0xff]
      %v2292 = vld [vmem:[%s4 + $0x68] sm:$0xff]
      %v2293 = vld [vmem:[%s4 + $0x70] sm:$0xff]
      %v2294 = vld [vmem:[%s4 + $0x78] sm:$0xff]
      %v2311 = vunpack.c.l.b16 %v2279
      %v2312 = vunpack.c.h.b16 %v2279
      %v2313 = vunpack.c.l.b16 %v2280
      %v2314 = vunpack.c.h.b16 %v2280
      %v2315 = vunpack.c.l.b16 %v2281
      %v2316 = vunpack.c.h.b16 %v2281
      %v2317 = vunpack.c.l.b16 %v2282
      %v2318 = vunpack.c.h.b16 %v2282
      %v2319 = vunpack.c.l.b16 %v2283
      %v2320 = vunpack.c.h.b16 %v2283
      %v2321 = vunpack.c.l.b16 %v2284
      %v2322 = vunpack.c.h.b16 %v2284
      %v2323 = vunpack.c.l.b16 %v2285
      %v2324 = vunpack.c.h.b16 %v2285
      %v2325 = vunpack.c.l.b16 %v2286
      %v2326 = vunpack.c.h.b16 %v2286
      %v2327 = vunpack.c.l.b16 %v2287
      %v2328 = vunpack.c.h.b16 %v2287
      %v2329 = vunpack.c.l.b16 %v2288
      %v2330 = vunpack.c.h.b16 %v2288
      %v2331 = vunpack.c.l.b16 %v2289
      %v2332 = vunpack.c.h.b16 %v2289
      %v2333 = vunpack.c.l.b16 %v2290
      %v2334 = vunpack.c.h.b16 %v2290
      %v2335 = vunpack.c.l.b16 %v2291
      %v2336 = vunpack.c.h.b16 %v2291
      %v2337 = vunpack.c.l.b16 %v2292
      %v2338 = vunpack.c.h.b16 %v2292
      %v2339 = vunpack.c.l.b16 %v2293
      %v2340 = vunpack.c.h.b16 %v2293
      %v2341 = vunpack.c.l.b16 %v2294
      %v2342 = vunpack.c.h.b16 %v2294
      %v2343 = vpack.c.b16 %v2313, %v2311
      %v2344 = vpack.c.b16 %v2314, %v2312
      %v2345 = vpack.c.b16 %v2317, %v2315
      %v2346 = vpack.c.b16 %v2318, %v2316
      %v2347 = vpack.c.b16 %v2321, %v2319
      %v2348 = vpack.c.b16 %v2322, %v2320
      %v2349 = vpack.c.b16 %v2325, %v2323
      %v2350 = vpack.c.b16 %v2326, %v2324
      %v2351 = vpack.c.b16 %v2329, %v2327
      %v2352 = vpack.c.b16 %v2330, %v2328
      %v2353 = vpack.c.b16 %v2333, %v2331
      %v2354 = vpack.c.b16 %v2334, %v2332
      %v2355 = vpack.c.b16 %v2337, %v2335
      %v2356 = vpack.c.b16 %v2338, %v2336
      %v2357 = vpack.c.b16 %v2341, %v2339
      %v2358 = vpack.c.b16 %v2342, %v2340
      %2375 = vmatprep.subr.bf16.mxu0 %v2344
      %2376 = vmatpush1.bf16.msra.mxu0 %v2343
      %2377 = vmatprep.subr.bf16.mxu0 %v2346
      %2378 = vmatpush1.bf16.msra.mxu0 %v2345
      %2379 = vmatprep.subr.bf16.mxu0 %v2348
      %2380 = vmatpush1.bf16.msra.mxu0 %v2347
      %2381 = vmatprep.subr.bf16.mxu0 %v2350
      %2382 = vmatpush1.bf16.msra.mxu0 %v2349
      %2383 = vmatprep.subr.bf16.mxu0 %v2352
      %2384 = vmatpush1.bf16.msra.mxu0 %v2351
      %2385 = vmatprep.subr.bf16.mxu0 %v2354
      %2386 = vmatpush1.bf16.msra.mxu0 %v2353
      %2387 = vmatprep.subr.bf16.mxu0 %v2356
      %2388 = vmatpush1.bf16.msra.mxu0 %v2355
      %2389 = vmatprep.subr.bf16.mxu0 %v2358
      %2390 = vmatpush1.bf16.msra.mxu0 %v2357
      %2391 = vmatprep.subr.bf16.mxu0 0
      %2392 = vmatpush1.bf16.msra.mxu0 0
      %2393 = vmatprep.subr.bf16.mxu0 0
      %2394 = vmatpush1.bf16.msra.mxu0 0
      %2395 = vmatprep.subr.bf16.mxu0 0
      %2396 = vmatpush1.bf16.msra.mxu0 0
      %2397 = vmatprep.subr.bf16.mxu0 0
      %2398 = vmatpush1.bf16.msra.mxu0 0
      %2399 = vmatprep.subr.bf16.mxu0 0
      %2400 = vmatpush1.bf16.msra.mxu0 0
      %2401 = vmatprep.subr.bf16.mxu0 0
      %2402 = vmatpush1.bf16.msra.mxu0 0
      %2403 = vmatprep.subr.bf16.mxu0 0
      %2404 = vmatpush1.bf16.msra.mxu0 0
      %2405 = vmatprep.subr.bf16.mxu0 0
      %2406 = vmatpush1.bf16.msra.mxu0 0
      %2407 = vmatprep.mubr.bf16.mxu0 0
      %2408 = vmatmul.mubr.bf16.gmra.mrb[0].mxu0 %v2263
      %v2409 = vpop.f32.mrb[0].mxu0
      %v2410 = vadd.f32 0.0, %v2409
      %v2411 = vpop.f32.mrb[0].mxu0
      %v2412 = vadd.f32 0.0, %v2411
      %v2413 = vpop.f32.mrb[0].mxu0
      %v2414 = vadd.f32 0.0, %v2413
      %v2415 = vpop.f32.mrb[0].mxu0
      %v2416 = vadd.f32 0.0, %v2415
      %2417 = vmatprep.mubr.bf16.mxu0 0
      %2418 = vmatmul.mubr.bf16.gmra.mrb[0].mxu0 %v2264
      %v2419 = vpop.f32.mrb[0].mxu0
      %v2420 = vadd.f32 0.0, %v2419
      %v2421 = vpop.f32.mrb[0].mxu0
      %v2422 = vadd.f32 0.0, %v2421
      %v2423 = vpop.f32.mrb[0].mxu0
      %v2424 = vadd.f32 0.0, %v2423
      %v2425 = vpop.f32.mrb[0].mxu0
      %v2426 = vadd.f32 0.0, %v2425
      %2427 = vmatprep.mubr.bf16.mxu0 0
      %2428 = vmatmul.mubr.bf16.gmra.mrb[0].mxu0 %v2265
      %v2429 = vpop.f32.mrb[0].mxu0
      %v2430 = vadd.f32 0.0, %v2429
      %v2431 = vpop.f32.mrb[0].mxu0
      %v2432 = vadd.f32 0.0, %v2431
      %v2433 = vpop.f32.mrb[0].mxu0
      %v2434 = vadd.f32 0.0, %v2433
      %v2435 = vpop.f32.mrb[0].mxu0
      %v2436 = vadd.f32 0.0, %v2435
      %2437 = vmatprep.mubr.bf16.mxu0 0
      %2438 = vmatmul.mubr.bf16.gmra.mrb[0].mxu0 %v2266
      %v2439 = vpop.f32.mrb[0].mxu0
      %v2440 = vadd.f32 0.0, %v2439
      %v2441 = vpop.f32.mrb[0].mxu0
      %v2442 = vadd.f32 0.0, %v2441
      %v2443 = vpop.f32.mrb[0].mxu0
      %v2444 = vadd.f32 0.0, %v2443
      %v2445 = vpop.f32.mrb[0].mxu0
      %v2446 = vadd.f32 0.0, %v2445
      %2447 = vmatprep.mubr.bf16.mxu0 0
      %2448 = vmatmul.mubr.bf16.gmra.mrb[0].mxu0 %v2267
      %v2449 = vpop.f32.mrb[0].mxu0
      %v2450 = vadd.f32 0.0, %v2449
      %v2451 = vpop.f32.mrb[0].mxu0
      %v2452 = vadd.f32 0.0, %v2451
      %v2453 = vpop.f32.mrb[0].mxu0
      %v2454 = vadd.f32 0.0, %v2453
      %v2455 = vpop.f32.mrb[0].mxu0
      %v2456 = vadd.f32 0.0, %v2455
      %2457 = vmatprep.mubr.bf16.mxu0 0
      %2458 = vmatmul.mubr.bf16.gmra.mrb[0].mxu0 %v2268
      %v2459 = vpop.f32.mrb[0].mxu0
      %v2460 = vadd.f32 0.0, %v2459
      %v2461 = vpop.f32.mrb[0].mxu0
      %v2462 = vadd.f32 0.0, %v2461
      %v2463 = vpop.f32.mrb[0].mxu0
      %v2464 = vadd.f32 0.0, %v2463
      %v2465 = vpop.f32.mrb[0].mxu0
      %v2466 = vadd.f32 0.0, %v2465
      %2467 = vmatprep.mubr.bf16.mxu0 0
      %2468 = vmatmul.mubr.bf16.gmra.mrb[0].mxu0 %v2269
      %v2469 = vpop.f32.mrb[0].mxu0
      %v2470 = vadd.f32 0.0, %v2469
      %v2471 = vpop.f32.mrb[0].mxu0
      %v2472 = vadd.f32 0.0, %v2471
      %v2473 = vpop.f32.mrb[0].mxu0
      %v2474 = vadd.f32 0.0, %v2473
      %v2475 = vpop.f32.mrb[0].mxu0
      %v2476 = vadd.f32 0.0, %v2475
      %2477 = vmatprep.mubr.bf16.mxu0 0
      %2478 = vmatmul.mubr.bf16.gmra.mrb[0].mxu0 %v2270
      %v2479 = vpop.f32.mrb[0].mxu0
      %v2480 = vadd.f32 0.0, %v2479
      %v2481 = vpop.f32.mrb[0].mxu0
      %v2482 = vadd.f32 0.0, %v2481
      %v2483 = vpop.f32.mrb[0].mxu0
      %v2484 = vadd.f32 0.0, %v2483
      %v2485 = vpop.f32.mrb[0].mxu0
      %v2486 = vadd.f32 0.0, %v2485
      %2487 = vmatprep.mubr.bf16.mxu0 0
      %2488 = vmatmul.mubr.bf16.gmra.mrb[0].mxu0 %v2271
      %v2489 = vpop.f32.mrb[0].mxu0
      %v2490 = vadd.f32 0.0, %v2489
      %v2491 = vpop.f32.mrb[0].mxu0
      %v2492 = vadd.f32 0.0, %v2491
      %v2493 = vpop.f32.mrb[0].mxu0
      %v2494 = vadd.f32 0.0, %v2493
      %v2495 = vpop.f32.mrb[0].mxu0
      %v2496 = vadd.f32 0.0, %v2495
      %2497 = vmatprep.mubr.bf16.mxu0 0
      %2498 = vmatmul.mubr.bf16.gmra.mrb[0].mxu0 %v2272
      %v2499 = vpop.f32.mrb[0].mxu0
      %v2500 = vadd.f32 0.0, %v2499
      %v2501 = vpop.f32.mrb[0].mxu0
      %v2502 = vadd.f32 0.0, %v2501
      %v2503 = vpop.f32.mrb[0].mxu0
      %v2504 = vadd.f32 0.0, %v2503
      %v2505 = vpop.f32.mrb[0].mxu0
      %v2506 = vadd.f32 0.0, %v2505
      %2507 = vmatprep.mubr.bf16.mxu0 0
      %2508 = vmatmul.mubr.bf16.gmra.mrb[0].mxu0 %v2273
      %v2509 = vpop.f32.mrb[0].mxu0
      %v2510 = vadd.f32 0.0, %v2509
      %v2511 = vpop.f32.mrb[0].mxu0
      %v2512 = vadd.f32 0.0, %v2511
      %v2513 = vpop.f32.mrb[0].mxu0
      %v2514 = vadd.f32 0.0, %v2513
      %v2515 = vpop.f32.mrb[0].mxu0
      %v2516 = vadd.f32 0.0, %v2515
      %2517 = vmatprep.mubr.bf16.mxu0 0
      %2518 = vmatmul.mubr.bf16.gmra.mrb[0].mxu0 %v2274
      %v2519 = vpop.f32.mrb[0].mxu0
      %v2520 = vadd.f32 0.0, %v2519
      %v2521 = vpop.f32.mrb[0].mxu0
      %v2522 = vadd.f32 0.0, %v2521
      %v2523 = vpop.f32.mrb[0].mxu0
      %v2524 = vadd.f32 0.0, %v2523
      %v2525 = vpop.f32.mrb[0].mxu0
      %v2526 = vadd.f32 0.0, %v2525
      %2527 = vmatprep.mubr.bf16.mxu0 0
      %2528 = vmatmul.mubr.bf16.gmra.mrb[0].mxu0 %v2275
      %v2529 = vpop.f32.mrb[0].mxu0
      %v2530 = vadd.f32 0.0, %v2529
      %v2531 = vpop.f32.mrb[0].mxu0
      %v2532 = vadd.f32 0.0, %v2531
      %v2533 = vpop.f32.mrb[0].mxu0
      %v2534 = vadd.f32 0.0, %v2533
      %v2535 = vpop.f32.mrb[0].mxu0
      %v2536 = vadd.f32 0.0, %v2535
      %2537 = vmatprep.mubr.bf16.mxu0 0
      %2538 = vmatmul.mubr.bf16.gmra.mrb[0].mxu0 %v2276
      %v2539 = vpop.f32.mrb[0].mxu0
      %v2540 = vadd.f32 0.0, %v2539
      %v2541 = vpop.f32.mrb[0].mxu0
      %v2542 = vadd.f32 0.0, %v2541
      %v2543 = vpop.f32.mrb[0].mxu0
      %v2544 = vadd.f32 0.0, %v2543
      %v2545 = vpop.f32.mrb[0].mxu0
      %v2546 = vadd.f32 0.0, %v2545
      %2547 = vmatprep.mubr.bf16.mxu0 0
      %2548 = vmatmul.mubr.bf16.gmra.mrb[0].mxu0 %v2277
      %v2549 = vpop.f32.mrb[0].mxu0
      %v2550 = vadd.f32 0.0, %v2549
      %v2551 = vpop.f32.mrb[0].mxu0
      %v2552 = vadd.f32 0.0, %v2551
      %v2553 = vpop.f32.mrb[0].mxu0
      %v2554 = vadd.f32 0.0, %v2553
      %v2555 = vpop.f32.mrb[0].mxu0
      %v2556 = vadd.f32 0.0, %v2555
      %2557 = vmatprep.mubr.bf16.mxu0 0
      %2558 = vmatmul.mubr.bf16.gmra.mrb[0].mxu0 %v2278
      %v2559 = vpop.f32.mrb[0].mxu0
      %v2560 = vadd.f32 0.0, %v2559
      %v2561 = vpop.f32.mrb[0].mxu0
      %v2562 = vadd.f32 0.0, %v2561
      %v2563 = vpop.f32.mrb[0].mxu0
      %v2564 = vadd.f32 0.0, %v2563
      %v2565 = vpop.f32.mrb[0].mxu0
      %v2566 = vadd.f32 0.0, %v2565
      %2567 = vdwg.mxu0
      %v2568 = vunpack.c.l.bf16 %v226
      %v2569 = vunpack.c.h.bf16 %v226
      %v2570 = vunpack.c.l.bf16 %v227
      %v2571 = vunpack.c.h.bf16 %v227
      %v2572 = vunpack.c.l.bf16 %v228
      %v2573 = vunpack.c.h.bf16 %v228
      %v2574 = vunpack.c.l.bf16 %v229
      %v2575 = vunpack.c.h.bf16 %v229
      %v2576 = vunpack.c.l.bf16 %v230
      %v2577 = vunpack.c.h.bf16 %v230
      %v2578 = vunpack.c.l.bf16 %v231
      %v2579 = vunpack.c.h.bf16 %v231
      %v2580 = vunpack.c.l.bf16 %v232
      %v2581 = vunpack.c.h.bf16 %v232
      %v2582 = vunpack.c.l.bf16 %v233
      %v2583 = vunpack.c.h.bf16 %v233
      %v2584 = vunpack.c.l.bf16 %v234
      %v2585 = vunpack.c.h.bf16 %v234
      %v2586 = vunpack.c.l.bf16 %v235
      %v2587 = vunpack.c.h.bf16 %v235
      %v2588 = vunpack.c.l.bf16 %v236
      %v2589 = vunpack.c.h.bf16 %v236
      %v2590 = vunpack.c.l.bf16 %v237
      %v2591 = vunpack.c.h.bf16 %v237
      %v2592 = vunpack.c.l.bf16 %v238
      %v2593 = vunpack.c.h.bf16 %v238
      %v2594 = vunpack.c.l.bf16 %v239
      %v2595 = vunpack.c.h.bf16 %v239
      %v2596 = vunpack.c.l.bf16 %v240
      %v2597 = vunpack.c.h.bf16 %v240
      %v2598 = vunpack.c.l.bf16 %v241
      %v2599 = vunpack.c.h.bf16 %v241
      %v2600 = vunpack.c.l.bf16 %v242
      %v2601 = vunpack.c.h.bf16 %v242
      %v2602 = vunpack.c.l.bf16 %v243
      %v2603 = vunpack.c.h.bf16 %v243
      %v2604 = vunpack.c.l.bf16 %v244
      %v2605 = vunpack.c.h.bf16 %v244
      %v2606 = vunpack.c.l.bf16 %v245
      %v2607 = vunpack.c.h.bf16 %v245
      %v2608 = vunpack.c.l.bf16 %v246
      %v2609 = vunpack.c.h.bf16 %v246
      %v2610 = vunpack.c.l.bf16 %v247
      %v2611 = vunpack.c.h.bf16 %v247
      %v2612 = vunpack.c.l.bf16 %v248
      %v2613 = vunpack.c.h.bf16 %v248
      %v2614 = vunpack.c.l.bf16 %v249
      %v2615 = vunpack.c.h.bf16 %v249
      %v2616 = vunpack.c.l.bf16 %v250
      %v2617 = vunpack.c.h.bf16 %v250
      %v2618 = vunpack.c.l.bf16 %v251
      %v2619 = vunpack.c.h.bf16 %v251
      %v2620 = vunpack.c.l.bf16 %v252
      %v2621 = vunpack.c.h.bf16 %v252
      %v2622 = vunpack.c.l.bf16 %v253
      %v2623 = vunpack.c.h.bf16 %v253
      %v2624 = vunpack.c.l.bf16 %v254
      %v2625 = vunpack.c.h.bf16 %v254
      %v2626 = vunpack.c.l.bf16 %v255
      %v2627 = vunpack.c.h.bf16 %v255
      %v2628 = vunpack.c.l.bf16 %v256
      %v2629 = vunpack.c.h.bf16 %v256
      %v2630 = vunpack.c.l.bf16 %v257
      %v2631 = vunpack.c.h.bf16 %v257
      %v2632 = vadd.f32 %v2568, %v2410
      %v2633 = vadd.f32 %v2569, %v2412
      %v2634 = vadd.f32 %v2570, %v2414
      %v2635 = vadd.f32 %v2571, %v2416
      %v2636 = vadd.f32 %v2572, %v2420
      %v2637 = vadd.f32 %v2573, %v2422
      %v2638 = vadd.f32 %v2574, %v2424
      %v2639 = vadd.f32 %v2575, %v2426
      %v2640 = vadd.f32 %v2576, %v2430
      %v2641 = vadd.f32 %v2577, %v2432
      %v2642 = vadd.f32 %v2578, %v2434
      %v2643 = vadd.f32 %v2579, %v2436
      %v2644 = vadd.f32 %v2580, %v2440
      %v2645 = vadd.f32 %v2581, %v2442
      %v2646 = vadd.f32 %v2582, %v2444
      %v2647 = vadd.f32 %v2583, %v2446
      %v2648 = vadd.f32 %v2584, %v2450
      %v2649 = vadd.f32 %v2585, %v2452
      %v2650 = vadd.f32 %v2586, %v2454
      %v2651 = vadd.f32 %v2587, %v2456
      %v2652 = vadd.f32 %v2588, %v2460
      %v2653 = vadd.f32 %v2589, %v2462
      %v2654 = vadd.f32 %v2590, %v2464
      %v2655 = vadd.f32 %v2591, %v2466
      %v2656 = vadd.f32 %v2592, %v2470
      %v2657 = vadd.f32 %v2593, %v2472
      %v2658 = vadd.f32 %v2594, %v2474
      %v2659 = vadd.f32 %v2595, %v2476
      %v2660 = vadd.f32 %v2596, %v2480
      %v2661 = vadd.f32 %v2597, %v2482
      %v2662 = vadd.f32 %v2598, %v2484
      %v2663 = vadd.f32 %v2599, %v2486
      %v2664 = vadd.f32 %v2600, %v2490
      %v2665 = vadd.f32 %v2601, %v2492
      %v2666 = vadd.f32 %v2602, %v2494
      %v2667 = vadd.f32 %v2603, %v2496
      %v2668 = vadd.f32 %v2604, %v2500
      %v2669 = vadd.f32 %v2605, %v2502
      %v2670 = vadd.f32 %v2606, %v2504
      %v2671 = vadd.f32 %v2607, %v2506
      %v2672 = vadd.f32 %v2608, %v2510
      %v2673 = vadd.f32 %v2609, %v2512
      %v2674 = vadd.f32 %v2610, %v2514
      %v2675 = vadd.f32 %v2611, %v2516
      %v2676 = vadd.f32 %v2612, %v2520
      %v2677 = vadd.f32 %v2613, %v2522
      %v2678 = vadd.f32 %v2614, %v2524
      %v2679 = vadd.f32 %v2615, %v2526
      %v2680 = vadd.f32 %v2616, %v2530
      %v2681 = vadd.f32 %v2617, %v2532
      %v2682 = vadd.f32 %v2618, %v2534
      %v2683 = vadd.f32 %v2619, %v2536
      %v2684 = vadd.f32 %v2620, %v2540
      %v2685 = vadd.f32 %v2621, %v2542
      %v2686 = vadd.f32 %v2622, %v2544
      %v2687 = vadd.f32 %v2623, %v2546
      %v2688 = vadd.f32 %v2624, %v2550
      %v2689 = vadd.f32 %v2625, %v2552
      %v2690 = vadd.f32 %v2626, %v2554
      %v2691 = vadd.f32 %v2627, %v2556
      %v2692 = vadd.f32 %v2628, %v2560
      %v2693 = vadd.f32 %v2629, %v2562
      %v2694 = vadd.f32 %v2630, %v2564
      %v2695 = vadd.f32 %v2631, %v2566
      %v2696 = vpack.c.bf16 %v2634, %v2632
      %v2697 = vpack.c.bf16 %v2635, %v2633
      %v2698 = vpack.c.bf16 %v2638, %v2636
      %v2699 = vpack.c.bf16 %v2639, %v2637
      %v2700 = vpack.c.bf16 %v2642, %v2640
      %v2701 = vpack.c.bf16 %v2643, %v2641
      %v2702 = vpack.c.bf16 %v2646, %v2644
      %v2703 = vpack.c.bf16 %v2647, %v2645
      %v2704 = vpack.c.bf16 %v2650, %v2648
      %v2705 = vpack.c.bf16 %v2651, %v2649
      %v2706 = vpack.c.bf16 %v2654, %v2652
      %v2707 = vpack.c.bf16 %v2655, %v2653
      %v2708 = vpack.c.bf16 %v2658, %v2656
      %v2709 = vpack.c.bf16 %v2659, %v2657
      %v2710 = vpack.c.bf16 %v2662, %v2660
      %v2711 = vpack.c.bf16 %v2663, %v2661
      %v2712 = vpack.c.bf16 %v2666, %v2664
      %v2713 = vpack.c.bf16 %v2667, %v2665
      %v2714 = vpack.c.bf16 %v2670, %v2668
      %v2715 = vpack.c.bf16 %v2671, %v2669
      %v2716 = vpack.c.bf16 %v2674, %v2672
      %v2717 = vpack.c.bf16 %v2675, %v2673
      %v2718 = vpack.c.bf16 %v2678, %v2676
      %v2719 = vpack.c.bf16 %v2679, %v2677
      %v2720 = vpack.c.bf16 %v2682, %v2680
      %v2721 = vpack.c.bf16 %v2683, %v2681
      %v2722 = vpack.c.bf16 %v2686, %v2684
      %v2723 = vpack.c.bf16 %v2687, %v2685
      %v2724 = vpack.c.bf16 %v2690, %v2688
      %v2725 = vpack.c.bf16 %v2691, %v2689
      %v2726 = vpack.c.bf16 %v2694, %v2692
      %v2727 = vpack.c.bf16 %v2695, %v2693
      %v2760 = vunpack.c.l.b16 %v2696
      %v2761 = vunpack.c.l.b16 %v2697
      %v2762 = vunpack.c.h.b16 %v2696
      %v2763 = vunpack.c.h.b16 %v2697
      %v2764 = vunpack.c.l.b16 %v2698
      %v2765 = vunpack.c.l.b16 %v2699
      %v2766 = vunpack.c.h.b16 %v2698
      %v2767 = vunpack.c.h.b16 %v2699
      %v2768 = vunpack.c.l.b16 %v2700
      %v2769 = vunpack.c.l.b16 %v2701
      %v2770 = vunpack.c.h.b16 %v2700
      %v2771 = vunpack.c.h.b16 %v2701
      %v2772 = vunpack.c.l.b16 %v2702
      %v2773 = vunpack.c.l.b16 %v2703
      %v2774 = vunpack.c.h.b16 %v2702
      %v2775 = vunpack.c.h.b16 %v2703
      %v2776 = vunpack.c.l.b16 %v2704
      %v2777 = vunpack.c.l.b16 %v2705
      %v2778 = vunpack.c.h.b16 %v2704
      %v2779 = vunpack.c.h.b16 %v2705
      %v2780 = vunpack.c.l.b16 %v2706
      %v2781 = vunpack.c.l.b16 %v2707
      %v2782 = vunpack.c.h.b16 %v2706
      %v2783 = vunpack.c.h.b16 %v2707
      %v2784 = vunpack.c.l.b16 %v2708
      %v2785 = vunpack.c.l.b16 %v2709
      %v2786 = vunpack.c.h.b16 %v2708
      %v2787 = vunpack.c.h.b16 %v2709
      %v2788 = vunpack.c.l.b16 %v2710
      %v2789 = vunpack.c.l.b16 %v2711
      %v2790 = vunpack.c.h.b16 %v2710
      %v2791 = vunpack.c.h.b16 %v2711
      %v2792 = vunpack.c.l.b16 %v2712
      %v2793 = vunpack.c.l.b16 %v2713
      %v2794 = vunpack.c.h.b16 %v2712
      %v2795 = vunpack.c.h.b16 %v2713
      %v2796 = vunpack.c.l.b16 %v2714
      %v2797 = vunpack.c.l.b16 %v2715
      %v2798 = vunpack.c.h.b16 %v2714
      %v2799 = vunpack.c.h.b16 %v2715
      %v2800 = vunpack.c.l.b16 %v2716
      %v2801 = vunpack.c.l.b16 %v2717
      %v2802 = vunpack.c.h.b16 %v2716
      %v2803 = vunpack.c.h.b16 %v2717
      %v2804 = vunpack.c.l.b16 %v2718
      %v2805 = vunpack.c.l.b16 %v2719
      %v2806 = vunpack.c.h.b16 %v2718
      %v2807 = vunpack.c.h.b16 %v2719
      %v2808 = vunpack.c.l.b16 %v2720
      %v2809 = vunpack.c.l.b16 %v2721
      %v2810 = vunpack.c.h.b16 %v2720
      %v2811 = vunpack.c.h.b16 %v2721
      %v2812 = vunpack.c.l.b16 %v2722
      %v2813 = vunpack.c.l.b16 %v2723
      %v2814 = vunpack.c.h.b16 %v2722
      %v2815 = vunpack.c.h.b16 %v2723
      %v2816 = vunpack.c.l.b16 %v2724
      %v2817 = vunpack.c.l.b16 %v2725
      %v2818 = vunpack.c.h.b16 %v2724
      %v2819 = vunpack.c.h.b16 %v2725
      %v2820 = vunpack.c.l.b16 %v2726
      %v2821 = vunpack.c.l.b16 %v2727
      %v2822 = vunpack.c.h.b16 %v2726
      %v2823 = vunpack.c.h.b16 %v2727
      %v2824 = vpack.c.b16 %v2761, %v2760
      %v2825 = vpack.c.b16 %v2763, %v2762
      %v2826 = vpack.c.b16 %v2765, %v2764
      %v2827 = vpack.c.b16 %v2767, %v2766
      %v2828 = vpack.c.b16 %v2769, %v2768
      %v2829 = vpack.c.b16 %v2771, %v2770
      %v2830 = vpack.c.b16 %v2773, %v2772
      %v2831 = vpack.c.b16 %v2775, %v2774
      %v2832 = vpack.c.b16 %v2777, %v2776
      %v2833 = vpack.c.b16 %v2779, %v2778
      %v2834 = vpack.c.b16 %v2781, %v2780
      %v2835 = vpack.c.b16 %v2783, %v2782
      %v2836 = vpack.c.b16 %v2785, %v2784
      %v2837 = vpack.c.b16 %v2787, %v2786
      %v2838 = vpack.c.b16 %v2789, %v2788
      %v2839 = vpack.c.b16 %v2791, %v2790
      %v2840 = vpack.c.b16 %v2793, %v2792
      %v2841 = vpack.c.b16 %v2795, %v2794
      %v2842 = vpack.c.b16 %v2797, %v2796
      %v2843 = vpack.c.b16 %v2799, %v2798
      %v2844 = vpack.c.b16 %v2801, %v2800
      %v2845 = vpack.c.b16 %v2803, %v2802
      %v2846 = vpack.c.b16 %v2805, %v2804
      %v2847 = vpack.c.b16 %v2807, %v2806
      %v2848 = vpack.c.b16 %v2809, %v2808
      %v2849 = vpack.c.b16 %v2811, %v2810
      %v2850 = vpack.c.b16 %v2813, %v2812
      %v2851 = vpack.c.b16 %v2815, %v2814
      %v2852 = vpack.c.b16 %v2817, %v2816
      %v2853 = vpack.c.b16 %v2819, %v2818
      %v2854 = vpack.c.b16 %v2821, %v2820
      %v2855 = vpack.c.b16 %v2823, %v2822
      %2888 = vst [vmem:[%s224] sm:$0xff] %v2824
      %2889 = vst [vmem:[%s224 + $0x8] sm:$0xff] %v2825
      %2890 = vst [vmem:[%s224 + $0x10] sm:$0xff] %v2826
      %2891 = vst [vmem:[%s224 + $0x18] sm:$0xff] %v2827
      %2892 = vst [vmem:[%s224 + $0x20] sm:$0xff] %v2828
      %2893 = vst [vmem:[%s224 + $0x28] sm:$0xff] %v2829
      %2894 = vst [vmem:[%s224 + $0x30] sm:$0xff] %v2830
      %2895 = vst [vmem:[%s224 + $0x38] sm:$0xff] %v2831
      %2896 = vst [vmem:[%s224 + $0x40] sm:$0xff] %v2832
      %2897 = vst [vmem:[%s224 + $0x48] sm:$0xff] %v2833
      %2898 = vst [vmem:[%s224 + $0x50] sm:$0xff] %v2834
      %2899 = vst [vmem:[%s224 + $0x58] sm:$0xff] %v2835
      %2900 = vst [vmem:[%s224 + $0x60] sm:$0xff] %v2836
      %2901 = vst [vmem:[%s224 + $0x68] sm:$0xff] %v2837
      %2902 = vst [vmem:[%s224 + $0x70] sm:$0xff] %v2838
      %2903 = vst [vmem:[%s224 + $0x78] sm:$0xff] %v2839
      %2904 = vst [vmem:[%s224 + $0x80] sm:$0xff] %v2840
      %2905 = vst [vmem:[%s224 + $0x88] sm:$0xff] %v2841
      %2906 = vst [vmem:[%s224 + $0x90] sm:$0xff] %v2842
      %2907 = vst [vmem:[%s224 + $0x98] sm:$0xff] %v2843
      %2908 = vst [vmem:[%s224 + $0xa0] sm:$0xff] %v2844
      %2909 = vst [vmem:[%s224 + $0xa8] sm:$0xff] %v2845
      %2910 = vst [vmem:[%s224 + $0xb0] sm:$0xff] %v2846
      %2911 = vst [vmem:[%s224 + $0xb8] sm:$0xff] %v2847
      %2912 = vst [vmem:[%s224 + $0xc0] sm:$0xff] %v2848
      %2913 = vst [vmem:[%s224 + $0xc8] sm:$0xff] %v2849
      %2914 = vst [vmem:[%s224 + $0xd0] sm:$0xff] %v2850
      %2915 = vst [vmem:[%s224 + $0xd8] sm:$0xff] %v2851
      %2916 = vst [vmem:[%s224 + $0xe0] sm:$0xff] %v2852
      %2917 = vst [vmem:[%s224 + $0xe8] sm:$0xff] %v2853
      %2918 = vst [vmem:[%s224 + $0xf0] sm:$0xff] %v2854
      %2919 = vst [vmem:[%s224 + $0xf8] sm:$0xff] %v2855
      %p2920 = scmp.lt.s32.totalorder %s16, 1
      %s2921 = scalar_select %p2920, %s16, 1
      %s2922 = smul.addr %s2921, 64
      %s2923 = smul.addr %s2922, 4
      %s2924 = scalar_lea.vmem %s5, %s2923
      // Predicated region
      $region41: #{forward.14} parent=39 // pred_check
        %p2925 = pneg %p144
      $region42: #{forward.14} parent=39 // pred_check_branch
        %2927 = sbr.rel (%p2925) target = $region44
      $region43: #{forward.14} parent=39 // pred_region
        _
      $region44: #{forward.14} parent=39 // pred_fallthru
        _
    $region40: #{forward.14} parent=5 // pred_fallthru
      _
    %p2928 = scmp.le.s32.totalorder 2, %s11
    // Predicated region
    $region45: #{forward.14} parent=5 // pred_check
      %p2929 = pneg %p2928
    $region46: #{forward.14} parent=5 // pred_check_branch
      %2931 = sbr.rel (%p2929) target = $region48
    $region47: #{forward.14} parent=5 // pred_region
      %s2932 = ssub.s32 %s11, 2
      // Predicated region
      $region49: #{forward.14} parent=47 // pred_check
        %p2933 = pneg %p150
      $region50: #{forward.14} parent=47 // pred_check_branch
        %2935 = sbr.rel (%p2933) target = $region52
      $region51: #{forward.14} parent=47 // pred_region
        %p2936 = scmp.lt.s32.totalorder %s17, 1
        %s2937 = scalar_select %p2936, %s17, 1
        %s2938 = smul.addr %s2937, 64
        %s2939 = smul.addr %s2938, 4
        %s2940 = scalar_lea.vmem %s5, %s2939
      $region52: #{forward.14} parent=47 // pred_fallthru
        _
    $region48: #{forward.14} parent=5 // pred_fallthru
      _
  $region6: #{forward.14} parent=0 // loop_footer
    %s15 = sadd.s32 1, %s11
  $region7: #{forward.14} parent=0 // loop_footer_branch
    %10 = sbr.rel target = $region3
  $region8: #{forward.14} parent=0 // loop_exit
    _

</llo_original>
